<compile_context>
chip_gen: v7x
topology: tpu7x:2x2x1
jax: 0.10.0
libtpu: 0.0.40
codegen_flags: <defaults>
</compile_context>

<pallas_src>
import jax
import jax.numpy as jnp
from jax.experimental import pallas as pl
from jax.experimental.pallas import tpu as pltpu


# ---------------------------------------------------------------------------
# Layer 1: ConvTranspose2d(nz, C1, 4, stride=1, pad=0) on a 1x1 input == dense matmul
# ---------------------------------------------------------------------------
def dense_pallas(x, w):
    """x: (N, K) bf16, w: (K, M) bf16 -> (N, M) f32 (single-block MXU matmul)."""
    n = x.shape[0]
    m = w.shape[1]

    def kernel(x_ref, w_ref, o_ref):
        o_ref[...] = jnp.dot(x_ref[...], w_ref[...],
                             preferred_element_type=jnp.float32)

    return pl.pallas_call(
        kernel, out_shape=jax.ShapeDtypeStruct((n, m), jnp.float32))(x, w)


# ---------------------------------------------------------------------------
# Layers 2-5: fused [BN-scale + ReLU] + phase-decomposed stride-2 ConvTranspose2d
# ---------------------------------------------------------------------------
def phase_convt_pallas(xp, wp, *, apply_tanh):
    """xp: (N, H+2, W+2, Cin) bf16  -- (x - batch_mean), zero halo-padded by 1.
       wp: (4, 4*Cin, Cout)   bf16  -- per-phase im2col weights, inv_std folded in.
       Returns (N, 2H, 2W, Cout) f32 = ConvTranspose2d_{k=4,s=2,p=1}(relu((x-mean)*inv_std)),
       optionally followed by tanh."""
    N, Hp, Wp, Cin = xp.shape
    H, W = Hp - 2, Wp - 2
    Cout = wp.shape[2]

    def kernel(x_ref, w_ref, o_ref):
        # Fused BatchNorm (scale folded into the weights) + ReLU.
        # Halo zeros stay zero, matching ConvTranspose padding semantics.
        xv = jnp.maximum(x_ref[0], 0)                         # (Hp, Wp, Cin) bf16
        rows = []
        for ph in range(2):                                   # output-row phase
            cols = []
            for pw in range(2):                               # output-col phase
                # im2col over this phase's 2x2 taps: M = H*W, K = 4*Cin
                patch = jnp.concatenate(
                    [xv[ph + di:ph + di + H, pw + dj:pw + dj + W, :]
                     for di in range(2) for dj in range(2)], axis=-1)
                patch = patch.reshape(H * W, 4 * Cin)
                cols.append(jnp.dot(patch, w_ref[2 * ph + pw],
                                    preferred_element_type=jnp.float32))
            # pack the two width-phases along lanes: (H*W, 2*Cout) -> (H, W, 2*Cout)
            rows.append(jnp.concatenate(cols, axis=-1).reshape(H, W, 2 * Cout))
        # interleave the two height-phases: (H, 2, W, 2*Cout) -> (2H, W, 2*Cout)
        full = jnp.stack(rows, axis=1).reshape(2 * H, W, 2 * Cout)
        if apply_tanh:
            full = jnp.tanh(full)                             # fused final Tanh
        o_ref[0] = full.astype(o_ref.dtype)

    out = pl.pallas_call(
        kernel,
        out_shape=jax.ShapeDtypeStruct((N, 2 * H, W, 2 * Cout), jnp.float32),
        grid_spec=pltpu.PrefetchScalarGridSpec(
            num_scalar_prefetch=0,
            grid=(N,),
            in_specs=[
                pl.BlockSpec((1, Hp, Wp, Cin), lambda n: (n, 0, 0, 0)),
                pl.BlockSpec((4, 4 * Cin, Cout), lambda n: (0, 0, 0)),  # resident
            ],
            out_specs=pl.BlockSpec((1, 2 * H, W, 2 * Cout), lambda n: (n, 0, 0, 0)),
        ),
        compiler_params=pltpu.CompilerParams(
            dimension_semantics=("parallel",),
            vmem_limit_bytes=48 * 1024 * 1024),   # explicit budget (fits v7x's 64 MiB)
    )(xp, wp)
    # free (contiguous) reshape: (N, 2H, W, 2, Cout) row-major == (N, 2H, 2W, Cout)
    return out.reshape(N, 2 * H, 2 * W, Cout)


# ---------------------------------------------------------------------------
# Weight preparation (plain-JAX glue, tiny)
# ---------------------------------------------------------------------------
def _phase_weights(wt):
    """PyTorch ConvTranspose2d weight (Cin, Cout, 4, 4) -> (4, 4*Cin, Cout).
       Phase p = 2*ph + pw; rows ordered (tap(di,dj), ci) to match the kernel im2col."""
    wf = jnp.transpose(wt[:, :, ::-1, ::-1], (2, 3, 0, 1))       # flipped HWIO
    phases = []
    for ph in range(2):
        for pw in range(2):
            taps = [wf[ph + 2 * di, pw + 2 * dj]                 # (Cin, Cout)
                    for di in range(2) for dj in range(2)]
            phases.append(jnp.concatenate(taps, axis=0))         # (4*Cin, Cout)
    return jnp.stack(phases, axis=0)                             # (4, 4*Cin, Cout)


# ---------------------------------------------------------------------------
# Generator forward (matches the PyTorch nn.Sequential)
# ---------------------------------------------------------------------------
def generator_forward(x_nchw, weights, eps=1e-5):
    """x_nchw: (N, nz, 1, 1) -> (N, nc, 64, 64)."""
    # TODO(synk): eval-mode BatchNorm (running stats + learned affine) is not modelled;
    #             like the fresh PyTorch module this uses batch statistics, gamma=1, beta=0.
    N, nz = x_nchw.shape[0], x_nchw.shape[1]

    # --- layer 1: 1x1 -> 4x4, stride 1, pad 0: a single dense matmul -----------
    wt0 = weights[0]                                     # (nz, C1, 4, 4)
    C1 = wt0.shape[1]
    wm = jnp.transpose(wt0, (0, 2, 3, 1)).reshape(nz, 16 * C1)
    a = dense_pallas(x_nchw.reshape(N, nz).astype(jnp.bfloat16),
                     wm.astype(jnp.bfloat16)).reshape(N, 4, 4, C1)

    # --- layers 2-5: fused BN+ReLU + phase-decomposed stride-2 ConvTranspose ---
    n_up = len(weights) - 1
    for i, wt in enumerate(weights[1:]):
        # training-mode batch statistics (cheap plain-XLA reduction)
        mean = jnp.mean(a, axis=(0, 1, 2))
        var = jnp.maximum(jnp.mean(jnp.square(a), axis=(0, 1, 2)) - mean * mean, 0.0)
        inv_std = jax.lax.rsqrt(var + eps)
        # center + zero halo-pad (XLA fuses subtract into the pad); ReLU runs inside
        # the conv kernel and inv_std is folded into the weights (ReLU(s*x)=s*ReLU(x), s>0).
        xp = jnp.pad((a - mean).astype(jnp.bfloat16),
                     ((0, 0), (1, 1), (1, 1), (0, 0)))
        wp = _phase_weights(wt) * jnp.tile(inv_std, 4)[None, :, None]
        a = phase_convt_pallas(xp, wp.astype(jnp.bfloat16),
                               apply_tanh=(i == n_up - 1))
    return jnp.transpose(a, (0, 3, 1, 2))                # NHWC -> NCHW


# ---------------------------------------------------------------------------
# Pure-XLA reference (for the numeric self-check)
# ---------------------------------------------------------------------------
def _ref_forward(x_nchw, weights, eps=1e-5):
    x = jnp.transpose(x_nchw, (0, 2, 3, 1))
    cfg = [(1, 0), (2, 1), (2, 1), (2, 1), (2, 1)]
    for i, (wt, (s, p)) in enumerate(zip(weights, cfg)):
        w_hwio = jnp.transpose(wt[:, :, ::-1, ::-1], (2, 3, 0, 1))
        k = wt.shape[-1]
        x = jax.lax.conv_general_dilated(
            x, w_hwio, window_strides=(1, 1),
            padding=[(k - 1 - p, k - 1 - p)] * 2,
            lhs_dilation=(s, s),
            dimension_numbers=("NHWC", "HWIO", "NHWC"))
        if i < len(weights) - 1:
            mean = jnp.mean(x, axis=(0, 1, 2))
            var = jnp.mean(jnp.square(x - mean), axis=(0, 1, 2))
            x = jnp.maximum((x - mean) * jax.lax.rsqrt(var + eps), 0.0)
        else:
            x = jnp.tanh(x)
    return jnp.transpose(x, (0, 3, 1, 2))


if __name__ == "__main__":
    # Small, shape-consistent config: nz=16, ngf=8, nc=3, batch=2.
    nz, ngf, nc, N = 16, 8, 3, 2

    key = jax.random.PRNGKey(0)
    ks = jax.random.split(key, 6)

    # ConvTranspose2d weights (Cin, Cout, 4, 4), DCGAN-style N(0, 0.02) init, no bias.
    chans = [nz, ngf * 8, ngf * 4, ngf * 2, ngf, nc]
    weights = [0.02 * jax.random.normal(ks[i], (chans[i], chans[i + 1], 4, 4),
                                        jnp.float32) for i in range(5)]
    x = jax.random.normal(ks[5], (N, nz, 1, 1), jnp.float32)

    out = jax.block_until_ready(jax.jit(generator_forward)(x, weights))
    assert out.shape == (N, nc, 64, 64), out.shape
    assert bool(jnp.all(jnp.isfinite(out)))

    # numeric self-check vs. pure XLA (bf16 matmuls -> loose relative tolerance)
    ref = jax.block_until_ready(jax.jit(_ref_forward)(x, weights))
    err = float(jnp.max(jnp.abs(out - ref)))
    scale = float(jnp.max(jnp.abs(ref))) + 1e-6
    assert err <= 0.25 * scale, (err, scale)

    print("KERNEL_OK")
</pallas_src>

<mosaic_0001>
module attributes {stable_mosaic.version = 11 : i64} {
  func.func @kernel(%arg0: memref<2x16xbf16, #tpu.memory_space<vmem>>, %arg1: memref<16x1024xbf16, #tpu.memory_space<vmem>>, %arg2: memref<2x1024xf32, #tpu.memory_space<vmem>>) attributes {dimension_semantics = [], scalar_prefetch = 0 : i64, scratch_operands = 0 : i64, tpu.core_type = #tpu.core_type<tc>} {
    %c0 = arith.constant 0 : index
    %c0_0 = arith.constant 0 : index
    %0 = vector.load %arg0[%c0, %c0_0] : memref<2x16xbf16, #tpu.memory_space<vmem>>, vector<2x16xbf16>
    %c0_1 = arith.constant 0 : index
    %c0_2 = arith.constant 0 : index
    %1 = vector.load %arg1[%c0_1, %c0_2] : memref<16x1024xbf16, #tpu.memory_space<vmem>>, vector<16x1024xbf16>
    %cst = arith.constant dense<0.000000e+00> : vector<2x1024xf32>
    %2 = tpu.matmul %0, %1, %cst {dimension_numbers = #tpu.dot_dimension_numbers<[1], [0], [0], [1], [0, 0, 1, 1], [], []>} : vector<2x16xbf16>, vector<16x1024xbf16>, vector<2x1024xf32> -> vector<2x1024xf32>
    %c0_3 = arith.constant 0 : index
    %c0_4 = arith.constant 0 : index
    %3 = vector.load %arg2[%c0_3, %c0_4] : memref<2x1024xf32, #tpu.memory_space<vmem>>, vector<2x1024xf32>
    tpu.vector_store %arg2[%c0_3, %c0_4], %2 {strides = array<i32>} : memref<2x1024xf32, #tpu.memory_space<vmem>>, vector<2x1024xf32>,
    return
  }
}

module attributes {stable_mosaic.version = 11 : i64} {
  func.func @kernel(%arg0: i32, %arg1: memref<1x6x6x64xbf16, #tpu.memory_space<vmem>>, %arg2: memref<4x256x32xbf16, #tpu.memory_space<vmem>>, %arg3: memref<1x8x4x64xf32, #tpu.memory_space<vmem>>) attributes {dimension_semantics = [#tpu.dimension_semantics<parallel>], iteration_bounds = array<i64: 2>, scalar_prefetch = 0 : i64, scratch_operands = 0 : i64, tpu.core_type = #tpu.core_type<tc>, window_params = [{transform_indices = @transform_0, window_bounds = array<i64: 1, 6, 6, 64>}, {pipeline_mode = #tpu.pipeline_mode<synchronous>, transform_indices = @transform_1, window_bounds = array<i64: 4, 256, 32>}, {transform_indices = @transform_2, window_bounds = array<i64: 1, 8, 4, 64>}]} {
    %c0 = arith.constant 0 : index
    %c0_0 = arith.constant 0 : index
    %c0_1 = arith.constant 0 : index
    %c0_2 = arith.constant 0 : index
    %0 = vector.load %arg1[%c0, %c0_0, %c0_1, %c0_2] : memref<1x6x6x64xbf16, #tpu.memory_space<vmem>>, vector<1x6x6x64xbf16>
    %1 = vector.shape_cast %0 : vector<1x6x6x64xbf16> to vector<6x6x64xbf16>
    %cst = arith.constant 0.000000e+00 : bf16
    %2 = vector.broadcast %cst : bf16 to vector<6x6x64xbf16>
    %3 = arith.maximumf %1, %2 : vector<6x6x64xbf16>
    %4 = vector.extract_strided_slice %3 {offsets = [0, 0, 0], sizes = [4, 4, 64], strides = [1, 1, 1]} : vector<6x6x64xbf16> to vector<4x4x64xbf16>
    %5 = vector.extract_strided_slice %3 {offsets = [0, 1, 0], sizes = [4, 4, 64], strides = [1, 1, 1]} : vector<6x6x64xbf16> to vector<4x4x64xbf16>
    %6 = vector.extract_strided_slice %3 {offsets = [1, 0, 0], sizes = [4, 4, 64], strides = [1, 1, 1]} : vector<6x6x64xbf16> to vector<4x4x64xbf16>
    %7 = vector.extract_strided_slice %3 {offsets = [1, 1, 0], sizes = [4, 4, 64], strides = [1, 1, 1]} : vector<6x6x64xbf16> to vector<4x4x64xbf16>
    %8 = tpu.concatenate %4, %5, %6, %7 in 2 : vector<4x4x64xbf16>, vector<4x4x64xbf16>, vector<4x4x64xbf16>, vector<4x4x64xbf16> -> vector<4x4x256xbf16>
    %9 = vector.shape_cast %8 : vector<4x4x256xbf16> to vector<16x256xbf16>
    %c0_3 = arith.constant 0 : index
    %c0_4 = arith.constant 0 : index
    %c0_5 = arith.constant 0 : index
    %10 = vector.load %arg2[%c0_3, %c0_4, %c0_5] : memref<4x256x32xbf16, #tpu.memory_space<vmem>>, vector<1x256x32xbf16>
    %11 = vector.shape_cast %10 : vector<1x256x32xbf16> to vector<256x32xbf16>
    %cst_6 = arith.constant dense<0.000000e+00> : vector<16x32xf32>
    %12 = tpu.matmul %9, %11, %cst_6 {dimension_numbers = #tpu.dot_dimension_numbers<[1], [0], [0], [1], [0, 0, 1, 1], [], []>} : vector<16x256xbf16>, vector<256x32xbf16>, vector<16x32xf32> -> vector<16x32xf32>
    %13 = vector.extract_strided_slice %3 {offsets = [0, 1, 0], sizes = [4, 4, 64], strides = [1, 1, 1]} : vector<6x6x64xbf16> to vector<4x4x64xbf16>
    %14 = vector.extract_strided_slice %3 {offsets = [0, 2, 0], sizes = [4, 4, 64], strides = [1, 1, 1]} : vector<6x6x64xbf16> to vector<4x4x64xbf16>
    %15 = vector.extract_strided_slice %3 {offsets = [1, 1, 0], sizes = [4, 4, 64], strides = [1, 1, 1]} : vector<6x6x64xbf16> to vector<4x4x64xbf16>
    %16 = vector.extract_strided_slice %3 {offsets = [1, 2, 0], sizes = [4, 4, 64], strides = [1, 1, 1]} : vector<6x6x64xbf16> to vector<4x4x64xbf16>
    %17 = tpu.concatenate %13, %14, %15, %16 in 2 : vector<4x4x64xbf16>, vector<4x4x64xbf16>, vector<4x4x64xbf16>, vector<4x4x64xbf16> -> vector<4x4x256xbf16>
    %18 = vector.shape_cast %17 : vector<4x4x256xbf16> to vector<16x256xbf16>
    %c1 = arith.constant 1 : index
    %c0_7 = arith.constant 0 : index
    %c0_8 = arith.constant 0 : index
    %19 = vector.load %arg2[%c1, %c0_7, %c0_8] : memref<4x256x32xbf16, #tpu.memory_space<vmem>>, vector<1x256x32xbf16>
    %20 = vector.shape_cast %19 : vector<1x256x32xbf16> to vector<256x32xbf16>
    %cst_9 = arith.constant dense<0.000000e+00> : vector<16x32xf32>
    %21 = tpu.matmul %18, %20, %cst_9 {dimension_numbers = #tpu.dot_dimension_numbers<[1], [0], [0], [1], [0, 0, 1, 1], [], []>} : vector<16x256xbf16>, vector<256x32xbf16>, vector<16x32xf32> -> vector<16x32xf32>
    %22 = tpu.concatenate %12, %21 in 1 : vector<16x32xf32>, vector<16x32xf32> -> vector<16x64xf32>
    %23 = vector.shape_cast %22 : vector<16x64xf32> to vector<4x4x64xf32>
    %24 = vector.extract_strided_slice %3 {offsets = [1, 0, 0], sizes = [4, 4, 64], strides = [1, 1, 1]} : vector<6x6x64xbf16> to vector<4x4x64xbf16>
    %25 = vector.extract_strided_slice %3 {offsets = [1, 1, 0], sizes = [4, 4, 64], strides = [1, 1, 1]} : vector<6x6x64xbf16> to vector<4x4x64xbf16>
    %26 = vector.extract_strided_slice %3 {offsets = [2, 0, 0], sizes = [4, 4, 64], strides = [1, 1, 1]} : vector<6x6x64xbf16> to vector<4x4x64xbf16>
    %27 = vector.extract_strided_slice %3 {offsets = [2, 1, 0], sizes = [4, 4, 64], strides = [1, 1, 1]} : vector<6x6x64xbf16> to vector<4x4x64xbf16>
    %28 = tpu.concatenate %24, %25, %26, %27 in 2 : vector<4x4x64xbf16>, vector<4x4x64xbf16>, vector<4x4x64xbf16>, vector<4x4x64xbf16> -> vector<4x4x256xbf16>
    %29 = vector.shape_cast %28 : vector<4x4x256xbf16> to vector<16x256xbf16>
    %c2 = arith.constant 2 : index
    %c0_10 = arith.constant 0 : index
    %c0_11 = arith.constant 0 : index
    %30 = vector.load %arg2[%c2, %c0_10, %c0_11] : memref<4x256x32xbf16, #tpu.memory_space<vmem>>, vector<1x256x32xbf16>
    %31 = vector.shape_cast %30 : vector<1x256x32xbf16> to vector<256x32xbf16>
    %cst_12 = arith.constant dense<0.000000e+00> : vector<16x32xf32>
    %32 = tpu.matmul %29, %31, %cst_12 {dimension_numbers = #tpu.dot_dimension_numbers<[1], [0], [0], [1], [0, 0, 1, 1], [], []>} : vector<16x256xbf16>, vector<256x32xbf16>, vector<16x32xf32> -> vector<16x32xf32>
    %33 = vector.extract_strided_slice %3 {offsets = [1, 1, 0], sizes = [4, 4, 64], strides = [1, 1, 1]} : vector<6x6x64xbf16> to vector<4x4x64xbf16>
    %34 = vector.extract_strided_slice %3 {offsets = [1, 2, 0], sizes = [4, 4, 64], strides = [1, 1, 1]} : vector<6x6x64xbf16> to vector<4x4x64xbf16>
    %35 = vector.extract_strided_slice %3 {offsets = [2, 1, 0], sizes = [4, 4, 64], strides = [1, 1, 1]} : vector<6x6x64xbf16> to vector<4x4x64xbf16>
    %36 = vector.extract_strided_slice %3 {offsets = [2, 2, 0], sizes = [4, 4, 64], strides = [1, 1, 1]} : vector<6x6x64xbf16> to vector<4x4x64xbf16>
    %37 = tpu.concatenate %33, %34, %35, %36 in 2 : vector<4x4x64xbf16>, vector<4x4x64xbf16>, vector<4x4x64xbf16>, vector<4x4x64xbf16> -> vector<4x4x256xbf16>
    %38 = vector.shape_cast %37 : vector<4x4x256xbf16> to vector<16x256xbf16>
    %c3 = arith.constant 3 : index
    %c0_13 = arith.constant 0 : index
    %c0_14 = arith.constant 0 : index
    %39 = vector.load %arg2[%c3, %c0_13, %c0_14] : memref<4x256x32xbf16, #tpu.memory_space<vmem>>, vector<1x256x32xbf16>
    %40 = vector.shape_cast %39 : vector<1x256x32xbf16> to vector<256x32xbf16>
    %cst_15 = arith.constant dense<0.000000e+00> : vector<16x32xf32>
    %41 = tpu.matmul %38, %40, %cst_15 {dimension_numbers = #tpu.dot_dimension_numbers<[1], [0], [0], [1], [0, 0, 1, 1], [], []>} : vector<16x256xbf16>, vector<256x32xbf16>, vector<16x32xf32> -> vector<16x32xf32>
    %42 = tpu.concatenate %32, %41 in 1 : vector<16x32xf32>, vector<16x32xf32> -> vector<16x64xf32>
    %43 = vector.shape_cast %42 : vector<16x64xf32> to vector<4x4x64xf32>
    %44 = vector.shape_cast %23 : vector<4x4x64xf32> to vector<4x1x4x64xf32>
    %45 = vector.shape_cast %43 : vector<4x4x64xf32> to vector<4x1x4x64xf32>
    %46 = tpu.concatenate %44, %45 in 1 : vector<4x1x4x64xf32>, vector<4x1x4x64xf32> -> vector<4x2x4x64xf32>
    %47 = vector.shape_cast %46 : vector<4x2x4x64xf32> to vector<8x4x64xf32>
    %c0_16 = arith.constant 0 : index
    %c0_17 = arith.constant 0 : index
    %c0_18 = arith.constant 0 : index
    %c0_19 = arith.constant 0 : index
    %48 = vector.load %arg3[%c0_16, %c0_17, %c0_18, %c0_19] : memref<1x8x4x64xf32, #tpu.memory_space<vmem>>, vector<1x8x4x64xf32>
    %49 = vector.shape_cast %48 : vector<1x8x4x64xf32> to vector<8x4x64xf32>
    %50 = vector.shape_cast %47 : vector<8x4x64xf32> to vector<1x8x4x64xf32>
    tpu.vector_store %arg3[%c0_16, %c0_17, %c0_18, %c0_19], %50 {strides = array<i32>} : memref<1x8x4x64xf32, #tpu.memory_space<vmem>>, vector<1x8x4x64xf32>,
    return
  }
  func.func @transform_0(%arg0: i32) -> (i32, i32, i32, i32) {
    %c0_i32 = arith.constant 0 : i32
    %c0_i32_0 = arith.constant 0 : i32
    %c0_i32_1 = arith.constant 0 : i32
    %c0_i32_2 = arith.constant 0 : i32
    return %arg0, %c0_i32, %c0_i32_0, %c0_i32_1 : i32, i32, i32, i32
  }
  func.func @transform_1(%arg0: i32) -> (i32, i32, i32) {
    %c0_i32 = arith.constant 0 : i32
    %c0_i32_0 = arith.constant 0 : i32
    %c0_i32_1 = arith.constant 0 : i32
    %c0_i32_2 = arith.constant 0 : i32
    return %c0_i32, %c0_i32_0, %c0_i32_1 : i32, i32, i32
  }
  func.func @transform_2(%arg0: i32) -> (i32, i32, i32, i32) {
    %c0_i32 = arith.constant 0 : i32
    %c0_i32_0 = arith.constant 0 : i32
    %c0_i32_1 = arith.constant 0 : i32
    %c0_i32_2 = arith.constant 0 : i32
    return %arg0, %c0_i32, %c0_i32_0, %c0_i32_1 : i32, i32, i32, i32
  }
}

module attributes {stable_mosaic.version = 11 : i64} {
  func.func @kernel(%arg0: i32, %arg1: memref<1x10x10x32xbf16, #tpu.memory_space<vmem>>, %arg2: memref<4x128x16xbf16, #tpu.memory_space<vmem>>, %arg3: memref<1x16x8x32xf32, #tpu.memory_space<vmem>>) attributes {dimension_semantics = [#tpu.dimension_semantics<parallel>], iteration_bounds = array<i64: 2>, scalar_prefetch = 0 : i64, scratch_operands = 0 : i64, tpu.core_type = #tpu.core_type<tc>, window_params = [{transform_indices = @transform_0, window_bounds = array<i64: 1, 10, 10, 32>}, {pipeline_mode = #tpu.pipeline_mode<synchronous>, transform_indices = @transform_1, window_bounds = array<i64: 4, 128, 16>}, {transform_indices = @transform_2, window_bounds = array<i64: 1, 16, 8, 32>}]} {
    %c0 = arith.constant 0 : index
    %c0_0 = arith.constant 0 : index
    %c0_1 = arith.constant 0 : index
    %c0_2 = arith.constant 0 : index
    %0 = vector.load %arg1[%c0, %c0_0, %c0_1, %c0_2] : memref<1x10x10x32xbf16, #tpu.memory_space<vmem>>, vector<1x10x10x32xbf16>
    %1 = vector.shape_cast %0 : vector<1x10x10x32xbf16> to vector<10x10x32xbf16>
    %cst = arith.constant 0.000000e+00 : bf16
    %2 = vector.broadcast %cst : bf16 to vector<10x10x32xbf16>
    %3 = arith.maximumf %1, %2 : vector<10x10x32xbf16>
    %4 = vector.extract_strided_slice %3 {offsets = [0, 0, 0], sizes = [8, 8, 32], strides = [1, 1, 1]} : vector<10x10x32xbf16> to vector<8x8x32xbf16>
    %5 = vector.extract_strided_slice %3 {offsets = [0, 1, 0], sizes = [8, 8, 32], strides = [1, 1, 1]} : vector<10x10x32xbf16> to vector<8x8x32xbf16>
    %6 = vector.extract_strided_slice %3 {offsets = [1, 0, 0], sizes = [8, 8, 32], strides = [1, 1, 1]} : vector<10x10x32xbf16> to vector<8x8x32xbf16>
    %7 = vector.extract_strided_slice %3 {offsets = [1, 1, 0], sizes = [8, 8, 32], strides = [1, 1, 1]} : vector<10x10x32xbf16> to vector<8x8x32xbf16>
    %8 = tpu.concatenate %4, %5, %6, %7 in 2 : vector<8x8x32xbf16>, vector<8x8x32xbf16>, vector<8x8x32xbf16>, vector<8x8x32xbf16> -> vector<8x8x128xbf16>
    %9 = vector.shape_cast %8 : vector<8x8x128xbf16> to vector<64x128xbf16>
    %c0_3 = arith.constant 0 : index
    %c0_4 = arith.constant 0 : index
    %c0_5 = arith.constant 0 : index
    %10 = vector.load %arg2[%c0_3, %c0_4, %c0_5] : memref<4x128x16xbf16, #tpu.memory_space<vmem>>, vector<1x128x16xbf16>
    %11 = vector.shape_cast %10 : vector<1x128x16xbf16> to vector<128x16xbf16>
    %cst_6 = arith.constant dense<0.000000e+00> : vector<64x16xf32>
    %12 = tpu.matmul %9, %11, %cst_6 {dimension_numbers = #tpu.dot_dimension_numbers<[1], [0], [0], [1], [0, 0, 1, 1], [], []>} : vector<64x128xbf16>, vector<128x16xbf16>, vector<64x16xf32> -> vector<64x16xf32>
    %13 = vector.extract_strided_slice %3 {offsets = [0, 1, 0], sizes = [8, 8, 32], strides = [1, 1, 1]} : vector<10x10x32xbf16> to vector<8x8x32xbf16>
    %14 = vector.extract_strided_slice %3 {offsets = [0, 2, 0], sizes = [8, 8, 32], strides = [1, 1, 1]} : vector<10x10x32xbf16> to vector<8x8x32xbf16>
    %15 = vector.extract_strided_slice %3 {offsets = [1, 1, 0], sizes = [8, 8, 32], strides = [1, 1, 1]} : vector<10x10x32xbf16> to vector<8x8x32xbf16>
    %16 = vector.extract_strided_slice %3 {offsets = [1, 2, 0], sizes = [8, 8, 32], strides = [1, 1, 1]} : vector<10x10x32xbf16> to vector<8x8x32xbf16>
    %17 = tpu.concatenate %13, %14, %15, %16 in 2 : vector<8x8x32xbf16>, vector<8x8x32xbf16>, vector<8x8x32xbf16>, vector<8x8x32xbf16> -> vector<8x8x128xbf16>
    %18 = vector.shape_cast %17 : vector<8x8x128xbf16> to vector<64x128xbf16>
    %c1 = arith.constant 1 : index
    %c0_7 = arith.constant 0 : index
    %c0_8 = arith.constant 0 : index
    %19 = vector.load %arg2[%c1, %c0_7, %c0_8] : memref<4x128x16xbf16, #tpu.memory_space<vmem>>, vector<1x128x16xbf16>
    %20 = vector.shape_cast %19 : vector<1x128x16xbf16> to vector<128x16xbf16>
    %cst_9 = arith.constant dense<0.000000e+00> : vector<64x16xf32>
    %21 = tpu.matmul %18, %20, %cst_9 {dimension_numbers = #tpu.dot_dimension_numbers<[1], [0], [0], [1], [0, 0, 1, 1], [], []>} : vector<64x128xbf16>, vector<128x16xbf16>, vector<64x16xf32> -> vector<64x16xf32>
    %22 = tpu.concatenate %12, %21 in 1 : vector<64x16xf32>, vector<64x16xf32> -> vector<64x32xf32>
    %23 = vector.shape_cast %22 : vector<64x32xf32> to vector<8x8x32xf32>
    %24 = vector.extract_strided_slice %3 {offsets = [1, 0, 0], sizes = [8, 8, 32], strides = [1, 1, 1]} : vector<10x10x32xbf16> to vector<8x8x32xbf16>
    %25 = vector.extract_strided_slice %3 {offsets = [1, 1, 0], sizes = [8, 8, 32], strides = [1, 1, 1]} : vector<10x10x32xbf16> to vector<8x8x32xbf16>
    %26 = vector.extract_strided_slice %3 {offsets = [2, 0, 0], sizes = [8, 8, 32], strides = [1, 1, 1]} : vector<10x10x32xbf16> to vector<8x8x32xbf16>
    %27 = vector.extract_strided_slice %3 {offsets = [2, 1, 0], sizes = [8, 8, 32], strides = [1, 1, 1]} : vector<10x10x32xbf16> to vector<8x8x32xbf16>
    %28 = tpu.concatenate %24, %25, %26, %27 in 2 : vector<8x8x32xbf16>, vector<8x8x32xbf16>, vector<8x8x32xbf16>, vector<8x8x32xbf16> -> vector<8x8x128xbf16>
    %29 = vector.shape_cast %28 : vector<8x8x128xbf16> to vector<64x128xbf16>
    %c2 = arith.constant 2 : index
    %c0_10 = arith.constant 0 : index
    %c0_11 = arith.constant 0 : index
    %30 = vector.load %arg2[%c2, %c0_10, %c0_11] : memref<4x128x16xbf16, #tpu.memory_space<vmem>>, vector<1x128x16xbf16>
    %31 = vector.shape_cast %30 : vector<1x128x16xbf16> to vector<128x16xbf16>
    %cst_12 = arith.constant dense<0.000000e+00> : vector<64x16xf32>
    %32 = tpu.matmul %29, %31, %cst_12 {dimension_numbers = #tpu.dot_dimension_numbers<[1], [0], [0], [1], [0, 0, 1, 1], [], []>} : vector<64x128xbf16>, vector<128x16xbf16>, vector<64x16xf32> -> vector<64x16xf32>
    %33 = vector.extract_strided_slice %3 {offsets = [1, 1, 0], sizes = [8, 8, 32], strides = [1, 1, 1]} : vector<10x10x32xbf16> to vector<8x8x32xbf16>
    %34 = vector.extract_strided_slice %3 {offsets = [1, 2, 0], sizes = [8, 8, 32], strides = [1, 1, 1]} : vector<10x10x32xbf16> to vector<8x8x32xbf16>
    %35 = vector.extract_strided_slice %3 {offsets = [2, 1, 0], sizes = [8, 8, 32], strides = [1, 1, 1]} : vector<10x10x32xbf16> to vector<8x8x32xbf16>
    %36 = vector.extract_strided_slice %3 {offsets = [2, 2, 0], sizes = [8, 8, 32], strides = [1, 1, 1]} : vector<10x10x32xbf16> to vector<8x8x32xbf16>
    %37 = tpu.concatenate %33, %34, %35, %36 in 2 : vector<8x8x32xbf16>, vector<8x8x32xbf16>, vector<8x8x32xbf16>, vector<8x8x32xbf16> -> vector<8x8x128xbf16>
    %38 = vector.shape_cast %37 : vector<8x8x128xbf16> to vector<64x128xbf16>
    %c3 = arith.constant 3 : index
    %c0_13 = arith.constant 0 : index
    %c0_14 = arith.constant 0 : index
    %39 = vector.load %arg2[%c3, %c0_13, %c0_14] : memref<4x128x16xbf16, #tpu.memory_space<vmem>>, vector<1x128x16xbf16>
    %40 = vector.shape_cast %39 : vector<1x128x16xbf16> to vector<128x16xbf16>
    %cst_15 = arith.constant dense<0.000000e+00> : vector<64x16xf32>
    %41 = tpu.matmul %38, %40, %cst_15 {dimension_numbers = #tpu.dot_dimension_numbers<[1], [0], [0], [1], [0, 0, 1, 1], [], []>} : vector<64x128xbf16>, vector<128x16xbf16>, vector<64x16xf32> -> vector<64x16xf32>
    %42 = tpu.concatenate %32, %41 in 1 : vector<64x16xf32>, vector<64x16xf32> -> vector<64x32xf32>
    %43 = vector.shape_cast %42 : vector<64x32xf32> to vector<8x8x32xf32>
    %44 = vector.shape_cast %23 : vector<8x8x32xf32> to vector<8x1x8x32xf32>
    %45 = vector.shape_cast %43 : vector<8x8x32xf32> to vector<8x1x8x32xf32>
    %46 = tpu.concatenate %44, %45 in 1 : vector<8x1x8x32xf32>, vector<8x1x8x32xf32> -> vector<8x2x8x32xf32>
    %47 = vector.shape_cast %46 : vector<8x2x8x32xf32> to vector<16x8x32xf32>
    %c0_16 = arith.constant 0 : index
    %c0_17 = arith.constant 0 : index
    %c0_18 = arith.constant 0 : index
    %c0_19 = arith.constant 0 : index
    %48 = vector.load %arg3[%c0_16, %c0_17, %c0_18, %c0_19] : memref<1x16x8x32xf32, #tpu.memory_space<vmem>>, vector<1x16x8x32xf32>
    %49 = vector.shape_cast %48 : vector<1x16x8x32xf32> to vector<16x8x32xf32>
    %50 = vector.shape_cast %47 : vector<16x8x32xf32> to vector<1x16x8x32xf32>
    tpu.vector_store %arg3[%c0_16, %c0_17, %c0_18, %c0_19], %50 {strides = array<i32>} : memref<1x16x8x32xf32, #tpu.memory_space<vmem>>, vector<1x16x8x32xf32>,
    return
  }
  func.func @transform_0(%arg0: i32) -> (i32, i32, i32, i32) {
    %c0_i32 = arith.constant 0 : i32
    %c0_i32_0 = arith.constant 0 : i32
    %c0_i32_1 = arith.constant 0 : i32
    %c0_i32_2 = arith.constant 0 : i32
    return %arg0, %c0_i32, %c0_i32_0, %c0_i32_1 : i32, i32, i32, i32
  }
  func.func @transform_1(%arg0: i32) -> (i32, i32, i32) {
    %c0_i32 = arith.constant 0 : i32
    %c0_i32_0 = arith.constant 0 : i32
    %c0_i32_1 = arith.constant 0 : i32
    %c0_i32_2 = arith.constant 0 : i32
    return %c0_i32, %c0_i32_0, %c0_i32_1 : i32, i32, i32
  }
  func.func @transform_2(%arg0: i32) -> (i32, i32, i32, i32) {
    %c0_i32 = arith.constant 0 : i32
    %c0_i32_0 = arith.constant 0 : i32
    %c0_i32_1 = arith.constant 0 : i32
    %c0_i32_2 = arith.constant 0 : i32
    return %arg0, %c0_i32, %c0_i32_0, %c0_i32_1 : i32, i32, i32, i32
  }
}

module attributes {stable_mosaic.version = 11 : i64} {
  func.func @kernel(%arg0: i32, %arg1: memref<1x18x18x16xbf16, #tpu.memory_space<vmem>>, %arg2: memref<4x64x8xbf16, #tpu.memory_space<vmem>>, %arg3: memref<1x32x16x16xf32, #tpu.memory_space<vmem>>) attributes {dimension_semantics = [#tpu.dimension_semantics<parallel>], iteration_bounds = array<i64: 2>, scalar_prefetch = 0 : i64, scratch_operands = 0 : i64, tpu.core_type = #tpu.core_type<tc>, window_params = [{transform_indices = @transform_0, window_bounds = array<i64: 1, 18, 18, 16>}, {pipeline_mode = #tpu.pipeline_mode<synchronous>, transform_indices = @transform_1, window_bounds = array<i64: 4, 64, 8>}, {transform_indices = @transform_2, window_bounds = array<i64: 1, 32, 16, 16>}]} {
    %c0 = arith.constant 0 : index
    %c0_0 = arith.constant 0 : index
    %c0_1 = arith.constant 0 : index
    %c0_2 = arith.constant 0 : index
    %0 = vector.load %arg1[%c0, %c0_0, %c0_1, %c0_2] : memref<1x18x18x16xbf16, #tpu.memory_space<vmem>>, vector<1x18x18x16xbf16>
    %1 = vector.shape_cast %0 : vector<1x18x18x16xbf16> to vector<18x18x16xbf16>
    %cst = arith.constant 0.000000e+00 : bf16
    %2 = vector.broadcast %cst : bf16 to vector<18x18x16xbf16>
    %3 = arith.maximumf %1, %2 : vector<18x18x16xbf16>
    %4 = vector.extract_strided_slice %3 {offsets = [0, 0, 0], sizes = [16, 16, 16], strides = [1, 1, 1]} : vector<18x18x16xbf16> to vector<16x16x16xbf16>
    %5 = vector.extract_strided_slice %3 {offsets = [0, 1, 0], sizes = [16, 16, 16], strides = [1, 1, 1]} : vector<18x18x16xbf16> to vector<16x16x16xbf16>
    %6 = vector.extract_strided_slice %3 {offsets = [1, 0, 0], sizes = [16, 16, 16], strides = [1, 1, 1]} : vector<18x18x16xbf16> to vector<16x16x16xbf16>
    %7 = vector.extract_strided_slice %3 {offsets = [1, 1, 0], sizes = [16, 16, 16], strides = [1, 1, 1]} : vector<18x18x16xbf16> to vector<16x16x16xbf16>
    %8 = tpu.concatenate %4, %5, %6, %7 in 2 : vector<16x16x16xbf16>, vector<16x16x16xbf16>, vector<16x16x16xbf16>, vector<16x16x16xbf16> -> vector<16x16x64xbf16>
    %9 = vector.shape_cast %8 : vector<16x16x64xbf16> to vector<256x64xbf16>
    %c0_3 = arith.constant 0 : index
    %c0_4 = arith.constant 0 : index
    %c0_5 = arith.constant 0 : index
    %10 = vector.load %arg2[%c0_3, %c0_4, %c0_5] : memref<4x64x8xbf16, #tpu.memory_space<vmem>>, vector<1x64x8xbf16>
    %11 = vector.shape_cast %10 : vector<1x64x8xbf16> to vector<64x8xbf16>
    %cst_6 = arith.constant dense<0.000000e+00> : vector<256x8xf32>
    %12 = tpu.matmul %9, %11, %cst_6 {dimension_numbers = #tpu.dot_dimension_numbers<[1], [0], [0], [1], [0, 0, 1, 1], [], []>} : vector<256x64xbf16>, vector<64x8xbf16>, vector<256x8xf32> -> vector<256x8xf32>
    %13 = vector.extract_strided_slice %3 {offsets = [0, 1, 0], sizes = [16, 16, 16], strides = [1, 1, 1]} : vector<18x18x16xbf16> to vector<16x16x16xbf16>
    %14 = vector.extract_strided_slice %3 {offsets = [0, 2, 0], sizes = [16, 16, 16], strides = [1, 1, 1]} : vector<18x18x16xbf16> to vector<16x16x16xbf16>
    %15 = vector.extract_strided_slice %3 {offsets = [1, 1, 0], sizes = [16, 16, 16], strides = [1, 1, 1]} : vector<18x18x16xbf16> to vector<16x16x16xbf16>
    %16 = vector.extract_strided_slice %3 {offsets = [1, 2, 0], sizes = [16, 16, 16], strides = [1, 1, 1]} : vector<18x18x16xbf16> to vector<16x16x16xbf16>
    %17 = tpu.concatenate %13, %14, %15, %16 in 2 : vector<16x16x16xbf16>, vector<16x16x16xbf16>, vector<16x16x16xbf16>, vector<16x16x16xbf16> -> vector<16x16x64xbf16>
    %18 = vector.shape_cast %17 : vector<16x16x64xbf16> to vector<256x64xbf16>
    %c1 = arith.constant 1 : index
    %c0_7 = arith.constant 0 : index
    %c0_8 = arith.constant 0 : index
    %19 = vector.load %arg2[%c1, %c0_7, %c0_8] : memref<4x64x8xbf16, #tpu.memory_space<vmem>>, vector<1x64x8xbf16>
    %20 = vector.shape_cast %19 : vector<1x64x8xbf16> to vector<64x8xbf16>
    %cst_9 = arith.constant dense<0.000000e+00> : vector<256x8xf32>
    %21 = tpu.matmul %18, %20, %cst_9 {dimension_numbers = #tpu.dot_dimension_numbers<[1], [0], [0], [1], [0, 0, 1, 1], [], []>} : vector<256x64xbf16>, vector<64x8xbf16>, vector<256x8xf32> -> vector<256x8xf32>
    %22 = tpu.concatenate %12, %21 in 1 : vector<256x8xf32>, vector<256x8xf32> -> vector<256x16xf32>
    %23 = vector.shape_cast %22 : vector<256x16xf32> to vector<16x16x16xf32>
    %24 = vector.extract_strided_slice %3 {offsets = [1, 0, 0], sizes = [16, 16, 16], strides = [1, 1, 1]} : vector<18x18x16xbf16> to vector<16x16x16xbf16>
    %25 = vector.extract_strided_slice %3 {offsets = [1, 1, 0], sizes = [16, 16, 16], strides = [1, 1, 1]} : vector<18x18x16xbf16> to vector<16x16x16xbf16>
    %26 = vector.extract_strided_slice %3 {offsets = [2, 0, 0], sizes = [16, 16, 16], strides = [1, 1, 1]} : vector<18x18x16xbf16> to vector<16x16x16xbf16>
    %27 = vector.extract_strided_slice %3 {offsets = [2, 1, 0], sizes = [16, 16, 16], strides = [1, 1, 1]} : vector<18x18x16xbf16> to vector<16x16x16xbf16>
    %28 = tpu.concatenate %24, %25, %26, %27 in 2 : vector<16x16x16xbf16>, vector<16x16x16xbf16>, vector<16x16x16xbf16>, vector<16x16x16xbf16> -> vector<16x16x64xbf16>
    %29 = vector.shape_cast %28 : vector<16x16x64xbf16> to vector<256x64xbf16>
    %c2 = arith.constant 2 : index
    %c0_10 = arith.constant 0 : index
    %c0_11 = arith.constant 0 : index
    %30 = vector.load %arg2[%c2, %c0_10, %c0_11] : memref<4x64x8xbf16, #tpu.memory_space<vmem>>, vector<1x64x8xbf16>
    %31 = vector.shape_cast %30 : vector<1x64x8xbf16> to vector<64x8xbf16>
    %cst_12 = arith.constant dense<0.000000e+00> : vector<256x8xf32>
    %32 = tpu.matmul %29, %31, %cst_12 {dimension_numbers = #tpu.dot_dimension_numbers<[1], [0], [0], [1], [0, 0, 1, 1], [], []>} : vector<256x64xbf16>, vector<64x8xbf16>, vector<256x8xf32> -> vector<256x8xf32>
    %33 = vector.extract_strided_slice %3 {offsets = [1, 1, 0], sizes = [16, 16, 16], strides = [1, 1, 1]} : vector<18x18x16xbf16> to vector<16x16x16xbf16>
    %34 = vector.extract_strided_slice %3 {offsets = [1, 2, 0], sizes = [16, 16, 16], strides = [1, 1, 1]} : vector<18x18x16xbf16> to vector<16x16x16xbf16>
    %35 = vector.extract_strided_slice %3 {offsets = [2, 1, 0], sizes = [16, 16, 16], strides = [1, 1, 1]} : vector<18x18x16xbf16> to vector<16x16x16xbf16>
    %36 = vector.extract_strided_slice %3 {offsets = [2, 2, 0], sizes = [16, 16, 16], strides = [1, 1, 1]} : vector<18x18x16xbf16> to vector<16x16x16xbf16>
    %37 = tpu.concatenate %33, %34, %35, %36 in 2 : vector<16x16x16xbf16>, vector<16x16x16xbf16>, vector<16x16x16xbf16>, vector<16x16x16xbf16> -> vector<16x16x64xbf16>
    %38 = vector.shape_cast %37 : vector<16x16x64xbf16> to vector<256x64xbf16>
    %c3 = arith.constant 3 : index
    %c0_13 = arith.constant 0 : index
    %c0_14 = arith.constant 0 : index
    %39 = vector.load %arg2[%c3, %c0_13, %c0_14] : memref<4x64x8xbf16, #tpu.memory_space<vmem>>, vector<1x64x8xbf16>
    %40 = vector.shape_cast %39 : vector<1x64x8xbf16> to vector<64x8xbf16>
    %cst_15 = arith.constant dense<0.000000e+00> : vector<256x8xf32>
    %41 = tpu.matmul %38, %40, %cst_15 {dimension_numbers = #tpu.dot_dimension_numbers<[1], [0], [0], [1], [0, 0, 1, 1], [], []>} : vector<256x64xbf16>, vector<64x8xbf16>, vector<256x8xf32> -> vector<256x8xf32>
    %42 = tpu.concatenate %32, %41 in 1 : vector<256x8xf32>, vector<256x8xf32> -> vector<256x16xf32>
    %43 = vector.shape_cast %42 : vector<256x16xf32> to vector<16x16x16xf32>
    %44 = vector.shape_cast %23 : vector<16x16x16xf32> to vector<16x1x16x16xf32>
    %45 = vector.shape_cast %43 : vector<16x16x16xf32> to vector<16x1x16x16xf32>
    %46 = tpu.concatenate %44, %45 in 1 : vector<16x1x16x16xf32>, vector<16x1x16x16xf32> -> vector<16x2x16x16xf32>
    %47 = vector.shape_cast %46 : vector<16x2x16x16xf32> to vector<32x16x16xf32>
    %c0_16 = arith.constant 0 : index
    %c0_17 = arith.constant 0 : index
    %c0_18 = arith.constant 0 : index
    %c0_19 = arith.constant 0 : index
    %48 = vector.load %arg3[%c0_16, %c0_17, %c0_18, %c0_19] : memref<1x32x16x16xf32, #tpu.memory_space<vmem>>, vector<1x32x16x16xf32>
    %49 = vector.shape_cast %48 : vector<1x32x16x16xf32> to vector<32x16x16xf32>
    %50 = vector.shape_cast %47 : vector<32x16x16xf32> to vector<1x32x16x16xf32>
    tpu.vector_store %arg3[%c0_16, %c0_17, %c0_18, %c0_19], %50 {strides = array<i32>} : memref<1x32x16x16xf32, #tpu.memory_space<vmem>>, vector<1x32x16x16xf32>,
    return
  }
  func.func @transform_0(%arg0: i32) -> (i32, i32, i32, i32) {
    %c0_i32 = arith.constant 0 : i32
    %c0_i32_0 = arith.constant 0 : i32
    %c0_i32_1 = arith.constant 0 : i32
    %c0_i32_2 = arith.constant 0 : i32
    return %arg0, %c0_i32, %c0_i32_0, %c0_i32_1 : i32, i32, i32, i32
  }
  func.func @transform_1(%arg0: i32) -> (i32, i32, i32) {
    %c0_i32 = arith.constant 0 : i32
    %c0_i32_0 = arith.constant 0 : i32
    %c0_i32_1 = arith.constant 0 : i32
    %c0_i32_2 = arith.constant 0 : i32
    return %c0_i32, %c0_i32_0, %c0_i32_1 : i32, i32, i32
  }
  func.func @transform_2(%arg0: i32) -> (i32, i32, i32, i32) {
    %c0_i32 = arith.constant 0 : i32
    %c0_i32_0 = arith.constant 0 : i32
    %c0_i32_1 = arith.constant 0 : i32
    %c0_i32_2 = arith.constant 0 : i32
    return %arg0, %c0_i32, %c0_i32_0, %c0_i32_1 : i32, i32, i32, i32
  }
}

module attributes {stable_mosaic.version = 11 : i64} {
  func.func @kernel(%arg0: i32, %arg1: memref<1x34x34x8xbf16, #tpu.memory_space<vmem>>, %arg2: memref<4x32x3xbf16, #tpu.memory_space<vmem>>, %arg3: memref<1x64x32x6xf32, #tpu.memory_space<vmem>>) attributes {dimension_semantics = [#tpu.dimension_semantics<parallel>], iteration_bounds = array<i64: 2>, scalar_prefetch = 0 : i64, scratch_operands = 0 : i64, tpu.core_type = #tpu.core_type<tc>, window_params = [{transform_indices = @transform_0, window_bounds = array<i64: 1, 34, 34, 8>}, {pipeline_mode = #tpu.pipeline_mode<synchronous>, transform_indices = @transform_1, window_bounds = array<i64: 4, 32, 3>}, {transform_indices = @transform_2, window_bounds = array<i64: 1, 64, 32, 6>}]} {
    %c0 = arith.constant 0 : index
    %c0_0 = arith.constant 0 : index
    %c0_1 = arith.constant 0 : index
    %c0_2 = arith.constant 0 : index
    %0 = vector.load %arg1[%c0, %c0_0, %c0_1, %c0_2] : memref<1x34x34x8xbf16, #tpu.memory_space<vmem>>, vector<1x34x34x8xbf16>
    %1 = vector.shape_cast %0 : vector<1x34x34x8xbf16> to vector<34x34x8xbf16>
    %cst = arith.constant 0.000000e+00 : bf16
    %2 = vector.broadcast %cst : bf16 to vector<34x34x8xbf16>
    %3 = arith.maximumf %1, %2 : vector<34x34x8xbf16>
    %4 = vector.extract_strided_slice %3 {offsets = [0, 0, 0], sizes = [32, 32, 8], strides = [1, 1, 1]} : vector<34x34x8xbf16> to vector<32x32x8xbf16>
    %5 = vector.extract_strided_slice %3 {offsets = [0, 1, 0], sizes = [32, 32, 8], strides = [1, 1, 1]} : vector<34x34x8xbf16> to vector<32x32x8xbf16>
    %6 = vector.extract_strided_slice %3 {offsets = [1, 0, 0], sizes = [32, 32, 8], strides = [1, 1, 1]} : vector<34x34x8xbf16> to vector<32x32x8xbf16>
    %7 = vector.extract_strided_slice %3 {offsets = [1, 1, 0], sizes = [32, 32, 8], strides = [1, 1, 1]} : vector<34x34x8xbf16> to vector<32x32x8xbf16>
    %8 = tpu.concatenate %4, %5, %6, %7 in 2 : vector<32x32x8xbf16>, vector<32x32x8xbf16>, vector<32x32x8xbf16>, vector<32x32x8xbf16> -> vector<32x32x32xbf16>
    %9 = vector.shape_cast %8 : vector<32x32x32xbf16> to vector<1024x32xbf16>
    %c0_3 = arith.constant 0 : index
    %c0_4 = arith.constant 0 : index
    %c0_5 = arith.constant 0 : index
    %10 = vector.load %arg2[%c0_3, %c0_4, %c0_5] : memref<4x32x3xbf16, #tpu.memory_space<vmem>>, vector<1x32x3xbf16>
    %11 = vector.shape_cast %10 : vector<1x32x3xbf16> to vector<32x3xbf16>
    %cst_6 = arith.constant dense<0.000000e+00> : vector<1024x3xf32>
    %12 = tpu.matmul %9, %11, %cst_6 {dimension_numbers = #tpu.dot_dimension_numbers<[1], [0], [0], [1], [0, 0, 1, 1], [], []>} : vector<1024x32xbf16>, vector<32x3xbf16>, vector<1024x3xf32> -> vector<1024x3xf32>
    %13 = vector.extract_strided_slice %3 {offsets = [0, 1, 0], sizes = [32, 32, 8], strides = [1, 1, 1]} : vector<34x34x8xbf16> to vector<32x32x8xbf16>
    %14 = vector.extract_strided_slice %3 {offsets = [0, 2, 0], sizes = [32, 32, 8], strides = [1, 1, 1]} : vector<34x34x8xbf16> to vector<32x32x8xbf16>
    %15 = vector.extract_strided_slice %3 {offsets = [1, 1, 0], sizes = [32, 32, 8], strides = [1, 1, 1]} : vector<34x34x8xbf16> to vector<32x32x8xbf16>
    %16 = vector.extract_strided_slice %3 {offsets = [1, 2, 0], sizes = [32, 32, 8], strides = [1, 1, 1]} : vector<34x34x8xbf16> to vector<32x32x8xbf16>
    %17 = tpu.concatenate %13, %14, %15, %16 in 2 : vector<32x32x8xbf16>, vector<32x32x8xbf16>, vector<32x32x8xbf16>, vector<32x32x8xbf16> -> vector<32x32x32xbf16>
    %18 = vector.shape_cast %17 : vector<32x32x32xbf16> to vector<1024x32xbf16>
    %c1 = arith.constant 1 : index
    %c0_7 = arith.constant 0 : index
    %c0_8 = arith.constant 0 : index
    %19 = vector.load %arg2[%c1, %c0_7, %c0_8] : memref<4x32x3xbf16, #tpu.memory_space<vmem>>, vector<1x32x3xbf16>
    %20 = vector.shape_cast %19 : vector<1x32x3xbf16> to vector<32x3xbf16>
    %cst_9 = arith.constant dense<0.000000e+00> : vector<1024x3xf32>
    %21 = tpu.matmul %18, %20, %cst_9 {dimension_numbers = #tpu.dot_dimension_numbers<[1], [0], [0], [1], [0, 0, 1, 1], [], []>} : vector<1024x32xbf16>, vector<32x3xbf16>, vector<1024x3xf32> -> vector<1024x3xf32>
    %22 = tpu.concatenate %12, %21 in 1 : vector<1024x3xf32>, vector<1024x3xf32> -> vector<1024x6xf32>
    %23 = vector.shape_cast %22 : vector<1024x6xf32> to vector<32x32x6xf32>
    %24 = vector.extract_strided_slice %3 {offsets = [1, 0, 0], sizes = [32, 32, 8], strides = [1, 1, 1]} : vector<34x34x8xbf16> to vector<32x32x8xbf16>
    %25 = vector.extract_strided_slice %3 {offsets = [1, 1, 0], sizes = [32, 32, 8], strides = [1, 1, 1]} : vector<34x34x8xbf16> to vector<32x32x8xbf16>
    %26 = vector.extract_strided_slice %3 {offsets = [2, 0, 0], sizes = [32, 32, 8], strides = [1, 1, 1]} : vector<34x34x8xbf16> to vector<32x32x8xbf16>
    %27 = vector.extract_strided_slice %3 {offsets = [2, 1, 0], sizes = [32, 32, 8], strides = [1, 1, 1]} : vector<34x34x8xbf16> to vector<32x32x8xbf16>
    %28 = tpu.concatenate %24, %25, %26, %27 in 2 : vector<32x32x8xbf16>, vector<32x32x8xbf16>, vector<32x32x8xbf16>, vector<32x32x8xbf16> -> vector<32x32x32xbf16>
    %29 = vector.shape_cast %28 : vector<32x32x32xbf16> to vector<1024x32xbf16>
    %c2 = arith.constant 2 : index
    %c0_10 = arith.constant 0 : index
    %c0_11 = arith.constant 0 : index
    %30 = vector.load %arg2[%c2, %c0_10, %c0_11] : memref<4x32x3xbf16, #tpu.memory_space<vmem>>, vector<1x32x3xbf16>
    %31 = vector.shape_cast %30 : vector<1x32x3xbf16> to vector<32x3xbf16>
    %cst_12 = arith.constant dense<0.000000e+00> : vector<1024x3xf32>
    %32 = tpu.matmul %29, %31, %cst_12 {dimension_numbers = #tpu.dot_dimension_numbers<[1], [0], [0], [1], [0, 0, 1, 1], [], []>} : vector<1024x32xbf16>, vector<32x3xbf16>, vector<1024x3xf32> -> vector<1024x3xf32>
    %33 = vector.extract_strided_slice %3 {offsets = [1, 1, 0], sizes = [32, 32, 8], strides = [1, 1, 1]} : vector<34x34x8xbf16> to vector<32x32x8xbf16>
    %34 = vector.extract_strided_slice %3 {offsets = [1, 2, 0], sizes = [32, 32, 8], strides = [1, 1, 1]} : vector<34x34x8xbf16> to vector<32x32x8xbf16>
    %35 = vector.extract_strided_slice %3 {offsets = [2, 1, 0], sizes = [32, 32, 8], strides = [1, 1, 1]} : vector<34x34x8xbf16> to vector<32x32x8xbf16>
    %36 = vector.extract_strided_slice %3 {offsets = [2, 2, 0], sizes = [32, 32, 8], strides = [1, 1, 1]} : vector<34x34x8xbf16> to vector<32x32x8xbf16>
    %37 = tpu.concatenate %33, %34, %35, %36 in 2 : vector<32x32x8xbf16>, vector<32x32x8xbf16>, vector<32x32x8xbf16>, vector<32x32x8xbf16> -> vector<32x32x32xbf16>
    %38 = vector.shape_cast %37 : vector<32x32x32xbf16> to vector<1024x32xbf16>
    %c3 = arith.constant 3 : index
    %c0_13 = arith.constant 0 : index
    %c0_14 = arith.constant 0 : index
    %39 = vector.load %arg2[%c3, %c0_13, %c0_14] : memref<4x32x3xbf16, #tpu.memory_space<vmem>>, vector<1x32x3xbf16>
    %40 = vector.shape_cast %39 : vector<1x32x3xbf16> to vector<32x3xbf16>
    %cst_15 = arith.constant dense<0.000000e+00> : vector<1024x3xf32>
    %41 = tpu.matmul %38, %40, %cst_15 {dimension_numbers = #tpu.dot_dimension_numbers<[1], [0], [0], [1], [0, 0, 1, 1], [], []>} : vector<1024x32xbf16>, vector<32x3xbf16>, vector<1024x3xf32> -> vector<1024x3xf32>
    %42 = tpu.concatenate %32, %41 in 1 : vector<1024x3xf32>, vector<1024x3xf32> -> vector<1024x6xf32>
    %43 = vector.shape_cast %42 : vector<1024x6xf32> to vector<32x32x6xf32>
    %44 = vector.shape_cast %23 : vector<32x32x6xf32> to vector<32x1x32x6xf32>
    %45 = vector.shape_cast %43 : vector<32x32x6xf32> to vector<32x1x32x6xf32>
    %46 = tpu.concatenate %44, %45 in 1 : vector<32x1x32x6xf32>, vector<32x1x32x6xf32> -> vector<32x2x32x6xf32>
    %47 = vector.shape_cast %46 : vector<32x2x32x6xf32> to vector<64x32x6xf32>
    %48 = math.tanh %47 : vector<64x32x6xf32>
    %c0_16 = arith.constant 0 : index
    %c0_17 = arith.constant 0 : index
    %c0_18 = arith.constant 0 : index
    %c0_19 = arith.constant 0 : index
    %49 = vector.load %arg3[%c0_16, %c0_17, %c0_18, %c0_19] : memref<1x64x32x6xf32, #tpu.memory_space<vmem>>, vector<1x64x32x6xf32>
    %50 = vector.shape_cast %49 : vector<1x64x32x6xf32> to vector<64x32x6xf32>
    %51 = vector.shape_cast %48 : vector<64x32x6xf32> to vector<1x64x32x6xf32>
    tpu.vector_store %arg3[%c0_16, %c0_17, %c0_18, %c0_19], %51 {strides = array<i32>} : memref<1x64x32x6xf32, #tpu.memory_space<vmem>>, vector<1x64x32x6xf32>,
    return
  }
  func.func @transform_0(%arg0: i32) -> (i32, i32, i32, i32) {
    %c0_i32 = arith.constant 0 : i32
    %c0_i32_0 = arith.constant 0 : i32
    %c0_i32_1 = arith.constant 0 : i32
    %c0_i32_2 = arith.constant 0 : i32
    return %arg0, %c0_i32, %c0_i32_0, %c0_i32_1 : i32, i32, i32, i32
  }
  func.func @transform_1(%arg0: i32) -> (i32, i32, i32) {
    %c0_i32 = arith.constant 0 : i32
    %c0_i32_0 = arith.constant 0 : i32
    %c0_i32_1 = arith.constant 0 : i32
    %c0_i32_2 = arith.constant 0 : i32
    return %c0_i32, %c0_i32_0, %c0_i32_1 : i32, i32, i32
  }
  func.func @transform_2(%arg0: i32) -> (i32, i32, i32, i32) {
    %c0_i32 = arith.constant 0 : i32
    %c0_i32_0 = arith.constant 0 : i32
    %c0_i32_1 = arith.constant 0 : i32
    %c0_i32_2 = arith.constant 0 : i32
    return %arg0, %c0_i32, %c0_i32_0, %c0_i32_1 : i32, i32, i32, i32
  }
}

</mosaic_0001>

<llo_original>
// kernel: tile.23
$region0: #{tile.23}
  #allocation0 [shape = 's32[1]{0}', space=sflag, size = 0x4, scoped, tag = 'scoped memory for tile.23']
  %s0 = inlined_call_operand.vmem [shape: f32[64], index: 0, kind: input, shape index: {}]
  %s1 = inlined_call_operand.vmem [shape: f32[4,64], index: 1, kind: output, shape index: {}]
  // Predicated region
  $region2: #{tile.23} parent=0 // pred_check
    _
  $region3: #{tile.23} parent=0 // pred_check_branch
    %3 = sbr.rel (0) target = $region5
  $region4: #{tile.23} parent=0 // pred_region
    _
  $region5: #{tile.23} parent=0 // pred_fallthru
    _
  %v4 = vld [vmem:[%s0] ss:$0 sm:$0xff]
  %5 = vst [vmem:[%s1] sm:$0xf] %v4

// kernel: mul.22
$region0: #{mul.22}
  %s0 = inlined_call_operand.vmem [shape: f32[4,64], index: 0, kind: input, shape index: {}]
  %s1 = inlined_call_operand.vmem [shape: f32[256], index: 1, kind: output, shape index: {}]
  $region1: #{mul.22} parent=0
    #allocation0 [shape = 'u8[4096]{0}', space=vmem, size = 0x1000, scoped, tag = 'scoped mem for output reshape']
    #allocation1 [shape = 'u8[4096]{0}', space=vmem, size = 0x1000, scoped, tag = 'scoped mem for input reshape']
    %s3 = sshllo.u32 0, 4
    %v4 = vld [vmem:[%s0] sm:%s3]
    %5 = vst [vmem:[#allocation1] sm:%s3] %v4
    %s6 = smov 3
    %v7 = vld [vmem:[#allocation1] ss:$2 sm:%s6]
    %vm8 = vcmask 523264
    %9 = vst.msk [vmem:[#allocation0] sm:$0x3] %vm8, %v7
    %s10 = scalar_lea.vmem [#allocation1], 1
    %s11 = smov 3
    %v12 = vld [vmem:[%s10] ss:$2 sm:%s11]
    %13 = vrot.lane.b32.xlu0 %v12, 64
    %v14 = vpop.permute.xlu0 %13
    %vm15 = vcmask 1048064
    %16 = vst.msk [vmem:[#allocation0] sm:$0x3] %vm15, %v14
    %s18 = sshllo.u32 0, 2
    %v20 = vld [vmem:[#allocation0] sm:%s18]
    %s21 = sshllo.u32 0, 2
    %22 = vst [vmem:[%s1] sm:%s21] %v20

// kernel: generator_forward.5
$region0: #{generator_forward.5}
  #allocation0 [shape = 'u32[]', space=smem, size = 0x4, offset = 0x4, fixed_abs, tag = 'smem constant byte address 0x4 - core index']
  #allocation1 [shape = 'u32[144,128]{1,0:T(1,128)}', space=vmem, size = 0x12000, scoped, tag = 'internal scratch']
  %s0 = inlined_call_operand.vmem [shape: bf16[2,16], index: 0, kind: input, shape index: {}]
  %s1 = inlined_call_operand.vmem [shape: bf16[16,1024], index: 1, kind: input, shape index: {}]
  %s2 = inlined_call_operand.vmem [shape: f32[2,1024], index: 2, kind: output, shape index: {}]
  %s3 = sld [smem:[#allocation0]]
  $region18: #{generator_forward.5} parent=0
    _
  %s5 = ssub.s32 1, %s3
  %s6 = scalar_select 0, %s5, %s3
  // Predicated region
  $region2: #{generator_forward.5} parent=0 // pred_check
    _
  $region3: #{generator_forward.5} parent=0 // pred_check_branch
    %8 = sbr.rel (0) target = $region5
  $region4: #{generator_forward.5} parent=0 // pred_region
    _
  $region5: #{generator_forward.5} parent=0 // pred_fallthru
    _
  // Predicated region
  $region6: #{generator_forward.5} parent=0 // pred_check
    _
  $region7: #{generator_forward.5} parent=0 // pred_check_branch
    %10 = sbr.rel (0) target = $region9
  $region8: #{generator_forward.5} parent=0 // pred_region
    _
  $region9: #{generator_forward.5} parent=0 // pred_fallthru
    _
  %v12 = vld [vmem:[%s0] sm:$0x1]
  %v13 = vld [vmem:[%s1] sm:$0xff]
  %v14 = vld [vmem:[%s1 + $0x8] sm:$0xff]
  %v15 = vld [vmem:[%s1 + $0x10] sm:$0xff]
  %v16 = vld [vmem:[%s1 + $0x18] sm:$0xff]
  %v17 = vld [vmem:[%s1 + $0x20] sm:$0xff]
  %v18 = vld [vmem:[%s1 + $0x28] sm:$0xff]
  %v19 = vld [vmem:[%s1 + $0x30] sm:$0xff]
  %v20 = vld [vmem:[%s1 + $0x38] sm:$0xff]
  %v29 = vunpack.c.l.b16 %v13
  %v30 = vunpack.c.h.b16 %v13
  %v31 = vunpack.c.l.b16 %v14
  %v32 = vunpack.c.h.b16 %v14
  %v33 = vunpack.c.l.b16 %v15
  %v34 = vunpack.c.h.b16 %v15
  %v35 = vunpack.c.l.b16 %v16
  %v36 = vunpack.c.h.b16 %v16
  %v37 = vunpack.c.l.b16 %v17
  %v38 = vunpack.c.h.b16 %v17
  %v39 = vunpack.c.l.b16 %v18
  %v40 = vunpack.c.h.b16 %v18
  %v41 = vunpack.c.l.b16 %v19
  %v42 = vunpack.c.h.b16 %v19
  %v43 = vunpack.c.l.b16 %v20
  %v44 = vunpack.c.h.b16 %v20
  %v45 = vpack.c.b16 %v37, %v29
  %v46 = vpack.c.b16 %v38, %v30
  %v47 = vpack.c.b16 %v39, %v31
  %v48 = vpack.c.b16 %v40, %v32
  %v49 = vpack.c.b16 %v41, %v33
  %v50 = vpack.c.b16 %v42, %v34
  %v51 = vpack.c.b16 %v43, %v35
  %v52 = vpack.c.b16 %v44, %v36
  %vm61 = vcmask 130048
  %v63 = vsel %vm61, %v12, 0
  %65 = vmatprep.subr.bf16.mxu0 %v46
  %66 = vmatpush1.bf16.msra.mxu0 %v45
  %67 = vmatprep.subr.bf16.mxu0 0
  %68 = vmatpush1.bf16.msra.mxu0 0
  %69 = vmatprep.subr.bf16.mxu0 0
  %70 = vmatpush1.bf16.msra.mxu0 0
  %71 = vmatprep.subr.bf16.mxu0 0
  %72 = vmatpush1.bf16.msra.mxu0 0
  %73 = vmatprep.subr.bf16.mxu0 0
  %74 = vmatpush1.bf16.msra.mxu0 0
  %75 = vmatprep.subr.bf16.mxu0 0
  %76 = vmatpush1.bf16.msra.mxu0 0
  %77 = vmatprep.subr.bf16.mxu0 0
  %78 = vmatpush1.bf16.msra.mxu0 0
  %79 = vmatprep.subr.bf16.mxu0 0
  %80 = vmatpush1.bf16.msra.mxu0 0
  %81 = vmatprep.subr.bf16.mxu0 0
  %82 = vmatpush1.bf16.msra.mxu0 0
  %83 = vmatprep.subr.bf16.mxu0 0
  %84 = vmatpush1.bf16.msra.mxu0 0
  %85 = vmatprep.subr.bf16.mxu0 0
  %86 = vmatpush1.bf16.msra.mxu0 0
  %87 = vmatprep.subr.bf16.mxu0 0
  %88 = vmatpush1.bf16.msra.mxu0 0
  %89 = vmatprep.subr.bf16.mxu0 0
  %90 = vmatpush1.bf16.msra.mxu0 0
  %91 = vmatprep.subr.bf16.mxu0 0
  %92 = vmatpush1.bf16.msra.mxu0 0
  %93 = vmatprep.subr.bf16.mxu0 0
  %94 = vmatpush1.bf16.msra.mxu0 0
  %95 = vmatprep.subr.bf16.mxu0 0
  %96 = vmatpush1.bf16.msra.mxu0 0
  %97 = vmatprep.mubr.bf16.mxu0 0
  %98 = vmatmul.mubr.bf16.gmra.mrb[0].mxu0 %v63
  %v99 = vpop.f32.mrb[0].mxu0
  %v100 = vadd.f32 0.0, %v99
  %v101 = vpop.f32.mrb[0].mxu0
  %v102 = vadd.f32 0.0, %v101
  %v103 = vpop.f32.mrb[0].mxu0
  %v104 = vpop.f32.mrb[0].mxu0
  %105 = vdwg.mxu0
  %106 = vmatprep.subr.bf16.mxu0 %v48
  %107 = vmatpush1.bf16.msra.mxu0 %v47
  %108 = vmatprep.subr.bf16.mxu0 0
  %109 = vmatpush1.bf16.msra.mxu0 0
  %110 = vmatprep.subr.bf16.mxu0 0
  %111 = vmatpush1.bf16.msra.mxu0 0
  %112 = vmatprep.subr.bf16.mxu0 0
  %113 = vmatpush1.bf16.msra.mxu0 0
  %114 = vmatprep.subr.bf16.mxu0 0
  %115 = vmatpush1.bf16.msra.mxu0 0
  %116 = vmatprep.subr.bf16.mxu0 0
  %117 = vmatpush1.bf16.msra.mxu0 0
  %118 = vmatprep.subr.bf16.mxu0 0
  %119 = vmatpush1.bf16.msra.mxu0 0
  %120 = vmatprep.subr.bf16.mxu0 0
  %121 = vmatpush1.bf16.msra.mxu0 0
  %122 = vmatprep.subr.bf16.mxu0 0
  %123 = vmatpush1.bf16.msra.mxu0 0
  %124 = vmatprep.subr.bf16.mxu0 0
  %125 = vmatpush1.bf16.msra.mxu0 0
  %126 = vmatprep.subr.bf16.mxu0 0
  %127 = vmatpush1.bf16.msra.mxu0 0
  %128 = vmatprep.subr.bf16.mxu0 0
  %129 = vmatpush1.bf16.msra.mxu0 0
  %130 = vmatprep.subr.bf16.mxu0 0
  %131 = vmatpush1.bf16.msra.mxu0 0
  %132 = vmatprep.subr.bf16.mxu0 0
  %133 = vmatpush1.bf16.msra.mxu0 0
  %134 = vmatprep.subr.bf16.mxu0 0
  %135 = vmatpush1.bf16.msra.mxu0 0
  %136 = vmatprep.subr.bf16.mxu0 0
  %137 = vmatpush1.bf16.msra.mxu0 0
  %138 = vmatprep.mubr.bf16.mxu0 0
  %139 = vmatmul.mubr.bf16.gmra.mrb[0].mxu0 %v63
  %v140 = vpop.f32.mrb[0].mxu0
  %v141 = vadd.f32 0.0, %v140
  %v142 = vpop.f32.mrb[0].mxu0
  %v143 = vadd.f32 0.0, %v142
  %v144 = vpop.f32.mrb[0].mxu0
  %v145 = vpop.f32.mrb[0].mxu0
  %146 = vdwg.mxu0
  %147 = vmatprep.subr.bf16.mxu0 %v50
  %148 = vmatpush1.bf16.msra.mxu0 %v49
  %149 = vmatprep.subr.bf16.mxu0 0
  %150 = vmatpush1.bf16.msra.mxu0 0
  %151 = vmatprep.subr.bf16.mxu0 0
  %152 = vmatpush1.bf16.msra.mxu0 0
  %153 = vmatprep.subr.bf16.mxu0 0
  %154 = vmatpush1.bf16.msra.mxu0 0
  %155 = vmatprep.subr.bf16.mxu0 0
  %156 = vmatpush1.bf16.msra.mxu0 0
  %157 = vmatprep.subr.bf16.mxu0 0
  %158 = vmatpush1.bf16.msra.mxu0 0
  %159 = vmatprep.subr.bf16.mxu0 0
  %160 = vmatpush1.bf16.msra.mxu0 0
  %161 = vmatprep.subr.bf16.mxu0 0
  %162 = vmatpush1.bf16.msra.mxu0 0
  %163 = vmatprep.subr.bf16.mxu0 0
  %164 = vmatpush1.bf16.msra.mxu0 0
  %165 = vmatprep.subr.bf16.mxu0 0
  %166 = vmatpush1.bf16.msra.mxu0 0
  %167 = vmatprep.subr.bf16.mxu0 0
  %168 = vmatpush1.bf16.msra.mxu0 0
  %169 = vmatprep.subr.bf16.mxu0 0
  %170 = vmatpush1.bf16.msra.mxu0 0
  %171 = vmatprep.subr.bf16.mxu0 0
  %172 = vmatpush1.bf16.msra.mxu0 0
  %173 = vmatprep.subr.bf16.mxu0 0
  %174 = vmatpush1.bf16.msra.mxu0 0
  %175 = vmatprep.subr.bf16.mxu0 0
  %176 = vmatpush1.bf16.msra.mxu0 0
  %177 = vmatprep.subr.bf16.mxu0 0
  %178 = vmatpush1.bf16.msra.mxu0 0
  %179 = vmatprep.mubr.bf16.mxu0 0
  %180 = vmatmul.mubr.bf16.gmra.mrb[0].mxu0 %v63
  %v181 = vpop.f32.mrb[0].mxu0
  %v182 = vadd.f32 0.0, %v181
  %v183 = vpop.f32.mrb[0].mxu0
  %v184 = vadd.f32 0.0, %v183
  %v185 = vpop.f32.mrb[0].mxu0
  %v186 = vpop.f32.mrb[0].mxu0
  %187 = vdwg.mxu0
  %188 = vmatprep.subr.bf16.mxu0 %v52
  %189 = vmatpush1.bf16.msra.mxu0 %v51
  %190 = vmatprep.subr.bf16.mxu0 0
  %191 = vmatpush1.bf16.msra.mxu0 0
  %192 = vmatprep.subr.bf16.mxu0 0
  %193 = vmatpush1.bf16.msra.mxu0 0
  %194 = vmatprep.subr.bf16.mxu0 0
  %195 = vmatpush1.bf16.msra.mxu0 0
  %196 = vmatprep.subr.bf16.mxu0 0
  %197 = vmatpush1.bf16.msra.mxu0 0
  %198 = vmatprep.subr.bf16.mxu0 0
  %199 = vmatpush1.bf16.msra.mxu0 0
  %200 = vmatprep.subr.bf16.mxu0 0
  %201 = vmatpush1.bf16.msra.mxu0 0
  %202 = vmatprep.subr.bf16.mxu0 0
  %203 = vmatpush1.bf16.msra.mxu0 0
  %204 = vmatprep.subr.bf16.mxu0 0
  %205 = vmatpush1.bf16.msra.mxu0 0
  %206 = vmatprep.subr.bf16.mxu0 0
  %207 = vmatpush1.bf16.msra.mxu0 0
  %208 = vmatprep.subr.bf16.mxu0 0
  %209 = vmatpush1.bf16.msra.mxu0 0
  %210 = vmatprep.subr.bf16.mxu0 0
  %211 = vmatpush1.bf16.msra.mxu0 0
  %212 = vmatprep.subr.bf16.mxu0 0
  %213 = vmatpush1.bf16.msra.mxu0 0
  %214 = vmatprep.subr.bf16.mxu0 0
  %215 = vmatpush1.bf16.msra.mxu0 0
  %216 = vmatprep.subr.bf16.mxu0 0
  %217 = vmatpush1.bf16.msra.mxu0 0
  %218 = vmatprep.subr.bf16.mxu0 0
  %219 = vmatpush1.bf16.msra.mxu0 0
  %220 = vmatprep.mubr.bf16.mxu0 0
  %221 = vmatmul.mubr.bf16.gmra.mrb[0].mxu0 %v63
  %v222 = vpop.f32.mrb[0].mxu0
  %v223 = vadd.f32 0.0, %v222
  %v224 = vpop.f32.mrb[0].mxu0
  %v225 = vadd.f32 0.0, %v224
  %v226 = vpop.f32.mrb[0].mxu0
  %v227 = vpop.f32.mrb[0].mxu0
  %228 = vdwg.mxu0
  %v237 = vcombine.low %v100, %v102
  %v238 = vcombine.low %v141, %v143
  %v240 = vunpack.c.l.s4 1983009808
  %v241 = vunpack.c.0.s8 %v240
  %v242 = vlaneseq
  %v243 = vshrl.u32 %v242, 7
  %v244 = vsub.s32 %v241, %v243
  %v245 = vrot.slane %v237, %v244
  %v247 = vunpack.c.l.s4 1983009808
  %v248 = vunpack.c.0.s8 %v247
  %v249 = vlaneseq
  %v250 = vshrl.u32 %v249, 7
  %v251 = vsub.s32 %v248, %v250
  %v252 = vrot.slane %v238, %v251
  %v253 = vcombine.low %v245, %v252
  %v254 = vcombine.low %v182, %v184
  %v255 = vcombine.low %v223, %v225
  %v257 = vunpack.c.l.s4 1983009808
  %v258 = vunpack.c.0.s8 %v257
  %v259 = vlaneseq
  %v260 = vshrl.u32 %v259, 7
  %v261 = vsub.s32 %v258, %v260
  %v262 = vrot.slane %v254, %v261
  %v264 = vunpack.c.l.s4 1983009808
  %v265 = vunpack.c.0.s8 %v264
  %v266 = vlaneseq
  %v267 = vshrl.u32 %v266, 7
  %v268 = vsub.s32 %v265, %v267
  %v269 = vrot.slane %v255, %v268
  %v270 = vcombine.low %v262, %v269
  %273 = vst [vmem:[%s2] sm:$0xff] %v253
  %274 = vst [vmem:[%s2 + $0x8] sm:$0xff] %v270
  // Predicated region
  $region10: #{generator_forward.5} parent=0 // pred_check
    _
  $region11: #{generator_forward.5} parent=0 // pred_check_branch
    %276 = sbr.rel (0) target = $region13
  $region12: #{generator_forward.5} parent=0 // pred_region
    _
  $region13: #{generator_forward.5} parent=0 // pred_fallthru
    _
  // Predicated region
  $region14: #{generator_forward.5} parent=0 // pred_check
    _
  $region15: #{generator_forward.5} parent=0 // pred_check_branch
    %278 = sbr.rel (0) target = $region17
  $region16: #{generator_forward.5} parent=0 // pred_region
    _
  $region17: #{generator_forward.5} parent=0 // pred_fallthru
    _

// kernel: tile.28
$region0: #{tile.28}
  #allocation0 [shape = 's32[1]{0}', space=sflag, size = 0x4, scoped, tag = 'scoped memory for tile.28']
  %s0 = inlined_call_operand.vmem [shape: f32[32], index: 0, kind: input, shape index: {}]
  %s1 = inlined_call_operand.vmem [shape: f32[4,32], index: 1, kind: output, shape index: {}]
  // Predicated region
  $region2: #{tile.28} parent=0 // pred_check
    _
  $region3: #{tile.28} parent=0 // pred_check_branch
    %3 = sbr.rel (0) target = $region5
  $region4: #{tile.28} parent=0 // pred_region
    _
  $region5: #{tile.28} parent=0 // pred_fallthru
    _
  %v4 = vld [vmem:[%s0] ss:$0 sm:$0xff]
  %5 = vst [vmem:[%s1] sm:$0xf] %v4

// kernel: mul.27
$region0: #{mul.27}
  %s0 = inlined_call_operand.vmem [shape: f32[4,32], index: 0, kind: input, shape index: {}]
  %s1 = inlined_call_operand.vmem [shape: f32[128], index: 1, kind: output, shape index: {}]
  $region1: #{mul.27} parent=0
    #allocation0 [shape = 'u8[4096]{0}', space=vmem, size = 0x1000, scoped, tag = 'scoped mem for output reshape']
    #allocation1 [shape = 'u8[4096]{0}', space=vmem, size = 0x1000, scoped, tag = 'scoped mem for input reshape']
    %s3 = sshllo.u32 0, 4
    %v4 = vld [vmem:[%s0] sm:%s3]
    %5 = vst [vmem:[#allocation1] sm:%s3] %v4
    %v6 = vld [vmem:[#allocation1] sm:$0x1]
    %vm7 = vcmask 261120
    %8 = vst.msk [vmem:[#allocation0] sm:$0x1] %vm7, %v6
    %s9 = scalar_lea.vmem [#allocation1], 3
    %v10 = vld [vmem:[%s9] sm:$0x1]
    %11 = vrot.lane.b32.xlu0 %v10, 96
    %v12 = vpop.permute.xlu0 %11
    %vm13 = vcmask 1048320
    %14 = vst.msk [vmem:[#allocation0] sm:$0x1] %vm13, %v12
    %s15 = scalar_lea.vmem [#allocation1], 2
    %v16 = vld [vmem:[%s15] sm:$0x1]
    %17 = vrot.lane.b32.xlu0 %v16, 64
    %v18 = vpop.permute.xlu0 %17
    %vm19 = vcmask 785920
    %20 = vst.msk [vmem:[#allocation0] sm:$0x1] %vm19, %v18
    %s21 = scalar_lea.vmem [#allocation1], 1
    %v22 = vld [vmem:[%s21] sm:$0x1]
    %23 = vrot.lane.b32.xlu0 %v22, 32
    %v24 = vpop.permute.xlu0 %23
    %vm25 = vcmask 523520
    %26 = vst.msk [vmem:[#allocation0] sm:$0x1] %vm25, %v24
    %s28 = sshllo.u32 0, 1
    %v30 = vld [vmem:[#allocation0] sm:%s28]
    %s31 = sshllo.u32 0, 1
    %32 = vst [vmem:[%s1] sm:%s31] %v30

// kernel: tile.33
$region0: #{tile.33}
  #allocation0 [shape = 's32[1]{0}', space=sflag, size = 0x4, scoped, tag = 'scoped memory for tile.33']
  %s0 = inlined_call_operand.vmem [shape: f32[16], index: 0, kind: input, shape index: {}]
  %s1 = inlined_call_operand.vmem [shape: f32[4,16], index: 1, kind: output, shape index: {}]
  // Predicated region
  $region2: #{tile.33} parent=0 // pred_check
    _
  $region3: #{tile.33} parent=0 // pred_check_branch
    %3 = sbr.rel (0) target = $region5
  $region4: #{tile.33} parent=0 // pred_region
    _
  $region5: #{tile.33} parent=0 // pred_fallthru
    _
  %v4 = vld [vmem:[%s0] ss:$0 sm:$0xff]
  %5 = vst [vmem:[%s1] sm:$0xf] %v4

// kernel: mul.32
$region0: #{mul.32}
  %s0 = inlined_call_operand.vmem [shape: f32[4,16], index: 0, kind: input, shape index: {}]
  %s1 = inlined_call_operand.vmem [shape: f32[64], index: 1, kind: output, shape index: {}]
  $region1: #{mul.32} parent=0
    #allocation0 [shape = 'u8[4096]{0}', space=vmem, size = 0x1000, scoped, tag = 'scoped mem for output reshape']
    #allocation1 [shape = 'u8[4096]{0}', space=vmem, size = 0x1000, scoped, tag = 'scoped mem for input reshape']
    %s3 = sshllo.u32 0, 4
    %v4 = vld [vmem:[%s0] sm:%s3]
    %5 = vst [vmem:[#allocation1] sm:%s3] %v4
    %v6 = vld [vmem:[#allocation1] sm:$0x1]
    %vm7 = vcmask 130048
    %8 = vst.msk [vmem:[#allocation0] sm:$0x1] %vm7, %v6
    %s9 = scalar_lea.vmem [#allocation1], 3
    %v10 = vld [vmem:[%s9] sm:$0x1]
    %11 = vrot.lane.b32.xlu0 %v10, 48
    %v12 = vpop.permute.xlu0 %11
    %vm13 = vcmask 523648
    %14 = vst.msk [vmem:[#allocation0] sm:$0x1] %vm13, %v12
    %s15 = scalar_lea.vmem [#allocation1], 2
    %v16 = vld [vmem:[%s15] sm:$0x1]
    %17 = vrot.lane.b32.xlu0 %v16, 32
    %v18 = vpop.permute.xlu0 %17
    %vm19 = vcmask 392448
    %20 = vst.msk [vmem:[#allocation0] sm:$0x1] %vm19, %v18
    %s21 = scalar_lea.vmem [#allocation1], 1
    %v22 = vld [vmem:[%s21] sm:$0x1]
    %23 = vrot.lane.b32.xlu0 %v22, 16
    %v24 = vpop.permute.xlu0 %23
    %vm25 = vcmask 261248
    %26 = vst.msk [vmem:[#allocation0] sm:$0x1] %vm25, %v24
    %s28 = sshllo.u32 0, 1
    %v30 = vld [vmem:[#allocation0] sm:%s28]
    %s31 = sshllo.u32 0, 1
    %32 = vst [vmem:[%s1] sm:%s31] %v30

// kernel: generator_forward.6
$region0: #{generator_forward.6}
  #allocation0 [shape = 'u32[]', space=smem, size = 0x4, offset = 0x4, fixed_abs, tag = 'smem constant byte address 0x4 - core index']
  #allocation1 [shape = 'u32[144,128]{1,0:T(1,128)}', space=vmem, size = 0x12000, scoped, tag = 'internal scratch']
  %s0 = inlined_call_operand.vmem [shape: bf16[2,6,6,64], index: 0, kind: input, shape index: {}]
  %s1 = inlined_call_operand.vmem [shape: bf16[4,256,32], index: 1, kind: input, shape index: {}]
  %s2 = inlined_call_operand.vmem [shape: f32[2,8,4,64], index: 2, kind: output, shape index: {}]
  %s3 = sld [smem:[#allocation0]]
  $region41: #{generator_forward.6} parent=0
    _
  %s5 = ssub.s32 1, %s3
  %s6 = scalar_select 0, %s5, %s3
  loop: start=0, step=1, limit=4
  $region2: #{generator_forward.6} parent=0 // loop_pre_header
    _
  $region3: #{generator_forward.6} parent=0 // loop_header
    %s8 = sphi 0, %s12
    %p9 = scmp.ge.s32.totalorder %s8, 4
    %s18 = sphi 0, %s20
    %s21 = sphi 0, %s18
    %s22 = sphi 0, %s21
    %s38 = sphi 0, %s22
    %s42 = sphi 0, %s42
    %s44 = sphi 0, %s42
    %s45 = sphi 0, %s44
    %s59 = sphi 0, %s45
    %s65 = sphi 0, %s67
    %s68 = sphi 0, %s65
    %s69 = sphi 0, %s68
    %s85 = sphi 0, %s69
  $region4: #{generator_forward.6} parent=0 // loop_header_branch
    %11 = sbr.rel (%p9) target = $region8
  $region5: #{generator_forward.6} parent=0 // loop_body
    %s13 = ssub.s32 %s8, 1
    %s14 = ssub.s32 %s8, 2
    %s15 = sadd.s32 %s8, 1
    %s16 = ssub.s32 %s8, %s15
    %p17 = scmp.eq.s32.totalorder %s16, 0
    %s19 = sadd.s32 %s18, 1
    %s20 = scalar_select %p17, %s18, %s19
    %p23 = pneg %p17
    %p24 = scmp.eq.s32.totalorder %s8, 1
    %p25 = por %p23, %p24
    %p26 = scmp.ne.s32.totalorder %s18, %s21
    %p27 = scmp.eq.s32.totalorder %s8, 0
    %p28 = por %p26, %p27
    %p29 = scmp.ne.s32.totalorder %s18, %s21
    %p30 = scmp.eq.s32.totalorder %s13, 1
    %p31 = por %p29, %p30
    %p32 = scmp.ne.s32.totalorder %s21, %s22
    %p33 = scmp.eq.s32.totalorder %s13, 0
    %p34 = por %p32, %p33
    %p35 = scmp.ne.s32.totalorder %s21, %s22
    %p36 = scmp.eq.s32.totalorder %s14, 1
    %p37 = por %p35, %p36
    %p39 = scmp.ne.s32.totalorder %s22, %s38
    %p40 = scmp.eq.s32.totalorder %s14, 0
    %p41 = por %p39, %p40
    %s43 = sadd.s32 %s42, 1
    %p46 = scmp.eq.s32.totalorder %s8, 1
    %p47 = scmp.ne.s32.totalorder %s42, %s44
    %p48 = scmp.eq.s32.totalorder %s8, 0
    %p49 = por %p47, %p48
    %p50 = scmp.ne.s32.totalorder %s42, %s44
    %p51 = scmp.eq.s32.totalorder %s13, 1
    %p52 = por %p50, %p51
    %p53 = scmp.ne.s32.totalorder %s44, %s45
    %p54 = scmp.eq.s32.totalorder %s13, 0
    %p55 = por %p53, %p54
    %p56 = scmp.ne.s32.totalorder %s44, %s45
    %p57 = scmp.eq.s32.totalorder %s14, 1
    %p58 = por %p56, %p57
    %p60 = scmp.ne.s32.totalorder %s45, %s59
    %p61 = scmp.eq.s32.totalorder %s14, 0
    %p62 = por %p60, %p61
    %s63 = ssub.s32 %s8, %s15
    %p64 = scmp.eq.s32.totalorder %s63, 0
    %s66 = sadd.s32 %s65, 1
    %s67 = scalar_select %p64, %s65, %s66
    %p70 = pneg %p64
    %p71 = scmp.eq.s32.totalorder %s8, 1
    %p72 = por %p70, %p71
    %p73 = scmp.ne.s32.totalorder %s65, %s68
    %p74 = scmp.eq.s32.totalorder %s8, 0
    %p75 = por %p73, %p74
    %p76 = scmp.ne.s32.totalorder %s65, %s68
    %p77 = scmp.eq.s32.totalorder %s13, 1
    %p78 = por %p76, %p77
    %p79 = scmp.ne.s32.totalorder %s68, %s69
    %p80 = scmp.eq.s32.totalorder %s13, 0
    %p81 = por %p79, %p80
    %p82 = scmp.ne.s32.totalorder %s68, %s69
    %p83 = scmp.eq.s32.totalorder %s14, 1
    %p84 = por %p82, %p83
    %p86 = scmp.ne.s32.totalorder %s69, %s85
    %p87 = scmp.eq.s32.totalorder %s14, 0
    %p88 = por %p86, %p87
    %p89 = scmp.le.s32.totalorder 1, %s8
    %p90 = scmp.lt.s32.totalorder %s8, 3
    %p91 = pnand %p89, %p90
    %p92 = pneg %p91
    // Predicated region
    $region9: #{generator_forward.6} parent=5 // pred_check
      _
    $region10: #{generator_forward.6} parent=5 // pred_check_branch
      %94 = sbr.rel (%p91) target = $region12
    $region11: #{generator_forward.6} parent=5 // pred_region
      %s95 = ssub.s32 %s8, 1
      // Predicated region
      $region13: #{generator_forward.6} parent=11 // pred_check
        %p96 = pneg %p55
      $region14: #{generator_forward.6} parent=11 // pred_check_branch
        %98 = sbr.rel (%p96) target = $region16
      $region15: #{generator_forward.6} parent=11 // pred_region
        _
      $region16: #{generator_forward.6} parent=11 // pred_fallthru
        _
    $region12: #{generator_forward.6} parent=5 // pred_fallthru
      _
    %p99 = scmp.lt.s32.totalorder %s8, 2
    // Predicated region
    $region17: #{generator_forward.6} parent=5 // pred_check
      %p100 = pneg %p99
    $region18: #{generator_forward.6} parent=5 // pred_check_branch
      %102 = sbr.rel (%p100) target = $region20
    $region19: #{generator_forward.6} parent=5 // pred_region
      // Predicated region
      $region21: #{generator_forward.6} parent=19 // pred_check
        %p103 = pneg %p28
      $region22: #{generator_forward.6} parent=19 // pred_check_branch
        %105 = sbr.rel (%p103) target = $region24
      $region23: #{generator_forward.6} parent=19 // pred_region
        %p106 = scmp.lt.s32.totalorder %s8, 1
        %s107 = scalar_select %p106, %s8, 1
        %s108 = smul.addr %s107, 6
        %s109 = smul.addr %s108, 4
        %s110 = scalar_lea.vmem %s0, %s109
      $region24: #{generator_forward.6} parent=19 // pred_fallthru
        _
    $region20: #{generator_forward.6} parent=5 // pred_fallthru
      _
    %p111 = scmp.le.s32.totalorder 1, %s8
    %p112 = scmp.lt.s32.totalorder %s8, 3
    %p113 = pnand %p111, %p112
    %p114 = pneg %p113
    // Predicated region
    $region25: #{generator_forward.6} parent=5 // pred_check
      _
    $region26: #{generator_forward.6} parent=5 // pred_check_branch
      %116 = sbr.rel (%p113) target = $region28
    $region27: #{generator_forward.6} parent=5 // pred_region
      %s117 = ssub.s32 %s8, 1
      %p118 = scmp.lt.s32.totalorder %s13, 1
      %s119 = scalar_select %p118, %s13, 1
      %s120 = smul.addr %s119, 6
      %s121 = smul.addr %s120, 4
      %s122 = scalar_lea.vmem %s0, %s121
      %p123 = pneg %p34
      %p124 = pneg %p31
      %p125 = pneg %p55
      %p126 = pneg %p52
      %p127 = pneg %p81
      %p128 = pneg %p78
      %p129 = scmp.lt.s32.totalorder %s13, 1
      %s130 = scalar_select %p129, %s13, 1
      %s131 = smul.addr %s130, 8
      %s132 = smul.addr %s131, 4
      %s133 = scalar_lea.vmem %s2, %s132
      %p134 = scmp.lt.s32.totalorder %s13, 1
      %s135 = scalar_select %p134, %s13, 1
      %s136 = smul.addr %s135, 6
      %s137 = smul.addr %s136, 4
      %s138 = scalar_lea.vmem %s0, %s137
      %p139 = scmp.lt.s32.totalorder %s13, 1
      %s140 = scalar_select %p139, %s13, 1
      %s141 = smul.addr %s140, 8
      %s142 = smul.addr %s141, 4
      %s143 = scalar_lea.vmem %s2, %s142
      %v145 = vld [vmem:[%s138] sm:$0x7]
      %v146 = vld [vmem:[%s138 + $0x4] sm:$0x7]
      %v147 = vld [vmem:[%s138 + $0x8] sm:$0x7]
      %v148 = vld [vmem:[%s138 + $0xc] sm:$0x7]
      %v149 = vld [vmem:[%s138 + $0x10] sm:$0x7]
      %v150 = vld [vmem:[%s138 + $0x14] sm:$0x7]
      %v151 = vmax.bf16 %v145, 0
      %v152 = vmax.bf16 %v146, 0
      %v153 = vmax.bf16 %v147, 0
      %v154 = vmax.bf16 %v148, 0
      %v155 = vmax.bf16 %v149, 0
      %v156 = vmax.bf16 %v150, 0
      %v161 = vunpack.c.l.b16 %v151
      %v162 = vunpack.c.l.b16 %v152
      %v163 = vunpack.c.l.b16 %v153
      %v164 = vunpack.c.l.b16 %v154
      %v165 = vpack.c.b16 %v161, %v161
      %v166 = vpack.c.b16 %v162, %v162
      %v167 = vpack.c.b16 %v163, %v163
      %v168 = vpack.c.b16 %v164, %v164
      %v170 = vshrl.u32 %v165, 16
      %v172 = vshll.u32 %v165, 16
      %v174 = vrot.slane %v172, 1
      %v175 = vor.u32 %v170, %v174
      %v177 = vshrl.u32 %v166, 16
      %v179 = vshll.u32 %v166, 16
      %v181 = vrot.slane %v179, 1
      %v182 = vor.u32 %v177, %v181
      %v184 = vshrl.u32 %v167, 16
      %v186 = vshll.u32 %v167, 16
      %v188 = vrot.slane %v186, 1
      %v189 = vor.u32 %v184, %v188
      %v191 = vshrl.u32 %v168, 16
      %v193 = vshll.u32 %v168, 16
      %v195 = vrot.slane %v193, 1
      %v196 = vor.u32 %v191, %v195
      %197 = vrot.lane.b32.xlu0 %v175, 64
      %v198 = vpop.permute.xlu0 %197
      %199 = vrot.lane.b32.xlu0 %v182, 64
      %v200 = vpop.permute.xlu0 %199
      %201 = vrot.lane.b32.xlu0 %v189, 64
      %v202 = vpop.permute.xlu0 %201
      %203 = vrot.lane.b32.xlu0 %v196, 64
      %v204 = vpop.permute.xlu0 %203
      %v206 = vunpack.c.l.b16 %v155
      %v207 = vpack.c.b16 %v206, %v206
      %v209 = vshrl.u32 %v207, 16
      %v211 = vshll.u32 %v207, 16
      %v213 = vrot.slane %v211, 1
      %v214 = vor.u32 %v209, %v213
      %215 = vrot.lane.b32.xlu0 %v214, 64
      %v216 = vpop.permute.xlu0 %215
      %vm217 = vcmask 523264
      %v220 = vsel %vm217, %v151, %v198
      %v223 = vsel %vm217, %v152, %v200
      %v226 = vsel %vm217, %v153, %v202
      %v229 = vsel %vm217, %v154, %v204
      %v232 = vsel %vm217, %v155, %v216
      %v238 = vcombine.low %v220, %v223
      %v240 = vunpack.c.l.s4 1983009808
      %v241 = vunpack.c.0.s8 %v240
      %v242 = vlaneseq
      %v243 = vshrl.u32 %v242, 7
      %v244 = vsub.s32 %v241, %v243
      %v245 = vrot.slane %v238, %v244
      %v246 = vcombine.low %v223, %v226
      %v248 = vunpack.c.l.s4 1983009808
      %v249 = vunpack.c.0.s8 %v248
      %v250 = vlaneseq
      %v251 = vshrl.u32 %v250, 7
      %v252 = vsub.s32 %v249, %v251
      %v253 = vrot.slane %v246, %v252
      %v254 = vcombine.low %v226, %v229
      %v256 = vunpack.c.l.s4 1983009808
      %v257 = vunpack.c.0.s8 %v256
      %v258 = vlaneseq
      %v259 = vshrl.u32 %v258, 7
      %v260 = vsub.s32 %v257, %v259
      %v261 = vrot.slane %v254, %v260
      %v262 = vcombine.low %v229, %v232
      %v264 = vunpack.c.l.s4 1983009808
      %v265 = vunpack.c.0.s8 %v264
      %v266 = vlaneseq
      %v267 = vshrl.u32 %v266, 7
      %v268 = vsub.s32 %v265, %v267
      %v269 = vrot.slane %v262, %v268
      %v270 = vld [vmem:[%s1] sm:$0xf]
      %v271 = vld [vmem:[%s1 + $0x4] sm:$0xf]
      %v272 = vld [vmem:[%s1 + $0x8] sm:$0xf]
      %v273 = vld [vmem:[%s1 + $0xc] sm:$0xf]
      %v274 = vld [vmem:[%s1 + $0x10] sm:$0xf]
      %v275 = vld [vmem:[%s1 + $0x14] sm:$0xf]
      %v276 = vld [vmem:[%s1 + $0x18] sm:$0xf]
      %v277 = vld [vmem:[%s1 + $0x1c] sm:$0xf]
      %v278 = vld [vmem:[%s1 + $0x20] sm:$0xf]
      %v279 = vld [vmem:[%s1 + $0x24] sm:$0xf]
      %v280 = vld [vmem:[%s1 + $0x28] sm:$0xf]
      %v281 = vld [vmem:[%s1 + $0x2c] sm:$0xf]
      %v282 = vld [vmem:[%s1 + $0x30] sm:$0xf]
      %v283 = vld [vmem:[%s1 + $0x34] sm:$0xf]
      %v284 = vld [vmem:[%s1 + $0x38] sm:$0xf]
      %v285 = vld [vmem:[%s1 + $0x3c] sm:$0xf]
      %v286 = vld [vmem:[%s1 + $0x40] sm:$0xf]
      %v287 = vld [vmem:[%s1 + $0x44] sm:$0xf]
      %v288 = vld [vmem:[%s1 + $0x48] sm:$0xf]
      %v289 = vld [vmem:[%s1 + $0x4c] sm:$0xf]
      %v290 = vld [vmem:[%s1 + $0x50] sm:$0xf]
      %v291 = vld [vmem:[%s1 + $0x54] sm:$0xf]
      %v292 = vld [vmem:[%s1 + $0x58] sm:$0xf]
      %v293 = vld [vmem:[%s1 + $0x5c] sm:$0xf]
      %v294 = vld [vmem:[%s1 + $0x60] sm:$0xf]
      %v295 = vld [vmem:[%s1 + $0x64] sm:$0xf]
      %v296 = vld [vmem:[%s1 + $0x68] sm:$0xf]
      %v297 = vld [vmem:[%s1 + $0x6c] sm:$0xf]
      %v298 = vld [vmem:[%s1 + $0x70] sm:$0xf]
      %v299 = vld [vmem:[%s1 + $0x74] sm:$0xf]
      %v300 = vld [vmem:[%s1 + $0x78] sm:$0xf]
      %v301 = vld [vmem:[%s1 + $0x7c] sm:$0xf]
      %v302 = vcombine.low %v245, %v253
      %v303 = vcombine.low %v261, %v269
      %v305 = vunpack.c.l.s4 1983009808
      %v306 = vunpack.c.0.s8 %v305
      %v307 = vlaneseq
      %v308 = vshrl.u32 %v307, 7
      %v309 = vsub.s32 %v306, %v308
      %v310 = vrot.slane %v302, %v309
      %v312 = vunpack.c.l.s4 1983009808
      %v313 = vunpack.c.0.s8 %v312
      %v314 = vlaneseq
      %v315 = vshrl.u32 %v314, 7
      %v316 = vsub.s32 %v313, %v315
      %v317 = vrot.slane %v303, %v316
      %v318 = vcombine.low %v310, %v317
      %v319 = vcombine.high %v310, %v317
      %v354 = vunpack.c.l.b16 %v270
      %v355 = vunpack.c.l.b16 %v271
      %v356 = vunpack.c.l.b16 %v272
      %v357 = vunpack.c.l.b16 %v273
      %v358 = vunpack.c.l.b16 %v274
      %v359 = vunpack.c.l.b16 %v275
      %v360 = vunpack.c.l.b16 %v276
      %v361 = vunpack.c.l.b16 %v277
      %v362 = vunpack.c.l.b16 %v278
      %v363 = vunpack.c.l.b16 %v279
      %v364 = vunpack.c.l.b16 %v280
      %v365 = vunpack.c.l.b16 %v281
      %v366 = vunpack.c.l.b16 %v282
      %v367 = vunpack.c.l.b16 %v283
      %v368 = vunpack.c.l.b16 %v284
      %v369 = vunpack.c.l.b16 %v285
      %v370 = vunpack.c.l.b16 %v286
      %v371 = vunpack.c.l.b16 %v287
      %v372 = vunpack.c.l.b16 %v288
      %v373 = vunpack.c.l.b16 %v289
      %v374 = vunpack.c.l.b16 %v290
      %v375 = vunpack.c.l.b16 %v291
      %v376 = vunpack.c.l.b16 %v292
      %v377 = vunpack.c.l.b16 %v293
      %v378 = vunpack.c.l.b16 %v294
      %v379 = vunpack.c.l.b16 %v295
      %v380 = vunpack.c.l.b16 %v296
      %v381 = vunpack.c.l.b16 %v297
      %v382 = vunpack.c.l.b16 %v298
      %v383 = vunpack.c.l.b16 %v299
      %v384 = vunpack.c.l.b16 %v300
      %v385 = vunpack.c.l.b16 %v301
      %v386 = vpack.c.b16 %v355, %v354
      %v387 = vpack.c.b16 %v357, %v356
      %v388 = vpack.c.b16 %v359, %v358
      %v389 = vpack.c.b16 %v361, %v360
      %v390 = vpack.c.b16 %v363, %v362
      %v391 = vpack.c.b16 %v365, %v364
      %v392 = vpack.c.b16 %v367, %v366
      %v393 = vpack.c.b16 %v369, %v368
      %v394 = vpack.c.b16 %v371, %v370
      %v395 = vpack.c.b16 %v373, %v372
      %v396 = vpack.c.b16 %v375, %v374
      %v397 = vpack.c.b16 %v377, %v376
      %v398 = vpack.c.b16 %v379, %v378
      %v399 = vpack.c.b16 %v381, %v380
      %v400 = vpack.c.b16 %v383, %v382
      %v401 = vpack.c.b16 %v385, %v384
      %418 = vmatprep.subr.bf16.mxu0 0
      %419 = vmatpush1.bf16.msra.mxu0 %v386
      %420 = vmatprep.subr.bf16.mxu0 0
      %421 = vmatpush1.bf16.msra.mxu0 %v387
      %422 = vmatprep.subr.bf16.mxu0 0
      %423 = vmatpush1.bf16.msra.mxu0 %v388
      %424 = vmatprep.subr.bf16.mxu0 0
      %425 = vmatpush1.bf16.msra.mxu0 %v389
      %426 = vmatprep.subr.bf16.mxu0 0
      %427 = vmatpush1.bf16.msra.mxu0 %v390
      %428 = vmatprep.subr.bf16.mxu0 0
      %429 = vmatpush1.bf16.msra.mxu0 %v391
      %430 = vmatprep.subr.bf16.mxu0 0
      %431 = vmatpush1.bf16.msra.mxu0 %v392
      %432 = vmatprep.subr.bf16.mxu0 0
      %433 = vmatpush1.bf16.msra.mxu0 %v393
      %434 = vmatprep.subr.bf16.mxu0 0
      %435 = vmatpush1.bf16.msra.mxu0 %v394
      %436 = vmatprep.subr.bf16.mxu0 0
      %437 = vmatpush1.bf16.msra.mxu0 %v395
      %438 = vmatprep.subr.bf16.mxu0 0
      %439 = vmatpush1.bf16.msra.mxu0 %v396
      %440 = vmatprep.subr.bf16.mxu0 0
      %441 = vmatpush1.bf16.msra.mxu0 %v397
      %442 = vmatprep.subr.bf16.mxu0 0
      %443 = vmatpush1.bf16.msra.mxu0 %v398
      %444 = vmatprep.subr.bf16.mxu0 0
      %445 = vmatpush1.bf16.msra.mxu0 %v399
      %446 = vmatprep.subr.bf16.mxu0 0
      %447 = vmatpush1.bf16.msra.mxu0 %v400
      %448 = vmatprep.subr.bf16.mxu0 0
      %449 = vmatpush1.bf16.msra.mxu0 %v401
      %450 = vmatprep.mubr.bf16.mxu0 %v319
      %451 = vmatmul.mubr.bf16.gmra.mrb[0].mxu0 %v318
      %v452 = vpop.f32.mrb[0].mxu0
      %v453 = vadd.f32 0.0, %v452
      %v454 = vpop.f32.mrb[0].mxu0
      %v455 = vpop.f32.mrb[0].mxu0
      %v456 = vadd.f32 0.0, %v455
      %v457 = vpop.f32.mrb[0].mxu0
      %458 = vdwg.mxu0
      %v459 = vcombine.high %v245, %v245
      %v460 = vcombine.high %v253, %v253
      %v461 = vcombine.high %v261, %v261
      %v462 = vcombine.high %v269, %v269
      %vm463 = vsmask.f32 1280
      %vm464 = vsmask.f32 3336
      %vm465 = vmor %vm463, %vm464
      %vm466 = vsmask.f32 5392
      %vm467 = vmor %vm465, %vm466
      %vm468 = vsmask.f32 7448
      %vm469 = vmor %vm467, %vm468
      %v471 = vshrl.u32 %v245, 16
      %v473 = vrot.slane %v471, 6
      %v474 = vshll.u32 %v245, 16
      %v476 = vrot.slane %v474, 7
      %v477 = vor.u32 %v473, %v476
      %v478 = vrot.slane %v477, 2
      %v480 = vshll.u32 %v459, 16
      %v482 = vrot.slane %v480, 7
      %v483 = vsel %vm469, %v478, %v482
      %v485 = vshrl.u32 %v253, 16
      %v487 = vrot.slane %v485, 6
      %v488 = vshll.u32 %v253, 16
      %v490 = vrot.slane %v488, 7
      %v491 = vor.u32 %v487, %v490
      %v492 = vrot.slane %v491, 2
      %v494 = vshll.u32 %v460, 16
      %v496 = vrot.slane %v494, 7
      %v497 = vsel %vm469, %v492, %v496
      %v499 = vshrl.u32 %v261, 16
      %v501 = vrot.slane %v499, 6
      %v502 = vshll.u32 %v261, 16
      %v504 = vrot.slane %v502, 7
      %v505 = vor.u32 %v501, %v504
      %v506 = vrot.slane %v505, 2
      %v508 = vshll.u32 %v461, 16
      %v510 = vrot.slane %v508, 7
      %v511 = vsel %vm469, %v506, %v510
      %v513 = vshrl.u32 %v269, 16
      %v515 = vrot.slane %v513, 6
      %v516 = vshll.u32 %v269, 16
      %v518 = vrot.slane %v516, 7
      %v519 = vor.u32 %v515, %v518
      %v520 = vrot.slane %v519, 2
      %v522 = vshll.u32 %v462, 16
      %v524 = vrot.slane %v522, 7
      %v525 = vsel %vm469, %v520, %v524
      %s526 = scalar_lea.vmem %s1, 128
      %v527 = vld [vmem:[%s526] sm:$0xf]
      %v528 = vld [vmem:[%s526 + $0x4] sm:$0xf]
      %v529 = vld [vmem:[%s526 + $0x8] sm:$0xf]
      %v530 = vld [vmem:[%s526 + $0xc] sm:$0xf]
      %v531 = vld [vmem:[%s526 + $0x10] sm:$0xf]
      %v532 = vld [vmem:[%s526 + $0x14] sm:$0xf]
      %v533 = vld [vmem:[%s526 + $0x18] sm:$0xf]
      %v534 = vld [vmem:[%s526 + $0x1c] sm:$0xf]
      %v535 = vld [vmem:[%s526 + $0x20] sm:$0xf]
      %v536 = vld [vmem:[%s526 + $0x24] sm:$0xf]
      %v537 = vld [vmem:[%s526 + $0x28] sm:$0xf]
      %v538 = vld [vmem:[%s526 + $0x2c] sm:$0xf]
      %v539 = vld [vmem:[%s526 + $0x30] sm:$0xf]
      %v540 = vld [vmem:[%s526 + $0x34] sm:$0xf]
      %v541 = vld [vmem:[%s526 + $0x38] sm:$0xf]
      %v542 = vld [vmem:[%s526 + $0x3c] sm:$0xf]
      %v543 = vld [vmem:[%s526 + $0x40] sm:$0xf]
      %v544 = vld [vmem:[%s526 + $0x44] sm:$0xf]
      %v545 = vld [vmem:[%s526 + $0x48] sm:$0xf]
      %v546 = vld [vmem:[%s526 + $0x4c] sm:$0xf]
      %v547 = vld [vmem:[%s526 + $0x50] sm:$0xf]
      %v548 = vld [vmem:[%s526 + $0x54] sm:$0xf]
      %v549 = vld [vmem:[%s526 + $0x58] sm:$0xf]
      %v550 = vld [vmem:[%s526 + $0x5c] sm:$0xf]
      %v551 = vld [vmem:[%s526 + $0x60] sm:$0xf]
      %v552 = vld [vmem:[%s526 + $0x64] sm:$0xf]
      %v553 = vld [vmem:[%s526 + $0x68] sm:$0xf]
      %v554 = vld [vmem:[%s526 + $0x6c] sm:$0xf]
      %v555 = vld [vmem:[%s526 + $0x70] sm:$0xf]
      %v556 = vld [vmem:[%s526 + $0x74] sm:$0xf]
      %v557 = vld [vmem:[%s526 + $0x78] sm:$0xf]
      %v558 = vld [vmem:[%s526 + $0x7c] sm:$0xf]
      %v559 = vcombine.low %v483, %v497
      %v560 = vcombine.low %v511, %v525
      %v562 = vunpack.c.l.s4 1983009808
      %v563 = vunpack.c.0.s8 %v562
      %v564 = vlaneseq
      %v565 = vshrl.u32 %v564, 7
      %v566 = vsub.s32 %v563, %v565
      %v567 = vrot.slane %v559, %v566
      %v569 = vunpack.c.l.s4 1983009808
      %v570 = vunpack.c.0.s8 %v569
      %v571 = vlaneseq
      %v572 = vshrl.u32 %v571, 7
      %v573 = vsub.s32 %v570, %v572
      %v574 = vrot.slane %v560, %v573
      %v575 = vcombine.low %v567, %v574
      %v576 = vcombine.high %v567, %v574
      %v611 = vunpack.c.l.b16 %v527
      %v612 = vunpack.c.l.b16 %v528
      %v613 = vunpack.c.l.b16 %v529
      %v614 = vunpack.c.l.b16 %v530
      %v615 = vunpack.c.l.b16 %v531
      %v616 = vunpack.c.l.b16 %v532
      %v617 = vunpack.c.l.b16 %v533
      %v618 = vunpack.c.l.b16 %v534
      %v619 = vunpack.c.l.b16 %v535
      %v620 = vunpack.c.l.b16 %v536
      %v621 = vunpack.c.l.b16 %v537
      %v622 = vunpack.c.l.b16 %v538
      %v623 = vunpack.c.l.b16 %v539
      %v624 = vunpack.c.l.b16 %v540
      %v625 = vunpack.c.l.b16 %v541
      %v626 = vunpack.c.l.b16 %v542
      %v627 = vunpack.c.l.b16 %v543
      %v628 = vunpack.c.l.b16 %v544
      %v629 = vunpack.c.l.b16 %v545
      %v630 = vunpack.c.l.b16 %v546
      %v631 = vunpack.c.l.b16 %v547
      %v632 = vunpack.c.l.b16 %v548
      %v633 = vunpack.c.l.b16 %v549
      %v634 = vunpack.c.l.b16 %v550
      %v635 = vunpack.c.l.b16 %v551
      %v636 = vunpack.c.l.b16 %v552
      %v637 = vunpack.c.l.b16 %v553
      %v638 = vunpack.c.l.b16 %v554
      %v639 = vunpack.c.l.b16 %v555
      %v640 = vunpack.c.l.b16 %v556
      %v641 = vunpack.c.l.b16 %v557
      %v642 = vunpack.c.l.b16 %v558
      %v643 = vpack.c.b16 %v612, %v611
      %v644 = vpack.c.b16 %v614, %v613
      %v645 = vpack.c.b16 %v616, %v615
      %v646 = vpack.c.b16 %v618, %v617
      %v647 = vpack.c.b16 %v620, %v619
      %v648 = vpack.c.b16 %v622, %v621
      %v649 = vpack.c.b16 %v624, %v623
      %v650 = vpack.c.b16 %v626, %v625
      %v651 = vpack.c.b16 %v628, %v627
      %v652 = vpack.c.b16 %v630, %v629
      %v653 = vpack.c.b16 %v632, %v631
      %v654 = vpack.c.b16 %v634, %v633
      %v655 = vpack.c.b16 %v636, %v635
      %v656 = vpack.c.b16 %v638, %v637
      %v657 = vpack.c.b16 %v640, %v639
      %v658 = vpack.c.b16 %v642, %v641
      %675 = vmatprep.subr.bf16.mxu0 0
      %676 = vmatpush1.bf16.msra.mxu0 %v643
      %677 = vmatprep.subr.bf16.mxu0 0
      %678 = vmatpush1.bf16.msra.mxu0 %v644
      %679 = vmatprep.subr.bf16.mxu0 0
      %680 = vmatpush1.bf16.msra.mxu0 %v645
      %681 = vmatprep.subr.bf16.mxu0 0
      %682 = vmatpush1.bf16.msra.mxu0 %v646
      %683 = vmatprep.subr.bf16.mxu0 0
      %684 = vmatpush1.bf16.msra.mxu0 %v647
      %685 = vmatprep.subr.bf16.mxu0 0
      %686 = vmatpush1.bf16.msra.mxu0 %v648
      %687 = vmatprep.subr.bf16.mxu0 0
      %688 = vmatpush1.bf16.msra.mxu0 %v649
      %689 = vmatprep.subr.bf16.mxu0 0
      %690 = vmatpush1.bf16.msra.mxu0 %v650
      %691 = vmatprep.subr.bf16.mxu0 0
      %692 = vmatpush1.bf16.msra.mxu0 %v651
      %693 = vmatprep.subr.bf16.mxu0 0
      %694 = vmatpush1.bf16.msra.mxu0 %v652
      %695 = vmatprep.subr.bf16.mxu0 0
      %696 = vmatpush1.bf16.msra.mxu0 %v653
      %697 = vmatprep.subr.bf16.mxu0 0
      %698 = vmatpush1.bf16.msra.mxu0 %v654
      %699 = vmatprep.subr.bf16.mxu0 0
      %700 = vmatpush1.bf16.msra.mxu0 %v655
      %701 = vmatprep.subr.bf16.mxu0 0
      %702 = vmatpush1.bf16.msra.mxu0 %v656
      %703 = vmatprep.subr.bf16.mxu0 0
      %704 = vmatpush1.bf16.msra.mxu0 %v657
      %705 = vmatprep.subr.bf16.mxu0 0
      %706 = vmatpush1.bf16.msra.mxu0 %v658
      %707 = vmatprep.mubr.bf16.mxu0 %v576
      %708 = vmatmul.mubr.bf16.gmra.mrb[0].mxu0 %v575
      %v709 = vpop.f32.mrb[0].mxu0
      %v710 = vadd.f32 0.0, %v709
      %v711 = vpop.f32.mrb[0].mxu0
      %v712 = vpop.f32.mrb[0].mxu0
      %v713 = vadd.f32 0.0, %v712
      %v714 = vpop.f32.mrb[0].mxu0
      %715 = vdwg.mxu0
      %718 = vrot.lane.b32.xlu0 %v710, 32
      %v719 = vpop.permute.xlu0 %718
      %720 = vrot.lane.b32.xlu0 %v713, 32
      %v721 = vpop.permute.xlu0 %720
      %vm724 = vcmask 261120
      %v725 = vsel %vm724, %v453, %v719
      %v726 = vsel %vm724, %v456, %v721
      %v728 = vunpack.c.l.b16 %v156
      %v729 = vpack.c.b16 %v728, %v728
      %v731 = vshrl.u32 %v729, 16
      %v733 = vshll.u32 %v729, 16
      %v735 = vrot.slane %v733, 1
      %v736 = vor.u32 %v731, %v735
      %737 = vrot.lane.b32.xlu0 %v736, 64
      %v738 = vpop.permute.xlu0 %737
      %v741 = vsel %vm217, %v156, %v738
      %v743 = vcombine.low %v232, %v741
      %v745 = vunpack.c.l.s4 1983009808
      %v746 = vunpack.c.0.s8 %v745
      %v747 = vlaneseq
      %v748 = vshrl.u32 %v747, 7
      %v749 = vsub.s32 %v746, %v748
      %v750 = vrot.slane %v743, %v749
      %s751 = scalar_lea.vmem %s1, 256
      %v752 = vld [vmem:[%s751] sm:$0xf]
      %v753 = vld [vmem:[%s751 + $0x4] sm:$0xf]
      %v754 = vld [vmem:[%s751 + $0x8] sm:$0xf]
      %v755 = vld [vmem:[%s751 + $0xc] sm:$0xf]
      %v756 = vld [vmem:[%s751 + $0x10] sm:$0xf]
      %v757 = vld [vmem:[%s751 + $0x14] sm:$0xf]
      %v758 = vld [vmem:[%s751 + $0x18] sm:$0xf]
      %v759 = vld [vmem:[%s751 + $0x1c] sm:$0xf]
      %v760 = vld [vmem:[%s751 + $0x20] sm:$0xf]
      %v761 = vld [vmem:[%s751 + $0x24] sm:$0xf]
      %v762 = vld [vmem:[%s751 + $0x28] sm:$0xf]
      %v763 = vld [vmem:[%s751 + $0x2c] sm:$0xf]
      %v764 = vld [vmem:[%s751 + $0x30] sm:$0xf]
      %v765 = vld [vmem:[%s751 + $0x34] sm:$0xf]
      %v766 = vld [vmem:[%s751 + $0x38] sm:$0xf]
      %v767 = vld [vmem:[%s751 + $0x3c] sm:$0xf]
      %v768 = vld [vmem:[%s751 + $0x40] sm:$0xf]
      %v769 = vld [vmem:[%s751 + $0x44] sm:$0xf]
      %v770 = vld [vmem:[%s751 + $0x48] sm:$0xf]
      %v771 = vld [vmem:[%s751 + $0x4c] sm:$0xf]
      %v772 = vld [vmem:[%s751 + $0x50] sm:$0xf]
      %v773 = vld [vmem:[%s751 + $0x54] sm:$0xf]
      %v774 = vld [vmem:[%s751 + $0x58] sm:$0xf]
      %v775 = vld [vmem:[%s751 + $0x5c] sm:$0xf]
      %v776 = vld [vmem:[%s751 + $0x60] sm:$0xf]
      %v777 = vld [vmem:[%s751 + $0x64] sm:$0xf]
      %v778 = vld [vmem:[%s751 + $0x68] sm:$0xf]
      %v779 = vld [vmem:[%s751 + $0x6c] sm:$0xf]
      %v780 = vld [vmem:[%s751 + $0x70] sm:$0xf]
      %v781 = vld [vmem:[%s751 + $0x74] sm:$0xf]
      %v782 = vld [vmem:[%s751 + $0x78] sm:$0xf]
      %v783 = vld [vmem:[%s751 + $0x7c] sm:$0xf]
      %v784 = vcombine.low %v253, %v261
      %v785 = vcombine.low %v269, %v750
      %v787 = vunpack.c.l.s4 1983009808
      %v788 = vunpack.c.0.s8 %v787
      %v789 = vlaneseq
      %v790 = vshrl.u32 %v789, 7
      %v791 = vsub.s32 %v788, %v790
      %v792 = vrot.slane %v784, %v791
      %v794 = vunpack.c.l.s4 1983009808
      %v795 = vunpack.c.0.s8 %v794
      %v796 = vlaneseq
      %v797 = vshrl.u32 %v796, 7
      %v798 = vsub.s32 %v795, %v797
      %v799 = vrot.slane %v785, %v798
      %v800 = vcombine.low %v792, %v799
      %v801 = vcombine.high %v792, %v799
      %v836 = vunpack.c.l.b16 %v752
      %v837 = vunpack.c.l.b16 %v753
      %v838 = vunpack.c.l.b16 %v754
      %v839 = vunpack.c.l.b16 %v755
      %v840 = vunpack.c.l.b16 %v756
      %v841 = vunpack.c.l.b16 %v757
      %v842 = vunpack.c.l.b16 %v758
      %v843 = vunpack.c.l.b16 %v759
      %v844 = vunpack.c.l.b16 %v760
      %v845 = vunpack.c.l.b16 %v761
      %v846 = vunpack.c.l.b16 %v762
      %v847 = vunpack.c.l.b16 %v763
      %v848 = vunpack.c.l.b16 %v764
      %v849 = vunpack.c.l.b16 %v765
      %v850 = vunpack.c.l.b16 %v766
      %v851 = vunpack.c.l.b16 %v767
      %v852 = vunpack.c.l.b16 %v768
      %v853 = vunpack.c.l.b16 %v769
      %v854 = vunpack.c.l.b16 %v770
      %v855 = vunpack.c.l.b16 %v771
      %v856 = vunpack.c.l.b16 %v772
      %v857 = vunpack.c.l.b16 %v773
      %v858 = vunpack.c.l.b16 %v774
      %v859 = vunpack.c.l.b16 %v775
      %v860 = vunpack.c.l.b16 %v776
      %v861 = vunpack.c.l.b16 %v777
      %v862 = vunpack.c.l.b16 %v778
      %v863 = vunpack.c.l.b16 %v779
      %v864 = vunpack.c.l.b16 %v780
      %v865 = vunpack.c.l.b16 %v781
      %v866 = vunpack.c.l.b16 %v782
      %v867 = vunpack.c.l.b16 %v783
      %v868 = vpack.c.b16 %v837, %v836
      %v869 = vpack.c.b16 %v839, %v838
      %v870 = vpack.c.b16 %v841, %v840
      %v871 = vpack.c.b16 %v843, %v842
      %v872 = vpack.c.b16 %v845, %v844
      %v873 = vpack.c.b16 %v847, %v846
      %v874 = vpack.c.b16 %v849, %v848
      %v875 = vpack.c.b16 %v851, %v850
      %v876 = vpack.c.b16 %v853, %v852
      %v877 = vpack.c.b16 %v855, %v854
      %v878 = vpack.c.b16 %v857, %v856
      %v879 = vpack.c.b16 %v859, %v858
      %v880 = vpack.c.b16 %v861, %v860
      %v881 = vpack.c.b16 %v863, %v862
      %v882 = vpack.c.b16 %v865, %v864
      %v883 = vpack.c.b16 %v867, %v866
      %900 = vmatprep.subr.bf16.mxu0 0
      %901 = vmatpush1.bf16.msra.mxu0 %v868
      %902 = vmatprep.subr.bf16.mxu0 0
      %903 = vmatpush1.bf16.msra.mxu0 %v869
      %904 = vmatprep.subr.bf16.mxu0 0
      %905 = vmatpush1.bf16.msra.mxu0 %v870
      %906 = vmatprep.subr.bf16.mxu0 0
      %907 = vmatpush1.bf16.msra.mxu0 %v871
      %908 = vmatprep.subr.bf16.mxu0 0
      %909 = vmatpush1.bf16.msra.mxu0 %v872
      %910 = vmatprep.subr.bf16.mxu0 0
      %911 = vmatpush1.bf16.msra.mxu0 %v873
      %912 = vmatprep.subr.bf16.mxu0 0
      %913 = vmatpush1.bf16.msra.mxu0 %v874
      %914 = vmatprep.subr.bf16.mxu0 0
      %915 = vmatpush1.bf16.msra.mxu0 %v875
      %916 = vmatprep.subr.bf16.mxu0 0
      %917 = vmatpush1.bf16.msra.mxu0 %v876
      %918 = vmatprep.subr.bf16.mxu0 0
      %919 = vmatpush1.bf16.msra.mxu0 %v877
      %920 = vmatprep.subr.bf16.mxu0 0
      %921 = vmatpush1.bf16.msra.mxu0 %v878
      %922 = vmatprep.subr.bf16.mxu0 0
      %923 = vmatpush1.bf16.msra.mxu0 %v879
      %924 = vmatprep.subr.bf16.mxu0 0
      %925 = vmatpush1.bf16.msra.mxu0 %v880
      %926 = vmatprep.subr.bf16.mxu0 0
      %927 = vmatpush1.bf16.msra.mxu0 %v881
      %928 = vmatprep.subr.bf16.mxu0 0
      %929 = vmatpush1.bf16.msra.mxu0 %v882
      %930 = vmatprep.subr.bf16.mxu0 0
      %931 = vmatpush1.bf16.msra.mxu0 %v883
      %932 = vmatprep.mubr.bf16.mxu0 %v801
      %933 = vmatmul.mubr.bf16.gmra.mrb[0].mxu0 %v800
      %v934 = vpop.f32.mrb[0].mxu0
      %v935 = vadd.f32 0.0, %v934
      %v936 = vpop.f32.mrb[0].mxu0
      %v937 = vpop.f32.mrb[0].mxu0
      %v938 = vadd.f32 0.0, %v937
      %v939 = vpop.f32.mrb[0].mxu0
      %940 = vdwg.mxu0
      %v941 = vcombine.high %v750, %v750
      %v943 = vshrl.u32 %v750, 16
      %v945 = vrot.slane %v943, 6
      %v946 = vshll.u32 %v750, 16
      %v948 = vrot.slane %v946, 7
      %v949 = vor.u32 %v945, %v948
      %v950 = vrot.slane %v949, 2
      %v952 = vshll.u32 %v941, 16
      %v954 = vrot.slane %v952, 7
      %v955 = vsel %vm469, %v950, %v954
      %s956 = scalar_lea.vmem %s1, 384
      %v957 = vld [vmem:[%s956] sm:$0xf]
      %v958 = vld [vmem:[%s956 + $0x4] sm:$0xf]
      %v959 = vld [vmem:[%s956 + $0x8] sm:$0xf]
      %v960 = vld [vmem:[%s956 + $0xc] sm:$0xf]
      %v961 = vld [vmem:[%s956 + $0x10] sm:$0xf]
      %v962 = vld [vmem:[%s956 + $0x14] sm:$0xf]
      %v963 = vld [vmem:[%s956 + $0x18] sm:$0xf]
      %v964 = vld [vmem:[%s956 + $0x1c] sm:$0xf]
      %v965 = vld [vmem:[%s956 + $0x20] sm:$0xf]
      %v966 = vld [vmem:[%s956 + $0x24] sm:$0xf]
      %v967 = vld [vmem:[%s956 + $0x28] sm:$0xf]
      %v968 = vld [vmem:[%s956 + $0x2c] sm:$0xf]
      %v969 = vld [vmem:[%s956 + $0x30] sm:$0xf]
      %v970 = vld [vmem:[%s956 + $0x34] sm:$0xf]
      %v971 = vld [vmem:[%s956 + $0x38] sm:$0xf]
      %v972 = vld [vmem:[%s956 + $0x3c] sm:$0xf]
      %v973 = vld [vmem:[%s956 + $0x40] sm:$0xf]
      %v974 = vld [vmem:[%s956 + $0x44] sm:$0xf]
      %v975 = vld [vmem:[%s956 + $0x48] sm:$0xf]
      %v976 = vld [vmem:[%s956 + $0x4c] sm:$0xf]
      %v977 = vld [vmem:[%s956 + $0x50] sm:$0xf]
      %v978 = vld [vmem:[%s956 + $0x54] sm:$0xf]
      %v979 = vld [vmem:[%s956 + $0x58] sm:$0xf]
      %v980 = vld [vmem:[%s956 + $0x5c] sm:$0xf]
      %v981 = vld [vmem:[%s956 + $0x60] sm:$0xf]
      %v982 = vld [vmem:[%s956 + $0x64] sm:$0xf]
      %v983 = vld [vmem:[%s956 + $0x68] sm:$0xf]
      %v984 = vld [vmem:[%s956 + $0x6c] sm:$0xf]
      %v985 = vld [vmem:[%s956 + $0x70] sm:$0xf]
      %v986 = vld [vmem:[%s956 + $0x74] sm:$0xf]
      %v987 = vld [vmem:[%s956 + $0x78] sm:$0xf]
      %v988 = vld [vmem:[%s956 + $0x7c] sm:$0xf]
      %v989 = vcombine.low %v497, %v511
      %v990 = vcombine.low %v525, %v955
      %v992 = vunpack.c.l.s4 1983009808
      %v993 = vunpack.c.0.s8 %v992
      %v994 = vlaneseq
      %v995 = vshrl.u32 %v994, 7
      %v996 = vsub.s32 %v993, %v995
      %v997 = vrot.slane %v989, %v996
      %v999 = vunpack.c.l.s4 1983009808
      %v1000 = vunpack.c.0.s8 %v999
      %v1001 = vlaneseq
      %v1002 = vshrl.u32 %v1001, 7
      %v1003 = vsub.s32 %v1000, %v1002
      %v1004 = vrot.slane %v990, %v1003
      %v1005 = vcombine.low %v997, %v1004
      %v1006 = vcombine.high %v997, %v1004
      %v1041 = vunpack.c.l.b16 %v957
      %v1042 = vunpack.c.l.b16 %v958
      %v1043 = vunpack.c.l.b16 %v959
      %v1044 = vunpack.c.l.b16 %v960
      %v1045 = vunpack.c.l.b16 %v961
      %v1046 = vunpack.c.l.b16 %v962
      %v1047 = vunpack.c.l.b16 %v963
      %v1048 = vunpack.c.l.b16 %v964
      %v1049 = vunpack.c.l.b16 %v965
      %v1050 = vunpack.c.l.b16 %v966
      %v1051 = vunpack.c.l.b16 %v967
      %v1052 = vunpack.c.l.b16 %v968
      %v1053 = vunpack.c.l.b16 %v969
      %v1054 = vunpack.c.l.b16 %v970
      %v1055 = vunpack.c.l.b16 %v971
      %v1056 = vunpack.c.l.b16 %v972
      %v1057 = vunpack.c.l.b16 %v973
      %v1058 = vunpack.c.l.b16 %v974
      %v1059 = vunpack.c.l.b16 %v975
      %v1060 = vunpack.c.l.b16 %v976
      %v1061 = vunpack.c.l.b16 %v977
      %v1062 = vunpack.c.l.b16 %v978
      %v1063 = vunpack.c.l.b16 %v979
      %v1064 = vunpack.c.l.b16 %v980
      %v1065 = vunpack.c.l.b16 %v981
      %v1066 = vunpack.c.l.b16 %v982
      %v1067 = vunpack.c.l.b16 %v983
      %v1068 = vunpack.c.l.b16 %v984
      %v1069 = vunpack.c.l.b16 %v985
      %v1070 = vunpack.c.l.b16 %v986
      %v1071 = vunpack.c.l.b16 %v987
      %v1072 = vunpack.c.l.b16 %v988
      %v1073 = vpack.c.b16 %v1042, %v1041
      %v1074 = vpack.c.b16 %v1044, %v1043
      %v1075 = vpack.c.b16 %v1046, %v1045
      %v1076 = vpack.c.b16 %v1048, %v1047
      %v1077 = vpack.c.b16 %v1050, %v1049
      %v1078 = vpack.c.b16 %v1052, %v1051
      %v1079 = vpack.c.b16 %v1054, %v1053
      %v1080 = vpack.c.b16 %v1056, %v1055
      %v1081 = vpack.c.b16 %v1058, %v1057
      %v1082 = vpack.c.b16 %v1060, %v1059
      %v1083 = vpack.c.b16 %v1062, %v1061
      %v1084 = vpack.c.b16 %v1064, %v1063
      %v1085 = vpack.c.b16 %v1066, %v1065
      %v1086 = vpack.c.b16 %v1068, %v1067
      %v1087 = vpack.c.b16 %v1070, %v1069
      %v1088 = vpack.c.b16 %v1072, %v1071
      %1105 = vmatprep.subr.bf16.mxu0 0
      %1106 = vmatpush1.bf16.msra.mxu0 %v1073
      %1107 = vmatprep.subr.bf16.mxu0 0
      %1108 = vmatpush1.bf16.msra.mxu0 %v1074
      %1109 = vmatprep.subr.bf16.mxu0 0
      %1110 = vmatpush1.bf16.msra.mxu0 %v1075
      %1111 = vmatprep.subr.bf16.mxu0 0
      %1112 = vmatpush1.bf16.msra.mxu0 %v1076
      %1113 = vmatprep.subr.bf16.mxu0 0
      %1114 = vmatpush1.bf16.msra.mxu0 %v1077
      %1115 = vmatprep.subr.bf16.mxu0 0
      %1116 = vmatpush1.bf16.msra.mxu0 %v1078
      %1117 = vmatprep.subr.bf16.mxu0 0
      %1118 = vmatpush1.bf16.msra.mxu0 %v1079
      %1119 = vmatprep.subr.bf16.mxu0 0
      %1120 = vmatpush1.bf16.msra.mxu0 %v1080
      %1121 = vmatprep.subr.bf16.mxu0 0
      %1122 = vmatpush1.bf16.msra.mxu0 %v1081
      %1123 = vmatprep.subr.bf16.mxu0 0
      %1124 = vmatpush1.bf16.msra.mxu0 %v1082
      %1125 = vmatprep.subr.bf16.mxu0 0
      %1126 = vmatpush1.bf16.msra.mxu0 %v1083
      %1127 = vmatprep.subr.bf16.mxu0 0
      %1128 = vmatpush1.bf16.msra.mxu0 %v1084
      %1129 = vmatprep.subr.bf16.mxu0 0
      %1130 = vmatpush1.bf16.msra.mxu0 %v1085
      %1131 = vmatprep.subr.bf16.mxu0 0
      %1132 = vmatpush1.bf16.msra.mxu0 %v1086
      %1133 = vmatprep.subr.bf16.mxu0 0
      %1134 = vmatpush1.bf16.msra.mxu0 %v1087
      %1135 = vmatprep.subr.bf16.mxu0 0
      %1136 = vmatpush1.bf16.msra.mxu0 %v1088
      %1137 = vmatprep.mubr.bf16.mxu0 %v1006
      %1138 = vmatmul.mubr.bf16.gmra.mrb[0].mxu0 %v1005
      %v1139 = vpop.f32.mrb[0].mxu0
      %v1140 = vadd.f32 0.0, %v1139
      %v1141 = vpop.f32.mrb[0].mxu0
      %v1142 = vpop.f32.mrb[0].mxu0
      %v1143 = vadd.f32 0.0, %v1142
      %v1144 = vpop.f32.mrb[0].mxu0
      %1145 = vdwg.mxu0
      %1148 = vrot.lane.b32.xlu0 %v1140, 32
      %v1149 = vpop.permute.xlu0 %1148
      %1150 = vrot.lane.b32.xlu0 %v1143, 32
      %v1151 = vpop.permute.xlu0 %1150
      %v1154 = vsel %vm724, %v935, %v1149
      %v1155 = vsel %vm724, %v938, %v1151
      %v1158 = vcombine.high %v725, %v725
      %v1159 = vcombine.high %v726, %v726
      %v1164 = vcombine.high %v1154, %v1154
      %v1165 = vcombine.high %v1155, %v1155
      %vm1168 = vcmask 519168
      %1169 = vst.msk [vmem:[%s143] sm:$0xf] %vm1168, %v725
      %1170 = vst.msk [vmem:[%s143 + $0x4] sm:$0xf] %vm1168, %v1154
      %1171 = vst.msk [vmem:[%s143 + $0x8] sm:$0xf] %vm1168, %v1158
      %1172 = vst.msk [vmem:[%s143 + $0xc] sm:$0xf] %vm1168, %v1164
      %1173 = vst.msk [vmem:[%s143 + $0x10] sm:$0xf] %vm1168, %v726
      %1174 = vst.msk [vmem:[%s143 + $0x14] sm:$0xf] %vm1168, %v1155
      %1175 = vst.msk [vmem:[%s143 + $0x18] sm:$0xf] %vm1168, %v1159
      %1176 = vst.msk [vmem:[%s143 + $0x1c] sm:$0xf] %vm1168, %v1165
      %p1177 = scmp.lt.s32.totalorder %s13, 1
      %s1178 = scalar_select %p1177, %s13, 1
      %s1179 = smul.addr %s1178, 8
      %s1180 = smul.addr %s1179, 4
      %s1181 = scalar_lea.vmem %s2, %s1180
      // Predicated region
      $region29: #{generator_forward.6} parent=27 // pred_check
        %p1182 = pneg %p78
      $region30: #{generator_forward.6} parent=27 // pred_check_branch
        %1184 = sbr.rel (%p1182) target = $region32
      $region31: #{generator_forward.6} parent=27 // pred_region
        _
      $region32: #{generator_forward.6} parent=27 // pred_fallthru
        _
    $region28: #{generator_forward.6} parent=5 // pred_fallthru
      _
    %p1185 = scmp.le.s32.totalorder 2, %s8
    // Predicated region
    $region33: #{generator_forward.6} parent=5 // pred_check
      %p1186 = pneg %p1185
    $region34: #{generator_forward.6} parent=5 // pred_check_branch
      %1188 = sbr.rel (%p1186) target = $region36
    $region35: #{generator_forward.6} parent=5 // pred_region
      %s1189 = ssub.s32 %s8, 2
      // Predicated region
      $region37: #{generator_forward.6} parent=35 // pred_check
        %p1190 = pneg %p84
      $region38: #{generator_forward.6} parent=35 // pred_check_branch
        %1192 = sbr.rel (%p1190) target = $region40
      $region39: #{generator_forward.6} parent=35 // pred_region
        %p1193 = scmp.lt.s32.totalorder %s14, 1
        %s1194 = scalar_select %p1193, %s14, 1
        %s1195 = smul.addr %s1194, 8
        %s1196 = smul.addr %s1195, 4
        %s1197 = scalar_lea.vmem %s2, %s1196
      $region40: #{generator_forward.6} parent=35 // pred_fallthru
        _
    $region36: #{generator_forward.6} parent=5 // pred_fallthru
      _
  $region6: #{generator_forward.6} parent=0 // loop_footer
    %s12 = sadd.s32 1, %s8
  $region7: #{generator_forward.6} parent=0 // loop_footer_branch
    %7 = sbr.rel target = $region3
  $region8: #{generator_forward.6} parent=0 // loop_exit
    _

// kernel: generator_forward.7
$region0: #{generator_forward.7}
  #allocation0 [shape = 'u32[]', space=smem, size = 0x4, offset = 0x4, fixed_abs, tag = 'smem constant byte address 0x4 - core index']
  #allocation1 [shape = 'u32[144,128]{1,0:T(1,128)}', space=vmem, size = 0x12000, scoped, tag = 'internal scratch']
  %s0 = inlined_call_operand.vmem [shape: bf16[2,10,10,32], index: 0, kind: input, shape index: {}]
  %s1 = inlined_call_operand.vmem [shape: bf16[4,128,16], index: 1, kind: input, shape index: {}]
  %s2 = inlined_call_operand.vmem [shape: f32[2,16,8,32], index: 2, kind: output, shape index: {}]
  %s3 = sld [smem:[#allocation0]]
  $region41: #{generator_forward.7} parent=0
    _
  %s5 = ssub.s32 1, %s3
  %s6 = scalar_select 0, %s5, %s3
  loop: start=0, step=1, limit=4
  $region2: #{generator_forward.7} parent=0 // loop_pre_header
    _
  $region3: #{generator_forward.7} parent=0 // loop_header
    %s8 = sphi 0, %s12
    %p9 = scmp.ge.s32.totalorder %s8, 4
    %s18 = sphi 0, %s20
    %s21 = sphi 0, %s18
    %s22 = sphi 0, %s21
    %s38 = sphi 0, %s22
    %s42 = sphi 0, %s42
    %s44 = sphi 0, %s42
    %s45 = sphi 0, %s44
    %s59 = sphi 0, %s45
    %s65 = sphi 0, %s67
    %s68 = sphi 0, %s65
    %s69 = sphi 0, %s68
    %s85 = sphi 0, %s69
  $region4: #{generator_forward.7} parent=0 // loop_header_branch
    %11 = sbr.rel (%p9) target = $region8
  $region5: #{generator_forward.7} parent=0 // loop_body
    %s13 = ssub.s32 %s8, 1
    %s14 = ssub.s32 %s8, 2
    %s15 = sadd.s32 %s8, 1
    %s16 = ssub.s32 %s8, %s15
    %p17 = scmp.eq.s32.totalorder %s16, 0
    %s19 = sadd.s32 %s18, 1
    %s20 = scalar_select %p17, %s18, %s19
    %p23 = pneg %p17
    %p24 = scmp.eq.s32.totalorder %s8, 1
    %p25 = por %p23, %p24
    %p26 = scmp.ne.s32.totalorder %s18, %s21
    %p27 = scmp.eq.s32.totalorder %s8, 0
    %p28 = por %p26, %p27
    %p29 = scmp.ne.s32.totalorder %s18, %s21
    %p30 = scmp.eq.s32.totalorder %s13, 1
    %p31 = por %p29, %p30
    %p32 = scmp.ne.s32.totalorder %s21, %s22
    %p33 = scmp.eq.s32.totalorder %s13, 0
    %p34 = por %p32, %p33
    %p35 = scmp.ne.s32.totalorder %s21, %s22
    %p36 = scmp.eq.s32.totalorder %s14, 1
    %p37 = por %p35, %p36
    %p39 = scmp.ne.s32.totalorder %s22, %s38
    %p40 = scmp.eq.s32.totalorder %s14, 0
    %p41 = por %p39, %p40
    %s43 = sadd.s32 %s42, 1
    %p46 = scmp.eq.s32.totalorder %s8, 1
    %p47 = scmp.ne.s32.totalorder %s42, %s44
    %p48 = scmp.eq.s32.totalorder %s8, 0
    %p49 = por %p47, %p48
    %p50 = scmp.ne.s32.totalorder %s42, %s44
    %p51 = scmp.eq.s32.totalorder %s13, 1
    %p52 = por %p50, %p51
    %p53 = scmp.ne.s32.totalorder %s44, %s45
    %p54 = scmp.eq.s32.totalorder %s13, 0
    %p55 = por %p53, %p54
    %p56 = scmp.ne.s32.totalorder %s44, %s45
    %p57 = scmp.eq.s32.totalorder %s14, 1
    %p58 = por %p56, %p57
    %p60 = scmp.ne.s32.totalorder %s45, %s59
    %p61 = scmp.eq.s32.totalorder %s14, 0
    %p62 = por %p60, %p61
    %s63 = ssub.s32 %s8, %s15
    %p64 = scmp.eq.s32.totalorder %s63, 0
    %s66 = sadd.s32 %s65, 1
    %s67 = scalar_select %p64, %s65, %s66
    %p70 = pneg %p64
    %p71 = scmp.eq.s32.totalorder %s8, 1
    %p72 = por %p70, %p71
    %p73 = scmp.ne.s32.totalorder %s65, %s68
    %p74 = scmp.eq.s32.totalorder %s8, 0
    %p75 = por %p73, %p74
    %p76 = scmp.ne.s32.totalorder %s65, %s68
    %p77 = scmp.eq.s32.totalorder %s13, 1
    %p78 = por %p76, %p77
    %p79 = scmp.ne.s32.totalorder %s68, %s69
    %p80 = scmp.eq.s32.totalorder %s13, 0
    %p81 = por %p79, %p80
    %p82 = scmp.ne.s32.totalorder %s68, %s69
    %p83 = scmp.eq.s32.totalorder %s14, 1
    %p84 = por %p82, %p83
    %p86 = scmp.ne.s32.totalorder %s69, %s85
    %p87 = scmp.eq.s32.totalorder %s14, 0
    %p88 = por %p86, %p87
    %p89 = scmp.le.s32.totalorder 1, %s8
    %p90 = scmp.lt.s32.totalorder %s8, 3
    %p91 = pnand %p89, %p90
    %p92 = pneg %p91
    // Predicated region
    $region9: #{generator_forward.7} parent=5 // pred_check
      _
    $region10: #{generator_forward.7} parent=5 // pred_check_branch
      %94 = sbr.rel (%p91) target = $region12
    $region11: #{generator_forward.7} parent=5 // pred_region
      %s95 = ssub.s32 %s8, 1
      // Predicated region
      $region13: #{generator_forward.7} parent=11 // pred_check
        %p96 = pneg %p55
      $region14: #{generator_forward.7} parent=11 // pred_check_branch
        %98 = sbr.rel (%p96) target = $region16
      $region15: #{generator_forward.7} parent=11 // pred_region
        _
      $region16: #{generator_forward.7} parent=11 // pred_fallthru
        _
    $region12: #{generator_forward.7} parent=5 // pred_fallthru
      _
    %p99 = scmp.lt.s32.totalorder %s8, 2
    // Predicated region
    $region17: #{generator_forward.7} parent=5 // pred_check
      %p100 = pneg %p99
    $region18: #{generator_forward.7} parent=5 // pred_check_branch
      %102 = sbr.rel (%p100) target = $region20
    $region19: #{generator_forward.7} parent=5 // pred_region
      // Predicated region
      $region21: #{generator_forward.7} parent=19 // pred_check
        %p103 = pneg %p28
      $region22: #{generator_forward.7} parent=19 // pred_check_branch
        %105 = sbr.rel (%p103) target = $region24
      $region23: #{generator_forward.7} parent=19 // pred_region
        %p106 = scmp.lt.s32.totalorder %s8, 1
        %s107 = scalar_select %p106, %s8, 1
        %s108 = smul.addr %s107, 20
        %s109 = smul.addr %s108, 4
        %s110 = scalar_lea.vmem %s0, %s109
      $region24: #{generator_forward.7} parent=19 // pred_fallthru
        _
    $region20: #{generator_forward.7} parent=5 // pred_fallthru
      _
    %p111 = scmp.le.s32.totalorder 1, %s8
    %p112 = scmp.lt.s32.totalorder %s8, 3
    %p113 = pnand %p111, %p112
    %p114 = pneg %p113
    // Predicated region
    $region25: #{generator_forward.7} parent=5 // pred_check
      _
    $region26: #{generator_forward.7} parent=5 // pred_check_branch
      %116 = sbr.rel (%p113) target = $region28
    $region27: #{generator_forward.7} parent=5 // pred_region
      %s117 = ssub.s32 %s8, 1
      %p118 = scmp.lt.s32.totalorder %s13, 1
      %s119 = scalar_select %p118, %s13, 1
      %s120 = smul.addr %s119, 20
      %s121 = smul.addr %s120, 4
      %s122 = scalar_lea.vmem %s0, %s121
      %p123 = pneg %p34
      %p124 = pneg %p31
      %p125 = pneg %p55
      %p126 = pneg %p52
      %p127 = pneg %p81
      %p128 = pneg %p78
      %p129 = scmp.lt.s32.totalorder %s13, 1
      %s130 = scalar_select %p129, %s13, 1
      %s131 = smul.addr %s130, 16
      %s132 = smul.addr %s131, 8
      %s133 = scalar_lea.vmem %s2, %s132
      %p134 = scmp.lt.s32.totalorder %s13, 1
      %s135 = scalar_select %p134, %s13, 1
      %s136 = smul.addr %s135, 20
      %s137 = smul.addr %s136, 4
      %s138 = scalar_lea.vmem %s0, %s137
      %p139 = scmp.lt.s32.totalorder %s13, 1
      %s140 = scalar_select %p139, %s13, 1
      %s141 = smul.addr %s140, 16
      %s142 = smul.addr %s141, 8
      %s143 = scalar_lea.vmem %s2, %s142
      %v145 = vld [vmem:[%s138] sm:$0xf]
      %v146 = vld [vmem:[%s138 + $0x4] sm:$0x1]
      %v147 = vld [vmem:[%s138 + $0x8] sm:$0xf]
      %v148 = vld [vmem:[%s138 + $0xc] sm:$0x1]
      %v149 = vld [vmem:[%s138 + $0x10] sm:$0xf]
      %v150 = vld [vmem:[%s138 + $0x14] sm:$0x1]
      %v151 = vld [vmem:[%s138 + $0x18] sm:$0xf]
      %v152 = vld [vmem:[%s138 + $0x1c] sm:$0x1]
      %v153 = vld [vmem:[%s138 + $0x20] sm:$0xf]
      %v154 = vld [vmem:[%s138 + $0x24] sm:$0x1]
      %v155 = vld [vmem:[%s138 + $0x28] sm:$0xf]
      %v156 = vld [vmem:[%s138 + $0x2c] sm:$0x1]
      %v157 = vld [vmem:[%s138 + $0x30] sm:$0xf]
      %v158 = vld [vmem:[%s138 + $0x34] sm:$0x1]
      %v159 = vld [vmem:[%s138 + $0x38] sm:$0xf]
      %v160 = vld [vmem:[%s138 + $0x3c] sm:$0x1]
      %v161 = vld [vmem:[%s138 + $0x40] sm:$0xf]
      %v162 = vld [vmem:[%s138 + $0x44] sm:$0x1]
      %v163 = vld [vmem:[%s138 + $0x48] sm:$0xf]
      %v164 = vld [vmem:[%s138 + $0x4c] sm:$0x1]
      %v165 = vmax.bf16 %v145, 0
      %v166 = vmax.bf16 %v146, 0
      %v167 = vmax.bf16 %v147, 0
      %v168 = vmax.bf16 %v148, 0
      %v169 = vmax.bf16 %v149, 0
      %v170 = vmax.bf16 %v150, 0
      %v171 = vmax.bf16 %v151, 0
      %v172 = vmax.bf16 %v152, 0
      %v173 = vmax.bf16 %v153, 0
      %v174 = vmax.bf16 %v154, 0
      %v175 = vmax.bf16 %v155, 0
      %v176 = vmax.bf16 %v156, 0
      %v177 = vmax.bf16 %v157, 0
      %v178 = vmax.bf16 %v158, 0
      %v179 = vmax.bf16 %v159, 0
      %v180 = vmax.bf16 %v160, 0
      %v181 = vmax.bf16 %v161, 0
      %v182 = vmax.bf16 %v162, 0
      %v183 = vmax.bf16 %v163, 0
      %v184 = vmax.bf16 %v164, 0
      %v201 = vunpack.c.l.b16 %v165
      %v202 = vunpack.c.l.b16 %v166
      %v203 = vunpack.c.l.b16 %v167
      %v204 = vunpack.c.l.b16 %v168
      %v205 = vunpack.c.l.b16 %v169
      %v206 = vunpack.c.l.b16 %v170
      %v207 = vunpack.c.l.b16 %v171
      %v208 = vunpack.c.l.b16 %v172
      %v209 = vunpack.c.l.b16 %v173
      %v210 = vunpack.c.l.b16 %v174
      %v211 = vunpack.c.l.b16 %v175
      %v212 = vunpack.c.l.b16 %v176
      %v213 = vunpack.c.l.b16 %v177
      %v214 = vunpack.c.l.b16 %v178
      %v215 = vunpack.c.l.b16 %v179
      %v216 = vunpack.c.l.b16 %v180
      %v217 = vpack.c.b16 %v202, %v201
      %v218 = vpack.c.b16 %v204, %v203
      %v219 = vpack.c.b16 %v206, %v205
      %v220 = vpack.c.b16 %v208, %v207
      %v221 = vpack.c.b16 %v210, %v209
      %v222 = vpack.c.b16 %v212, %v211
      %v223 = vpack.c.b16 %v214, %v213
      %v224 = vpack.c.b16 %v216, %v215
      %v226 = vshrl.u32 %v217, 16
      %v228 = vshll.u32 %v217, 16
      %v230 = vrot.slane %v228, 1
      %v231 = vor.u32 %v226, %v230
      %v233 = vshrl.u32 %v218, 16
      %v235 = vshll.u32 %v218, 16
      %v237 = vrot.slane %v235, 1
      %v238 = vor.u32 %v233, %v237
      %v240 = vshrl.u32 %v219, 16
      %v242 = vshll.u32 %v219, 16
      %v244 = vrot.slane %v242, 1
      %v245 = vor.u32 %v240, %v244
      %v247 = vshrl.u32 %v220, 16
      %v249 = vshll.u32 %v220, 16
      %v251 = vrot.slane %v249, 1
      %v252 = vor.u32 %v247, %v251
      %v254 = vshrl.u32 %v221, 16
      %v256 = vshll.u32 %v221, 16
      %v258 = vrot.slane %v256, 1
      %v259 = vor.u32 %v254, %v258
      %v261 = vshrl.u32 %v222, 16
      %v263 = vshll.u32 %v222, 16
      %v265 = vrot.slane %v263, 1
      %v266 = vor.u32 %v261, %v265
      %v268 = vshrl.u32 %v223, 16
      %v270 = vshll.u32 %v223, 16
      %v272 = vrot.slane %v270, 1
      %v273 = vor.u32 %v268, %v272
      %v275 = vshrl.u32 %v224, 16
      %v277 = vshll.u32 %v224, 16
      %v279 = vrot.slane %v277, 1
      %v280 = vor.u32 %v275, %v279
      %281 = vrot.lane.b32.xlu0 %v231, 32
      %v282 = vpop.permute.xlu0 %281
      %283 = vrot.lane.b32.xlu0 %v238, 32
      %v284 = vpop.permute.xlu0 %283
      %285 = vrot.lane.b32.xlu0 %v245, 32
      %v286 = vpop.permute.xlu0 %285
      %287 = vrot.lane.b32.xlu0 %v252, 32
      %v288 = vpop.permute.xlu0 %287
      %289 = vrot.lane.b32.xlu0 %v259, 32
      %v290 = vpop.permute.xlu0 %289
      %291 = vrot.lane.b32.xlu0 %v266, 32
      %v292 = vpop.permute.xlu0 %291
      %293 = vrot.lane.b32.xlu0 %v273, 32
      %v294 = vpop.permute.xlu0 %293
      %295 = vrot.lane.b32.xlu0 %v280, 32
      %v296 = vpop.permute.xlu0 %295
      %v298 = vunpack.c.l.b16 %v181
      %v299 = vpack.c.b16 %v203, %v203
      %v300 = vpack.c.b16 %v205, %v205
      %v301 = vpack.c.b16 %v207, %v207
      %v302 = vpack.c.b16 %v209, %v209
      %v303 = vpack.c.b16 %v211, %v211
      %v304 = vpack.c.b16 %v213, %v213
      %v305 = vpack.c.b16 %v215, %v215
      %v306 = vpack.c.b16 %v298, %v298
      %307 = vrot.lane.b32.xlu0 %v299, 64
      %v308 = vpop.permute.xlu0 %307
      %309 = vrot.lane.b32.xlu0 %v300, 64
      %v310 = vpop.permute.xlu0 %309
      %311 = vrot.lane.b32.xlu0 %v301, 64
      %v312 = vpop.permute.xlu0 %311
      %313 = vrot.lane.b32.xlu0 %v302, 64
      %v314 = vpop.permute.xlu0 %313
      %315 = vrot.lane.b32.xlu0 %v303, 64
      %v316 = vpop.permute.xlu0 %315
      %317 = vrot.lane.b32.xlu0 %v304, 64
      %v318 = vpop.permute.xlu0 %317
      %319 = vrot.lane.b32.xlu0 %v305, 64
      %v320 = vpop.permute.xlu0 %319
      %321 = vrot.lane.b32.xlu0 %v306, 64
      %v322 = vpop.permute.xlu0 %321
      %v324 = vunpack.c.l.b16 %v182
      %v325 = vpack.c.b16 %v324, %v298
      %v327 = vshrl.u32 %v325, 16
      %v329 = vshll.u32 %v325, 16
      %v331 = vrot.slane %v329, 1
      %v332 = vor.u32 %v327, %v331
      %333 = vrot.lane.b32.xlu0 %v238, 96
      %v334 = vpop.permute.xlu0 %333
      %335 = vrot.lane.b32.xlu0 %v245, 96
      %v336 = vpop.permute.xlu0 %335
      %337 = vrot.lane.b32.xlu0 %v252, 96
      %v338 = vpop.permute.xlu0 %337
      %339 = vrot.lane.b32.xlu0 %v259, 96
      %v340 = vpop.permute.xlu0 %339
      %341 = vrot.lane.b32.xlu0 %v266, 96
      %v342 = vpop.permute.xlu0 %341
      %343 = vrot.lane.b32.xlu0 %v273, 96
      %v344 = vpop.permute.xlu0 %343
      %345 = vrot.lane.b32.xlu0 %v280, 96
      %v346 = vpop.permute.xlu0 %345
      %347 = vrot.lane.b32.xlu0 %v332, 96
      %v348 = vpop.permute.xlu0 %347
      %vm349 = vcmask 261120
      %v352 = vsel %vm349, %v165, %v282
      %v355 = vsel %vm349, %v167, %v284
      %v358 = vsel %vm349, %v169, %v286
      %v361 = vsel %vm349, %v171, %v288
      %v364 = vsel %vm349, %v173, %v290
      %v367 = vsel %vm349, %v175, %v292
      %v370 = vsel %vm349, %v177, %v294
      %v373 = vsel %vm349, %v179, %v296
      %vm374 = vcmask 523264
      %v376 = vsel %vm374, %v352, %v308
      %v378 = vsel %vm374, %v355, %v310
      %v380 = vsel %vm374, %v358, %v312
      %v382 = vsel %vm374, %v361, %v314
      %v384 = vsel %vm374, %v364, %v316
      %v386 = vsel %vm374, %v367, %v318
      %v388 = vsel %vm374, %v370, %v320
      %v390 = vsel %vm374, %v373, %v322
      %vm391 = vcmask 785408
      %v393 = vsel %vm391, %v376, %v334
      %v395 = vsel %vm391, %v378, %v336
      %v397 = vsel %vm391, %v380, %v338
      %v399 = vsel %vm391, %v382, %v340
      %v401 = vsel %vm391, %v384, %v342
      %v403 = vsel %vm391, %v386, %v344
      %v405 = vsel %vm391, %v388, %v346
      %v407 = vsel %vm391, %v390, %v348
      %v408 = vld [vmem:[%s1] sm:$0xf]
      %v409 = vld [vmem:[%s1 + $0x4] sm:$0xf]
      %v410 = vld [vmem:[%s1 + $0x8] sm:$0xf]
      %v411 = vld [vmem:[%s1 + $0xc] sm:$0xf]
      %v412 = vld [vmem:[%s1 + $0x10] sm:$0xf]
      %v413 = vld [vmem:[%s1 + $0x14] sm:$0xf]
      %v414 = vld [vmem:[%s1 + $0x18] sm:$0xf]
      %v415 = vld [vmem:[%s1 + $0x1c] sm:$0xf]
      %v416 = vld [vmem:[%s1 + $0x20] sm:$0xf]
      %v417 = vld [vmem:[%s1 + $0x24] sm:$0xf]
      %v418 = vld [vmem:[%s1 + $0x28] sm:$0xf]
      %v419 = vld [vmem:[%s1 + $0x2c] sm:$0xf]
      %v420 = vld [vmem:[%s1 + $0x30] sm:$0xf]
      %v421 = vld [vmem:[%s1 + $0x34] sm:$0xf]
      %v422 = vld [vmem:[%s1 + $0x38] sm:$0xf]
      %v423 = vld [vmem:[%s1 + $0x3c] sm:$0xf]
      %v432 = vunpack.c.l.b16 %v393
      %v433 = vunpack.c.l.b16 %v395
      %v434 = vunpack.c.l.b16 %v397
      %v435 = vunpack.c.l.b16 %v399
      %v436 = vunpack.c.l.b16 %v401
      %v437 = vunpack.c.l.b16 %v403
      %v438 = vunpack.c.l.b16 %v405
      %v439 = vunpack.c.l.b16 %v407
      %v440 = vpack.c.b16 %v433, %v432
      %v441 = vpack.c.b16 %v435, %v434
      %v442 = vpack.c.b16 %v437, %v436
      %v443 = vpack.c.b16 %v439, %v438
      %v464 = vunpack.c.l.b16 %v408
      %v465 = vunpack.c.l.b16 %v409
      %v466 = vunpack.c.l.b16 %v410
      %v467 = vunpack.c.l.b16 %v411
      %v468 = vunpack.c.l.b16 %v412
      %v469 = vunpack.c.l.b16 %v413
      %v470 = vunpack.c.l.b16 %v414
      %v471 = vunpack.c.l.b16 %v415
      %v472 = vunpack.c.l.b16 %v416
      %v473 = vunpack.c.l.b16 %v417
      %v474 = vunpack.c.l.b16 %v418
      %v475 = vunpack.c.l.b16 %v419
      %v476 = vunpack.c.l.b16 %v420
      %v477 = vunpack.c.l.b16 %v421
      %v478 = vunpack.c.l.b16 %v422
      %v479 = vunpack.c.l.b16 %v423
      %v480 = vpack.c.b16 %v465, %v464
      %v481 = vpack.c.b16 %v467, %v466
      %v482 = vpack.c.b16 %v469, %v468
      %v483 = vpack.c.b16 %v471, %v470
      %v484 = vpack.c.b16 %v473, %v472
      %v485 = vpack.c.b16 %v475, %v474
      %v486 = vpack.c.b16 %v477, %v476
      %v487 = vpack.c.b16 %v479, %v478
      %496 = vmatprep.subr.bf16.mxu0 0
      %497 = vmatpush1.bf16.msra.mxu0 %v480
      %498 = vmatprep.subr.bf16.mxu0 0
      %499 = vmatpush1.bf16.msra.mxu0 %v481
      %500 = vmatprep.subr.bf16.mxu0 0
      %501 = vmatpush1.bf16.msra.mxu0 %v482
      %502 = vmatprep.subr.bf16.mxu0 0
      %503 = vmatpush1.bf16.msra.mxu0 %v483
      %504 = vmatprep.subr.bf16.mxu0 0
      %505 = vmatpush1.bf16.msra.mxu0 %v484
      %506 = vmatprep.subr.bf16.mxu0 0
      %507 = vmatpush1.bf16.msra.mxu0 %v485
      %508 = vmatprep.subr.bf16.mxu0 0
      %509 = vmatpush1.bf16.msra.mxu0 %v486
      %510 = vmatprep.subr.bf16.mxu0 0
      %511 = vmatpush1.bf16.msra.mxu0 %v487
      %512 = vmatprep.subr.bf16.mxu0 0
      %513 = vmatpush1.bf16.msra.mxu0 0
      %514 = vmatprep.subr.bf16.mxu0 0
      %515 = vmatpush1.bf16.msra.mxu0 0
      %516 = vmatprep.subr.bf16.mxu0 0
      %517 = vmatpush1.bf16.msra.mxu0 0
      %518 = vmatprep.subr.bf16.mxu0 0
      %519 = vmatpush1.bf16.msra.mxu0 0
      %520 = vmatprep.subr.bf16.mxu0 0
      %521 = vmatpush1.bf16.msra.mxu0 0
      %522 = vmatprep.subr.bf16.mxu0 0
      %523 = vmatpush1.bf16.msra.mxu0 0
      %524 = vmatprep.subr.bf16.mxu0 0
      %525 = vmatpush1.bf16.msra.mxu0 0
      %526 = vmatprep.subr.bf16.mxu0 0
      %527 = vmatpush1.bf16.msra.mxu0 0
      %528 = vmatprep.mubr.bf16.mxu0 0
      %529 = vmatmul.mubr.bf16.gmra.mrb[0].mxu0 %v440
      %v530 = vpop.f32.mrb[0].mxu0
      %v531 = vadd.f32 0.0, %v530
      %v532 = vpop.f32.mrb[0].mxu0
      %v533 = vpop.f32.mrb[0].mxu0
      %v534 = vadd.f32 0.0, %v533
      %v535 = vpop.f32.mrb[0].mxu0
      %536 = vmatprep.mubr.bf16.mxu0 0
      %537 = vmatmul.mubr.bf16.gmra.mrb[0].mxu0 %v441
      %v538 = vpop.f32.mrb[0].mxu0
      %v539 = vadd.f32 0.0, %v538
      %v540 = vpop.f32.mrb[0].mxu0
      %v541 = vpop.f32.mrb[0].mxu0
      %v542 = vadd.f32 0.0, %v541
      %v543 = vpop.f32.mrb[0].mxu0
      %544 = vmatprep.mubr.bf16.mxu0 0
      %545 = vmatmul.mubr.bf16.gmra.mrb[0].mxu0 %v442
      %v546 = vpop.f32.mrb[0].mxu0
      %v547 = vadd.f32 0.0, %v546
      %v548 = vpop.f32.mrb[0].mxu0
      %v549 = vpop.f32.mrb[0].mxu0
      %v550 = vadd.f32 0.0, %v549
      %v551 = vpop.f32.mrb[0].mxu0
      %552 = vmatprep.mubr.bf16.mxu0 0
      %553 = vmatmul.mubr.bf16.gmra.mrb[0].mxu0 %v443
      %v554 = vpop.f32.mrb[0].mxu0
      %v555 = vadd.f32 0.0, %v554
      %v556 = vpop.f32.mrb[0].mxu0
      %v557 = vpop.f32.mrb[0].mxu0
      %v558 = vadd.f32 0.0, %v557
      %v559 = vpop.f32.mrb[0].mxu0
      %560 = vdwg.mxu0
      %561 = vrot.lane.b32.xlu0 %v218, 64
      %v562 = vpop.permute.xlu0 %561
      %563 = vrot.lane.b32.xlu0 %v219, 64
      %v564 = vpop.permute.xlu0 %563
      %565 = vrot.lane.b32.xlu0 %v220, 64
      %v566 = vpop.permute.xlu0 %565
      %567 = vrot.lane.b32.xlu0 %v221, 64
      %v568 = vpop.permute.xlu0 %567
      %569 = vrot.lane.b32.xlu0 %v222, 64
      %v570 = vpop.permute.xlu0 %569
      %571 = vrot.lane.b32.xlu0 %v223, 64
      %v572 = vpop.permute.xlu0 %571
      %573 = vrot.lane.b32.xlu0 %v224, 64
      %v574 = vpop.permute.xlu0 %573
      %575 = vrot.lane.b32.xlu0 %v325, 64
      %v576 = vpop.permute.xlu0 %575
      %v577 = vsel %vm349, %v217, %v282
      %v578 = vsel %vm349, %v218, %v284
      %v579 = vsel %vm349, %v219, %v286
      %v580 = vsel %vm349, %v220, %v288
      %v581 = vsel %vm349, %v221, %v290
      %v582 = vsel %vm349, %v222, %v292
      %v583 = vsel %vm349, %v223, %v294
      %v584 = vsel %vm349, %v224, %v296
      %v586 = vsel %vm374, %v577, %v562
      %v588 = vsel %vm374, %v578, %v564
      %v590 = vsel %vm374, %v579, %v566
      %v592 = vsel %vm374, %v580, %v568
      %v594 = vsel %vm374, %v581, %v570
      %v596 = vsel %vm374, %v582, %v572
      %v598 = vsel %vm374, %v583, %v574
      %v600 = vsel %vm374, %v584, %v576
      %v601 = vsel %vm391, %v586, %v334
      %v602 = vsel %vm391, %v588, %v336
      %v603 = vsel %vm391, %v590, %v338
      %v604 = vsel %vm391, %v592, %v340
      %v605 = vsel %vm391, %v594, %v342
      %v606 = vsel %vm391, %v596, %v344
      %v607 = vsel %vm391, %v598, %v346
      %v608 = vsel %vm391, %v600, %v348
      %v617 = vunpack.c.l.b16 %v601
      %v618 = vunpack.c.h.b16 %v601
      %v619 = vunpack.c.l.b16 %v602
      %v620 = vunpack.c.h.b16 %v602
      %v621 = vunpack.c.l.b16 %v603
      %v622 = vunpack.c.h.b16 %v603
      %v623 = vunpack.c.l.b16 %v604
      %v624 = vunpack.c.h.b16 %v604
      %v625 = vunpack.c.l.b16 %v605
      %v626 = vunpack.c.h.b16 %v605
      %v627 = vunpack.c.l.b16 %v606
      %v628 = vunpack.c.h.b16 %v606
      %v629 = vunpack.c.l.b16 %v607
      %v630 = vunpack.c.h.b16 %v607
      %v631 = vunpack.c.l.b16 %v608
      %v632 = vunpack.c.h.b16 %v608
      %v633 = vpack.c.b16 %v617, %v617
      %v634 = vpack.c.b16 %v618, %v618
      %v635 = vpack.c.b16 %v619, %v619
      %v636 = vpack.c.b16 %v620, %v620
      %v637 = vpack.c.b16 %v621, %v621
      %v638 = vpack.c.b16 %v622, %v622
      %v639 = vpack.c.b16 %v623, %v623
      %v640 = vpack.c.b16 %v624, %v624
      %v641 = vpack.c.b16 %v625, %v625
      %v642 = vpack.c.b16 %v626, %v626
      %v643 = vpack.c.b16 %v627, %v627
      %v644 = vpack.c.b16 %v628, %v628
      %v645 = vpack.c.b16 %v629, %v629
      %v646 = vpack.c.b16 %v630, %v630
      %v647 = vpack.c.b16 %v631, %v631
      %v648 = vpack.c.b16 %v632, %v632
      %vm649 = vsmask.f32 3328
      %vm650 = vsmask.f32 7440
      %vm651 = vmor %vm649, %vm650
      %v653 = vshrl.u32 %v633, 16
      %v655 = vrot.slane %v653, 4
      %v656 = vshll.u32 %v633, 16
      %v658 = vrot.slane %v656, 5
      %v659 = vor.u32 %v655, %v658
      %v660 = vrot.slane %v659, 4
      %v662 = vshll.u32 %v634, 16
      %v664 = vrot.slane %v662, 5
      %v665 = vsel %vm651, %v660, %v664
      %v667 = vshrl.u32 %v635, 16
      %v669 = vrot.slane %v667, 4
      %v670 = vshll.u32 %v635, 16
      %v672 = vrot.slane %v670, 5
      %v673 = vor.u32 %v669, %v672
      %v674 = vrot.slane %v673, 4
      %v676 = vshll.u32 %v636, 16
      %v678 = vrot.slane %v676, 5
      %v679 = vsel %vm651, %v674, %v678
      %v681 = vshrl.u32 %v637, 16
      %v683 = vrot.slane %v681, 4
      %v684 = vshll.u32 %v637, 16
      %v686 = vrot.slane %v684, 5
      %v687 = vor.u32 %v683, %v686
      %v688 = vrot.slane %v687, 4
      %v690 = vshll.u32 %v638, 16
      %v692 = vrot.slane %v690, 5
      %v693 = vsel %vm651, %v688, %v692
      %v695 = vshrl.u32 %v639, 16
      %v697 = vrot.slane %v695, 4
      %v698 = vshll.u32 %v639, 16
      %v700 = vrot.slane %v698, 5
      %v701 = vor.u32 %v697, %v700
      %v702 = vrot.slane %v701, 4
      %v704 = vshll.u32 %v640, 16
      %v706 = vrot.slane %v704, 5
      %v707 = vsel %vm651, %v702, %v706
      %v709 = vshrl.u32 %v641, 16
      %v711 = vrot.slane %v709, 4
      %v712 = vshll.u32 %v641, 16
      %v714 = vrot.slane %v712, 5
      %v715 = vor.u32 %v711, %v714
      %v716 = vrot.slane %v715, 4
      %v718 = vshll.u32 %v642, 16
      %v720 = vrot.slane %v718, 5
      %v721 = vsel %vm651, %v716, %v720
      %v723 = vshrl.u32 %v643, 16
      %v725 = vrot.slane %v723, 4
      %v726 = vshll.u32 %v643, 16
      %v728 = vrot.slane %v726, 5
      %v729 = vor.u32 %v725, %v728
      %v730 = vrot.slane %v729, 4
      %v732 = vshll.u32 %v644, 16
      %v734 = vrot.slane %v732, 5
      %v735 = vsel %vm651, %v730, %v734
      %v737 = vshrl.u32 %v645, 16
      %v739 = vrot.slane %v737, 4
      %v740 = vshll.u32 %v645, 16
      %v742 = vrot.slane %v740, 5
      %v743 = vor.u32 %v739, %v742
      %v744 = vrot.slane %v743, 4
      %v746 = vshll.u32 %v646, 16
      %v748 = vrot.slane %v746, 5
      %v749 = vsel %vm651, %v744, %v748
      %v751 = vshrl.u32 %v647, 16
      %v753 = vrot.slane %v751, 4
      %v754 = vshll.u32 %v647, 16
      %v756 = vrot.slane %v754, 5
      %v757 = vor.u32 %v753, %v756
      %v758 = vrot.slane %v757, 4
      %v760 = vshll.u32 %v648, 16
      %v762 = vrot.slane %v760, 5
      %v763 = vsel %vm651, %v758, %v762
      %s764 = scalar_lea.vmem %s1, 64
      %v765 = vld [vmem:[%s764] sm:$0xf]
      %v766 = vld [vmem:[%s764 + $0x4] sm:$0xf]
      %v767 = vld [vmem:[%s764 + $0x8] sm:$0xf]
      %v768 = vld [vmem:[%s764 + $0xc] sm:$0xf]
      %v769 = vld [vmem:[%s764 + $0x10] sm:$0xf]
      %v770 = vld [vmem:[%s764 + $0x14] sm:$0xf]
      %v771 = vld [vmem:[%s764 + $0x18] sm:$0xf]
      %v772 = vld [vmem:[%s764 + $0x1c] sm:$0xf]
      %v773 = vld [vmem:[%s764 + $0x20] sm:$0xf]
      %v774 = vld [vmem:[%s764 + $0x24] sm:$0xf]
      %v775 = vld [vmem:[%s764 + $0x28] sm:$0xf]
      %v776 = vld [vmem:[%s764 + $0x2c] sm:$0xf]
      %v777 = vld [vmem:[%s764 + $0x30] sm:$0xf]
      %v778 = vld [vmem:[%s764 + $0x34] sm:$0xf]
      %v779 = vld [vmem:[%s764 + $0x38] sm:$0xf]
      %v780 = vld [vmem:[%s764 + $0x3c] sm:$0xf]
      %v781 = vunpack.c.l.b16 %v665
      %v782 = vunpack.c.l.b16 %v679
      %v783 = vunpack.c.l.b16 %v693
      %v784 = vunpack.c.l.b16 %v707
      %v785 = vunpack.c.l.b16 %v721
      %v786 = vunpack.c.l.b16 %v735
      %v787 = vunpack.c.l.b16 %v749
      %v788 = vunpack.c.l.b16 %v763
      %v789 = vpack.c.b16 %v782, %v781
      %v790 = vpack.c.b16 %v784, %v783
      %v791 = vpack.c.b16 %v786, %v785
      %v792 = vpack.c.b16 %v788, %v787
      %v813 = vunpack.c.l.b16 %v765
      %v814 = vunpack.c.l.b16 %v766
      %v815 = vunpack.c.l.b16 %v767
      %v816 = vunpack.c.l.b16 %v768
      %v817 = vunpack.c.l.b16 %v769
      %v818 = vunpack.c.l.b16 %v770
      %v819 = vunpack.c.l.b16 %v771
      %v820 = vunpack.c.l.b16 %v772
      %v821 = vunpack.c.l.b16 %v773
      %v822 = vunpack.c.l.b16 %v774
      %v823 = vunpack.c.l.b16 %v775
      %v824 = vunpack.c.l.b16 %v776
      %v825 = vunpack.c.l.b16 %v777
      %v826 = vunpack.c.l.b16 %v778
      %v827 = vunpack.c.l.b16 %v779
      %v828 = vunpack.c.l.b16 %v780
      %v829 = vpack.c.b16 %v814, %v813
      %v830 = vpack.c.b16 %v816, %v815
      %v831 = vpack.c.b16 %v818, %v817
      %v832 = vpack.c.b16 %v820, %v819
      %v833 = vpack.c.b16 %v822, %v821
      %v834 = vpack.c.b16 %v824, %v823
      %v835 = vpack.c.b16 %v826, %v825
      %v836 = vpack.c.b16 %v828, %v827
      %845 = vmatprep.subr.bf16.mxu0 0
      %846 = vmatpush1.bf16.msra.mxu0 %v829
      %847 = vmatprep.subr.bf16.mxu0 0
      %848 = vmatpush1.bf16.msra.mxu0 %v830
      %849 = vmatprep.subr.bf16.mxu0 0
      %850 = vmatpush1.bf16.msra.mxu0 %v831
      %851 = vmatprep.subr.bf16.mxu0 0
      %852 = vmatpush1.bf16.msra.mxu0 %v832
      %853 = vmatprep.subr.bf16.mxu0 0
      %854 = vmatpush1.bf16.msra.mxu0 %v833
      %855 = vmatprep.subr.bf16.mxu0 0
      %856 = vmatpush1.bf16.msra.mxu0 %v834
      %857 = vmatprep.subr.bf16.mxu0 0
      %858 = vmatpush1.bf16.msra.mxu0 %v835
      %859 = vmatprep.subr.bf16.mxu0 0
      %860 = vmatpush1.bf16.msra.mxu0 %v836
      %861 = vmatprep.subr.bf16.mxu0 0
      %862 = vmatpush1.bf16.msra.mxu0 0
      %863 = vmatprep.subr.bf16.mxu0 0
      %864 = vmatpush1.bf16.msra.mxu0 0
      %865 = vmatprep.subr.bf16.mxu0 0
      %866 = vmatpush1.bf16.msra.mxu0 0
      %867 = vmatprep.subr.bf16.mxu0 0
      %868 = vmatpush1.bf16.msra.mxu0 0
      %869 = vmatprep.subr.bf16.mxu0 0
      %870 = vmatpush1.bf16.msra.mxu0 0
      %871 = vmatprep.subr.bf16.mxu0 0
      %872 = vmatpush1.bf16.msra.mxu0 0
      %873 = vmatprep.subr.bf16.mxu0 0
      %874 = vmatpush1.bf16.msra.mxu0 0
      %875 = vmatprep.subr.bf16.mxu0 0
      %876 = vmatpush1.bf16.msra.mxu0 0
      %877 = vmatprep.mubr.bf16.mxu0 0
      %878 = vmatmul.mubr.bf16.gmra.mrb[0].mxu0 %v789
      %v879 = vpop.f32.mrb[0].mxu0
      %v880 = vadd.f32 0.0, %v879
      %v881 = vpop.f32.mrb[0].mxu0
      %v882 = vpop.f32.mrb[0].mxu0
      %v883 = vadd.f32 0.0, %v882
      %v884 = vpop.f32.mrb[0].mxu0
      %885 = vmatprep.mubr.bf16.mxu0 0
      %886 = vmatmul.mubr.bf16.gmra.mrb[0].mxu0 %v790
      %v887 = vpop.f32.mrb[0].mxu0
      %v888 = vadd.f32 0.0, %v887
      %v889 = vpop.f32.mrb[0].mxu0
      %v890 = vpop.f32.mrb[0].mxu0
      %v891 = vadd.f32 0.0, %v890
      %v892 = vpop.f32.mrb[0].mxu0
      %893 = vmatprep.mubr.bf16.mxu0 0
      %894 = vmatmul.mubr.bf16.gmra.mrb[0].mxu0 %v791
      %v895 = vpop.f32.mrb[0].mxu0
      %v896 = vadd.f32 0.0, %v895
      %v897 = vpop.f32.mrb[0].mxu0
      %v898 = vpop.f32.mrb[0].mxu0
      %v899 = vadd.f32 0.0, %v898
      %v900 = vpop.f32.mrb[0].mxu0
      %901 = vmatprep.mubr.bf16.mxu0 0
      %902 = vmatmul.mubr.bf16.gmra.mrb[0].mxu0 %v792
      %v903 = vpop.f32.mrb[0].mxu0
      %v904 = vadd.f32 0.0, %v903
      %v905 = vpop.f32.mrb[0].mxu0
      %v906 = vpop.f32.mrb[0].mxu0
      %v907 = vadd.f32 0.0, %v906
      %v908 = vpop.f32.mrb[0].mxu0
      %909 = vdwg.mxu0
      %918 = vrot.lane.b32.xlu0 %v880, 16
      %v919 = vpop.permute.xlu0 %918
      %920 = vrot.lane.b32.xlu0 %v883, 16
      %v921 = vpop.permute.xlu0 %920
      %922 = vrot.lane.b32.xlu0 %v888, 16
      %v923 = vpop.permute.xlu0 %922
      %924 = vrot.lane.b32.xlu0 %v891, 16
      %v925 = vpop.permute.xlu0 %924
      %926 = vrot.lane.b32.xlu0 %v896, 16
      %v927 = vpop.permute.xlu0 %926
      %928 = vrot.lane.b32.xlu0 %v899, 16
      %v929 = vpop.permute.xlu0 %928
      %930 = vrot.lane.b32.xlu0 %v904, 16
      %v931 = vpop.permute.xlu0 %930
      %932 = vrot.lane.b32.xlu0 %v907, 16
      %v933 = vpop.permute.xlu0 %932
      %vm942 = vcmask 130048
      %v943 = vsel %vm942, %v531, %v919
      %v944 = vsel %vm942, %v534, %v921
      %v945 = vsel %vm942, %v539, %v923
      %v946 = vsel %vm942, %v542, %v925
      %v947 = vsel %vm942, %v547, %v927
      %v948 = vsel %vm942, %v550, %v929
      %v949 = vsel %vm942, %v555, %v931
      %v950 = vsel %vm942, %v558, %v933
      %951 = vrot.lane.b32.xlu0 %v332, 32
      %v952 = vpop.permute.xlu0 %951
      %v954 = vunpack.c.l.b16 %v183
      %v955 = vpack.c.b16 %v954, %v954
      %956 = vrot.lane.b32.xlu0 %v955, 64
      %v957 = vpop.permute.xlu0 %956
      %v959 = vunpack.c.l.b16 %v184
      %v960 = vpack.c.b16 %v959, %v954
      %v962 = vshrl.u32 %v960, 16
      %v964 = vshll.u32 %v960, 16
      %v966 = vrot.slane %v964, 1
      %v967 = vor.u32 %v962, %v966
      %968 = vrot.lane.b32.xlu0 %v967, 96
      %v969 = vpop.permute.xlu0 %968
      %v972 = vsel %vm349, %v181, %v952
      %v974 = vsel %vm374, %v972, %v957
      %v976 = vsel %vm391, %v974, %v969
      %s977 = scalar_lea.vmem %s1, 128
      %v978 = vld [vmem:[%s977] sm:$0xf]
      %v979 = vld [vmem:[%s977 + $0x4] sm:$0xf]
      %v980 = vld [vmem:[%s977 + $0x8] sm:$0xf]
      %v981 = vld [vmem:[%s977 + $0xc] sm:$0xf]
      %v982 = vld [vmem:[%s977 + $0x10] sm:$0xf]
      %v983 = vld [vmem:[%s977 + $0x14] sm:$0xf]
      %v984 = vld [vmem:[%s977 + $0x18] sm:$0xf]
      %v985 = vld [vmem:[%s977 + $0x1c] sm:$0xf]
      %v986 = vld [vmem:[%s977 + $0x20] sm:$0xf]
      %v987 = vld [vmem:[%s977 + $0x24] sm:$0xf]
      %v988 = vld [vmem:[%s977 + $0x28] sm:$0xf]
      %v989 = vld [vmem:[%s977 + $0x2c] sm:$0xf]
      %v990 = vld [vmem:[%s977 + $0x30] sm:$0xf]
      %v991 = vld [vmem:[%s977 + $0x34] sm:$0xf]
      %v992 = vld [vmem:[%s977 + $0x38] sm:$0xf]
      %v993 = vld [vmem:[%s977 + $0x3c] sm:$0xf]
      %v995 = vunpack.c.l.b16 %v976
      %v996 = vpack.c.b16 %v434, %v433
      %v997 = vpack.c.b16 %v436, %v435
      %v998 = vpack.c.b16 %v438, %v437
      %v999 = vpack.c.b16 %v995, %v439
      %v1020 = vunpack.c.l.b16 %v978
      %v1021 = vunpack.c.l.b16 %v979
      %v1022 = vunpack.c.l.b16 %v980
      %v1023 = vunpack.c.l.b16 %v981
      %v1024 = vunpack.c.l.b16 %v982
      %v1025 = vunpack.c.l.b16 %v983
      %v1026 = vunpack.c.l.b16 %v984
      %v1027 = vunpack.c.l.b16 %v985
      %v1028 = vunpack.c.l.b16 %v986
      %v1029 = vunpack.c.l.b16 %v987
      %v1030 = vunpack.c.l.b16 %v988
      %v1031 = vunpack.c.l.b16 %v989
      %v1032 = vunpack.c.l.b16 %v990
      %v1033 = vunpack.c.l.b16 %v991
      %v1034 = vunpack.c.l.b16 %v992
      %v1035 = vunpack.c.l.b16 %v993
      %v1036 = vpack.c.b16 %v1021, %v1020
      %v1037 = vpack.c.b16 %v1023, %v1022
      %v1038 = vpack.c.b16 %v1025, %v1024
      %v1039 = vpack.c.b16 %v1027, %v1026
      %v1040 = vpack.c.b16 %v1029, %v1028
      %v1041 = vpack.c.b16 %v1031, %v1030
      %v1042 = vpack.c.b16 %v1033, %v1032
      %v1043 = vpack.c.b16 %v1035, %v1034
      %1052 = vmatprep.subr.bf16.mxu0 0
      %1053 = vmatpush1.bf16.msra.mxu0 %v1036
      %1054 = vmatprep.subr.bf16.mxu0 0
      %1055 = vmatpush1.bf16.msra.mxu0 %v1037
      %1056 = vmatprep.subr.bf16.mxu0 0
      %1057 = vmatpush1.bf16.msra.mxu0 %v1038
      %1058 = vmatprep.subr.bf16.mxu0 0
      %1059 = vmatpush1.bf16.msra.mxu0 %v1039
      %1060 = vmatprep.subr.bf16.mxu0 0
      %1061 = vmatpush1.bf16.msra.mxu0 %v1040
      %1062 = vmatprep.subr.bf16.mxu0 0
      %1063 = vmatpush1.bf16.msra.mxu0 %v1041
      %1064 = vmatprep.subr.bf16.mxu0 0
      %1065 = vmatpush1.bf16.msra.mxu0 %v1042
      %1066 = vmatprep.subr.bf16.mxu0 0
      %1067 = vmatpush1.bf16.msra.mxu0 %v1043
      %1068 = vmatprep.subr.bf16.mxu0 0
      %1069 = vmatpush1.bf16.msra.mxu0 0
      %1070 = vmatprep.subr.bf16.mxu0 0
      %1071 = vmatpush1.bf16.msra.mxu0 0
      %1072 = vmatprep.subr.bf16.mxu0 0
      %1073 = vmatpush1.bf16.msra.mxu0 0
      %1074 = vmatprep.subr.bf16.mxu0 0
      %1075 = vmatpush1.bf16.msra.mxu0 0
      %1076 = vmatprep.subr.bf16.mxu0 0
      %1077 = vmatpush1.bf16.msra.mxu0 0
      %1078 = vmatprep.subr.bf16.mxu0 0
      %1079 = vmatpush1.bf16.msra.mxu0 0
      %1080 = vmatprep.subr.bf16.mxu0 0
      %1081 = vmatpush1.bf16.msra.mxu0 0
      %1082 = vmatprep.subr.bf16.mxu0 0
      %1083 = vmatpush1.bf16.msra.mxu0 0
      %1084 = vmatprep.mubr.bf16.mxu0 0
      %1085 = vmatmul.mubr.bf16.gmra.mrb[0].mxu0 %v996
      %v1086 = vpop.f32.mrb[0].mxu0
      %v1087 = vadd.f32 0.0, %v1086
      %v1088 = vpop.f32.mrb[0].mxu0
      %v1089 = vpop.f32.mrb[0].mxu0
      %v1090 = vadd.f32 0.0, %v1089
      %v1091 = vpop.f32.mrb[0].mxu0
      %1092 = vmatprep.mubr.bf16.mxu0 0
      %1093 = vmatmul.mubr.bf16.gmra.mrb[0].mxu0 %v997
      %v1094 = vpop.f32.mrb[0].mxu0
      %v1095 = vadd.f32 0.0, %v1094
      %v1096 = vpop.f32.mrb[0].mxu0
      %v1097 = vpop.f32.mrb[0].mxu0
      %v1098 = vadd.f32 0.0, %v1097
      %v1099 = vpop.f32.mrb[0].mxu0
      %1100 = vmatprep.mubr.bf16.mxu0 0
      %1101 = vmatmul.mubr.bf16.gmra.mrb[0].mxu0 %v998
      %v1102 = vpop.f32.mrb[0].mxu0
      %v1103 = vadd.f32 0.0, %v1102
      %v1104 = vpop.f32.mrb[0].mxu0
      %v1105 = vpop.f32.mrb[0].mxu0
      %v1106 = vadd.f32 0.0, %v1105
      %v1107 = vpop.f32.mrb[0].mxu0
      %1108 = vmatprep.mubr.bf16.mxu0 0
      %1109 = vmatmul.mubr.bf16.gmra.mrb[0].mxu0 %v999
      %v1110 = vpop.f32.mrb[0].mxu0
      %v1111 = vadd.f32 0.0, %v1110
      %v1112 = vpop.f32.mrb[0].mxu0
      %v1113 = vpop.f32.mrb[0].mxu0
      %v1114 = vadd.f32 0.0, %v1113
      %v1115 = vpop.f32.mrb[0].mxu0
      %1116 = vdwg.mxu0
      %1117 = vrot.lane.b32.xlu0 %v960, 64
      %v1118 = vpop.permute.xlu0 %1117
      %v1119 = vsel %vm349, %v325, %v952
      %v1121 = vsel %vm374, %v1119, %v1118
      %v1122 = vsel %vm391, %v1121, %v969
      %v1124 = vunpack.c.l.b16 %v1122
      %v1125 = vunpack.c.h.b16 %v1122
      %v1126 = vpack.c.b16 %v1124, %v1124
      %v1127 = vpack.c.b16 %v1125, %v1125
      %v1129 = vshrl.u32 %v1126, 16
      %v1131 = vrot.slane %v1129, 4
      %v1132 = vshll.u32 %v1126, 16
      %v1134 = vrot.slane %v1132, 5
      %v1135 = vor.u32 %v1131, %v1134
      %v1136 = vrot.slane %v1135, 4
      %v1138 = vshll.u32 %v1127, 16
      %v1140 = vrot.slane %v1138, 5
      %v1141 = vsel %vm651, %v1136, %v1140
      %s1142 = scalar_lea.vmem %s1, 192
      %v1143 = vld [vmem:[%s1142] sm:$0xf]
      %v1144 = vld [vmem:[%s1142 + $0x4] sm:$0xf]
      %v1145 = vld [vmem:[%s1142 + $0x8] sm:$0xf]
      %v1146 = vld [vmem:[%s1142 + $0xc] sm:$0xf]
      %v1147 = vld [vmem:[%s1142 + $0x10] sm:$0xf]
      %v1148 = vld [vmem:[%s1142 + $0x14] sm:$0xf]
      %v1149 = vld [vmem:[%s1142 + $0x18] sm:$0xf]
      %v1150 = vld [vmem:[%s1142 + $0x1c] sm:$0xf]
      %v1151 = vld [vmem:[%s1142 + $0x20] sm:$0xf]
      %v1152 = vld [vmem:[%s1142 + $0x24] sm:$0xf]
      %v1153 = vld [vmem:[%s1142 + $0x28] sm:$0xf]
      %v1154 = vld [vmem:[%s1142 + $0x2c] sm:$0xf]
      %v1155 = vld [vmem:[%s1142 + $0x30] sm:$0xf]
      %v1156 = vld [vmem:[%s1142 + $0x34] sm:$0xf]
      %v1157 = vld [vmem:[%s1142 + $0x38] sm:$0xf]
      %v1158 = vld [vmem:[%s1142 + $0x3c] sm:$0xf]
      %v1159 = vunpack.c.l.b16 %v1141
      %v1160 = vpack.c.b16 %v783, %v782
      %v1161 = vpack.c.b16 %v785, %v784
      %v1162 = vpack.c.b16 %v787, %v786
      %v1163 = vpack.c.b16 %v1159, %v788
      %v1184 = vunpack.c.l.b16 %v1143
      %v1185 = vunpack.c.l.b16 %v1144
      %v1186 = vunpack.c.l.b16 %v1145
      %v1187 = vunpack.c.l.b16 %v1146
      %v1188 = vunpack.c.l.b16 %v1147
      %v1189 = vunpack.c.l.b16 %v1148
      %v1190 = vunpack.c.l.b16 %v1149
      %v1191 = vunpack.c.l.b16 %v1150
      %v1192 = vunpack.c.l.b16 %v1151
      %v1193 = vunpack.c.l.b16 %v1152
      %v1194 = vunpack.c.l.b16 %v1153
      %v1195 = vunpack.c.l.b16 %v1154
      %v1196 = vunpack.c.l.b16 %v1155
      %v1197 = vunpack.c.l.b16 %v1156
      %v1198 = vunpack.c.l.b16 %v1157
      %v1199 = vunpack.c.l.b16 %v1158
      %v1200 = vpack.c.b16 %v1185, %v1184
      %v1201 = vpack.c.b16 %v1187, %v1186
      %v1202 = vpack.c.b16 %v1189, %v1188
      %v1203 = vpack.c.b16 %v1191, %v1190
      %v1204 = vpack.c.b16 %v1193, %v1192
      %v1205 = vpack.c.b16 %v1195, %v1194
      %v1206 = vpack.c.b16 %v1197, %v1196
      %v1207 = vpack.c.b16 %v1199, %v1198
      %1216 = vmatprep.subr.bf16.mxu0 0
      %1217 = vmatpush1.bf16.msra.mxu0 %v1200
      %1218 = vmatprep.subr.bf16.mxu0 0
      %1219 = vmatpush1.bf16.msra.mxu0 %v1201
      %1220 = vmatprep.subr.bf16.mxu0 0
      %1221 = vmatpush1.bf16.msra.mxu0 %v1202
      %1222 = vmatprep.subr.bf16.mxu0 0
      %1223 = vmatpush1.bf16.msra.mxu0 %v1203
      %1224 = vmatprep.subr.bf16.mxu0 0
      %1225 = vmatpush1.bf16.msra.mxu0 %v1204
      %1226 = vmatprep.subr.bf16.mxu0 0
      %1227 = vmatpush1.bf16.msra.mxu0 %v1205
      %1228 = vmatprep.subr.bf16.mxu0 0
      %1229 = vmatpush1.bf16.msra.mxu0 %v1206
      %1230 = vmatprep.subr.bf16.mxu0 0
      %1231 = vmatpush1.bf16.msra.mxu0 %v1207
      %1232 = vmatprep.subr.bf16.mxu0 0
      %1233 = vmatpush1.bf16.msra.mxu0 0
      %1234 = vmatprep.subr.bf16.mxu0 0
      %1235 = vmatpush1.bf16.msra.mxu0 0
      %1236 = vmatprep.subr.bf16.mxu0 0
      %1237 = vmatpush1.bf16.msra.mxu0 0
      %1238 = vmatprep.subr.bf16.mxu0 0
      %1239 = vmatpush1.bf16.msra.mxu0 0
      %1240 = vmatprep.subr.bf16.mxu0 0
      %1241 = vmatpush1.bf16.msra.mxu0 0
      %1242 = vmatprep.subr.bf16.mxu0 0
      %1243 = vmatpush1.bf16.msra.mxu0 0
      %1244 = vmatprep.subr.bf16.mxu0 0
      %1245 = vmatpush1.bf16.msra.mxu0 0
      %1246 = vmatprep.subr.bf16.mxu0 0
      %1247 = vmatpush1.bf16.msra.mxu0 0
      %1248 = vmatprep.mubr.bf16.mxu0 0
      %1249 = vmatmul.mubr.bf16.gmra.mrb[0].mxu0 %v1160
      %v1250 = vpop.f32.mrb[0].mxu0
      %v1251 = vadd.f32 0.0, %v1250
      %v1252 = vpop.f32.mrb[0].mxu0
      %v1253 = vpop.f32.mrb[0].mxu0
      %v1254 = vadd.f32 0.0, %v1253
      %v1255 = vpop.f32.mrb[0].mxu0
      %1256 = vmatprep.mubr.bf16.mxu0 0
      %1257 = vmatmul.mubr.bf16.gmra.mrb[0].mxu0 %v1161
      %v1258 = vpop.f32.mrb[0].mxu0
      %v1259 = vadd.f32 0.0, %v1258
      %v1260 = vpop.f32.mrb[0].mxu0
      %v1261 = vpop.f32.mrb[0].mxu0
      %v1262 = vadd.f32 0.0, %v1261
      %v1263 = vpop.f32.mrb[0].mxu0
      %1264 = vmatprep.mubr.bf16.mxu0 0
      %1265 = vmatmul.mubr.bf16.gmra.mrb[0].mxu0 %v1162
      %v1266 = vpop.f32.mrb[0].mxu0
      %v1267 = vadd.f32 0.0, %v1266
      %v1268 = vpop.f32.mrb[0].mxu0
      %v1269 = vpop.f32.mrb[0].mxu0
      %v1270 = vadd.f32 0.0, %v1269
      %v1271 = vpop.f32.mrb[0].mxu0
      %1272 = vmatprep.mubr.bf16.mxu0 0
      %1273 = vmatmul.mubr.bf16.gmra.mrb[0].mxu0 %v1163
      %v1274 = vpop.f32.mrb[0].mxu0
      %v1275 = vadd.f32 0.0, %v1274
      %v1276 = vpop.f32.mrb[0].mxu0
      %v1277 = vpop.f32.mrb[0].mxu0
      %v1278 = vadd.f32 0.0, %v1277
      %v1279 = vpop.f32.mrb[0].mxu0
      %1280 = vdwg.mxu0
      %1289 = vrot.lane.b32.xlu0 %v1251, 16
      %v1290 = vpop.permute.xlu0 %1289
      %1291 = vrot.lane.b32.xlu0 %v1254, 16
      %v1292 = vpop.permute.xlu0 %1291
      %1293 = vrot.lane.b32.xlu0 %v1259, 16
      %v1294 = vpop.permute.xlu0 %1293
      %1295 = vrot.lane.b32.xlu0 %v1262, 16
      %v1296 = vpop.permute.xlu0 %1295
      %1297 = vrot.lane.b32.xlu0 %v1267, 16
      %v1298 = vpop.permute.xlu0 %1297
      %1299 = vrot.lane.b32.xlu0 %v1270, 16
      %v1300 = vpop.permute.xlu0 %1299
      %1301 = vrot.lane.b32.xlu0 %v1275, 16
      %v1302 = vpop.permute.xlu0 %1301
      %1303 = vrot.lane.b32.xlu0 %v1278, 16
      %v1304 = vpop.permute.xlu0 %1303
      %v1313 = vsel %vm942, %v1087, %v1290
      %v1314 = vsel %vm942, %v1090, %v1292
      %v1315 = vsel %vm942, %v1095, %v1294
      %v1316 = vsel %vm942, %v1098, %v1296
      %v1317 = vsel %vm942, %v1103, %v1298
      %v1318 = vsel %vm942, %v1106, %v1300
      %v1319 = vsel %vm942, %v1111, %v1302
      %v1320 = vsel %vm942, %v1114, %v1304
      %1321 = vst.msk [vmem:[%s143] sm:$0xff] %vm349, %v943
      %1322 = vst.msk [vmem:[%s143 + $0x8] sm:$0xff] %vm349, %v1313
      %1323 = vst.msk [vmem:[%s143 + $0x10] sm:$0xff] %vm349, %v944
      %1324 = vst.msk [vmem:[%s143 + $0x18] sm:$0xff] %vm349, %v1314
      %1325 = vst.msk [vmem:[%s143 + $0x20] sm:$0xff] %vm349, %v945
      %1326 = vst.msk [vmem:[%s143 + $0x28] sm:$0xff] %vm349, %v1315
      %1327 = vst.msk [vmem:[%s143 + $0x30] sm:$0xff] %vm349, %v946
      %1328 = vst.msk [vmem:[%s143 + $0x38] sm:$0xff] %vm349, %v1316
      %1329 = vst.msk [vmem:[%s143 + $0x40] sm:$0xff] %vm349, %v947
      %1330 = vst.msk [vmem:[%s143 + $0x48] sm:$0xff] %vm349, %v1317
      %1331 = vst.msk [vmem:[%s143 + $0x50] sm:$0xff] %vm349, %v948
      %1332 = vst.msk [vmem:[%s143 + $0x58] sm:$0xff] %vm349, %v1318
      %1333 = vst.msk [vmem:[%s143 + $0x60] sm:$0xff] %vm349, %v949
      %1334 = vst.msk [vmem:[%s143 + $0x68] sm:$0xff] %vm349, %v1319
      %1335 = vst.msk [vmem:[%s143 + $0x70] sm:$0xff] %vm349, %v950
      %1336 = vst.msk [vmem:[%s143 + $0x78] sm:$0xff] %vm349, %v1320
      %p1337 = scmp.lt.s32.totalorder %s13, 1
      %s1338 = scalar_select %p1337, %s13, 1
      %s1339 = smul.addr %s1338, 16
      %s1340 = smul.addr %s1339, 8
      %s1341 = scalar_lea.vmem %s2, %s1340
      // Predicated region
      $region29: #{generator_forward.7} parent=27 // pred_check
        %p1342 = pneg %p78
      $region30: #{generator_forward.7} parent=27 // pred_check_branch
        %1344 = sbr.rel (%p1342) target = $region32
      $region31: #{generator_forward.7} parent=27 // pred_region
        _
      $region32: #{generator_forward.7} parent=27 // pred_fallthru
        _
    $region28: #{generator_forward.7} parent=5 // pred_fallthru
      _
    %p1345 = scmp.le.s32.totalorder 2, %s8
    // Predicated region
    $region33: #{generator_forward.7} parent=5 // pred_check
      %p1346 = pneg %p1345
    $region34: #{generator_forward.7} parent=5 // pred_check_branch
      %1348 = sbr.rel (%p1346) target = $region36
    $region35: #{generator_forward.7} parent=5 // pred_region
      %s1349 = ssub.s32 %s8, 2
      // Predicated region
      $region37: #{generator_forward.7} parent=35 // pred_check
        %p1350 = pneg %p84
      $region38: #{generator_forward.7} parent=35 // pred_check_branch
        %1352 = sbr.rel (%p1350) target = $region40
      $region39: #{generator_forward.7} parent=35 // pred_region
        %p1353 = scmp.lt.s32.totalorder %s14, 1
        %s1354 = scalar_select %p1353, %s14, 1
        %s1355 = smul.addr %s1354, 16
        %s1356 = smul.addr %s1355, 8
        %s1357 = scalar_lea.vmem %s2, %s1356
      $region40: #{generator_forward.7} parent=35 // pred_fallthru
        _
    $region36: #{generator_forward.7} parent=5 // pred_fallthru
      _
  $region6: #{generator_forward.7} parent=0 // loop_footer
    %s12 = sadd.s32 1, %s8
  $region7: #{generator_forward.7} parent=0 // loop_footer_branch
    %7 = sbr.rel target = $region3
  $region8: #{generator_forward.7} parent=0 // loop_exit
    _

// kernel: tile.38
$region0: #{tile.38}
  #allocation0 [shape = 's32[1]{0}', space=sflag, size = 0x4, scoped, tag = 'scoped memory for tile.38']
  %s0 = inlined_call_operand.vmem [shape: f32[8], index: 0, kind: input, shape index: {}]
  %s1 = inlined_call_operand.vmem [shape: f32[4,8], index: 1, kind: output, shape index: {}]
  // Predicated region
  $region2: #{tile.38} parent=0 // pred_check
    _
  $region3: #{tile.38} parent=0 // pred_check_branch
    %3 = sbr.rel (0) target = $region5
  $region4: #{tile.38} parent=0 // pred_region
    _
  $region5: #{tile.38} parent=0 // pred_fallthru
    _
  %v4 = vld [vmem:[%s0] ss:$0 sm:$0xff]
  %5 = vst [vmem:[%s1] sm:$0xf] %v4

// kernel: mul.37
$region0: #{mul.37}
  %s0 = inlined_call_operand.vmem [shape: f32[4,8], index: 0, kind: input, shape index: {}]
  %s1 = inlined_call_operand.vmem [shape: f32[32], index: 1, kind: output, shape index: {}]
  $region1: #{mul.37} parent=0
    #allocation0 [shape = 'u8[4096]{0}', space=vmem, size = 0x1000, scoped, tag = 'scoped mem for output reshape']
    #allocation1 [shape = 'u8[4096]{0}', space=vmem, size = 0x1000, scoped, tag = 'scoped mem for input reshape']
    %s3 = sshllo.u32 0, 4
    %v4 = vld [vmem:[%s0] sm:%s3]
    %5 = vst [vmem:[#allocation1] sm:%s3] %v4
    %v6 = vld [vmem:[#allocation1] sm:$0x1]
    %vm7 = vcmask 64512
    %8 = vst.msk [vmem:[#allocation0] sm:$0x1] %vm7, %v6
    %s9 = scalar_lea.vmem [#allocation1], 3
    %v10 = vld [vmem:[%s9] sm:$0x1]
    %11 = vrot.lane.b32.xlu0 %v10, 24
    %v12 = vpop.permute.xlu0 %11
    %vm13 = vcmask 261312
    %14 = vst.msk [vmem:[#allocation0] sm:$0x1] %vm13, %v12
    %s15 = scalar_lea.vmem [#allocation1], 2
    %v16 = vld [vmem:[%s15] sm:$0x1]
    %17 = vrot.lane.b32.xlu0 %v16, 16
    %v18 = vpop.permute.xlu0 %17
    %vm19 = vcmask 195712
    %20 = vst.msk [vmem:[#allocation0] sm:$0x1] %vm19, %v18
    %s21 = scalar_lea.vmem [#allocation1], 1
    %v22 = vld [vmem:[%s21] sm:$0x1]
    %23 = vrot.lane.b32.xlu0 %v22, 8
    %v24 = vpop.permute.xlu0 %23
    %vm25 = vcmask 130112
    %26 = vst.msk [vmem:[#allocation0] sm:$0x1] %vm25, %v24
    %s28 = sshllo.u32 0, 1
    %v30 = vld [vmem:[#allocation0] sm:%s28]
    %s31 = sshllo.u32 0, 1
    %32 = vst [vmem:[%s1] sm:%s31] %v30

// kernel: generator_forward.8
$region0: #{generator_forward.8}
  #allocation0 [shape = 'u32[]', space=smem, size = 0x4, offset = 0x4, fixed_abs, tag = 'smem constant byte address 0x4 - core index']
  #allocation1 [shape = 'u32[144,128]{1,0:T(1,128)}', space=vmem, size = 0x12000, scoped, tag = 'internal scratch']
  %s0 = inlined_call_operand.vmem [shape: bf16[2,18,18,16], index: 0, kind: input, shape index: {}]
  %s1 = inlined_call_operand.vmem [shape: bf16[4,64,8], index: 1, kind: input, shape index: {}]
  %s2 = inlined_call_operand.vmem [shape: f32[2,32,16,16], index: 2, kind: output, shape index: {}]
  %s3 = sld [smem:[#allocation0]]
  $region41: #{generator_forward.8} parent=0
    _
  %s5 = ssub.s32 1, %s3
  %s6 = scalar_select 0, %s5, %s3
  loop: start=0, step=1, limit=4
  $region2: #{generator_forward.8} parent=0 // loop_pre_header
    _
  $region3: #{generator_forward.8} parent=0 // loop_header
    %s8 = sphi 0, %s12
    %p9 = scmp.ge.s32.totalorder %s8, 4
    %s18 = sphi 0, %s20
    %s21 = sphi 0, %s18
    %s22 = sphi 0, %s21
    %s38 = sphi 0, %s22
    %s42 = sphi 0, %s42
    %s44 = sphi 0, %s42
    %s45 = sphi 0, %s44
    %s59 = sphi 0, %s45
    %s65 = sphi 0, %s67
    %s68 = sphi 0, %s65
    %s69 = sphi 0, %s68
    %s85 = sphi 0, %s69
  $region4: #{generator_forward.8} parent=0 // loop_header_branch
    %11 = sbr.rel (%p9) target = $region8
  $region5: #{generator_forward.8} parent=0 // loop_body
    %s13 = ssub.s32 %s8, 1
    %s14 = ssub.s32 %s8, 2
    %s15 = sadd.s32 %s8, 1
    %s16 = ssub.s32 %s8, %s15
    %p17 = scmp.eq.s32.totalorder %s16, 0
    %s19 = sadd.s32 %s18, 1
    %s20 = scalar_select %p17, %s18, %s19
    %p23 = pneg %p17
    %p24 = scmp.eq.s32.totalorder %s8, 1
    %p25 = por %p23, %p24
    %p26 = scmp.ne.s32.totalorder %s18, %s21
    %p27 = scmp.eq.s32.totalorder %s8, 0
    %p28 = por %p26, %p27
    %p29 = scmp.ne.s32.totalorder %s18, %s21
    %p30 = scmp.eq.s32.totalorder %s13, 1
    %p31 = por %p29, %p30
    %p32 = scmp.ne.s32.totalorder %s21, %s22
    %p33 = scmp.eq.s32.totalorder %s13, 0
    %p34 = por %p32, %p33
    %p35 = scmp.ne.s32.totalorder %s21, %s22
    %p36 = scmp.eq.s32.totalorder %s14, 1
    %p37 = por %p35, %p36
    %p39 = scmp.ne.s32.totalorder %s22, %s38
    %p40 = scmp.eq.s32.totalorder %s14, 0
    %p41 = por %p39, %p40
    %s43 = sadd.s32 %s42, 1
    %p46 = scmp.eq.s32.totalorder %s8, 1
    %p47 = scmp.ne.s32.totalorder %s42, %s44
    %p48 = scmp.eq.s32.totalorder %s8, 0
    %p49 = por %p47, %p48
    %p50 = scmp.ne.s32.totalorder %s42, %s44
    %p51 = scmp.eq.s32.totalorder %s13, 1
    %p52 = por %p50, %p51
    %p53 = scmp.ne.s32.totalorder %s44, %s45
    %p54 = scmp.eq.s32.totalorder %s13, 0
    %p55 = por %p53, %p54
    %p56 = scmp.ne.s32.totalorder %s44, %s45
    %p57 = scmp.eq.s32.totalorder %s14, 1
    %p58 = por %p56, %p57
    %p60 = scmp.ne.s32.totalorder %s45, %s59
    %p61 = scmp.eq.s32.totalorder %s14, 0
    %p62 = por %p60, %p61
    %s63 = ssub.s32 %s8, %s15
    %p64 = scmp.eq.s32.totalorder %s63, 0
    %s66 = sadd.s32 %s65, 1
    %s67 = scalar_select %p64, %s65, %s66
    %p70 = pneg %p64
    %p71 = scmp.eq.s32.totalorder %s8, 1
    %p72 = por %p70, %p71
    %p73 = scmp.ne.s32.totalorder %s65, %s68
    %p74 = scmp.eq.s32.totalorder %s8, 0
    %p75 = por %p73, %p74
    %p76 = scmp.ne.s32.totalorder %s65, %s68
    %p77 = scmp.eq.s32.totalorder %s13, 1
    %p78 = por %p76, %p77
    %p79 = scmp.ne.s32.totalorder %s68, %s69
    %p80 = scmp.eq.s32.totalorder %s13, 0
    %p81 = por %p79, %p80
    %p82 = scmp.ne.s32.totalorder %s68, %s69
    %p83 = scmp.eq.s32.totalorder %s14, 1
    %p84 = por %p82, %p83
    %p86 = scmp.ne.s32.totalorder %s69, %s85
    %p87 = scmp.eq.s32.totalorder %s14, 0
    %p88 = por %p86, %p87
    %p89 = scmp.le.s32.totalorder 1, %s8
    %p90 = scmp.lt.s32.totalorder %s8, 3
    %p91 = pnand %p89, %p90
    %p92 = pneg %p91
    // Predicated region
    $region9: #{generator_forward.8} parent=5 // pred_check
      _
    $region10: #{generator_forward.8} parent=5 // pred_check_branch
      %94 = sbr.rel (%p91) target = $region12
    $region11: #{generator_forward.8} parent=5 // pred_region
      %s95 = ssub.s32 %s8, 1
      // Predicated region
      $region13: #{generator_forward.8} parent=11 // pred_check
        %p96 = pneg %p55
      $region14: #{generator_forward.8} parent=11 // pred_check_branch
        %98 = sbr.rel (%p96) target = $region16
      $region15: #{generator_forward.8} parent=11 // pred_region
        _
      $region16: #{generator_forward.8} parent=11 // pred_fallthru
        _
    $region12: #{generator_forward.8} parent=5 // pred_fallthru
      _
    %p99 = scmp.lt.s32.totalorder %s8, 2
    // Predicated region
    $region17: #{generator_forward.8} parent=5 // pred_check
      %p100 = pneg %p99
    $region18: #{generator_forward.8} parent=5 // pred_check_branch
      %102 = sbr.rel (%p100) target = $region20
    $region19: #{generator_forward.8} parent=5 // pred_region
      // Predicated region
      $region21: #{generator_forward.8} parent=19 // pred_check
        %p103 = pneg %p28
      $region22: #{generator_forward.8} parent=19 // pred_check_branch
        %105 = sbr.rel (%p103) target = $region24
      $region23: #{generator_forward.8} parent=19 // pred_region
        %p106 = scmp.lt.s32.totalorder %s8, 1
        %s107 = scalar_select %p106, %s8, 1
        %s108 = smul.addr %s107, 54
        %s109 = smul.addr %s108, 4
        %s110 = scalar_lea.vmem %s0, %s109
      $region24: #{generator_forward.8} parent=19 // pred_fallthru
        _
    $region20: #{generator_forward.8} parent=5 // pred_fallthru
      _
    %p111 = scmp.le.s32.totalorder 1, %s8
    %p112 = scmp.lt.s32.totalorder %s8, 3
    %p113 = pnand %p111, %p112
    %p114 = pneg %p113
    // Predicated region
    $region25: #{generator_forward.8} parent=5 // pred_check
      _
    $region26: #{generator_forward.8} parent=5 // pred_check_branch
      %116 = sbr.rel (%p113) target = $region28
    $region27: #{generator_forward.8} parent=5 // pred_region
      %s117 = ssub.s32 %s8, 1
      %p118 = scmp.lt.s32.totalorder %s13, 1
      %s119 = scalar_select %p118, %s13, 1
      %s120 = smul.addr %s119, 54
      %s121 = smul.addr %s120, 4
      %s122 = scalar_lea.vmem %s0, %s121
      %p123 = pneg %p34
      %p124 = pneg %p31
      %p125 = pneg %p55
      %p126 = pneg %p52
      %p127 = pneg %p81
      %p128 = pneg %p78
      %p129 = scmp.lt.s32.totalorder %s13, 1
      %s130 = scalar_select %p129, %s13, 1
      %s131 = smul.addr %s130, 64
      %s132 = smul.addr %s131, 8
      %s133 = scalar_lea.vmem %s2, %s132
      %p134 = scmp.lt.s32.totalorder %s13, 1
      %s135 = scalar_select %p134, %s13, 1
      %s136 = smul.addr %s135, 54
      %s137 = smul.addr %s136, 4
      %s138 = scalar_lea.vmem %s0, %s137
      %p139 = scmp.lt.s32.totalorder %s13, 1
      %s140 = scalar_select %p139, %s13, 1
      %s141 = smul.addr %s140, 64
      %s142 = smul.addr %s141, 8
      %s143 = scalar_lea.vmem %s2, %s142
      %v145 = vld [vmem:[%s138] sm:$0xf]
      %v146 = vld [vmem:[%s138 + $0x4] sm:$0xf]
      %v147 = vld [vmem:[%s138 + $0x8] sm:$0x1]
      %v148 = vld [vmem:[%s138 + $0xc] sm:$0xf]
      %v149 = vld [vmem:[%s138 + $0x10] sm:$0xf]
      %v150 = vld [vmem:[%s138 + $0x14] sm:$0x1]
      %v151 = vld [vmem:[%s138 + $0x18] sm:$0xf]
      %v152 = vld [vmem:[%s138 + $0x1c] sm:$0xf]
      %v153 = vld [vmem:[%s138 + $0x20] sm:$0x1]
      %v154 = vld [vmem:[%s138 + $0x24] sm:$0xf]
      %v155 = vld [vmem:[%s138 + $0x28] sm:$0xf]
      %v156 = vld [vmem:[%s138 + $0x2c] sm:$0x1]
      %v157 = vld [vmem:[%s138 + $0x30] sm:$0xf]
      %v158 = vld [vmem:[%s138 + $0x34] sm:$0xf]
      %v159 = vld [vmem:[%s138 + $0x38] sm:$0x1]
      %v160 = vld [vmem:[%s138 + $0x3c] sm:$0xf]
      %v161 = vld [vmem:[%s138 + $0x40] sm:$0xf]
      %v162 = vld [vmem:[%s138 + $0x44] sm:$0x1]
      %v163 = vld [vmem:[%s138 + $0x48] sm:$0xf]
      %v164 = vld [vmem:[%s138 + $0x4c] sm:$0xf]
      %v165 = vld [vmem:[%s138 + $0x50] sm:$0x1]
      %v166 = vld [vmem:[%s138 + $0x54] sm:$0xf]
      %v167 = vld [vmem:[%s138 + $0x58] sm:$0xf]
      %v168 = vld [vmem:[%s138 + $0x5c] sm:$0x1]
      %v169 = vld [vmem:[%s138 + $0x60] sm:$0xf]
      %v170 = vld [vmem:[%s138 + $0x64] sm:$0xf]
      %v171 = vld [vmem:[%s138 + $0x68] sm:$0x1]
      %v172 = vld [vmem:[%s138 + $0x6c] sm:$0xf]
      %v173 = vld [vmem:[%s138 + $0x70] sm:$0xf]
      %v174 = vld [vmem:[%s138 + $0x74] sm:$0x1]
      %v175 = vld [vmem:[%s138 + $0x78] sm:$0xf]
      %v176 = vld [vmem:[%s138 + $0x7c] sm:$0xf]
      %v177 = vld [vmem:[%s138 + $0x80] sm:$0x1]
      %v178 = vld [vmem:[%s138 + $0x84] sm:$0xf]
      %v179 = vld [vmem:[%s138 + $0x88] sm:$0xf]
      %v180 = vld [vmem:[%s138 + $0x8c] sm:$0x1]
      %v181 = vld [vmem:[%s138 + $0x90] sm:$0xf]
      %v182 = vld [vmem:[%s138 + $0x94] sm:$0xf]
      %v183 = vld [vmem:[%s138 + $0x98] sm:$0x1]
      %v184 = vld [vmem:[%s138 + $0x9c] sm:$0xf]
      %v185 = vld [vmem:[%s138 + $0xa0] sm:$0xf]
      %v186 = vld [vmem:[%s138 + $0xa4] sm:$0x1]
      %v187 = vld [vmem:[%s138 + $0xa8] sm:$0xf]
      %v188 = vld [vmem:[%s138 + $0xac] sm:$0xf]
      %v189 = vld [vmem:[%s138 + $0xb0] sm:$0x1]
      %v190 = vld [vmem:[%s138 + $0xb4] sm:$0xf]
      %v191 = vld [vmem:[%s138 + $0xb8] sm:$0xf]
      %v192 = vld [vmem:[%s138 + $0xbc] sm:$0x1]
      %v193 = vld [vmem:[%s138 + $0xc0] sm:$0xf]
      %v194 = vld [vmem:[%s138 + $0xc4] sm:$0xf]
      %v195 = vld [vmem:[%s138 + $0xc8] sm:$0x1]
      %v196 = vld [vmem:[%s138 + $0xcc] sm:$0xf]
      %v197 = vld [vmem:[%s138 + $0xd0] sm:$0xf]
      %v198 = vld [vmem:[%s138 + $0xd4] sm:$0x1]
      %v199 = vmax.bf16 %v145, 0
      %v200 = vmax.bf16 %v146, 0
      %v201 = vmax.bf16 %v147, 0
      %v202 = vmax.bf16 %v148, 0
      %v203 = vmax.bf16 %v149, 0
      %v204 = vmax.bf16 %v150, 0
      %v205 = vmax.bf16 %v151, 0
      %v206 = vmax.bf16 %v152, 0
      %v207 = vmax.bf16 %v153, 0
      %v208 = vmax.bf16 %v154, 0
      %v209 = vmax.bf16 %v155, 0
      %v210 = vmax.bf16 %v156, 0
      %v211 = vmax.bf16 %v157, 0
      %v212 = vmax.bf16 %v158, 0
      %v213 = vmax.bf16 %v159, 0
      %v214 = vmax.bf16 %v160, 0
      %v215 = vmax.bf16 %v161, 0
      %v216 = vmax.bf16 %v162, 0
      %v217 = vmax.bf16 %v163, 0
      %v218 = vmax.bf16 %v164, 0
      %v219 = vmax.bf16 %v165, 0
      %v220 = vmax.bf16 %v166, 0
      %v221 = vmax.bf16 %v167, 0
      %v222 = vmax.bf16 %v168, 0
      %v223 = vmax.bf16 %v169, 0
      %v224 = vmax.bf16 %v170, 0
      %v225 = vmax.bf16 %v171, 0
      %v226 = vmax.bf16 %v172, 0
      %v227 = vmax.bf16 %v173, 0
      %v228 = vmax.bf16 %v174, 0
      %v229 = vmax.bf16 %v175, 0
      %v230 = vmax.bf16 %v176, 0
      %v231 = vmax.bf16 %v177, 0
      %v232 = vmax.bf16 %v178, 0
      %v233 = vmax.bf16 %v179, 0
      %v234 = vmax.bf16 %v180, 0
      %v235 = vmax.bf16 %v181, 0
      %v236 = vmax.bf16 %v182, 0
      %v237 = vmax.bf16 %v183, 0
      %v238 = vmax.bf16 %v184, 0
      %v239 = vmax.bf16 %v185, 0
      %v240 = vmax.bf16 %v186, 0
      %v241 = vmax.bf16 %v187, 0
      %v242 = vmax.bf16 %v188, 0
      %v243 = vmax.bf16 %v189, 0
      %v244 = vmax.bf16 %v190, 0
      %v245 = vmax.bf16 %v191, 0
      %v246 = vmax.bf16 %v192, 0
      %v247 = vmax.bf16 %v193, 0
      %v248 = vmax.bf16 %v194, 0
      %v249 = vmax.bf16 %v195, 0
      %v250 = vmax.bf16 %v196, 0
      %v251 = vmax.bf16 %v197, 0
      %v252 = vmax.bf16 %v198, 0
      %v285 = vunpack.c.l.b16 %v199
      %v286 = vunpack.c.l.b16 %v200
      %v287 = vunpack.c.l.b16 %v202
      %v288 = vunpack.c.l.b16 %v203
      %v289 = vunpack.c.l.b16 %v205
      %v290 = vunpack.c.l.b16 %v206
      %v291 = vunpack.c.l.b16 %v208
      %v292 = vunpack.c.l.b16 %v209
      %v293 = vunpack.c.l.b16 %v211
      %v294 = vunpack.c.l.b16 %v212
      %v295 = vunpack.c.l.b16 %v214
      %v296 = vunpack.c.l.b16 %v215
      %v297 = vunpack.c.l.b16 %v217
      %v298 = vunpack.c.l.b16 %v218
      %v299 = vunpack.c.l.b16 %v220
      %v300 = vunpack.c.l.b16 %v221
      %v301 = vunpack.c.l.b16 %v223
      %v302 = vunpack.c.l.b16 %v224
      %v303 = vunpack.c.l.b16 %v226
      %v304 = vunpack.c.l.b16 %v227
      %v305 = vunpack.c.l.b16 %v229
      %v306 = vunpack.c.l.b16 %v230
      %v307 = vunpack.c.l.b16 %v232
      %v308 = vunpack.c.l.b16 %v233
      %v309 = vunpack.c.l.b16 %v235
      %v310 = vunpack.c.l.b16 %v236
      %v311 = vunpack.c.l.b16 %v238
      %v312 = vunpack.c.l.b16 %v239
      %v313 = vunpack.c.l.b16 %v241
      %v314 = vunpack.c.l.b16 %v242
      %v315 = vunpack.c.l.b16 %v244
      %v316 = vunpack.c.l.b16 %v245
      %v317 = vpack.c.b16 %v286, %v285
      %v318 = vpack.c.b16 %v288, %v287
      %v319 = vpack.c.b16 %v290, %v289
      %v320 = vpack.c.b16 %v292, %v291
      %v321 = vpack.c.b16 %v294, %v293
      %v322 = vpack.c.b16 %v296, %v295
      %v323 = vpack.c.b16 %v298, %v297
      %v324 = vpack.c.b16 %v300, %v299
      %v325 = vpack.c.b16 %v302, %v301
      %v326 = vpack.c.b16 %v304, %v303
      %v327 = vpack.c.b16 %v306, %v305
      %v328 = vpack.c.b16 %v308, %v307
      %v329 = vpack.c.b16 %v310, %v309
      %v330 = vpack.c.b16 %v312, %v311
      %v331 = vpack.c.b16 %v314, %v313
      %v332 = vpack.c.b16 %v316, %v315
      %v349 = vunpack.c.l.b16 %v201
      %v350 = vunpack.c.l.b16 %v204
      %v351 = vunpack.c.l.b16 %v207
      %v352 = vunpack.c.l.b16 %v210
      %v353 = vunpack.c.l.b16 %v213
      %v354 = vunpack.c.l.b16 %v216
      %v355 = vunpack.c.l.b16 %v219
      %v356 = vunpack.c.l.b16 %v222
      %v357 = vunpack.c.l.b16 %v225
      %v358 = vunpack.c.l.b16 %v228
      %v359 = vunpack.c.l.b16 %v231
      %v360 = vunpack.c.l.b16 %v234
      %v361 = vunpack.c.l.b16 %v237
      %v362 = vunpack.c.l.b16 %v240
      %v363 = vunpack.c.l.b16 %v243
      %v364 = vunpack.c.l.b16 %v246
      %v365 = vpack.c.b16 %v349, %v349
      %v366 = vpack.c.b16 %v350, %v350
      %v367 = vpack.c.b16 %v351, %v351
      %v368 = vpack.c.b16 %v352, %v352
      %v369 = vpack.c.b16 %v353, %v353
      %v370 = vpack.c.b16 %v354, %v354
      %v371 = vpack.c.b16 %v355, %v355
      %v372 = vpack.c.b16 %v356, %v356
      %v373 = vpack.c.b16 %v357, %v357
      %v374 = vpack.c.b16 %v358, %v358
      %v375 = vpack.c.b16 %v359, %v359
      %v376 = vpack.c.b16 %v360, %v360
      %v377 = vpack.c.b16 %v361, %v361
      %v378 = vpack.c.b16 %v362, %v362
      %v379 = vpack.c.b16 %v363, %v363
      %v380 = vpack.c.b16 %v364, %v364
      %vm381 = vsmask.f32 7424
      %v383 = vshrl.u32 %v317, 16
      %v385 = vshll.u32 %v317, 16
      %v387 = vrot.slane %v385, 1
      %v388 = vor.u32 %v383, %v387
      %v390 = vshll.u32 %v365, 16
      %v392 = vrot.slane %v390, 1
      %v393 = vsel %vm381, %v388, %v392
      %v395 = vshrl.u32 %v318, 16
      %v397 = vshll.u32 %v318, 16
      %v399 = vrot.slane %v397, 1
      %v400 = vor.u32 %v395, %v399
      %v402 = vshll.u32 %v366, 16
      %v404 = vrot.slane %v402, 1
      %v405 = vsel %vm381, %v400, %v404
      %v407 = vshrl.u32 %v319, 16
      %v409 = vshll.u32 %v319, 16
      %v411 = vrot.slane %v409, 1
      %v412 = vor.u32 %v407, %v411
      %v414 = vshll.u32 %v367, 16
      %v416 = vrot.slane %v414, 1
      %v417 = vsel %vm381, %v412, %v416
      %v419 = vshrl.u32 %v320, 16
      %v421 = vshll.u32 %v320, 16
      %v423 = vrot.slane %v421, 1
      %v424 = vor.u32 %v419, %v423
      %v426 = vshll.u32 %v368, 16
      %v428 = vrot.slane %v426, 1
      %v429 = vsel %vm381, %v424, %v428
      %v431 = vshrl.u32 %v321, 16
      %v433 = vshll.u32 %v321, 16
      %v435 = vrot.slane %v433, 1
      %v436 = vor.u32 %v431, %v435
      %v438 = vshll.u32 %v369, 16
      %v440 = vrot.slane %v438, 1
      %v441 = vsel %vm381, %v436, %v440
      %v443 = vshrl.u32 %v322, 16
      %v445 = vshll.u32 %v322, 16
      %v447 = vrot.slane %v445, 1
      %v448 = vor.u32 %v443, %v447
      %v450 = vshll.u32 %v370, 16
      %v452 = vrot.slane %v450, 1
      %v453 = vsel %vm381, %v448, %v452
      %v455 = vshrl.u32 %v323, 16
      %v457 = vshll.u32 %v323, 16
      %v459 = vrot.slane %v457, 1
      %v460 = vor.u32 %v455, %v459
      %v462 = vshll.u32 %v371, 16
      %v464 = vrot.slane %v462, 1
      %v465 = vsel %vm381, %v460, %v464
      %v467 = vshrl.u32 %v324, 16
      %v469 = vshll.u32 %v324, 16
      %v471 = vrot.slane %v469, 1
      %v472 = vor.u32 %v467, %v471
      %v474 = vshll.u32 %v372, 16
      %v476 = vrot.slane %v474, 1
      %v477 = vsel %vm381, %v472, %v476
      %v479 = vshrl.u32 %v325, 16
      %v481 = vshll.u32 %v325, 16
      %v483 = vrot.slane %v481, 1
      %v484 = vor.u32 %v479, %v483
      %v486 = vshll.u32 %v373, 16
      %v488 = vrot.slane %v486, 1
      %v489 = vsel %vm381, %v484, %v488
      %v491 = vshrl.u32 %v326, 16
      %v493 = vshll.u32 %v326, 16
      %v495 = vrot.slane %v493, 1
      %v496 = vor.u32 %v491, %v495
      %v498 = vshll.u32 %v374, 16
      %v500 = vrot.slane %v498, 1
      %v501 = vsel %vm381, %v496, %v500
      %v503 = vshrl.u32 %v327, 16
      %v505 = vshll.u32 %v327, 16
      %v507 = vrot.slane %v505, 1
      %v508 = vor.u32 %v503, %v507
      %v510 = vshll.u32 %v375, 16
      %v512 = vrot.slane %v510, 1
      %v513 = vsel %vm381, %v508, %v512
      %v515 = vshrl.u32 %v328, 16
      %v517 = vshll.u32 %v328, 16
      %v519 = vrot.slane %v517, 1
      %v520 = vor.u32 %v515, %v519
      %v522 = vshll.u32 %v376, 16
      %v524 = vrot.slane %v522, 1
      %v525 = vsel %vm381, %v520, %v524
      %v527 = vshrl.u32 %v329, 16
      %v529 = vshll.u32 %v329, 16
      %v531 = vrot.slane %v529, 1
      %v532 = vor.u32 %v527, %v531
      %v534 = vshll.u32 %v377, 16
      %v536 = vrot.slane %v534, 1
      %v537 = vsel %vm381, %v532, %v536
      %v539 = vshrl.u32 %v330, 16
      %v541 = vshll.u32 %v330, 16
      %v543 = vrot.slane %v541, 1
      %v544 = vor.u32 %v539, %v543
      %v546 = vshll.u32 %v378, 16
      %v548 = vrot.slane %v546, 1
      %v549 = vsel %vm381, %v544, %v548
      %v551 = vshrl.u32 %v331, 16
      %v553 = vshll.u32 %v331, 16
      %v555 = vrot.slane %v553, 1
      %v556 = vor.u32 %v551, %v555
      %v558 = vshll.u32 %v379, 16
      %v560 = vrot.slane %v558, 1
      %v561 = vsel %vm381, %v556, %v560
      %v563 = vshrl.u32 %v332, 16
      %v565 = vshll.u32 %v332, 16
      %v567 = vrot.slane %v565, 1
      %v568 = vor.u32 %v563, %v567
      %v570 = vshll.u32 %v380, 16
      %v572 = vrot.slane %v570, 1
      %v573 = vsel %vm381, %v568, %v572
      %574 = vrot.lane.b32.xlu0 %v393, 16
      %v575 = vpop.permute.xlu0 %574
      %576 = vrot.lane.b32.xlu0 %v405, 16
      %v577 = vpop.permute.xlu0 %576
      %578 = vrot.lane.b32.xlu0 %v417, 16
      %v579 = vpop.permute.xlu0 %578
      %580 = vrot.lane.b32.xlu0 %v429, 16
      %v581 = vpop.permute.xlu0 %580
      %582 = vrot.lane.b32.xlu0 %v441, 16
      %v583 = vpop.permute.xlu0 %582
      %584 = vrot.lane.b32.xlu0 %v453, 16
      %v585 = vpop.permute.xlu0 %584
      %586 = vrot.lane.b32.xlu0 %v465, 16
      %v587 = vpop.permute.xlu0 %586
      %588 = vrot.lane.b32.xlu0 %v477, 16
      %v589 = vpop.permute.xlu0 %588
      %590 = vrot.lane.b32.xlu0 %v489, 16
      %v591 = vpop.permute.xlu0 %590
      %592 = vrot.lane.b32.xlu0 %v501, 16
      %v593 = vpop.permute.xlu0 %592
      %594 = vrot.lane.b32.xlu0 %v513, 16
      %v595 = vpop.permute.xlu0 %594
      %596 = vrot.lane.b32.xlu0 %v525, 16
      %v597 = vpop.permute.xlu0 %596
      %598 = vrot.lane.b32.xlu0 %v537, 16
      %v599 = vpop.permute.xlu0 %598
      %600 = vrot.lane.b32.xlu0 %v549, 16
      %v601 = vpop.permute.xlu0 %600
      %602 = vrot.lane.b32.xlu0 %v561, 16
      %v603 = vpop.permute.xlu0 %602
      %604 = vrot.lane.b32.xlu0 %v573, 16
      %v605 = vpop.permute.xlu0 %604
      %v608 = vunpack.c.l.b16 %v247
      %v609 = vunpack.c.l.b16 %v248
      %v610 = vpack.c.b16 %v609, %v608
      %611 = vrot.lane.b32.xlu0 %v318, 32
      %v612 = vpop.permute.xlu0 %611
      %613 = vrot.lane.b32.xlu0 %v319, 32
      %v614 = vpop.permute.xlu0 %613
      %615 = vrot.lane.b32.xlu0 %v320, 32
      %v616 = vpop.permute.xlu0 %615
      %617 = vrot.lane.b32.xlu0 %v321, 32
      %v618 = vpop.permute.xlu0 %617
      %619 = vrot.lane.b32.xlu0 %v322, 32
      %v620 = vpop.permute.xlu0 %619
      %621 = vrot.lane.b32.xlu0 %v323, 32
      %v622 = vpop.permute.xlu0 %621
      %623 = vrot.lane.b32.xlu0 %v324, 32
      %v624 = vpop.permute.xlu0 %623
      %625 = vrot.lane.b32.xlu0 %v325, 32
      %v626 = vpop.permute.xlu0 %625
      %627 = vrot.lane.b32.xlu0 %v326, 32
      %v628 = vpop.permute.xlu0 %627
      %629 = vrot.lane.b32.xlu0 %v327, 32
      %v630 = vpop.permute.xlu0 %629
      %631 = vrot.lane.b32.xlu0 %v328, 32
      %v632 = vpop.permute.xlu0 %631
      %633 = vrot.lane.b32.xlu0 %v329, 32
      %v634 = vpop.permute.xlu0 %633
      %635 = vrot.lane.b32.xlu0 %v330, 32
      %v636 = vpop.permute.xlu0 %635
      %637 = vrot.lane.b32.xlu0 %v331, 32
      %v638 = vpop.permute.xlu0 %637
      %639 = vrot.lane.b32.xlu0 %v332, 32
      %v640 = vpop.permute.xlu0 %639
      %641 = vrot.lane.b32.xlu0 %v610, 32
      %v642 = vpop.permute.xlu0 %641
      %v644 = vunpack.c.l.b16 %v249
      %v645 = vpack.c.b16 %v644, %v644
      %v647 = vshrl.u32 %v610, 16
      %v649 = vshll.u32 %v610, 16
      %v651 = vrot.slane %v649, 1
      %v652 = vor.u32 %v647, %v651
      %v654 = vshll.u32 %v645, 16
      %v656 = vrot.slane %v654, 1
      %v657 = vsel %vm381, %v652, %v656
      %658 = vrot.lane.b32.xlu0 %v405, 48
      %v659 = vpop.permute.xlu0 %658
      %660 = vrot.lane.b32.xlu0 %v417, 48
      %v661 = vpop.permute.xlu0 %660
      %662 = vrot.lane.b32.xlu0 %v429, 48
      %v663 = vpop.permute.xlu0 %662
      %664 = vrot.lane.b32.xlu0 %v441, 48
      %v665 = vpop.permute.xlu0 %664
      %666 = vrot.lane.b32.xlu0 %v453, 48
      %v667 = vpop.permute.xlu0 %666
      %668 = vrot.lane.b32.xlu0 %v465, 48
      %v669 = vpop.permute.xlu0 %668
      %670 = vrot.lane.b32.xlu0 %v477, 48
      %v671 = vpop.permute.xlu0 %670
      %672 = vrot.lane.b32.xlu0 %v489, 48
      %v673 = vpop.permute.xlu0 %672
      %674 = vrot.lane.b32.xlu0 %v501, 48
      %v675 = vpop.permute.xlu0 %674
      %676 = vrot.lane.b32.xlu0 %v513, 48
      %v677 = vpop.permute.xlu0 %676
      %678 = vrot.lane.b32.xlu0 %v525, 48
      %v679 = vpop.permute.xlu0 %678
      %680 = vrot.lane.b32.xlu0 %v537, 48
      %v681 = vpop.permute.xlu0 %680
      %682 = vrot.lane.b32.xlu0 %v549, 48
      %v683 = vpop.permute.xlu0 %682
      %684 = vrot.lane.b32.xlu0 %v561, 48
      %v685 = vpop.permute.xlu0 %684
      %686 = vrot.lane.b32.xlu0 %v573, 48
      %v687 = vpop.permute.xlu0 %686
      %688 = vrot.lane.b32.xlu0 %v657, 48
      %v689 = vpop.permute.xlu0 %688
      %vm690 = vcmask 130048
      %v692 = vsel %vm690, %v317, %v575
      %v694 = vsel %vm690, %v318, %v577
      %v696 = vsel %vm690, %v319, %v579
      %v698 = vsel %vm690, %v320, %v581
      %v700 = vsel %vm690, %v321, %v583
      %v702 = vsel %vm690, %v322, %v585
      %v704 = vsel %vm690, %v323, %v587
      %v706 = vsel %vm690, %v324, %v589
      %v708 = vsel %vm690, %v325, %v591
      %v710 = vsel %vm690, %v326, %v593
      %v712 = vsel %vm690, %v327, %v595
      %v714 = vsel %vm690, %v328, %v597
      %v716 = vsel %vm690, %v329, %v599
      %v718 = vsel %vm690, %v330, %v601
      %v720 = vsel %vm690, %v331, %v603
      %v722 = vsel %vm690, %v332, %v605
      %vm723 = vcmask 261120
      %v725 = vsel %vm723, %v692, %v612
      %v727 = vsel %vm723, %v694, %v614
      %v729 = vsel %vm723, %v696, %v616
      %v731 = vsel %vm723, %v698, %v618
      %v733 = vsel %vm723, %v700, %v620
      %v735 = vsel %vm723, %v702, %v622
      %v737 = vsel %vm723, %v704, %v624
      %v739 = vsel %vm723, %v706, %v626
      %v741 = vsel %vm723, %v708, %v628
      %v743 = vsel %vm723, %v710, %v630
      %v745 = vsel %vm723, %v712, %v632
      %v747 = vsel %vm723, %v714, %v634
      %v749 = vsel %vm723, %v716, %v636
      %v751 = vsel %vm723, %v718, %v638
      %v753 = vsel %vm723, %v720, %v640
      %v755 = vsel %vm723, %v722, %v642
      %vm756 = vcmask 392192
      %v758 = vsel %vm756, %v725, %v659
      %v760 = vsel %vm756, %v727, %v661
      %v762 = vsel %vm756, %v729, %v663
      %v764 = vsel %vm756, %v731, %v665
      %v766 = vsel %vm756, %v733, %v667
      %v768 = vsel %vm756, %v735, %v669
      %v770 = vsel %vm756, %v737, %v671
      %v772 = vsel %vm756, %v739, %v673
      %v774 = vsel %vm756, %v741, %v675
      %v776 = vsel %vm756, %v743, %v677
      %v778 = vsel %vm756, %v745, %v679
      %v780 = vsel %vm756, %v747, %v681
      %v782 = vsel %vm756, %v749, %v683
      %v784 = vsel %vm756, %v751, %v685
      %v786 = vsel %vm756, %v753, %v687
      %v788 = vsel %vm756, %v755, %v689
      %v789 = vld [vmem:[%s1] sm:$0xf]
      %v790 = vld [vmem:[%s1 + $0x4] sm:$0xf]
      %v791 = vld [vmem:[%s1 + $0x8] sm:$0xf]
      %v792 = vld [vmem:[%s1 + $0xc] sm:$0xf]
      %v793 = vld [vmem:[%s1 + $0x10] sm:$0xf]
      %v794 = vld [vmem:[%s1 + $0x14] sm:$0xf]
      %v795 = vld [vmem:[%s1 + $0x18] sm:$0xf]
      %v796 = vld [vmem:[%s1 + $0x1c] sm:$0xf]
      %v805 = vunpack.c.l.b16 %v789
      %v806 = vunpack.c.l.b16 %v790
      %v807 = vunpack.c.l.b16 %v791
      %v808 = vunpack.c.l.b16 %v792
      %v809 = vunpack.c.l.b16 %v793
      %v810 = vunpack.c.l.b16 %v794
      %v811 = vunpack.c.l.b16 %v795
      %v812 = vunpack.c.l.b16 %v796
      %v813 = vpack.c.b16 %v806, %v805
      %v814 = vpack.c.b16 %v808, %v807
      %v815 = vpack.c.b16 %v810, %v809
      %v816 = vpack.c.b16 %v812, %v811
      %vm821 = vcmask 523264
      %v822 = vsel %vm821, %v758, 0
      %v824 = vsel %vm821, %v760, 0
      %v826 = vsel %vm821, %v762, 0
      %v828 = vsel %vm821, %v764, 0
      %v830 = vsel %vm821, %v766, 0
      %v832 = vsel %vm821, %v768, 0
      %v834 = vsel %vm821, %v770, 0
      %v836 = vsel %vm821, %v772, 0
      %v838 = vsel %vm821, %v774, 0
      %v840 = vsel %vm821, %v776, 0
      %v842 = vsel %vm821, %v778, 0
      %v844 = vsel %vm821, %v780, 0
      %v846 = vsel %vm821, %v782, 0
      %v848 = vsel %vm821, %v784, 0
      %v850 = vsel %vm821, %v786, 0
      %v852 = vsel %vm821, %v788, 0
      %854 = vmatprep.subr.bf16.mxu0 0
      %855 = vmatpush1.bf16.msra.mxu0 %v813
      %856 = vmatprep.subr.bf16.mxu0 0
      %857 = vmatpush1.bf16.msra.mxu0 %v814
      %858 = vmatprep.subr.bf16.mxu0 0
      %859 = vmatpush1.bf16.msra.mxu0 %v815
      %860 = vmatprep.subr.bf16.mxu0 0
      %861 = vmatpush1.bf16.msra.mxu0 %v816
      %862 = vmatprep.subr.bf16.mxu0 0
      %863 = vmatpush1.bf16.msra.mxu0 0
      %864 = vmatprep.subr.bf16.mxu0 0
      %865 = vmatpush1.bf16.msra.mxu0 0
      %866 = vmatprep.subr.bf16.mxu0 0
      %867 = vmatpush1.bf16.msra.mxu0 0
      %868 = vmatprep.subr.bf16.mxu0 0
      %869 = vmatpush1.bf16.msra.mxu0 0
      %870 = vmatprep.subr.bf16.mxu0 0
      %871 = vmatpush1.bf16.msra.mxu0 0
      %872 = vmatprep.subr.bf16.mxu0 0
      %873 = vmatpush1.bf16.msra.mxu0 0
      %874 = vmatprep.subr.bf16.mxu0 0
      %875 = vmatpush1.bf16.msra.mxu0 0
      %876 = vmatprep.subr.bf16.mxu0 0
      %877 = vmatpush1.bf16.msra.mxu0 0
      %878 = vmatprep.subr.bf16.mxu0 0
      %879 = vmatpush1.bf16.msra.mxu0 0
      %880 = vmatprep.subr.bf16.mxu0 0
      %881 = vmatpush1.bf16.msra.mxu0 0
      %882 = vmatprep.subr.bf16.mxu0 0
      %883 = vmatpush1.bf16.msra.mxu0 0
      %884 = vmatprep.subr.bf16.mxu0 0
      %885 = vmatpush1.bf16.msra.mxu0 0
      %886 = vmatprep.mubr.bf16.mxu0 0
      %887 = vmatmul.mubr.bf16.gmra.mrb[0].mxu0 %v822
      %v888 = vpop.f32.mrb[0].mxu0
      %v889 = vadd.f32 0.0, %v888
      %v890 = vpop.f32.mrb[0].mxu0
      %v891 = vpop.f32.mrb[0].mxu0
      %v892 = vadd.f32 0.0, %v891
      %v893 = vpop.f32.mrb[0].mxu0
      %894 = vmatprep.mubr.bf16.mxu0 0
      %895 = vmatmul.mubr.bf16.gmra.mrb[0].mxu0 %v824
      %v896 = vpop.f32.mrb[0].mxu0
      %v897 = vadd.f32 0.0, %v896
      %v898 = vpop.f32.mrb[0].mxu0
      %v899 = vpop.f32.mrb[0].mxu0
      %v900 = vadd.f32 0.0, %v899
      %v901 = vpop.f32.mrb[0].mxu0
      %902 = vmatprep.mubr.bf16.mxu0 0
      %903 = vmatmul.mubr.bf16.gmra.mrb[0].mxu0 %v826
      %v904 = vpop.f32.mrb[0].mxu0
      %v905 = vadd.f32 0.0, %v904
      %v906 = vpop.f32.mrb[0].mxu0
      %v907 = vpop.f32.mrb[0].mxu0
      %v908 = vadd.f32 0.0, %v907
      %v909 = vpop.f32.mrb[0].mxu0
      %910 = vmatprep.mubr.bf16.mxu0 0
      %911 = vmatmul.mubr.bf16.gmra.mrb[0].mxu0 %v828
      %v912 = vpop.f32.mrb[0].mxu0
      %v913 = vadd.f32 0.0, %v912
      %v914 = vpop.f32.mrb[0].mxu0
      %v915 = vpop.f32.mrb[0].mxu0
      %v916 = vadd.f32 0.0, %v915
      %v917 = vpop.f32.mrb[0].mxu0
      %918 = vmatprep.mubr.bf16.mxu0 0
      %919 = vmatmul.mubr.bf16.gmra.mrb[0].mxu0 %v830
      %v920 = vpop.f32.mrb[0].mxu0
      %v921 = vadd.f32 0.0, %v920
      %v922 = vpop.f32.mrb[0].mxu0
      %v923 = vpop.f32.mrb[0].mxu0
      %v924 = vadd.f32 0.0, %v923
      %v925 = vpop.f32.mrb[0].mxu0
      %926 = vmatprep.mubr.bf16.mxu0 0
      %927 = vmatmul.mubr.bf16.gmra.mrb[0].mxu0 %v832
      %v928 = vpop.f32.mrb[0].mxu0
      %v929 = vadd.f32 0.0, %v928
      %v930 = vpop.f32.mrb[0].mxu0
      %v931 = vpop.f32.mrb[0].mxu0
      %v932 = vadd.f32 0.0, %v931
      %v933 = vpop.f32.mrb[0].mxu0
      %934 = vmatprep.mubr.bf16.mxu0 0
      %935 = vmatmul.mubr.bf16.gmra.mrb[0].mxu0 %v834
      %v936 = vpop.f32.mrb[0].mxu0
      %v937 = vadd.f32 0.0, %v936
      %v938 = vpop.f32.mrb[0].mxu0
      %v939 = vpop.f32.mrb[0].mxu0
      %v940 = vadd.f32 0.0, %v939
      %v941 = vpop.f32.mrb[0].mxu0
      %942 = vmatprep.mubr.bf16.mxu0 0
      %943 = vmatmul.mubr.bf16.gmra.mrb[0].mxu0 %v836
      %v944 = vpop.f32.mrb[0].mxu0
      %v945 = vadd.f32 0.0, %v944
      %v946 = vpop.f32.mrb[0].mxu0
      %v947 = vpop.f32.mrb[0].mxu0
      %v948 = vadd.f32 0.0, %v947
      %v949 = vpop.f32.mrb[0].mxu0
      %950 = vmatprep.mubr.bf16.mxu0 0
      %951 = vmatmul.mubr.bf16.gmra.mrb[0].mxu0 %v838
      %v952 = vpop.f32.mrb[0].mxu0
      %v953 = vadd.f32 0.0, %v952
      %v954 = vpop.f32.mrb[0].mxu0
      %v955 = vpop.f32.mrb[0].mxu0
      %v956 = vadd.f32 0.0, %v955
      %v957 = vpop.f32.mrb[0].mxu0
      %958 = vmatprep.mubr.bf16.mxu0 0
      %959 = vmatmul.mubr.bf16.gmra.mrb[0].mxu0 %v840
      %v960 = vpop.f32.mrb[0].mxu0
      %v961 = vadd.f32 0.0, %v960
      %v962 = vpop.f32.mrb[0].mxu0
      %v963 = vpop.f32.mrb[0].mxu0
      %v964 = vadd.f32 0.0, %v963
      %v965 = vpop.f32.mrb[0].mxu0
      %966 = vmatprep.mubr.bf16.mxu0 0
      %967 = vmatmul.mubr.bf16.gmra.mrb[0].mxu0 %v842
      %v968 = vpop.f32.mrb[0].mxu0
      %v969 = vadd.f32 0.0, %v968
      %v970 = vpop.f32.mrb[0].mxu0
      %v971 = vpop.f32.mrb[0].mxu0
      %v972 = vadd.f32 0.0, %v971
      %v973 = vpop.f32.mrb[0].mxu0
      %974 = vmatprep.mubr.bf16.mxu0 0
      %975 = vmatmul.mubr.bf16.gmra.mrb[0].mxu0 %v844
      %v976 = vpop.f32.mrb[0].mxu0
      %v977 = vadd.f32 0.0, %v976
      %v978 = vpop.f32.mrb[0].mxu0
      %v979 = vpop.f32.mrb[0].mxu0
      %v980 = vadd.f32 0.0, %v979
      %v981 = vpop.f32.mrb[0].mxu0
      %982 = vmatprep.mubr.bf16.mxu0 0
      %983 = vmatmul.mubr.bf16.gmra.mrb[0].mxu0 %v846
      %v984 = vpop.f32.mrb[0].mxu0
      %v985 = vadd.f32 0.0, %v984
      %v986 = vpop.f32.mrb[0].mxu0
      %v987 = vpop.f32.mrb[0].mxu0
      %v988 = vadd.f32 0.0, %v987
      %v989 = vpop.f32.mrb[0].mxu0
      %990 = vmatprep.mubr.bf16.mxu0 0
      %991 = vmatmul.mubr.bf16.gmra.mrb[0].mxu0 %v848
      %v992 = vpop.f32.mrb[0].mxu0
      %v993 = vadd.f32 0.0, %v992
      %v994 = vpop.f32.mrb[0].mxu0
      %v995 = vpop.f32.mrb[0].mxu0
      %v996 = vadd.f32 0.0, %v995
      %v997 = vpop.f32.mrb[0].mxu0
      %998 = vmatprep.mubr.bf16.mxu0 0
      %999 = vmatmul.mubr.bf16.gmra.mrb[0].mxu0 %v850
      %v1000 = vpop.f32.mrb[0].mxu0
      %v1001 = vadd.f32 0.0, %v1000
      %v1002 = vpop.f32.mrb[0].mxu0
      %v1003 = vpop.f32.mrb[0].mxu0
      %v1004 = vadd.f32 0.0, %v1003
      %v1005 = vpop.f32.mrb[0].mxu0
      %1006 = vmatprep.mubr.bf16.mxu0 0
      %1007 = vmatmul.mubr.bf16.gmra.mrb[0].mxu0 %v852
      %v1008 = vpop.f32.mrb[0].mxu0
      %v1009 = vadd.f32 0.0, %v1008
      %v1010 = vpop.f32.mrb[0].mxu0
      %v1011 = vpop.f32.mrb[0].mxu0
      %v1012 = vadd.f32 0.0, %v1011
      %v1013 = vpop.f32.mrb[0].mxu0
      %1014 = vdwg.mxu0
      %v1015 = vshrl.u32 %v365, 16
      %v1017 = vshrl.u32 %v366, 16
      %v1019 = vshrl.u32 %v367, 16
      %v1021 = vshrl.u32 %v368, 16
      %v1023 = vshrl.u32 %v369, 16
      %v1025 = vshrl.u32 %v370, 16
      %v1027 = vshrl.u32 %v371, 16
      %v1029 = vshrl.u32 %v372, 16
      %v1031 = vshrl.u32 %v373, 16
      %v1033 = vshrl.u32 %v374, 16
      %v1035 = vshrl.u32 %v375, 16
      %v1037 = vshrl.u32 %v376, 16
      %v1039 = vshrl.u32 %v377, 16
      %v1041 = vshrl.u32 %v378, 16
      %v1043 = vshrl.u32 %v379, 16
      %v1045 = vshrl.u32 %v380, 16
      %1047 = vrot.lane.b32.xlu0 %v1015, 16
      %v1048 = vpop.permute.xlu0 %1047
      %1049 = vrot.lane.b32.xlu0 %v1017, 16
      %v1050 = vpop.permute.xlu0 %1049
      %1051 = vrot.lane.b32.xlu0 %v1019, 16
      %v1052 = vpop.permute.xlu0 %1051
      %1053 = vrot.lane.b32.xlu0 %v1021, 16
      %v1054 = vpop.permute.xlu0 %1053
      %1055 = vrot.lane.b32.xlu0 %v1023, 16
      %v1056 = vpop.permute.xlu0 %1055
      %1057 = vrot.lane.b32.xlu0 %v1025, 16
      %v1058 = vpop.permute.xlu0 %1057
      %1059 = vrot.lane.b32.xlu0 %v1027, 16
      %v1060 = vpop.permute.xlu0 %1059
      %1061 = vrot.lane.b32.xlu0 %v1029, 16
      %v1062 = vpop.permute.xlu0 %1061
      %1063 = vrot.lane.b32.xlu0 %v1031, 16
      %v1064 = vpop.permute.xlu0 %1063
      %1065 = vrot.lane.b32.xlu0 %v1033, 16
      %v1066 = vpop.permute.xlu0 %1065
      %1067 = vrot.lane.b32.xlu0 %v1035, 16
      %v1068 = vpop.permute.xlu0 %1067
      %1069 = vrot.lane.b32.xlu0 %v1037, 16
      %v1070 = vpop.permute.xlu0 %1069
      %1071 = vrot.lane.b32.xlu0 %v1039, 16
      %v1072 = vpop.permute.xlu0 %1071
      %1073 = vrot.lane.b32.xlu0 %v1041, 16
      %v1074 = vpop.permute.xlu0 %1073
      %1075 = vrot.lane.b32.xlu0 %v1043, 16
      %v1076 = vpop.permute.xlu0 %1075
      %1077 = vrot.lane.b32.xlu0 %v1045, 16
      %v1078 = vpop.permute.xlu0 %1077
      %1079 = vrot.lane.b32.xlu0 %v366, 32
      %v1080 = vpop.permute.xlu0 %1079
      %1081 = vrot.lane.b32.xlu0 %v367, 32
      %v1082 = vpop.permute.xlu0 %1081
      %1083 = vrot.lane.b32.xlu0 %v368, 32
      %v1084 = vpop.permute.xlu0 %1083
      %1085 = vrot.lane.b32.xlu0 %v369, 32
      %v1086 = vpop.permute.xlu0 %1085
      %1087 = vrot.lane.b32.xlu0 %v370, 32
      %v1088 = vpop.permute.xlu0 %1087
      %1089 = vrot.lane.b32.xlu0 %v371, 32
      %v1090 = vpop.permute.xlu0 %1089
      %1091 = vrot.lane.b32.xlu0 %v372, 32
      %v1092 = vpop.permute.xlu0 %1091
      %1093 = vrot.lane.b32.xlu0 %v373, 32
      %v1094 = vpop.permute.xlu0 %1093
      %1095 = vrot.lane.b32.xlu0 %v374, 32
      %v1096 = vpop.permute.xlu0 %1095
      %1097 = vrot.lane.b32.xlu0 %v375, 32
      %v1098 = vpop.permute.xlu0 %1097
      %1099 = vrot.lane.b32.xlu0 %v376, 32
      %v1100 = vpop.permute.xlu0 %1099
      %1101 = vrot.lane.b32.xlu0 %v377, 32
      %v1102 = vpop.permute.xlu0 %1101
      %1103 = vrot.lane.b32.xlu0 %v378, 32
      %v1104 = vpop.permute.xlu0 %1103
      %1105 = vrot.lane.b32.xlu0 %v379, 32
      %v1106 = vpop.permute.xlu0 %1105
      %1107 = vrot.lane.b32.xlu0 %v380, 32
      %v1108 = vpop.permute.xlu0 %1107
      %1109 = vrot.lane.b32.xlu0 %v645, 32
      %v1110 = vpop.permute.xlu0 %1109
      %v1111 = vshrl.u32 %v645, 16
      %1113 = vrot.lane.b32.xlu0 %v1017, 48
      %v1114 = vpop.permute.xlu0 %1113
      %1115 = vrot.lane.b32.xlu0 %v1019, 48
      %v1116 = vpop.permute.xlu0 %1115
      %1117 = vrot.lane.b32.xlu0 %v1021, 48
      %v1118 = vpop.permute.xlu0 %1117
      %1119 = vrot.lane.b32.xlu0 %v1023, 48
      %v1120 = vpop.permute.xlu0 %1119
      %1121 = vrot.lane.b32.xlu0 %v1025, 48
      %v1122 = vpop.permute.xlu0 %1121
      %1123 = vrot.lane.b32.xlu0 %v1027, 48
      %v1124 = vpop.permute.xlu0 %1123
      %1125 = vrot.lane.b32.xlu0 %v1029, 48
      %v1126 = vpop.permute.xlu0 %1125
      %1127 = vrot.lane.b32.xlu0 %v1031, 48
      %v1128 = vpop.permute.xlu0 %1127
      %1129 = vrot.lane.b32.xlu0 %v1033, 48
      %v1130 = vpop.permute.xlu0 %1129
      %1131 = vrot.lane.b32.xlu0 %v1035, 48
      %v1132 = vpop.permute.xlu0 %1131
      %1133 = vrot.lane.b32.xlu0 %v1037, 48
      %v1134 = vpop.permute.xlu0 %1133
      %1135 = vrot.lane.b32.xlu0 %v1039, 48
      %v1136 = vpop.permute.xlu0 %1135
      %1137 = vrot.lane.b32.xlu0 %v1041, 48
      %v1138 = vpop.permute.xlu0 %1137
      %1139 = vrot.lane.b32.xlu0 %v1043, 48
      %v1140 = vpop.permute.xlu0 %1139
      %1141 = vrot.lane.b32.xlu0 %v1045, 48
      %v1142 = vpop.permute.xlu0 %1141
      %1143 = vrot.lane.b32.xlu0 %v1111, 48
      %v1144 = vpop.permute.xlu0 %1143
      %v1146 = vsel %vm690, %v365, %v1048
      %v1148 = vsel %vm690, %v366, %v1050
      %v1150 = vsel %vm690, %v367, %v1052
      %v1152 = vsel %vm690, %v368, %v1054
      %v1154 = vsel %vm690, %v369, %v1056
      %v1156 = vsel %vm690, %v370, %v1058
      %v1158 = vsel %vm690, %v371, %v1060
      %v1160 = vsel %vm690, %v372, %v1062
      %v1162 = vsel %vm690, %v373, %v1064
      %v1164 = vsel %vm690, %v374, %v1066
      %v1166 = vsel %vm690, %v375, %v1068
      %v1168 = vsel %vm690, %v376, %v1070
      %v1170 = vsel %vm690, %v377, %v1072
      %v1172 = vsel %vm690, %v378, %v1074
      %v1174 = vsel %vm690, %v379, %v1076
      %v1176 = vsel %vm690, %v380, %v1078
      %v1178 = vsel %vm723, %v1146, %v1080
      %v1180 = vsel %vm723, %v1148, %v1082
      %v1182 = vsel %vm723, %v1150, %v1084
      %v1184 = vsel %vm723, %v1152, %v1086
      %v1186 = vsel %vm723, %v1154, %v1088
      %v1188 = vsel %vm723, %v1156, %v1090
      %v1190 = vsel %vm723, %v1158, %v1092
      %v1192 = vsel %vm723, %v1160, %v1094
      %v1194 = vsel %vm723, %v1162, %v1096
      %v1196 = vsel %vm723, %v1164, %v1098
      %v1198 = vsel %vm723, %v1166, %v1100
      %v1200 = vsel %vm723, %v1168, %v1102
      %v1202 = vsel %vm723, %v1170, %v1104
      %v1204 = vsel %vm723, %v1172, %v1106
      %v1206 = vsel %vm723, %v1174, %v1108
      %v1208 = vsel %vm723, %v1176, %v1110
      %v1210 = vsel %vm756, %v1178, %v1114
      %v1212 = vsel %vm756, %v1180, %v1116
      %v1214 = vsel %vm756, %v1182, %v1118
      %v1216 = vsel %vm756, %v1184, %v1120
      %v1218 = vsel %vm756, %v1186, %v1122
      %v1220 = vsel %vm756, %v1188, %v1124
      %v1222 = vsel %vm756, %v1190, %v1126
      %v1224 = vsel %vm756, %v1192, %v1128
      %v1226 = vsel %vm756, %v1194, %v1130
      %v1228 = vsel %vm756, %v1196, %v1132
      %v1230 = vsel %vm756, %v1198, %v1134
      %v1232 = vsel %vm756, %v1200, %v1136
      %v1234 = vsel %vm756, %v1202, %v1138
      %v1236 = vsel %vm756, %v1204, %v1140
      %v1238 = vsel %vm756, %v1206, %v1142
      %v1240 = vsel %vm756, %v1208, %v1144
      %v1241 = vshrl.u32 %v758, 16
      %v1243 = vshll.u32 %v758, 16
      %v1245 = vrot.slane %v1243, 1
      %v1246 = vor.u32 %v1241, %v1245
      %v1247 = vshll.u32 %v1210, 16
      %v1249 = vrot.slane %v1247, 1
      %v1250 = vsel %vm381, %v1246, %v1249
      %v1251 = vshrl.u32 %v760, 16
      %v1253 = vshll.u32 %v760, 16
      %v1255 = vrot.slane %v1253, 1
      %v1256 = vor.u32 %v1251, %v1255
      %v1257 = vshll.u32 %v1212, 16
      %v1259 = vrot.slane %v1257, 1
      %v1260 = vsel %vm381, %v1256, %v1259
      %v1261 = vshrl.u32 %v762, 16
      %v1263 = vshll.u32 %v762, 16
      %v1265 = vrot.slane %v1263, 1
      %v1266 = vor.u32 %v1261, %v1265
      %v1267 = vshll.u32 %v1214, 16
      %v1269 = vrot.slane %v1267, 1
      %v1270 = vsel %vm381, %v1266, %v1269
      %v1271 = vshrl.u32 %v764, 16
      %v1273 = vshll.u32 %v764, 16
      %v1275 = vrot.slane %v1273, 1
      %v1276 = vor.u32 %v1271, %v1275
      %v1277 = vshll.u32 %v1216, 16
      %v1279 = vrot.slane %v1277, 1
      %v1280 = vsel %vm381, %v1276, %v1279
      %v1281 = vshrl.u32 %v766, 16
      %v1283 = vshll.u32 %v766, 16
      %v1285 = vrot.slane %v1283, 1
      %v1286 = vor.u32 %v1281, %v1285
      %v1287 = vshll.u32 %v1218, 16
      %v1289 = vrot.slane %v1287, 1
      %v1290 = vsel %vm381, %v1286, %v1289
      %v1291 = vshrl.u32 %v768, 16
      %v1293 = vshll.u32 %v768, 16
      %v1295 = vrot.slane %v1293, 1
      %v1296 = vor.u32 %v1291, %v1295
      %v1297 = vshll.u32 %v1220, 16
      %v1299 = vrot.slane %v1297, 1
      %v1300 = vsel %vm381, %v1296, %v1299
      %v1301 = vshrl.u32 %v770, 16
      %v1303 = vshll.u32 %v770, 16
      %v1305 = vrot.slane %v1303, 1
      %v1306 = vor.u32 %v1301, %v1305
      %v1307 = vshll.u32 %v1222, 16
      %v1309 = vrot.slane %v1307, 1
      %v1310 = vsel %vm381, %v1306, %v1309
      %v1311 = vshrl.u32 %v772, 16
      %v1313 = vshll.u32 %v772, 16
      %v1315 = vrot.slane %v1313, 1
      %v1316 = vor.u32 %v1311, %v1315
      %v1317 = vshll.u32 %v1224, 16
      %v1319 = vrot.slane %v1317, 1
      %v1320 = vsel %vm381, %v1316, %v1319
      %v1321 = vshrl.u32 %v774, 16
      %v1323 = vshll.u32 %v774, 16
      %v1325 = vrot.slane %v1323, 1
      %v1326 = vor.u32 %v1321, %v1325
      %v1327 = vshll.u32 %v1226, 16
      %v1329 = vrot.slane %v1327, 1
      %v1330 = vsel %vm381, %v1326, %v1329
      %v1331 = vshrl.u32 %v776, 16
      %v1333 = vshll.u32 %v776, 16
      %v1335 = vrot.slane %v1333, 1
      %v1336 = vor.u32 %v1331, %v1335
      %v1337 = vshll.u32 %v1228, 16
      %v1339 = vrot.slane %v1337, 1
      %v1340 = vsel %vm381, %v1336, %v1339
      %v1341 = vshrl.u32 %v778, 16
      %v1343 = vshll.u32 %v778, 16
      %v1345 = vrot.slane %v1343, 1
      %v1346 = vor.u32 %v1341, %v1345
      %v1347 = vshll.u32 %v1230, 16
      %v1349 = vrot.slane %v1347, 1
      %v1350 = vsel %vm381, %v1346, %v1349
      %v1351 = vshrl.u32 %v780, 16
      %v1353 = vshll.u32 %v780, 16
      %v1355 = vrot.slane %v1353, 1
      %v1356 = vor.u32 %v1351, %v1355
      %v1357 = vshll.u32 %v1232, 16
      %v1359 = vrot.slane %v1357, 1
      %v1360 = vsel %vm381, %v1356, %v1359
      %v1361 = vshrl.u32 %v782, 16
      %v1363 = vshll.u32 %v782, 16
      %v1365 = vrot.slane %v1363, 1
      %v1366 = vor.u32 %v1361, %v1365
      %v1367 = vshll.u32 %v1234, 16
      %v1369 = vrot.slane %v1367, 1
      %v1370 = vsel %vm381, %v1366, %v1369
      %v1371 = vshrl.u32 %v784, 16
      %v1373 = vshll.u32 %v784, 16
      %v1375 = vrot.slane %v1373, 1
      %v1376 = vor.u32 %v1371, %v1375
      %v1377 = vshll.u32 %v1236, 16
      %v1379 = vrot.slane %v1377, 1
      %v1380 = vsel %vm381, %v1376, %v1379
      %v1381 = vshrl.u32 %v786, 16
      %v1383 = vshll.u32 %v786, 16
      %v1385 = vrot.slane %v1383, 1
      %v1386 = vor.u32 %v1381, %v1385
      %v1387 = vshll.u32 %v1238, 16
      %v1389 = vrot.slane %v1387, 1
      %v1390 = vsel %vm381, %v1386, %v1389
      %v1391 = vshrl.u32 %v788, 16
      %v1393 = vshll.u32 %v788, 16
      %v1395 = vrot.slane %v1393, 1
      %v1396 = vor.u32 %v1391, %v1395
      %v1397 = vshll.u32 %v1240, 16
      %v1399 = vrot.slane %v1397, 1
      %v1400 = vsel %vm381, %v1396, %v1399
      %s1401 = scalar_lea.vmem %s1, 32
      %v1402 = vld [vmem:[%s1401] sm:$0xf]
      %v1403 = vld [vmem:[%s1401 + $0x4] sm:$0xf]
      %v1404 = vld [vmem:[%s1401 + $0x8] sm:$0xf]
      %v1405 = vld [vmem:[%s1401 + $0xc] sm:$0xf]
      %v1406 = vld [vmem:[%s1401 + $0x10] sm:$0xf]
      %v1407 = vld [vmem:[%s1401 + $0x14] sm:$0xf]
      %v1408 = vld [vmem:[%s1401 + $0x18] sm:$0xf]
      %v1409 = vld [vmem:[%s1401 + $0x1c] sm:$0xf]
      %v1418 = vunpack.c.l.b16 %v1402
      %v1419 = vunpack.c.l.b16 %v1403
      %v1420 = vunpack.c.l.b16 %v1404
      %v1421 = vunpack.c.l.b16 %v1405
      %v1422 = vunpack.c.l.b16 %v1406
      %v1423 = vunpack.c.l.b16 %v1407
      %v1424 = vunpack.c.l.b16 %v1408
      %v1425 = vunpack.c.l.b16 %v1409
      %v1426 = vpack.c.b16 %v1419, %v1418
      %v1427 = vpack.c.b16 %v1421, %v1420
      %v1428 = vpack.c.b16 %v1423, %v1422
      %v1429 = vpack.c.b16 %v1425, %v1424
      %v1435 = vsel %vm821, %v1250, 0
      %v1438 = vsel %vm821, %v1260, 0
      %v1441 = vsel %vm821, %v1270, 0
      %v1444 = vsel %vm821, %v1280, 0
      %v1447 = vsel %vm821, %v1290, 0
      %v1450 = vsel %vm821, %v1300, 0
      %v1453 = vsel %vm821, %v1310, 0
      %v1456 = vsel %vm821, %v1320, 0
      %v1459 = vsel %vm821, %v1330, 0
      %v1462 = vsel %vm821, %v1340, 0
      %v1465 = vsel %vm821, %v1350, 0
      %v1468 = vsel %vm821, %v1360, 0
      %v1471 = vsel %vm821, %v1370, 0
      %v1474 = vsel %vm821, %v1380, 0
      %v1477 = vsel %vm821, %v1390, 0
      %v1480 = vsel %vm821, %v1400, 0
      %1482 = vmatprep.subr.bf16.mxu0 0
      %1483 = vmatpush1.bf16.msra.mxu0 %v1426
      %1484 = vmatprep.subr.bf16.mxu0 0
      %1485 = vmatpush1.bf16.msra.mxu0 %v1427
      %1486 = vmatprep.subr.bf16.mxu0 0
      %1487 = vmatpush1.bf16.msra.mxu0 %v1428
      %1488 = vmatprep.subr.bf16.mxu0 0
      %1489 = vmatpush1.bf16.msra.mxu0 %v1429
      %1490 = vmatprep.subr.bf16.mxu0 0
      %1491 = vmatpush1.bf16.msra.mxu0 0
      %1492 = vmatprep.subr.bf16.mxu0 0
      %1493 = vmatpush1.bf16.msra.mxu0 0
      %1494 = vmatprep.subr.bf16.mxu0 0
      %1495 = vmatpush1.bf16.msra.mxu0 0
      %1496 = vmatprep.subr.bf16.mxu0 0
      %1497 = vmatpush1.bf16.msra.mxu0 0
      %1498 = vmatprep.subr.bf16.mxu0 0
      %1499 = vmatpush1.bf16.msra.mxu0 0
      %1500 = vmatprep.subr.bf16.mxu0 0
      %1501 = vmatpush1.bf16.msra.mxu0 0
      %1502 = vmatprep.subr.bf16.mxu0 0
      %1503 = vmatpush1.bf16.msra.mxu0 0
      %1504 = vmatprep.subr.bf16.mxu0 0
      %1505 = vmatpush1.bf16.msra.mxu0 0
      %1506 = vmatprep.subr.bf16.mxu0 0
      %1507 = vmatpush1.bf16.msra.mxu0 0
      %1508 = vmatprep.subr.bf16.mxu0 0
      %1509 = vmatpush1.bf16.msra.mxu0 0
      %1510 = vmatprep.subr.bf16.mxu0 0
      %1511 = vmatpush1.bf16.msra.mxu0 0
      %1512 = vmatprep.subr.bf16.mxu0 0
      %1513 = vmatpush1.bf16.msra.mxu0 0
      %1514 = vmatprep.mubr.bf16.mxu0 0
      %1515 = vmatmul.mubr.bf16.gmra.mrb[0].mxu0 %v1435
      %v1516 = vpop.f32.mrb[0].mxu0
      %v1517 = vadd.f32 0.0, %v1516
      %v1518 = vpop.f32.mrb[0].mxu0
      %v1519 = vpop.f32.mrb[0].mxu0
      %v1520 = vadd.f32 0.0, %v1519
      %v1521 = vpop.f32.mrb[0].mxu0
      %1522 = vmatprep.mubr.bf16.mxu0 0
      %1523 = vmatmul.mubr.bf16.gmra.mrb[0].mxu0 %v1438
      %v1524 = vpop.f32.mrb[0].mxu0
      %v1525 = vadd.f32 0.0, %v1524
      %v1526 = vpop.f32.mrb[0].mxu0
      %v1527 = vpop.f32.mrb[0].mxu0
      %v1528 = vadd.f32 0.0, %v1527
      %v1529 = vpop.f32.mrb[0].mxu0
      %1530 = vmatprep.mubr.bf16.mxu0 0
      %1531 = vmatmul.mubr.bf16.gmra.mrb[0].mxu0 %v1441
      %v1532 = vpop.f32.mrb[0].mxu0
      %v1533 = vadd.f32 0.0, %v1532
      %v1534 = vpop.f32.mrb[0].mxu0
      %v1535 = vpop.f32.mrb[0].mxu0
      %v1536 = vadd.f32 0.0, %v1535
      %v1537 = vpop.f32.mrb[0].mxu0
      %1538 = vmatprep.mubr.bf16.mxu0 0
      %1539 = vmatmul.mubr.bf16.gmra.mrb[0].mxu0 %v1444
      %v1540 = vpop.f32.mrb[0].mxu0
      %v1541 = vadd.f32 0.0, %v1540
      %v1542 = vpop.f32.mrb[0].mxu0
      %v1543 = vpop.f32.mrb[0].mxu0
      %v1544 = vadd.f32 0.0, %v1543
      %v1545 = vpop.f32.mrb[0].mxu0
      %1546 = vmatprep.mubr.bf16.mxu0 0
      %1547 = vmatmul.mubr.bf16.gmra.mrb[0].mxu0 %v1447
      %v1548 = vpop.f32.mrb[0].mxu0
      %v1549 = vadd.f32 0.0, %v1548
      %v1550 = vpop.f32.mrb[0].mxu0
      %v1551 = vpop.f32.mrb[0].mxu0
      %v1552 = vadd.f32 0.0, %v1551
      %v1553 = vpop.f32.mrb[0].mxu0
      %1554 = vmatprep.mubr.bf16.mxu0 0
      %1555 = vmatmul.mubr.bf16.gmra.mrb[0].mxu0 %v1450
      %v1556 = vpop.f32.mrb[0].mxu0
      %v1557 = vadd.f32 0.0, %v1556
      %v1558 = vpop.f32.mrb[0].mxu0
      %v1559 = vpop.f32.mrb[0].mxu0
      %v1560 = vadd.f32 0.0, %v1559
      %v1561 = vpop.f32.mrb[0].mxu0
      %1562 = vmatprep.mubr.bf16.mxu0 0
      %1563 = vmatmul.mubr.bf16.gmra.mrb[0].mxu0 %v1453
      %v1564 = vpop.f32.mrb[0].mxu0
      %v1565 = vadd.f32 0.0, %v1564
      %v1566 = vpop.f32.mrb[0].mxu0
      %v1567 = vpop.f32.mrb[0].mxu0
      %v1568 = vadd.f32 0.0, %v1567
      %v1569 = vpop.f32.mrb[0].mxu0
      %1570 = vmatprep.mubr.bf16.mxu0 0
      %1571 = vmatmul.mubr.bf16.gmra.mrb[0].mxu0 %v1456
      %v1572 = vpop.f32.mrb[0].mxu0
      %v1573 = vadd.f32 0.0, %v1572
      %v1574 = vpop.f32.mrb[0].mxu0
      %v1575 = vpop.f32.mrb[0].mxu0
      %v1576 = vadd.f32 0.0, %v1575
      %v1577 = vpop.f32.mrb[0].mxu0
      %1578 = vmatprep.mubr.bf16.mxu0 0
      %1579 = vmatmul.mubr.bf16.gmra.mrb[0].mxu0 %v1459
      %v1580 = vpop.f32.mrb[0].mxu0
      %v1581 = vadd.f32 0.0, %v1580
      %v1582 = vpop.f32.mrb[0].mxu0
      %v1583 = vpop.f32.mrb[0].mxu0
      %v1584 = vadd.f32 0.0, %v1583
      %v1585 = vpop.f32.mrb[0].mxu0
      %1586 = vmatprep.mubr.bf16.mxu0 0
      %1587 = vmatmul.mubr.bf16.gmra.mrb[0].mxu0 %v1462
      %v1588 = vpop.f32.mrb[0].mxu0
      %v1589 = vadd.f32 0.0, %v1588
      %v1590 = vpop.f32.mrb[0].mxu0
      %v1591 = vpop.f32.mrb[0].mxu0
      %v1592 = vadd.f32 0.0, %v1591
      %v1593 = vpop.f32.mrb[0].mxu0
      %1594 = vmatprep.mubr.bf16.mxu0 0
      %1595 = vmatmul.mubr.bf16.gmra.mrb[0].mxu0 %v1465
      %v1596 = vpop.f32.mrb[0].mxu0
      %v1597 = vadd.f32 0.0, %v1596
      %v1598 = vpop.f32.mrb[0].mxu0
      %v1599 = vpop.f32.mrb[0].mxu0
      %v1600 = vadd.f32 0.0, %v1599
      %v1601 = vpop.f32.mrb[0].mxu0
      %1602 = vmatprep.mubr.bf16.mxu0 0
      %1603 = vmatmul.mubr.bf16.gmra.mrb[0].mxu0 %v1468
      %v1604 = vpop.f32.mrb[0].mxu0
      %v1605 = vadd.f32 0.0, %v1604
      %v1606 = vpop.f32.mrb[0].mxu0
      %v1607 = vpop.f32.mrb[0].mxu0
      %v1608 = vadd.f32 0.0, %v1607
      %v1609 = vpop.f32.mrb[0].mxu0
      %1610 = vmatprep.mubr.bf16.mxu0 0
      %1611 = vmatmul.mubr.bf16.gmra.mrb[0].mxu0 %v1471
      %v1612 = vpop.f32.mrb[0].mxu0
      %v1613 = vadd.f32 0.0, %v1612
      %v1614 = vpop.f32.mrb[0].mxu0
      %v1615 = vpop.f32.mrb[0].mxu0
      %v1616 = vadd.f32 0.0, %v1615
      %v1617 = vpop.f32.mrb[0].mxu0
      %1618 = vmatprep.mubr.bf16.mxu0 0
      %1619 = vmatmul.mubr.bf16.gmra.mrb[0].mxu0 %v1474
      %v1620 = vpop.f32.mrb[0].mxu0
      %v1621 = vadd.f32 0.0, %v1620
      %v1622 = vpop.f32.mrb[0].mxu0
      %v1623 = vpop.f32.mrb[0].mxu0
      %v1624 = vadd.f32 0.0, %v1623
      %v1625 = vpop.f32.mrb[0].mxu0
      %1626 = vmatprep.mubr.bf16.mxu0 0
      %1627 = vmatmul.mubr.bf16.gmra.mrb[0].mxu0 %v1477
      %v1628 = vpop.f32.mrb[0].mxu0
      %v1629 = vadd.f32 0.0, %v1628
      %v1630 = vpop.f32.mrb[0].mxu0
      %v1631 = vpop.f32.mrb[0].mxu0
      %v1632 = vadd.f32 0.0, %v1631
      %v1633 = vpop.f32.mrb[0].mxu0
      %1634 = vmatprep.mubr.bf16.mxu0 0
      %1635 = vmatmul.mubr.bf16.gmra.mrb[0].mxu0 %v1480
      %v1636 = vpop.f32.mrb[0].mxu0
      %v1637 = vadd.f32 0.0, %v1636
      %v1638 = vpop.f32.mrb[0].mxu0
      %v1639 = vpop.f32.mrb[0].mxu0
      %v1640 = vadd.f32 0.0, %v1639
      %v1641 = vpop.f32.mrb[0].mxu0
      %1642 = vdwg.mxu0
      %1675 = vrot.lane.b32.xlu0 %v1517, 8
      %v1676 = vpop.permute.xlu0 %1675
      %1677 = vrot.lane.b32.xlu0 %v1520, 8
      %v1678 = vpop.permute.xlu0 %1677
      %1679 = vrot.lane.b32.xlu0 %v1525, 8
      %v1680 = vpop.permute.xlu0 %1679
      %1681 = vrot.lane.b32.xlu0 %v1528, 8
      %v1682 = vpop.permute.xlu0 %1681
      %1683 = vrot.lane.b32.xlu0 %v1533, 8
      %v1684 = vpop.permute.xlu0 %1683
      %1685 = vrot.lane.b32.xlu0 %v1536, 8
      %v1686 = vpop.permute.xlu0 %1685
      %1687 = vrot.lane.b32.xlu0 %v1541, 8
      %v1688 = vpop.permute.xlu0 %1687
      %1689 = vrot.lane.b32.xlu0 %v1544, 8
      %v1690 = vpop.permute.xlu0 %1689
      %1691 = vrot.lane.b32.xlu0 %v1549, 8
      %v1692 = vpop.permute.xlu0 %1691
      %1693 = vrot.lane.b32.xlu0 %v1552, 8
      %v1694 = vpop.permute.xlu0 %1693
      %1695 = vrot.lane.b32.xlu0 %v1557, 8
      %v1696 = vpop.permute.xlu0 %1695
      %1697 = vrot.lane.b32.xlu0 %v1560, 8
      %v1698 = vpop.permute.xlu0 %1697
      %1699 = vrot.lane.b32.xlu0 %v1565, 8
      %v1700 = vpop.permute.xlu0 %1699
      %1701 = vrot.lane.b32.xlu0 %v1568, 8
      %v1702 = vpop.permute.xlu0 %1701
      %1703 = vrot.lane.b32.xlu0 %v1573, 8
      %v1704 = vpop.permute.xlu0 %1703
      %1705 = vrot.lane.b32.xlu0 %v1576, 8
      %v1706 = vpop.permute.xlu0 %1705
      %1707 = vrot.lane.b32.xlu0 %v1581, 8
      %v1708 = vpop.permute.xlu0 %1707
      %1709 = vrot.lane.b32.xlu0 %v1584, 8
      %v1710 = vpop.permute.xlu0 %1709
      %1711 = vrot.lane.b32.xlu0 %v1589, 8
      %v1712 = vpop.permute.xlu0 %1711
      %1713 = vrot.lane.b32.xlu0 %v1592, 8
      %v1714 = vpop.permute.xlu0 %1713
      %1715 = vrot.lane.b32.xlu0 %v1597, 8
      %v1716 = vpop.permute.xlu0 %1715
      %1717 = vrot.lane.b32.xlu0 %v1600, 8
      %v1718 = vpop.permute.xlu0 %1717
      %1719 = vrot.lane.b32.xlu0 %v1605, 8
      %v1720 = vpop.permute.xlu0 %1719
      %1721 = vrot.lane.b32.xlu0 %v1608, 8
      %v1722 = vpop.permute.xlu0 %1721
      %1723 = vrot.lane.b32.xlu0 %v1613, 8
      %v1724 = vpop.permute.xlu0 %1723
      %1725 = vrot.lane.b32.xlu0 %v1616, 8
      %v1726 = vpop.permute.xlu0 %1725
      %1727 = vrot.lane.b32.xlu0 %v1621, 8
      %v1728 = vpop.permute.xlu0 %1727
      %1729 = vrot.lane.b32.xlu0 %v1624, 8
      %v1730 = vpop.permute.xlu0 %1729
      %1731 = vrot.lane.b32.xlu0 %v1629, 8
      %v1732 = vpop.permute.xlu0 %1731
      %1733 = vrot.lane.b32.xlu0 %v1632, 8
      %v1734 = vpop.permute.xlu0 %1733
      %1735 = vrot.lane.b32.xlu0 %v1637, 8
      %v1736 = vpop.permute.xlu0 %1735
      %1737 = vrot.lane.b32.xlu0 %v1640, 8
      %v1738 = vpop.permute.xlu0 %1737
      %vm1771 = vcmask 64512
      %v1772 = vsel %vm1771, %v889, %v1676
      %v1773 = vsel %vm1771, %v892, %v1678
      %v1774 = vsel %vm1771, %v897, %v1680
      %v1775 = vsel %vm1771, %v900, %v1682
      %v1776 = vsel %vm1771, %v905, %v1684
      %v1777 = vsel %vm1771, %v908, %v1686
      %v1778 = vsel %vm1771, %v913, %v1688
      %v1779 = vsel %vm1771, %v916, %v1690
      %v1780 = vsel %vm1771, %v921, %v1692
      %v1781 = vsel %vm1771, %v924, %v1694
      %v1782 = vsel %vm1771, %v929, %v1696
      %v1783 = vsel %vm1771, %v932, %v1698
      %v1784 = vsel %vm1771, %v937, %v1700
      %v1785 = vsel %vm1771, %v940, %v1702
      %v1786 = vsel %vm1771, %v945, %v1704
      %v1787 = vsel %vm1771, %v948, %v1706
      %v1788 = vsel %vm1771, %v953, %v1708
      %v1789 = vsel %vm1771, %v956, %v1710
      %v1790 = vsel %vm1771, %v961, %v1712
      %v1791 = vsel %vm1771, %v964, %v1714
      %v1792 = vsel %vm1771, %v969, %v1716
      %v1793 = vsel %vm1771, %v972, %v1718
      %v1794 = vsel %vm1771, %v977, %v1720
      %v1795 = vsel %vm1771, %v980, %v1722
      %v1796 = vsel %vm1771, %v985, %v1724
      %v1797 = vsel %vm1771, %v988, %v1726
      %v1798 = vsel %vm1771, %v993, %v1728
      %v1799 = vsel %vm1771, %v996, %v1730
      %v1800 = vsel %vm1771, %v1001, %v1732
      %v1801 = vsel %vm1771, %v1004, %v1734
      %v1802 = vsel %vm1771, %v1009, %v1736
      %v1803 = vsel %vm1771, %v1012, %v1738
      %1804 = vrot.lane.b32.xlu0 %v657, 16
      %v1805 = vpop.permute.xlu0 %1804
      %v1808 = vunpack.c.l.b16 %v250
      %v1809 = vunpack.c.l.b16 %v251
      %v1810 = vpack.c.b16 %v1809, %v1808
      %1811 = vrot.lane.b32.xlu0 %v1810, 32
      %v1812 = vpop.permute.xlu0 %1811
      %v1814 = vunpack.c.l.b16 %v252
      %v1815 = vpack.c.b16 %v1814, %v1814
      %v1817 = vshrl.u32 %v1810, 16
      %v1819 = vshll.u32 %v1810, 16
      %v1821 = vrot.slane %v1819, 1
      %v1822 = vor.u32 %v1817, %v1821
      %v1824 = vshll.u32 %v1815, 16
      %v1826 = vrot.slane %v1824, 1
      %v1827 = vsel %vm381, %v1822, %v1826
      %1828 = vrot.lane.b32.xlu0 %v1827, 48
      %v1829 = vpop.permute.xlu0 %1828
      %v1831 = vsel %vm690, %v610, %v1805
      %v1833 = vsel %vm723, %v1831, %v1812
      %v1835 = vsel %vm756, %v1833, %v1829
      %s1836 = scalar_lea.vmem %s1, 64
      %v1837 = vld [vmem:[%s1836] sm:$0xf]
      %v1838 = vld [vmem:[%s1836 + $0x4] sm:$0xf]
      %v1839 = vld [vmem:[%s1836 + $0x8] sm:$0xf]
      %v1840 = vld [vmem:[%s1836 + $0xc] sm:$0xf]
      %v1841 = vld [vmem:[%s1836 + $0x10] sm:$0xf]
      %v1842 = vld [vmem:[%s1836 + $0x14] sm:$0xf]
      %v1843 = vld [vmem:[%s1836 + $0x18] sm:$0xf]
      %v1844 = vld [vmem:[%s1836 + $0x1c] sm:$0xf]
      %v1853 = vunpack.c.l.b16 %v1837
      %v1854 = vunpack.c.l.b16 %v1838
      %v1855 = vunpack.c.l.b16 %v1839
      %v1856 = vunpack.c.l.b16 %v1840
      %v1857 = vunpack.c.l.b16 %v1841
      %v1858 = vunpack.c.l.b16 %v1842
      %v1859 = vunpack.c.l.b16 %v1843
      %v1860 = vunpack.c.l.b16 %v1844
      %v1861 = vpack.c.b16 %v1854, %v1853
      %v1862 = vpack.c.b16 %v1856, %v1855
      %v1863 = vpack.c.b16 %v1858, %v1857
      %v1864 = vpack.c.b16 %v1860, %v1859
      %v1869 = vsel %vm821, %v1835, 0
      %1871 = vmatprep.subr.bf16.mxu0 0
      %1872 = vmatpush1.bf16.msra.mxu0 %v1861
      %1873 = vmatprep.subr.bf16.mxu0 0
      %1874 = vmatpush1.bf16.msra.mxu0 %v1862
      %1875 = vmatprep.subr.bf16.mxu0 0
      %1876 = vmatpush1.bf16.msra.mxu0 %v1863
      %1877 = vmatprep.subr.bf16.mxu0 0
      %1878 = vmatpush1.bf16.msra.mxu0 %v1864
      %1879 = vmatprep.subr.bf16.mxu0 0
      %1880 = vmatpush1.bf16.msra.mxu0 0
      %1881 = vmatprep.subr.bf16.mxu0 0
      %1882 = vmatpush1.bf16.msra.mxu0 0
      %1883 = vmatprep.subr.bf16.mxu0 0
      %1884 = vmatpush1.bf16.msra.mxu0 0
      %1885 = vmatprep.subr.bf16.mxu0 0
      %1886 = vmatpush1.bf16.msra.mxu0 0
      %1887 = vmatprep.subr.bf16.mxu0 0
      %1888 = vmatpush1.bf16.msra.mxu0 0
      %1889 = vmatprep.subr.bf16.mxu0 0
      %1890 = vmatpush1.bf16.msra.mxu0 0
      %1891 = vmatprep.subr.bf16.mxu0 0
      %1892 = vmatpush1.bf16.msra.mxu0 0
      %1893 = vmatprep.subr.bf16.mxu0 0
      %1894 = vmatpush1.bf16.msra.mxu0 0
      %1895 = vmatprep.subr.bf16.mxu0 0
      %1896 = vmatpush1.bf16.msra.mxu0 0
      %1897 = vmatprep.subr.bf16.mxu0 0
      %1898 = vmatpush1.bf16.msra.mxu0 0
      %1899 = vmatprep.subr.bf16.mxu0 0
      %1900 = vmatpush1.bf16.msra.mxu0 0
      %1901 = vmatprep.subr.bf16.mxu0 0
      %1902 = vmatpush1.bf16.msra.mxu0 0
      %1903 = vmatprep.mubr.bf16.mxu0 0
      %1904 = vmatmul.mubr.bf16.gmra.mrb[0].mxu0 %v824
      %v1905 = vpop.f32.mrb[0].mxu0
      %v1906 = vadd.f32 0.0, %v1905
      %v1907 = vpop.f32.mrb[0].mxu0
      %v1908 = vpop.f32.mrb[0].mxu0
      %v1909 = vadd.f32 0.0, %v1908
      %v1910 = vpop.f32.mrb[0].mxu0
      %1911 = vmatprep.mubr.bf16.mxu0 0
      %1912 = vmatmul.mubr.bf16.gmra.mrb[0].mxu0 %v826
      %v1913 = vpop.f32.mrb[0].mxu0
      %v1914 = vadd.f32 0.0, %v1913
      %v1915 = vpop.f32.mrb[0].mxu0
      %v1916 = vpop.f32.mrb[0].mxu0
      %v1917 = vadd.f32 0.0, %v1916
      %v1918 = vpop.f32.mrb[0].mxu0
      %1919 = vmatprep.mubr.bf16.mxu0 0
      %1920 = vmatmul.mubr.bf16.gmra.mrb[0].mxu0 %v828
      %v1921 = vpop.f32.mrb[0].mxu0
      %v1922 = vadd.f32 0.0, %v1921
      %v1923 = vpop.f32.mrb[0].mxu0
      %v1924 = vpop.f32.mrb[0].mxu0
      %v1925 = vadd.f32 0.0, %v1924
      %v1926 = vpop.f32.mrb[0].mxu0
      %1927 = vmatprep.mubr.bf16.mxu0 0
      %1928 = vmatmul.mubr.bf16.gmra.mrb[0].mxu0 %v830
      %v1929 = vpop.f32.mrb[0].mxu0
      %v1930 = vadd.f32 0.0, %v1929
      %v1931 = vpop.f32.mrb[0].mxu0
      %v1932 = vpop.f32.mrb[0].mxu0
      %v1933 = vadd.f32 0.0, %v1932
      %v1934 = vpop.f32.mrb[0].mxu0
      %1935 = vmatprep.mubr.bf16.mxu0 0
      %1936 = vmatmul.mubr.bf16.gmra.mrb[0].mxu0 %v832
      %v1937 = vpop.f32.mrb[0].mxu0
      %v1938 = vadd.f32 0.0, %v1937
      %v1939 = vpop.f32.mrb[0].mxu0
      %v1940 = vpop.f32.mrb[0].mxu0
      %v1941 = vadd.f32 0.0, %v1940
      %v1942 = vpop.f32.mrb[0].mxu0
      %1943 = vmatprep.mubr.bf16.mxu0 0
      %1944 = vmatmul.mubr.bf16.gmra.mrb[0].mxu0 %v834
      %v1945 = vpop.f32.mrb[0].mxu0
      %v1946 = vadd.f32 0.0, %v1945
      %v1947 = vpop.f32.mrb[0].mxu0
      %v1948 = vpop.f32.mrb[0].mxu0
      %v1949 = vadd.f32 0.0, %v1948
      %v1950 = vpop.f32.mrb[0].mxu0
      %1951 = vmatprep.mubr.bf16.mxu0 0
      %1952 = vmatmul.mubr.bf16.gmra.mrb[0].mxu0 %v836
      %v1953 = vpop.f32.mrb[0].mxu0
      %v1954 = vadd.f32 0.0, %v1953
      %v1955 = vpop.f32.mrb[0].mxu0
      %v1956 = vpop.f32.mrb[0].mxu0
      %v1957 = vadd.f32 0.0, %v1956
      %v1958 = vpop.f32.mrb[0].mxu0
      %1959 = vmatprep.mubr.bf16.mxu0 0
      %1960 = vmatmul.mubr.bf16.gmra.mrb[0].mxu0 %v838
      %v1961 = vpop.f32.mrb[0].mxu0
      %v1962 = vadd.f32 0.0, %v1961
      %v1963 = vpop.f32.mrb[0].mxu0
      %v1964 = vpop.f32.mrb[0].mxu0
      %v1965 = vadd.f32 0.0, %v1964
      %v1966 = vpop.f32.mrb[0].mxu0
      %1967 = vmatprep.mubr.bf16.mxu0 0
      %1968 = vmatmul.mubr.bf16.gmra.mrb[0].mxu0 %v840
      %v1969 = vpop.f32.mrb[0].mxu0
      %v1970 = vadd.f32 0.0, %v1969
      %v1971 = vpop.f32.mrb[0].mxu0
      %v1972 = vpop.f32.mrb[0].mxu0
      %v1973 = vadd.f32 0.0, %v1972
      %v1974 = vpop.f32.mrb[0].mxu0
      %1975 = vmatprep.mubr.bf16.mxu0 0
      %1976 = vmatmul.mubr.bf16.gmra.mrb[0].mxu0 %v842
      %v1977 = vpop.f32.mrb[0].mxu0
      %v1978 = vadd.f32 0.0, %v1977
      %v1979 = vpop.f32.mrb[0].mxu0
      %v1980 = vpop.f32.mrb[0].mxu0
      %v1981 = vadd.f32 0.0, %v1980
      %v1982 = vpop.f32.mrb[0].mxu0
      %1983 = vmatprep.mubr.bf16.mxu0 0
      %1984 = vmatmul.mubr.bf16.gmra.mrb[0].mxu0 %v844
      %v1985 = vpop.f32.mrb[0].mxu0
      %v1986 = vadd.f32 0.0, %v1985
      %v1987 = vpop.f32.mrb[0].mxu0
      %v1988 = vpop.f32.mrb[0].mxu0
      %v1989 = vadd.f32 0.0, %v1988
      %v1990 = vpop.f32.mrb[0].mxu0
      %1991 = vmatprep.mubr.bf16.mxu0 0
      %1992 = vmatmul.mubr.bf16.gmra.mrb[0].mxu0 %v846
      %v1993 = vpop.f32.mrb[0].mxu0
      %v1994 = vadd.f32 0.0, %v1993
      %v1995 = vpop.f32.mrb[0].mxu0
      %v1996 = vpop.f32.mrb[0].mxu0
      %v1997 = vadd.f32 0.0, %v1996
      %v1998 = vpop.f32.mrb[0].mxu0
      %1999 = vmatprep.mubr.bf16.mxu0 0
      %2000 = vmatmul.mubr.bf16.gmra.mrb[0].mxu0 %v848
      %v2001 = vpop.f32.mrb[0].mxu0
      %v2002 = vadd.f32 0.0, %v2001
      %v2003 = vpop.f32.mrb[0].mxu0
      %v2004 = vpop.f32.mrb[0].mxu0
      %v2005 = vadd.f32 0.0, %v2004
      %v2006 = vpop.f32.mrb[0].mxu0
      %2007 = vmatprep.mubr.bf16.mxu0 0
      %2008 = vmatmul.mubr.bf16.gmra.mrb[0].mxu0 %v850
      %v2009 = vpop.f32.mrb[0].mxu0
      %v2010 = vadd.f32 0.0, %v2009
      %v2011 = vpop.f32.mrb[0].mxu0
      %v2012 = vpop.f32.mrb[0].mxu0
      %v2013 = vadd.f32 0.0, %v2012
      %v2014 = vpop.f32.mrb[0].mxu0
      %2015 = vmatprep.mubr.bf16.mxu0 0
      %2016 = vmatmul.mubr.bf16.gmra.mrb[0].mxu0 %v852
      %v2017 = vpop.f32.mrb[0].mxu0
      %v2018 = vadd.f32 0.0, %v2017
      %v2019 = vpop.f32.mrb[0].mxu0
      %v2020 = vpop.f32.mrb[0].mxu0
      %v2021 = vadd.f32 0.0, %v2020
      %v2022 = vpop.f32.mrb[0].mxu0
      %2023 = vmatprep.mubr.bf16.mxu0 0
      %2024 = vmatmul.mubr.bf16.gmra.mrb[0].mxu0 %v1869
      %v2025 = vpop.f32.mrb[0].mxu0
      %v2026 = vadd.f32 0.0, %v2025
      %v2027 = vpop.f32.mrb[0].mxu0
      %v2028 = vpop.f32.mrb[0].mxu0
      %v2029 = vadd.f32 0.0, %v2028
      %v2030 = vpop.f32.mrb[0].mxu0
      %2031 = vdwg.mxu0
      %2032 = vrot.lane.b32.xlu0 %v1111, 16
      %v2033 = vpop.permute.xlu0 %2032
      %2034 = vrot.lane.b32.xlu0 %v1815, 32
      %v2035 = vpop.permute.xlu0 %2034
      %v2036 = vshrl.u32 %v1815, 16
      %2038 = vrot.lane.b32.xlu0 %v2036, 48
      %v2039 = vpop.permute.xlu0 %2038
      %v2041 = vsel %vm690, %v645, %v2033
      %v2043 = vsel %vm723, %v2041, %v2035
      %v2045 = vsel %vm756, %v2043, %v2039
      %v2046 = vshrl.u32 %v1835, 16
      %v2048 = vshll.u32 %v1835, 16
      %v2050 = vrot.slane %v2048, 1
      %v2051 = vor.u32 %v2046, %v2050
      %v2052 = vshll.u32 %v2045, 16
      %v2054 = vrot.slane %v2052, 1
      %v2055 = vsel %vm381, %v2051, %v2054
      %s2056 = scalar_lea.vmem %s1, 96
      %v2057 = vld [vmem:[%s2056] sm:$0xf]
      %v2058 = vld [vmem:[%s2056 + $0x4] sm:$0xf]
      %v2059 = vld [vmem:[%s2056 + $0x8] sm:$0xf]
      %v2060 = vld [vmem:[%s2056 + $0xc] sm:$0xf]
      %v2061 = vld [vmem:[%s2056 + $0x10] sm:$0xf]
      %v2062 = vld [vmem:[%s2056 + $0x14] sm:$0xf]
      %v2063 = vld [vmem:[%s2056 + $0x18] sm:$0xf]
      %v2064 = vld [vmem:[%s2056 + $0x1c] sm:$0xf]
      %v2073 = vunpack.c.l.b16 %v2057
      %v2074 = vunpack.c.l.b16 %v2058
      %v2075 = vunpack.c.l.b16 %v2059
      %v2076 = vunpack.c.l.b16 %v2060
      %v2077 = vunpack.c.l.b16 %v2061
      %v2078 = vunpack.c.l.b16 %v2062
      %v2079 = vunpack.c.l.b16 %v2063
      %v2080 = vunpack.c.l.b16 %v2064
      %v2081 = vpack.c.b16 %v2074, %v2073
      %v2082 = vpack.c.b16 %v2076, %v2075
      %v2083 = vpack.c.b16 %v2078, %v2077
      %v2084 = vpack.c.b16 %v2080, %v2079
      %v2090 = vsel %vm821, %v2055, 0
      %2092 = vmatprep.subr.bf16.mxu0 0
      %2093 = vmatpush1.bf16.msra.mxu0 %v2081
      %2094 = vmatprep.subr.bf16.mxu0 0
      %2095 = vmatpush1.bf16.msra.mxu0 %v2082
      %2096 = vmatprep.subr.bf16.mxu0 0
      %2097 = vmatpush1.bf16.msra.mxu0 %v2083
      %2098 = vmatprep.subr.bf16.mxu0 0
      %2099 = vmatpush1.bf16.msra.mxu0 %v2084
      %2100 = vmatprep.subr.bf16.mxu0 0
      %2101 = vmatpush1.bf16.msra.mxu0 0
      %2102 = vmatprep.subr.bf16.mxu0 0
      %2103 = vmatpush1.bf16.msra.mxu0 0
      %2104 = vmatprep.subr.bf16.mxu0 0
      %2105 = vmatpush1.bf16.msra.mxu0 0
      %2106 = vmatprep.subr.bf16.mxu0 0
      %2107 = vmatpush1.bf16.msra.mxu0 0
      %2108 = vmatprep.subr.bf16.mxu0 0
      %2109 = vmatpush1.bf16.msra.mxu0 0
      %2110 = vmatprep.subr.bf16.mxu0 0
      %2111 = vmatpush1.bf16.msra.mxu0 0
      %2112 = vmatprep.subr.bf16.mxu0 0
      %2113 = vmatpush1.bf16.msra.mxu0 0
      %2114 = vmatprep.subr.bf16.mxu0 0
      %2115 = vmatpush1.bf16.msra.mxu0 0
      %2116 = vmatprep.subr.bf16.mxu0 0
      %2117 = vmatpush1.bf16.msra.mxu0 0
      %2118 = vmatprep.subr.bf16.mxu0 0
      %2119 = vmatpush1.bf16.msra.mxu0 0
      %2120 = vmatprep.subr.bf16.mxu0 0
      %2121 = vmatpush1.bf16.msra.mxu0 0
      %2122 = vmatprep.subr.bf16.mxu0 0
      %2123 = vmatpush1.bf16.msra.mxu0 0
      %2124 = vmatprep.mubr.bf16.mxu0 0
      %2125 = vmatmul.mubr.bf16.gmra.mrb[0].mxu0 %v1438
      %v2126 = vpop.f32.mrb[0].mxu0
      %v2127 = vadd.f32 0.0, %v2126
      %v2128 = vpop.f32.mrb[0].mxu0
      %v2129 = vpop.f32.mrb[0].mxu0
      %v2130 = vadd.f32 0.0, %v2129
      %v2131 = vpop.f32.mrb[0].mxu0
      %2132 = vmatprep.mubr.bf16.mxu0 0
      %2133 = vmatmul.mubr.bf16.gmra.mrb[0].mxu0 %v1441
      %v2134 = vpop.f32.mrb[0].mxu0
      %v2135 = vadd.f32 0.0, %v2134
      %v2136 = vpop.f32.mrb[0].mxu0
      %v2137 = vpop.f32.mrb[0].mxu0
      %v2138 = vadd.f32 0.0, %v2137
      %v2139 = vpop.f32.mrb[0].mxu0
      %2140 = vmatprep.mubr.bf16.mxu0 0
      %2141 = vmatmul.mubr.bf16.gmra.mrb[0].mxu0 %v1444
      %v2142 = vpop.f32.mrb[0].mxu0
      %v2143 = vadd.f32 0.0, %v2142
      %v2144 = vpop.f32.mrb[0].mxu0
      %v2145 = vpop.f32.mrb[0].mxu0
      %v2146 = vadd.f32 0.0, %v2145
      %v2147 = vpop.f32.mrb[0].mxu0
      %2148 = vmatprep.mubr.bf16.mxu0 0
      %2149 = vmatmul.mubr.bf16.gmra.mrb[0].mxu0 %v1447
      %v2150 = vpop.f32.mrb[0].mxu0
      %v2151 = vadd.f32 0.0, %v2150
      %v2152 = vpop.f32.mrb[0].mxu0
      %v2153 = vpop.f32.mrb[0].mxu0
      %v2154 = vadd.f32 0.0, %v2153
      %v2155 = vpop.f32.mrb[0].mxu0
      %2156 = vmatprep.mubr.bf16.mxu0 0
      %2157 = vmatmul.mubr.bf16.gmra.mrb[0].mxu0 %v1450
      %v2158 = vpop.f32.mrb[0].mxu0
      %v2159 = vadd.f32 0.0, %v2158
      %v2160 = vpop.f32.mrb[0].mxu0
      %v2161 = vpop.f32.mrb[0].mxu0
      %v2162 = vadd.f32 0.0, %v2161
      %v2163 = vpop.f32.mrb[0].mxu0
      %2164 = vmatprep.mubr.bf16.mxu0 0
      %2165 = vmatmul.mubr.bf16.gmra.mrb[0].mxu0 %v1453
      %v2166 = vpop.f32.mrb[0].mxu0
      %v2167 = vadd.f32 0.0, %v2166
      %v2168 = vpop.f32.mrb[0].mxu0
      %v2169 = vpop.f32.mrb[0].mxu0
      %v2170 = vadd.f32 0.0, %v2169
      %v2171 = vpop.f32.mrb[0].mxu0
      %2172 = vmatprep.mubr.bf16.mxu0 0
      %2173 = vmatmul.mubr.bf16.gmra.mrb[0].mxu0 %v1456
      %v2174 = vpop.f32.mrb[0].mxu0
      %v2175 = vadd.f32 0.0, %v2174
      %v2176 = vpop.f32.mrb[0].mxu0
      %v2177 = vpop.f32.mrb[0].mxu0
      %v2178 = vadd.f32 0.0, %v2177
      %v2179 = vpop.f32.mrb[0].mxu0
      %2180 = vmatprep.mubr.bf16.mxu0 0
      %2181 = vmatmul.mubr.bf16.gmra.mrb[0].mxu0 %v1459
      %v2182 = vpop.f32.mrb[0].mxu0
      %v2183 = vadd.f32 0.0, %v2182
      %v2184 = vpop.f32.mrb[0].mxu0
      %v2185 = vpop.f32.mrb[0].mxu0
      %v2186 = vadd.f32 0.0, %v2185
      %v2187 = vpop.f32.mrb[0].mxu0
      %2188 = vmatprep.mubr.bf16.mxu0 0
      %2189 = vmatmul.mubr.bf16.gmra.mrb[0].mxu0 %v1462
      %v2190 = vpop.f32.mrb[0].mxu0
      %v2191 = vadd.f32 0.0, %v2190
      %v2192 = vpop.f32.mrb[0].mxu0
      %v2193 = vpop.f32.mrb[0].mxu0
      %v2194 = vadd.f32 0.0, %v2193
      %v2195 = vpop.f32.mrb[0].mxu0
      %2196 = vmatprep.mubr.bf16.mxu0 0
      %2197 = vmatmul.mubr.bf16.gmra.mrb[0].mxu0 %v1465
      %v2198 = vpop.f32.mrb[0].mxu0
      %v2199 = vadd.f32 0.0, %v2198
      %v2200 = vpop.f32.mrb[0].mxu0
      %v2201 = vpop.f32.mrb[0].mxu0
      %v2202 = vadd.f32 0.0, %v2201
      %v2203 = vpop.f32.mrb[0].mxu0
      %2204 = vmatprep.mubr.bf16.mxu0 0
      %2205 = vmatmul.mubr.bf16.gmra.mrb[0].mxu0 %v1468
      %v2206 = vpop.f32.mrb[0].mxu0
      %v2207 = vadd.f32 0.0, %v2206
      %v2208 = vpop.f32.mrb[0].mxu0
      %v2209 = vpop.f32.mrb[0].mxu0
      %v2210 = vadd.f32 0.0, %v2209
      %v2211 = vpop.f32.mrb[0].mxu0
      %2212 = vmatprep.mubr.bf16.mxu0 0
      %2213 = vmatmul.mubr.bf16.gmra.mrb[0].mxu0 %v1471
      %v2214 = vpop.f32.mrb[0].mxu0
      %v2215 = vadd.f32 0.0, %v2214
      %v2216 = vpop.f32.mrb[0].mxu0
      %v2217 = vpop.f32.mrb[0].mxu0
      %v2218 = vadd.f32 0.0, %v2217
      %v2219 = vpop.f32.mrb[0].mxu0
      %2220 = vmatprep.mubr.bf16.mxu0 0
      %2221 = vmatmul.mubr.bf16.gmra.mrb[0].mxu0 %v1474
      %v2222 = vpop.f32.mrb[0].mxu0
      %v2223 = vadd.f32 0.0, %v2222
      %v2224 = vpop.f32.mrb[0].mxu0
      %v2225 = vpop.f32.mrb[0].mxu0
      %v2226 = vadd.f32 0.0, %v2225
      %v2227 = vpop.f32.mrb[0].mxu0
      %2228 = vmatprep.mubr.bf16.mxu0 0
      %2229 = vmatmul.mubr.bf16.gmra.mrb[0].mxu0 %v1477
      %v2230 = vpop.f32.mrb[0].mxu0
      %v2231 = vadd.f32 0.0, %v2230
      %v2232 = vpop.f32.mrb[0].mxu0
      %v2233 = vpop.f32.mrb[0].mxu0
      %v2234 = vadd.f32 0.0, %v2233
      %v2235 = vpop.f32.mrb[0].mxu0
      %2236 = vmatprep.mubr.bf16.mxu0 0
      %2237 = vmatmul.mubr.bf16.gmra.mrb[0].mxu0 %v1480
      %v2238 = vpop.f32.mrb[0].mxu0
      %v2239 = vadd.f32 0.0, %v2238
      %v2240 = vpop.f32.mrb[0].mxu0
      %v2241 = vpop.f32.mrb[0].mxu0
      %v2242 = vadd.f32 0.0, %v2241
      %v2243 = vpop.f32.mrb[0].mxu0
      %2244 = vmatprep.mubr.bf16.mxu0 0
      %2245 = vmatmul.mubr.bf16.gmra.mrb[0].mxu0 %v2090
      %v2246 = vpop.f32.mrb[0].mxu0
      %v2247 = vadd.f32 0.0, %v2246
      %v2248 = vpop.f32.mrb[0].mxu0
      %v2249 = vpop.f32.mrb[0].mxu0
      %v2250 = vadd.f32 0.0, %v2249
      %v2251 = vpop.f32.mrb[0].mxu0
      %2252 = vdwg.mxu0
      %2285 = vrot.lane.b32.xlu0 %v2127, 8
      %v2286 = vpop.permute.xlu0 %2285
      %2287 = vrot.lane.b32.xlu0 %v2130, 8
      %v2288 = vpop.permute.xlu0 %2287
      %2289 = vrot.lane.b32.xlu0 %v2135, 8
      %v2290 = vpop.permute.xlu0 %2289
      %2291 = vrot.lane.b32.xlu0 %v2138, 8
      %v2292 = vpop.permute.xlu0 %2291
      %2293 = vrot.lane.b32.xlu0 %v2143, 8
      %v2294 = vpop.permute.xlu0 %2293
      %2295 = vrot.lane.b32.xlu0 %v2146, 8
      %v2296 = vpop.permute.xlu0 %2295
      %2297 = vrot.lane.b32.xlu0 %v2151, 8
      %v2298 = vpop.permute.xlu0 %2297
      %2299 = vrot.lane.b32.xlu0 %v2154, 8
      %v2300 = vpop.permute.xlu0 %2299
      %2301 = vrot.lane.b32.xlu0 %v2159, 8
      %v2302 = vpop.permute.xlu0 %2301
      %2303 = vrot.lane.b32.xlu0 %v2162, 8
      %v2304 = vpop.permute.xlu0 %2303
      %2305 = vrot.lane.b32.xlu0 %v2167, 8
      %v2306 = vpop.permute.xlu0 %2305
      %2307 = vrot.lane.b32.xlu0 %v2170, 8
      %v2308 = vpop.permute.xlu0 %2307
      %2309 = vrot.lane.b32.xlu0 %v2175, 8
      %v2310 = vpop.permute.xlu0 %2309
      %2311 = vrot.lane.b32.xlu0 %v2178, 8
      %v2312 = vpop.permute.xlu0 %2311
      %2313 = vrot.lane.b32.xlu0 %v2183, 8
      %v2314 = vpop.permute.xlu0 %2313
      %2315 = vrot.lane.b32.xlu0 %v2186, 8
      %v2316 = vpop.permute.xlu0 %2315
      %2317 = vrot.lane.b32.xlu0 %v2191, 8
      %v2318 = vpop.permute.xlu0 %2317
      %2319 = vrot.lane.b32.xlu0 %v2194, 8
      %v2320 = vpop.permute.xlu0 %2319
      %2321 = vrot.lane.b32.xlu0 %v2199, 8
      %v2322 = vpop.permute.xlu0 %2321
      %2323 = vrot.lane.b32.xlu0 %v2202, 8
      %v2324 = vpop.permute.xlu0 %2323
      %2325 = vrot.lane.b32.xlu0 %v2207, 8
      %v2326 = vpop.permute.xlu0 %2325
      %2327 = vrot.lane.b32.xlu0 %v2210, 8
      %v2328 = vpop.permute.xlu0 %2327
      %2329 = vrot.lane.b32.xlu0 %v2215, 8
      %v2330 = vpop.permute.xlu0 %2329
      %2331 = vrot.lane.b32.xlu0 %v2218, 8
      %v2332 = vpop.permute.xlu0 %2331
      %2333 = vrot.lane.b32.xlu0 %v2223, 8
      %v2334 = vpop.permute.xlu0 %2333
      %2335 = vrot.lane.b32.xlu0 %v2226, 8
      %v2336 = vpop.permute.xlu0 %2335
      %2337 = vrot.lane.b32.xlu0 %v2231, 8
      %v2338 = vpop.permute.xlu0 %2337
      %2339 = vrot.lane.b32.xlu0 %v2234, 8
      %v2340 = vpop.permute.xlu0 %2339
      %2341 = vrot.lane.b32.xlu0 %v2239, 8
      %v2342 = vpop.permute.xlu0 %2341
      %2343 = vrot.lane.b32.xlu0 %v2242, 8
      %v2344 = vpop.permute.xlu0 %2343
      %2345 = vrot.lane.b32.xlu0 %v2247, 8
      %v2346 = vpop.permute.xlu0 %2345
      %2347 = vrot.lane.b32.xlu0 %v2250, 8
      %v2348 = vpop.permute.xlu0 %2347
      %v2381 = vsel %vm1771, %v1906, %v2286
      %v2382 = vsel %vm1771, %v1909, %v2288
      %v2383 = vsel %vm1771, %v1914, %v2290
      %v2384 = vsel %vm1771, %v1917, %v2292
      %v2385 = vsel %vm1771, %v1922, %v2294
      %v2386 = vsel %vm1771, %v1925, %v2296
      %v2387 = vsel %vm1771, %v1930, %v2298
      %v2388 = vsel %vm1771, %v1933, %v2300
      %v2389 = vsel %vm1771, %v1938, %v2302
      %v2390 = vsel %vm1771, %v1941, %v2304
      %v2391 = vsel %vm1771, %v1946, %v2306
      %v2392 = vsel %vm1771, %v1949, %v2308
      %v2393 = vsel %vm1771, %v1954, %v2310
      %v2394 = vsel %vm1771, %v1957, %v2312
      %v2395 = vsel %vm1771, %v1962, %v2314
      %v2396 = vsel %vm1771, %v1965, %v2316
      %v2397 = vsel %vm1771, %v1970, %v2318
      %v2398 = vsel %vm1771, %v1973, %v2320
      %v2399 = vsel %vm1771, %v1978, %v2322
      %v2400 = vsel %vm1771, %v1981, %v2324
      %v2401 = vsel %vm1771, %v1986, %v2326
      %v2402 = vsel %vm1771, %v1989, %v2328
      %v2403 = vsel %vm1771, %v1994, %v2330
      %v2404 = vsel %vm1771, %v1997, %v2332
      %v2405 = vsel %vm1771, %v2002, %v2334
      %v2406 = vsel %vm1771, %v2005, %v2336
      %v2407 = vsel %vm1771, %v2010, %v2338
      %v2408 = vsel %vm1771, %v2013, %v2340
      %v2409 = vsel %vm1771, %v2018, %v2342
      %v2410 = vsel %vm1771, %v2021, %v2344
      %v2411 = vsel %vm1771, %v2026, %v2346
      %v2412 = vsel %vm1771, %v2029, %v2348
      %2413 = vst.msk [vmem:[%s143] sm:$0xff] %vm690, %v1772
      %2414 = vst.msk [vmem:[%s143 + $0x8] sm:$0xff] %vm690, %v1773
      %2415 = vst.msk [vmem:[%s143 + $0x10] sm:$0xff] %vm690, %v2381
      %2416 = vst.msk [vmem:[%s143 + $0x18] sm:$0xff] %vm690, %v2382
      %2417 = vst.msk [vmem:[%s143 + $0x20] sm:$0xff] %vm690, %v1774
      %2418 = vst.msk [vmem:[%s143 + $0x28] sm:$0xff] %vm690, %v1775
      %2419 = vst.msk [vmem:[%s143 + $0x30] sm:$0xff] %vm690, %v2383
      %2420 = vst.msk [vmem:[%s143 + $0x38] sm:$0xff] %vm690, %v2384
      %2421 = vst.msk [vmem:[%s143 + $0x40] sm:$0xff] %vm690, %v1776
      %2422 = vst.msk [vmem:[%s143 + $0x48] sm:$0xff] %vm690, %v1777
      %2423 = vst.msk [vmem:[%s143 + $0x50] sm:$0xff] %vm690, %v2385
      %2424 = vst.msk [vmem:[%s143 + $0x58] sm:$0xff] %vm690, %v2386
      %2425 = vst.msk [vmem:[%s143 + $0x60] sm:$0xff] %vm690, %v1778
      %2426 = vst.msk [vmem:[%s143 + $0x68] sm:$0xff] %vm690, %v1779
      %2427 = vst.msk [vmem:[%s143 + $0x70] sm:$0xff] %vm690, %v2387
      %2428 = vst.msk [vmem:[%s143 + $0x78] sm:$0xff] %vm690, %v2388
      %2429 = vst.msk [vmem:[%s143 + $0x80] sm:$0xff] %vm690, %v1780
      %2430 = vst.msk [vmem:[%s143 + $0x88] sm:$0xff] %vm690, %v1781
      %2431 = vst.msk [vmem:[%s143 + $0x90] sm:$0xff] %vm690, %v2389
      %2432 = vst.msk [vmem:[%s143 + $0x98] sm:$0xff] %vm690, %v2390
      %2433 = vst.msk [vmem:[%s143 + $0xa0] sm:$0xff] %vm690, %v1782
      %2434 = vst.msk [vmem:[%s143 + $0xa8] sm:$0xff] %vm690, %v1783
      %2435 = vst.msk [vmem:[%s143 + $0xb0] sm:$0xff] %vm690, %v2391
      %2436 = vst.msk [vmem:[%s143 + $0xb8] sm:$0xff] %vm690, %v2392
      %2437 = vst.msk [vmem:[%s143 + $0xc0] sm:$0xff] %vm690, %v1784
      %2438 = vst.msk [vmem:[%s143 + $0xc8] sm:$0xff] %vm690, %v1785
      %2439 = vst.msk [vmem:[%s143 + $0xd0] sm:$0xff] %vm690, %v2393
      %2440 = vst.msk [vmem:[%s143 + $0xd8] sm:$0xff] %vm690, %v2394
      %2441 = vst.msk [vmem:[%s143 + $0xe0] sm:$0xff] %vm690, %v1786
      %2442 = vst.msk [vmem:[%s143 + $0xe8] sm:$0xff] %vm690, %v1787
      %2443 = vst.msk [vmem:[%s143 + $0xf0] sm:$0xff] %vm690, %v2395
      %2444 = vst.msk [vmem:[%s143 + $0xf8] sm:$0xff] %vm690, %v2396
      %2445 = vst.msk [vmem:[%s143 + $0x100] sm:$0xff] %vm690, %v1788
      %2446 = vst.msk [vmem:[%s143 + $0x108] sm:$0xff] %vm690, %v1789
      %2447 = vst.msk [vmem:[%s143 + $0x110] sm:$0xff] %vm690, %v2397
      %2448 = vst.msk [vmem:[%s143 + $0x118] sm:$0xff] %vm690, %v2398
      %2449 = vst.msk [vmem:[%s143 + $0x120] sm:$0xff] %vm690, %v1790
      %2450 = vst.msk [vmem:[%s143 + $0x128] sm:$0xff] %vm690, %v1791
      %2451 = vst.msk [vmem:[%s143 + $0x130] sm:$0xff] %vm690, %v2399
      %2452 = vst.msk [vmem:[%s143 + $0x138] sm:$0xff] %vm690, %v2400
      %2453 = vst.msk [vmem:[%s143 + $0x140] sm:$0xff] %vm690, %v1792
      %2454 = vst.msk [vmem:[%s143 + $0x148] sm:$0xff] %vm690, %v1793
      %2455 = vst.msk [vmem:[%s143 + $0x150] sm:$0xff] %vm690, %v2401
      %2456 = vst.msk [vmem:[%s143 + $0x158] sm:$0xff] %vm690, %v2402
      %2457 = vst.msk [vmem:[%s143 + $0x160] sm:$0xff] %vm690, %v1794
      %2458 = vst.msk [vmem:[%s143 + $0x168] sm:$0xff] %vm690, %v1795
      %2459 = vst.msk [vmem:[%s143 + $0x170] sm:$0xff] %vm690, %v2403
      %2460 = vst.msk [vmem:[%s143 + $0x178] sm:$0xff] %vm690, %v2404
      %2461 = vst.msk [vmem:[%s143 + $0x180] sm:$0xff] %vm690, %v1796
      %2462 = vst.msk [vmem:[%s143 + $0x188] sm:$0xff] %vm690, %v1797
      %2463 = vst.msk [vmem:[%s143 + $0x190] sm:$0xff] %vm690, %v2405
      %2464 = vst.msk [vmem:[%s143 + $0x198] sm:$0xff] %vm690, %v2406
      %2465 = vst.msk [vmem:[%s143 + $0x1a0] sm:$0xff] %vm690, %v1798
      %2466 = vst.msk [vmem:[%s143 + $0x1a8] sm:$0xff] %vm690, %v1799
      %2467 = vst.msk [vmem:[%s143 + $0x1b0] sm:$0xff] %vm690, %v2407
      %2468 = vst.msk [vmem:[%s143 + $0x1b8] sm:$0xff] %vm690, %v2408
      %2469 = vst.msk [vmem:[%s143 + $0x1c0] sm:$0xff] %vm690, %v1800
      %2470 = vst.msk [vmem:[%s143 + $0x1c8] sm:$0xff] %vm690, %v1801
      %2471 = vst.msk [vmem:[%s143 + $0x1d0] sm:$0xff] %vm690, %v2409
      %2472 = vst.msk [vmem:[%s143 + $0x1d8] sm:$0xff] %vm690, %v2410
      %2473 = vst.msk [vmem:[%s143 + $0x1e0] sm:$0xff] %vm690, %v1802
      %2474 = vst.msk [vmem:[%s143 + $0x1e8] sm:$0xff] %vm690, %v1803
      %2475 = vst.msk [vmem:[%s143 + $0x1f0] sm:$0xff] %vm690, %v2411
      %2476 = vst.msk [vmem:[%s143 + $0x1f8] sm:$0xff] %vm690, %v2412
      %p2477 = scmp.lt.s32.totalorder %s13, 1
      %s2478 = scalar_select %p2477, %s13, 1
      %s2479 = smul.addr %s2478, 64
      %s2480 = smul.addr %s2479, 8
      %s2481 = scalar_lea.vmem %s2, %s2480
      // Predicated region
      $region29: #{generator_forward.8} parent=27 // pred_check
        %p2482 = pneg %p78
      $region30: #{generator_forward.8} parent=27 // pred_check_branch
        %2484 = sbr.rel (%p2482) target = $region32
      $region31: #{generator_forward.8} parent=27 // pred_region
        _
      $region32: #{generator_forward.8} parent=27 // pred_fallthru
        _
    $region28: #{generator_forward.8} parent=5 // pred_fallthru
      _
    %p2485 = scmp.le.s32.totalorder 2, %s8
    // Predicated region
    $region33: #{generator_forward.8} parent=5 // pred_check
      %p2486 = pneg %p2485
    $region34: #{generator_forward.8} parent=5 // pred_check_branch
      %2488 = sbr.rel (%p2486) target = $region36
    $region35: #{generator_forward.8} parent=5 // pred_region
      %s2489 = ssub.s32 %s8, 2
      // Predicated region
      $region37: #{generator_forward.8} parent=35 // pred_check
        %p2490 = pneg %p84
      $region38: #{generator_forward.8} parent=35 // pred_check_branch
        %2492 = sbr.rel (%p2490) target = $region40
      $region39: #{generator_forward.8} parent=35 // pred_region
        %p2493 = scmp.lt.s32.totalorder %s14, 1
        %s2494 = scalar_select %p2493, %s14, 1
        %s2495 = smul.addr %s2494, 64
        %s2496 = smul.addr %s2495, 8
        %s2497 = scalar_lea.vmem %s2, %s2496
      $region40: #{generator_forward.8} parent=35 // pred_fallthru
        _
    $region36: #{generator_forward.8} parent=5 // pred_fallthru
      _
  $region6: #{generator_forward.8} parent=0 // loop_footer
    %s12 = sadd.s32 1, %s8
  $region7: #{generator_forward.8} parent=0 // loop_footer_branch
    %7 = sbr.rel target = $region3
  $region8: #{generator_forward.8} parent=0 // loop_exit
    _

// kernel: generator_forward.9
$region0: #{generator_forward.9}
  #allocation0 [shape = 'u32[]', space=smem, size = 0x4, offset = 0x4, fixed_abs, tag = 'smem constant byte address 0x4 - core index']
  #allocation1 [shape = 'u32[144,128]{1,0:T(1,128)}', space=vmem, size = 0x12000, scoped, tag = 'internal scratch']
  %s0 = inlined_call_operand.vmem [shape: bf16[2,34,34,8], index: 0, kind: input, shape index: {}]
  %s1 = inlined_call_operand.vmem [shape: bf16[4,32,3], index: 1, kind: input, shape index: {}]
  %s2 = inlined_call_operand.vmem [shape: f32[2,64,32,6], index: 2, kind: output, shape index: {}]
  %s3 = sld [smem:[#allocation0]]
  $region41: #{generator_forward.9} parent=0
    _
  %s5 = ssub.s32 1, %s3
  %s6 = scalar_select 0, %s5, %s3
  loop: start=0, step=1, limit=4
  $region2: #{generator_forward.9} parent=0 // loop_pre_header
    _
  $region3: #{generator_forward.9} parent=0 // loop_header
    %s8 = sphi 0, %s12
    %p9 = scmp.ge.s32.totalorder %s8, 4
    %s18 = sphi 0, %s20
    %s21 = sphi 0, %s18
    %s22 = sphi 0, %s21
    %s38 = sphi 0, %s22
    %s42 = sphi 0, %s42
    %s44 = sphi 0, %s42
    %s45 = sphi 0, %s44
    %s59 = sphi 0, %s45
    %s65 = sphi 0, %s67
    %s68 = sphi 0, %s65
    %s69 = sphi 0, %s68
    %s85 = sphi 0, %s69
  $region4: #{generator_forward.9} parent=0 // loop_header_branch
    %11 = sbr.rel (%p9) target = $region8
  $region5: #{generator_forward.9} parent=0 // loop_body
    %s13 = ssub.s32 %s8, 1
    %s14 = ssub.s32 %s8, 2
    %s15 = sadd.s32 %s8, 1
    %s16 = ssub.s32 %s8, %s15
    %p17 = scmp.eq.s32.totalorder %s16, 0
    %s19 = sadd.s32 %s18, 1
    %s20 = scalar_select %p17, %s18, %s19
    %p23 = pneg %p17
    %p24 = scmp.eq.s32.totalorder %s8, 1
    %p25 = por %p23, %p24
    %p26 = scmp.ne.s32.totalorder %s18, %s21
    %p27 = scmp.eq.s32.totalorder %s8, 0
    %p28 = por %p26, %p27
    %p29 = scmp.ne.s32.totalorder %s18, %s21
    %p30 = scmp.eq.s32.totalorder %s13, 1
    %p31 = por %p29, %p30
    %p32 = scmp.ne.s32.totalorder %s21, %s22
    %p33 = scmp.eq.s32.totalorder %s13, 0
    %p34 = por %p32, %p33
    %p35 = scmp.ne.s32.totalorder %s21, %s22
    %p36 = scmp.eq.s32.totalorder %s14, 1
    %p37 = por %p35, %p36
    %p39 = scmp.ne.s32.totalorder %s22, %s38
    %p40 = scmp.eq.s32.totalorder %s14, 0
    %p41 = por %p39, %p40
    %s43 = sadd.s32 %s42, 1
    %p46 = scmp.eq.s32.totalorder %s8, 1
    %p47 = scmp.ne.s32.totalorder %s42, %s44
    %p48 = scmp.eq.s32.totalorder %s8, 0
    %p49 = por %p47, %p48
    %p50 = scmp.ne.s32.totalorder %s42, %s44
    %p51 = scmp.eq.s32.totalorder %s13, 1
    %p52 = por %p50, %p51
    %p53 = scmp.ne.s32.totalorder %s44, %s45
    %p54 = scmp.eq.s32.totalorder %s13, 0
    %p55 = por %p53, %p54
    %p56 = scmp.ne.s32.totalorder %s44, %s45
    %p57 = scmp.eq.s32.totalorder %s14, 1
    %p58 = por %p56, %p57
    %p60 = scmp.ne.s32.totalorder %s45, %s59
    %p61 = scmp.eq.s32.totalorder %s14, 0
    %p62 = por %p60, %p61
    %s63 = ssub.s32 %s8, %s15
    %p64 = scmp.eq.s32.totalorder %s63, 0
    %s66 = sadd.s32 %s65, 1
    %s67 = scalar_select %p64, %s65, %s66
    %p70 = pneg %p64
    %p71 = scmp.eq.s32.totalorder %s8, 1
    %p72 = por %p70, %p71
    %p73 = scmp.ne.s32.totalorder %s65, %s68
    %p74 = scmp.eq.s32.totalorder %s8, 0
    %p75 = por %p73, %p74
    %p76 = scmp.ne.s32.totalorder %s65, %s68
    %p77 = scmp.eq.s32.totalorder %s13, 1
    %p78 = por %p76, %p77
    %p79 = scmp.ne.s32.totalorder %s68, %s69
    %p80 = scmp.eq.s32.totalorder %s13, 0
    %p81 = por %p79, %p80
    %p82 = scmp.ne.s32.totalorder %s68, %s69
    %p83 = scmp.eq.s32.totalorder %s14, 1
    %p84 = por %p82, %p83
    %p86 = scmp.ne.s32.totalorder %s69, %s85
    %p87 = scmp.eq.s32.totalorder %s14, 0
    %p88 = por %p86, %p87
    %p89 = scmp.le.s32.totalorder 1, %s8
    %p90 = scmp.lt.s32.totalorder %s8, 3
    %p91 = pnand %p89, %p90
    %p92 = pneg %p91
    // Predicated region
    $region9: #{generator_forward.9} parent=5 // pred_check
      _
    $region10: #{generator_forward.9} parent=5 // pred_check_branch
      %94 = sbr.rel (%p91) target = $region12
    $region11: #{generator_forward.9} parent=5 // pred_region
      %s95 = ssub.s32 %s8, 1
      // Predicated region
      $region13: #{generator_forward.9} parent=11 // pred_check
        %p96 = pneg %p55
      $region14: #{generator_forward.9} parent=11 // pred_check_branch
        %98 = sbr.rel (%p96) target = $region16
      $region15: #{generator_forward.9} parent=11 // pred_region
        _
      $region16: #{generator_forward.9} parent=11 // pred_fallthru
        _
    $region12: #{generator_forward.9} parent=5 // pred_fallthru
      _
    %p99 = scmp.lt.s32.totalorder %s8, 2
    // Predicated region
    $region17: #{generator_forward.9} parent=5 // pred_check
      %p100 = pneg %p99
    $region18: #{generator_forward.9} parent=5 // pred_check_branch
      %102 = sbr.rel (%p100) target = $region20
    $region19: #{generator_forward.9} parent=5 // pred_region
      // Predicated region
      $region21: #{generator_forward.9} parent=19 // pred_check
        %p103 = pneg %p28
      $region22: #{generator_forward.9} parent=19 // pred_check_branch
        %105 = sbr.rel (%p103) target = $region24
      $region23: #{generator_forward.9} parent=19 // pred_region
        %p106 = scmp.lt.s32.totalorder %s8, 1
        %s107 = scalar_select %p106, %s8, 1
        %s108 = smul.addr %s107, 170
        %s109 = smul.addr %s108, 4
        %s110 = scalar_lea.vmem %s0, %s109
      $region24: #{generator_forward.9} parent=19 // pred_fallthru
        _
    $region20: #{generator_forward.9} parent=5 // pred_fallthru
      _
    %p111 = scmp.le.s32.totalorder 1, %s8
    %p112 = scmp.lt.s32.totalorder %s8, 3
    %p113 = pnand %p111, %p112
    %p114 = pneg %p113
    // Predicated region
    $region25: #{generator_forward.9} parent=5 // pred_check
      _
    $region26: #{generator_forward.9} parent=5 // pred_check_branch
      %116 = sbr.rel (%p113) target = $region28
    $region27: #{generator_forward.9} parent=5 // pred_region
      %s117 = ssub.s32 %s8, 1
      %p118 = scmp.lt.s32.totalorder %s13, 1
      %s119 = scalar_select %p118, %s13, 1
      %s120 = smul.addr %s119, 170
      %s121 = smul.addr %s120, 4
      %s122 = scalar_lea.vmem %s0, %s121
      %p123 = pneg %p34
      %p124 = pneg %p31
      %p125 = pneg %p55
      %p126 = pneg %p52
      %p127 = pneg %p81
      %p128 = pneg %p78
      %p129 = scmp.lt.s32.totalorder %s13, 1
      %s130 = scalar_select %p129, %s13, 1
      %s131 = smul.addr %s130, 256
      %s132 = smul.addr %s131, 8
      %s133 = scalar_lea.vmem %s2, %s132
      %p134 = scmp.lt.s32.totalorder %s13, 1
      %s135 = scalar_select %p134, %s13, 1
      %s136 = smul.addr %s135, 170
      %s137 = smul.addr %s136, 4
      %s138 = scalar_lea.vmem %s0, %s137
      %p139 = scmp.lt.s32.totalorder %s13, 1
      %s140 = scalar_select %p139, %s13, 1
      %s141 = smul.addr %s140, 256
      %s142 = smul.addr %s141, 8
      %s143 = scalar_lea.vmem %s2, %s142
      %v145 = vld [vmem:[%s138] sm:$0xf]
      %v146 = vld [vmem:[%s138 + $0x4] sm:$0xf]
      %v147 = vld [vmem:[%s138 + $0x8] sm:$0xf]
      %v148 = vld [vmem:[%s138 + $0xc] sm:$0xf]
      %v149 = vld [vmem:[%s138 + $0x10] sm:$0x1]
      %v150 = vld [vmem:[%s138 + $0x14] sm:$0xf]
      %v151 = vld [vmem:[%s138 + $0x18] sm:$0xf]
      %v152 = vld [vmem:[%s138 + $0x1c] sm:$0xf]
      %v153 = vld [vmem:[%s138 + $0x20] sm:$0xf]
      %v154 = vld [vmem:[%s138 + $0x24] sm:$0x1]
      %v155 = vld [vmem:[%s138 + $0x28] sm:$0xf]
      %v156 = vld [vmem:[%s138 + $0x2c] sm:$0xf]
      %v157 = vld [vmem:[%s138 + $0x30] sm:$0xf]
      %v158 = vld [vmem:[%s138 + $0x34] sm:$0xf]
      %v159 = vld [vmem:[%s138 + $0x38] sm:$0x1]
      %v160 = vld [vmem:[%s138 + $0x3c] sm:$0xf]
      %v161 = vld [vmem:[%s138 + $0x40] sm:$0xf]
      %v162 = vld [vmem:[%s138 + $0x44] sm:$0xf]
      %v163 = vld [vmem:[%s138 + $0x48] sm:$0xf]
      %v164 = vld [vmem:[%s138 + $0x4c] sm:$0x1]
      %v165 = vld [vmem:[%s138 + $0x50] sm:$0xf]
      %v166 = vld [vmem:[%s138 + $0x54] sm:$0xf]
      %v167 = vld [vmem:[%s138 + $0x58] sm:$0xf]
      %v168 = vld [vmem:[%s138 + $0x5c] sm:$0xf]
      %v169 = vld [vmem:[%s138 + $0x60] sm:$0x1]
      %v170 = vld [vmem:[%s138 + $0x64] sm:$0xf]
      %v171 = vld [vmem:[%s138 + $0x68] sm:$0xf]
      %v172 = vld [vmem:[%s138 + $0x6c] sm:$0xf]
      %v173 = vld [vmem:[%s138 + $0x70] sm:$0xf]
      %v174 = vld [vmem:[%s138 + $0x74] sm:$0x1]
      %v175 = vld [vmem:[%s138 + $0x78] sm:$0xf]
      %v176 = vld [vmem:[%s138 + $0x7c] sm:$0xf]
      %v177 = vld [vmem:[%s138 + $0x80] sm:$0xf]
      %v178 = vld [vmem:[%s138 + $0x84] sm:$0xf]
      %v179 = vld [vmem:[%s138 + $0x88] sm:$0x1]
      %v180 = vld [vmem:[%s138 + $0x8c] sm:$0xf]
      %v181 = vld [vmem:[%s138 + $0x90] sm:$0xf]
      %v182 = vld [vmem:[%s138 + $0x94] sm:$0xf]
      %v183 = vld [vmem:[%s138 + $0x98] sm:$0xf]
      %v184 = vld [vmem:[%s138 + $0x9c] sm:$0x1]
      %v185 = vld [vmem:[%s138 + $0xa0] sm:$0xf]
      %v186 = vld [vmem:[%s138 + $0xa4] sm:$0xf]
      %v187 = vld [vmem:[%s138 + $0xa8] sm:$0xf]
      %v188 = vld [vmem:[%s138 + $0xac] sm:$0xf]
      %v189 = vld [vmem:[%s138 + $0xb0] sm:$0x1]
      %v190 = vld [vmem:[%s138 + $0xb4] sm:$0xf]
      %v191 = vld [vmem:[%s138 + $0xb8] sm:$0xf]
      %v192 = vld [vmem:[%s138 + $0xbc] sm:$0xf]
      %v193 = vld [vmem:[%s138 + $0xc0] sm:$0xf]
      %v194 = vld [vmem:[%s138 + $0xc4] sm:$0x1]
      %v195 = vld [vmem:[%s138 + $0xc8] sm:$0xf]
      %v196 = vld [vmem:[%s138 + $0xcc] sm:$0xf]
      %v197 = vld [vmem:[%s138 + $0xd0] sm:$0xf]
      %v198 = vld [vmem:[%s138 + $0xd4] sm:$0xf]
      %v199 = vld [vmem:[%s138 + $0xd8] sm:$0x1]
      %v200 = vld [vmem:[%s138 + $0xdc] sm:$0xf]
      %v201 = vld [vmem:[%s138 + $0xe0] sm:$0xf]
      %v202 = vld [vmem:[%s138 + $0xe4] sm:$0xf]
      %v203 = vld [vmem:[%s138 + $0xe8] sm:$0xf]
      %v204 = vld [vmem:[%s138 + $0xec] sm:$0x1]
      %v205 = vld [vmem:[%s138 + $0xf0] sm:$0xf]
      %v206 = vld [vmem:[%s138 + $0xf4] sm:$0xf]
      %v207 = vld [vmem:[%s138 + $0xf8] sm:$0xf]
      %v208 = vld [vmem:[%s138 + $0xfc] sm:$0xf]
      %v209 = vld [vmem:[%s138 + $0x100] sm:$0x1]
      %v210 = vld [vmem:[%s138 + $0x104] sm:$0xf]
      %v211 = vld [vmem:[%s138 + $0x108] sm:$0xf]
      %v212 = vld [vmem:[%s138 + $0x10c] sm:$0xf]
      %v213 = vld [vmem:[%s138 + $0x110] sm:$0xf]
      %v214 = vld [vmem:[%s138 + $0x114] sm:$0x1]
      %v215 = vld [vmem:[%s138 + $0x118] sm:$0xf]
      %v216 = vld [vmem:[%s138 + $0x11c] sm:$0xf]
      %v217 = vld [vmem:[%s138 + $0x120] sm:$0xf]
      %v218 = vld [vmem:[%s138 + $0x124] sm:$0xf]
      %v219 = vld [vmem:[%s138 + $0x128] sm:$0x1]
      %v220 = vld [vmem:[%s138 + $0x12c] sm:$0xf]
      %v221 = vld [vmem:[%s138 + $0x130] sm:$0xf]
      %v222 = vld [vmem:[%s138 + $0x134] sm:$0xf]
      %v223 = vld [vmem:[%s138 + $0x138] sm:$0xf]
      %v224 = vld [vmem:[%s138 + $0x13c] sm:$0x1]
      %v225 = vld [vmem:[%s138 + $0x140] sm:$0xf]
      %v226 = vld [vmem:[%s138 + $0x144] sm:$0xf]
      %v227 = vld [vmem:[%s138 + $0x148] sm:$0xf]
      %v228 = vld [vmem:[%s138 + $0x14c] sm:$0xf]
      %v229 = vld [vmem:[%s138 + $0x150] sm:$0x1]
      %v230 = vld [vmem:[%s138 + $0x154] sm:$0xf]
      %v231 = vld [vmem:[%s138 + $0x158] sm:$0xf]
      %v232 = vld [vmem:[%s138 + $0x15c] sm:$0xf]
      %v233 = vld [vmem:[%s138 + $0x160] sm:$0xf]
      %v234 = vld [vmem:[%s138 + $0x164] sm:$0x1]
      %v235 = vld [vmem:[%s138 + $0x168] sm:$0xf]
      %v236 = vld [vmem:[%s138 + $0x16c] sm:$0xf]
      %v237 = vld [vmem:[%s138 + $0x170] sm:$0xf]
      %v238 = vld [vmem:[%s138 + $0x174] sm:$0xf]
      %v239 = vld [vmem:[%s138 + $0x178] sm:$0x1]
      %v240 = vld [vmem:[%s138 + $0x17c] sm:$0xf]
      %v241 = vld [vmem:[%s138 + $0x180] sm:$0xf]
      %v242 = vld [vmem:[%s138 + $0x184] sm:$0xf]
      %v243 = vld [vmem:[%s138 + $0x188] sm:$0xf]
      %v244 = vld [vmem:[%s138 + $0x18c] sm:$0x1]
      %v245 = vld [vmem:[%s138 + $0x190] sm:$0xf]
      %v246 = vld [vmem:[%s138 + $0x194] sm:$0xf]
      %v247 = vld [vmem:[%s138 + $0x198] sm:$0xf]
      %v248 = vld [vmem:[%s138 + $0x19c] sm:$0xf]
      %v249 = vld [vmem:[%s138 + $0x1a0] sm:$0x1]
      %v250 = vld [vmem:[%s138 + $0x1a4] sm:$0xf]
      %v251 = vld [vmem:[%s138 + $0x1a8] sm:$0xf]
      %v252 = vld [vmem:[%s138 + $0x1ac] sm:$0xf]
      %v253 = vld [vmem:[%s138 + $0x1b0] sm:$0xf]
      %v254 = vld [vmem:[%s138 + $0x1b4] sm:$0x1]
      %v255 = vld [vmem:[%s138 + $0x1b8] sm:$0xf]
      %v256 = vld [vmem:[%s138 + $0x1bc] sm:$0xf]
      %v257 = vld [vmem:[%s138 + $0x1c0] sm:$0xf]
      %v258 = vld [vmem:[%s138 + $0x1c4] sm:$0xf]
      %v259 = vld [vmem:[%s138 + $0x1c8] sm:$0x1]
      %v260 = vld [vmem:[%s138 + $0x1cc] sm:$0xf]
      %v261 = vld [vmem:[%s138 + $0x1d0] sm:$0xf]
      %v262 = vld [vmem:[%s138 + $0x1d4] sm:$0xf]
      %v263 = vld [vmem:[%s138 + $0x1d8] sm:$0xf]
      %v264 = vld [vmem:[%s138 + $0x1dc] sm:$0x1]
      %v265 = vld [vmem:[%s138 + $0x1e0] sm:$0xf]
      %v266 = vld [vmem:[%s138 + $0x1e4] sm:$0xf]
      %v267 = vld [vmem:[%s138 + $0x1e8] sm:$0xf]
      %v268 = vld [vmem:[%s138 + $0x1ec] sm:$0xf]
      %v269 = vld [vmem:[%s138 + $0x1f0] sm:$0x1]
      %v270 = vld [vmem:[%s138 + $0x1f4] sm:$0xf]
      %v271 = vld [vmem:[%s138 + $0x1f8] sm:$0xf]
      %v272 = vld [vmem:[%s138 + $0x1fc] sm:$0xf]
      %v273 = vld [vmem:[%s138 + $0x200] sm:$0xf]
      %v274 = vld [vmem:[%s138 + $0x204] sm:$0x1]
      %v275 = vld [vmem:[%s138 + $0x208] sm:$0xf]
      %v276 = vld [vmem:[%s138 + $0x20c] sm:$0xf]
      %v277 = vld [vmem:[%s138 + $0x210] sm:$0xf]
      %v278 = vld [vmem:[%s138 + $0x214] sm:$0xf]
      %v279 = vld [vmem:[%s138 + $0x218] sm:$0x1]
      %v280 = vld [vmem:[%s138 + $0x21c] sm:$0xf]
      %v281 = vld [vmem:[%s138 + $0x220] sm:$0xf]
      %v282 = vld [vmem:[%s138 + $0x224] sm:$0xf]
      %v283 = vld [vmem:[%s138 + $0x228] sm:$0xf]
      %v284 = vld [vmem:[%s138 + $0x22c] sm:$0x1]
      %v285 = vld [vmem:[%s138 + $0x230] sm:$0xf]
      %v286 = vld [vmem:[%s138 + $0x234] sm:$0xf]
      %v287 = vld [vmem:[%s138 + $0x238] sm:$0xf]
      %v288 = vld [vmem:[%s138 + $0x23c] sm:$0xf]
      %v289 = vld [vmem:[%s138 + $0x240] sm:$0x1]
      %v290 = vld [vmem:[%s138 + $0x244] sm:$0xf]
      %v291 = vld [vmem:[%s138 + $0x248] sm:$0xf]
      %v292 = vld [vmem:[%s138 + $0x24c] sm:$0xf]
      %v293 = vld [vmem:[%s138 + $0x250] sm:$0xf]
      %v294 = vld [vmem:[%s138 + $0x254] sm:$0x1]
      %v295 = vld [vmem:[%s138 + $0x258] sm:$0xf]
      %v296 = vld [vmem:[%s138 + $0x25c] sm:$0xf]
      %v297 = vld [vmem:[%s138 + $0x260] sm:$0xf]
      %v298 = vld [vmem:[%s138 + $0x264] sm:$0xf]
      %v299 = vld [vmem:[%s138 + $0x268] sm:$0x1]
      %v300 = vld [vmem:[%s138 + $0x26c] sm:$0xf]
      %v301 = vld [vmem:[%s138 + $0x270] sm:$0xf]
      %v302 = vld [vmem:[%s138 + $0x274] sm:$0xf]
      %v303 = vld [vmem:[%s138 + $0x278] sm:$0xf]
      %v304 = vld [vmem:[%s138 + $0x27c] sm:$0x1]
      %v305 = vld [vmem:[%s138 + $0x280] sm:$0xf]
      %v306 = vld [vmem:[%s138 + $0x284] sm:$0xf]
      %v307 = vld [vmem:[%s138 + $0x288] sm:$0xf]
      %v308 = vld [vmem:[%s138 + $0x28c] sm:$0xf]
      %v309 = vld [vmem:[%s138 + $0x290] sm:$0x1]
      %v310 = vld [vmem:[%s138 + $0x294] sm:$0xf]
      %v311 = vld [vmem:[%s138 + $0x298] sm:$0xf]
      %v312 = vld [vmem:[%s138 + $0x29c] sm:$0xf]
      %v313 = vld [vmem:[%s138 + $0x2a0] sm:$0xf]
      %v314 = vld [vmem:[%s138 + $0x2a4] sm:$0x1]
      %v315 = vmax.bf16 %v145, 0
      %v316 = vmax.bf16 %v146, 0
      %v317 = vmax.bf16 %v147, 0
      %v318 = vmax.bf16 %v148, 0
      %v319 = vmax.bf16 %v149, 0
      %v320 = vmax.bf16 %v150, 0
      %v321 = vmax.bf16 %v151, 0
      %v322 = vmax.bf16 %v152, 0
      %v323 = vmax.bf16 %v153, 0
      %v324 = vmax.bf16 %v154, 0
      %v325 = vmax.bf16 %v155, 0
      %v326 = vmax.bf16 %v156, 0
      %v327 = vmax.bf16 %v157, 0
      %v328 = vmax.bf16 %v158, 0
      %v329 = vmax.bf16 %v159, 0
      %v330 = vmax.bf16 %v160, 0
      %v331 = vmax.bf16 %v161, 0
      %v332 = vmax.bf16 %v162, 0
      %v333 = vmax.bf16 %v163, 0
      %v334 = vmax.bf16 %v164, 0
      %v335 = vmax.bf16 %v165, 0
      %v336 = vmax.bf16 %v166, 0
      %v337 = vmax.bf16 %v167, 0
      %v338 = vmax.bf16 %v168, 0
      %v339 = vmax.bf16 %v169, 0
      %v340 = vmax.bf16 %v170, 0
      %v341 = vmax.bf16 %v171, 0
      %v342 = vmax.bf16 %v172, 0
      %v343 = vmax.bf16 %v173, 0
      %v344 = vmax.bf16 %v174, 0
      %v345 = vmax.bf16 %v175, 0
      %v346 = vmax.bf16 %v176, 0
      %v347 = vmax.bf16 %v177, 0
      %v348 = vmax.bf16 %v178, 0
      %v349 = vmax.bf16 %v179, 0
      %v350 = vmax.bf16 %v180, 0
      %v351 = vmax.bf16 %v181, 0
      %v352 = vmax.bf16 %v182, 0
      %v353 = vmax.bf16 %v183, 0
      %v354 = vmax.bf16 %v184, 0
      %v355 = vmax.bf16 %v185, 0
      %v356 = vmax.bf16 %v186, 0
      %v357 = vmax.bf16 %v187, 0
      %v358 = vmax.bf16 %v188, 0
      %v359 = vmax.bf16 %v189, 0
      %v360 = vmax.bf16 %v190, 0
      %v361 = vmax.bf16 %v191, 0
      %v362 = vmax.bf16 %v192, 0
      %v363 = vmax.bf16 %v193, 0
      %v364 = vmax.bf16 %v194, 0
      %v365 = vmax.bf16 %v195, 0
      %v366 = vmax.bf16 %v196, 0
      %v367 = vmax.bf16 %v197, 0
      %v368 = vmax.bf16 %v198, 0
      %v369 = vmax.bf16 %v199, 0
      %v370 = vmax.bf16 %v200, 0
      %v371 = vmax.bf16 %v201, 0
      %v372 = vmax.bf16 %v202, 0
      %v373 = vmax.bf16 %v203, 0
      %v374 = vmax.bf16 %v204, 0
      %v375 = vmax.bf16 %v205, 0
      %v376 = vmax.bf16 %v206, 0
      %v377 = vmax.bf16 %v207, 0
      %v378 = vmax.bf16 %v208, 0
      %v379 = vmax.bf16 %v209, 0
      %v380 = vmax.bf16 %v210, 0
      %v381 = vmax.bf16 %v211, 0
      %v382 = vmax.bf16 %v212, 0
      %v383 = vmax.bf16 %v213, 0
      %v384 = vmax.bf16 %v214, 0
      %v385 = vmax.bf16 %v215, 0
      %v386 = vmax.bf16 %v216, 0
      %v387 = vmax.bf16 %v217, 0
      %v388 = vmax.bf16 %v218, 0
      %v389 = vmax.bf16 %v219, 0
      %v390 = vmax.bf16 %v220, 0
      %v391 = vmax.bf16 %v221, 0
      %v392 = vmax.bf16 %v222, 0
      %v393 = vmax.bf16 %v223, 0
      %v394 = vmax.bf16 %v224, 0
      %v395 = vmax.bf16 %v225, 0
      %v396 = vmax.bf16 %v226, 0
      %v397 = vmax.bf16 %v227, 0
      %v398 = vmax.bf16 %v228, 0
      %v399 = vmax.bf16 %v229, 0
      %v400 = vmax.bf16 %v230, 0
      %v401 = vmax.bf16 %v231, 0
      %v402 = vmax.bf16 %v232, 0
      %v403 = vmax.bf16 %v233, 0
      %v404 = vmax.bf16 %v234, 0
      %v405 = vmax.bf16 %v235, 0
      %v406 = vmax.bf16 %v236, 0
      %v407 = vmax.bf16 %v237, 0
      %v408 = vmax.bf16 %v238, 0
      %v409 = vmax.bf16 %v239, 0
      %v410 = vmax.bf16 %v240, 0
      %v411 = vmax.bf16 %v241, 0
      %v412 = vmax.bf16 %v242, 0
      %v413 = vmax.bf16 %v243, 0
      %v414 = vmax.bf16 %v244, 0
      %v415 = vmax.bf16 %v245, 0
      %v416 = vmax.bf16 %v246, 0
      %v417 = vmax.bf16 %v247, 0
      %v418 = vmax.bf16 %v248, 0
      %v419 = vmax.bf16 %v249, 0
      %v420 = vmax.bf16 %v250, 0
      %v421 = vmax.bf16 %v251, 0
      %v422 = vmax.bf16 %v252, 0
      %v423 = vmax.bf16 %v253, 0
      %v424 = vmax.bf16 %v254, 0
      %v425 = vmax.bf16 %v255, 0
      %v426 = vmax.bf16 %v256, 0
      %v427 = vmax.bf16 %v257, 0
      %v428 = vmax.bf16 %v258, 0
      %v429 = vmax.bf16 %v259, 0
      %v430 = vmax.bf16 %v260, 0
      %v431 = vmax.bf16 %v261, 0
      %v432 = vmax.bf16 %v262, 0
      %v433 = vmax.bf16 %v263, 0
      %v434 = vmax.bf16 %v264, 0
      %v435 = vmax.bf16 %v265, 0
      %v436 = vmax.bf16 %v266, 0
      %v437 = vmax.bf16 %v267, 0
      %v438 = vmax.bf16 %v268, 0
      %v439 = vmax.bf16 %v269, 0
      %v440 = vmax.bf16 %v270, 0
      %v441 = vmax.bf16 %v271, 0
      %v442 = vmax.bf16 %v272, 0
      %v443 = vmax.bf16 %v273, 0
      %v444 = vmax.bf16 %v274, 0
      %v445 = vmax.bf16 %v275, 0
      %v446 = vmax.bf16 %v276, 0
      %v447 = vmax.bf16 %v277, 0
      %v448 = vmax.bf16 %v278, 0
      %v449 = vmax.bf16 %v279, 0
      %v450 = vmax.bf16 %v280, 0
      %v451 = vmax.bf16 %v281, 0
      %v452 = vmax.bf16 %v282, 0
      %v453 = vmax.bf16 %v283, 0
      %v454 = vmax.bf16 %v284, 0
      %v455 = vmax.bf16 %v285, 0
      %v456 = vmax.bf16 %v286, 0
      %v457 = vmax.bf16 %v287, 0
      %v458 = vmax.bf16 %v288, 0
      %v459 = vmax.bf16 %v289, 0
      %v460 = vmax.bf16 %v290, 0
      %v461 = vmax.bf16 %v291, 0
      %v462 = vmax.bf16 %v292, 0
      %v463 = vmax.bf16 %v293, 0
      %v464 = vmax.bf16 %v294, 0
      %v465 = vmax.bf16 %v295, 0
      %v466 = vmax.bf16 %v296, 0
      %v467 = vmax.bf16 %v297, 0
      %v468 = vmax.bf16 %v298, 0
      %v469 = vmax.bf16 %v299, 0
      %v470 = vmax.bf16 %v300, 0
      %v471 = vmax.bf16 %v301, 0
      %v472 = vmax.bf16 %v302, 0
      %v473 = vmax.bf16 %v303, 0
      %v474 = vmax.bf16 %v304, 0
      %v475 = vmax.bf16 %v305, 0
      %v476 = vmax.bf16 %v306, 0
      %v477 = vmax.bf16 %v307, 0
      %v478 = vmax.bf16 %v308, 0
      %v479 = vmax.bf16 %v309, 0
      %v480 = vmax.bf16 %v310, 0
      %v481 = vmax.bf16 %v311, 0
      %v482 = vmax.bf16 %v312, 0
      %v483 = vmax.bf16 %v313, 0
      %v484 = vmax.bf16 %v314, 0
      %v613 = vunpack.c.l.b16 %v315
      %v614 = vunpack.c.l.b16 %v316
      %v615 = vunpack.c.l.b16 %v317
      %v616 = vunpack.c.l.b16 %v318
      %v617 = vunpack.c.l.b16 %v320
      %v618 = vunpack.c.l.b16 %v321
      %v619 = vunpack.c.l.b16 %v322
      %v620 = vunpack.c.l.b16 %v323
      %v621 = vunpack.c.l.b16 %v325
      %v622 = vunpack.c.l.b16 %v326
      %v623 = vunpack.c.l.b16 %v327
      %v624 = vunpack.c.l.b16 %v328
      %v625 = vunpack.c.l.b16 %v330
      %v626 = vunpack.c.l.b16 %v331
      %v627 = vunpack.c.l.b16 %v332
      %v628 = vunpack.c.l.b16 %v333
      %v629 = vunpack.c.l.b16 %v335
      %v630 = vunpack.c.l.b16 %v336
      %v631 = vunpack.c.l.b16 %v337
      %v632 = vunpack.c.l.b16 %v338
      %v633 = vunpack.c.l.b16 %v340
      %v634 = vunpack.c.l.b16 %v341
      %v635 = vunpack.c.l.b16 %v342
      %v636 = vunpack.c.l.b16 %v343
      %v637 = vunpack.c.l.b16 %v345
      %v638 = vunpack.c.l.b16 %v346
      %v639 = vunpack.c.l.b16 %v347
      %v640 = vunpack.c.l.b16 %v348
      %v641 = vunpack.c.l.b16 %v350
      %v642 = vunpack.c.l.b16 %v351
      %v643 = vunpack.c.l.b16 %v352
      %v644 = vunpack.c.l.b16 %v353
      %v645 = vunpack.c.l.b16 %v355
      %v646 = vunpack.c.l.b16 %v356
      %v647 = vunpack.c.l.b16 %v357
      %v648 = vunpack.c.l.b16 %v358
      %v649 = vunpack.c.l.b16 %v360
      %v650 = vunpack.c.l.b16 %v361
      %v651 = vunpack.c.l.b16 %v362
      %v652 = vunpack.c.l.b16 %v363
      %v653 = vunpack.c.l.b16 %v365
      %v654 = vunpack.c.l.b16 %v366
      %v655 = vunpack.c.l.b16 %v367
      %v656 = vunpack.c.l.b16 %v368
      %v657 = vunpack.c.l.b16 %v370
      %v658 = vunpack.c.l.b16 %v371
      %v659 = vunpack.c.l.b16 %v372
      %v660 = vunpack.c.l.b16 %v373
      %v661 = vunpack.c.l.b16 %v375
      %v662 = vunpack.c.l.b16 %v376
      %v663 = vunpack.c.l.b16 %v377
      %v664 = vunpack.c.l.b16 %v378
      %v665 = vunpack.c.l.b16 %v380
      %v666 = vunpack.c.l.b16 %v381
      %v667 = vunpack.c.l.b16 %v382
      %v668 = vunpack.c.l.b16 %v383
      %v669 = vunpack.c.l.b16 %v385
      %v670 = vunpack.c.l.b16 %v386
      %v671 = vunpack.c.l.b16 %v387
      %v672 = vunpack.c.l.b16 %v388
      %v673 = vunpack.c.l.b16 %v390
      %v674 = vunpack.c.l.b16 %v391
      %v675 = vunpack.c.l.b16 %v392
      %v676 = vunpack.c.l.b16 %v393
      %v677 = vunpack.c.l.b16 %v395
      %v678 = vunpack.c.l.b16 %v396
      %v679 = vunpack.c.l.b16 %v397
      %v680 = vunpack.c.l.b16 %v398
      %v681 = vunpack.c.l.b16 %v400
      %v682 = vunpack.c.l.b16 %v401
      %v683 = vunpack.c.l.b16 %v402
      %v684 = vunpack.c.l.b16 %v403
      %v685 = vunpack.c.l.b16 %v405
      %v686 = vunpack.c.l.b16 %v406
      %v687 = vunpack.c.l.b16 %v407
      %v688 = vunpack.c.l.b16 %v408
      %v689 = vunpack.c.l.b16 %v410
      %v690 = vunpack.c.l.b16 %v411
      %v691 = vunpack.c.l.b16 %v412
      %v692 = vunpack.c.l.b16 %v413
      %v693 = vunpack.c.l.b16 %v415
      %v694 = vunpack.c.l.b16 %v416
      %v695 = vunpack.c.l.b16 %v417
      %v696 = vunpack.c.l.b16 %v418
      %v697 = vunpack.c.l.b16 %v420
      %v698 = vunpack.c.l.b16 %v421
      %v699 = vunpack.c.l.b16 %v422
      %v700 = vunpack.c.l.b16 %v423
      %v701 = vunpack.c.l.b16 %v425
      %v702 = vunpack.c.l.b16 %v426
      %v703 = vunpack.c.l.b16 %v427
      %v704 = vunpack.c.l.b16 %v428
      %v705 = vunpack.c.l.b16 %v430
      %v706 = vunpack.c.l.b16 %v431
      %v707 = vunpack.c.l.b16 %v432
      %v708 = vunpack.c.l.b16 %v433
      %v709 = vunpack.c.l.b16 %v435
      %v710 = vunpack.c.l.b16 %v436
      %v711 = vunpack.c.l.b16 %v437
      %v712 = vunpack.c.l.b16 %v438
      %v713 = vunpack.c.l.b16 %v440
      %v714 = vunpack.c.l.b16 %v441
      %v715 = vunpack.c.l.b16 %v442
      %v716 = vunpack.c.l.b16 %v443
      %v717 = vunpack.c.l.b16 %v445
      %v718 = vunpack.c.l.b16 %v446
      %v719 = vunpack.c.l.b16 %v447
      %v720 = vunpack.c.l.b16 %v448
      %v721 = vunpack.c.l.b16 %v450
      %v722 = vunpack.c.l.b16 %v451
      %v723 = vunpack.c.l.b16 %v452
      %v724 = vunpack.c.l.b16 %v453
      %v725 = vunpack.c.l.b16 %v455
      %v726 = vunpack.c.l.b16 %v456
      %v727 = vunpack.c.l.b16 %v457
      %v728 = vunpack.c.l.b16 %v458
      %v729 = vunpack.c.l.b16 %v460
      %v730 = vunpack.c.l.b16 %v461
      %v731 = vunpack.c.l.b16 %v462
      %v732 = vunpack.c.l.b16 %v463
      %v733 = vunpack.c.l.b16 %v465
      %v734 = vunpack.c.l.b16 %v466
      %v735 = vunpack.c.l.b16 %v467
      %v736 = vunpack.c.l.b16 %v468
      %v737 = vunpack.c.l.b16 %v470
      %v738 = vunpack.c.l.b16 %v471
      %v739 = vunpack.c.l.b16 %v472
      %v740 = vunpack.c.l.b16 %v473
      %v741 = vpack.c.b16 %v614, %v613
      %v742 = vpack.c.b16 %v616, %v615
      %v743 = vpack.c.b16 %v618, %v617
      %v744 = vpack.c.b16 %v620, %v619
      %v745 = vpack.c.b16 %v622, %v621
      %v746 = vpack.c.b16 %v624, %v623
      %v747 = vpack.c.b16 %v626, %v625
      %v748 = vpack.c.b16 %v628, %v627
      %v749 = vpack.c.b16 %v630, %v629
      %v750 = vpack.c.b16 %v632, %v631
      %v751 = vpack.c.b16 %v634, %v633
      %v752 = vpack.c.b16 %v636, %v635
      %v753 = vpack.c.b16 %v638, %v637
      %v754 = vpack.c.b16 %v640, %v639
      %v755 = vpack.c.b16 %v642, %v641
      %v756 = vpack.c.b16 %v644, %v643
      %v757 = vpack.c.b16 %v646, %v645
      %v758 = vpack.c.b16 %v648, %v647
      %v759 = vpack.c.b16 %v650, %v649
      %v760 = vpack.c.b16 %v652, %v651
      %v761 = vpack.c.b16 %v654, %v653
      %v762 = vpack.c.b16 %v656, %v655
      %v763 = vpack.c.b16 %v658, %v657
      %v764 = vpack.c.b16 %v660, %v659
      %v765 = vpack.c.b16 %v662, %v661
      %v766 = vpack.c.b16 %v664, %v663
      %v767 = vpack.c.b16 %v666, %v665
      %v768 = vpack.c.b16 %v668, %v667
      %v769 = vpack.c.b16 %v670, %v669
      %v770 = vpack.c.b16 %v672, %v671
      %v771 = vpack.c.b16 %v674, %v673
      %v772 = vpack.c.b16 %v676, %v675
      %v773 = vpack.c.b16 %v678, %v677
      %v774 = vpack.c.b16 %v680, %v679
      %v775 = vpack.c.b16 %v682, %v681
      %v776 = vpack.c.b16 %v684, %v683
      %v777 = vpack.c.b16 %v686, %v685
      %v778 = vpack.c.b16 %v688, %v687
      %v779 = vpack.c.b16 %v690, %v689
      %v780 = vpack.c.b16 %v692, %v691
      %v781 = vpack.c.b16 %v694, %v693
      %v782 = vpack.c.b16 %v696, %v695
      %v783 = vpack.c.b16 %v698, %v697
      %v784 = vpack.c.b16 %v700, %v699
      %v785 = vpack.c.b16 %v702, %v701
      %v786 = vpack.c.b16 %v704, %v703
      %v787 = vpack.c.b16 %v706, %v705
      %v788 = vpack.c.b16 %v708, %v707
      %v789 = vpack.c.b16 %v710, %v709
      %v790 = vpack.c.b16 %v712, %v711
      %v791 = vpack.c.b16 %v714, %v713
      %v792 = vpack.c.b16 %v716, %v715
      %v793 = vpack.c.b16 %v718, %v717
      %v794 = vpack.c.b16 %v720, %v719
      %v795 = vpack.c.b16 %v722, %v721
      %v796 = vpack.c.b16 %v724, %v723
      %v797 = vpack.c.b16 %v726, %v725
      %v798 = vpack.c.b16 %v728, %v727
      %v799 = vpack.c.b16 %v730, %v729
      %v800 = vpack.c.b16 %v732, %v731
      %v801 = vpack.c.b16 %v734, %v733
      %v802 = vpack.c.b16 %v736, %v735
      %v803 = vpack.c.b16 %v738, %v737
      %v804 = vpack.c.b16 %v740, %v739
      %v837 = vunpack.c.l.b16 %v319
      %v838 = vunpack.c.l.b16 %v324
      %v839 = vunpack.c.l.b16 %v329
      %v840 = vunpack.c.l.b16 %v334
      %v841 = vunpack.c.l.b16 %v339
      %v842 = vunpack.c.l.b16 %v344
      %v843 = vunpack.c.l.b16 %v349
      %v844 = vunpack.c.l.b16 %v354
      %v845 = vunpack.c.l.b16 %v359
      %v846 = vunpack.c.l.b16 %v364
      %v847 = vunpack.c.l.b16 %v369
      %v848 = vunpack.c.l.b16 %v374
      %v849 = vunpack.c.l.b16 %v379
      %v850 = vunpack.c.l.b16 %v384
      %v851 = vunpack.c.l.b16 %v389
      %v852 = vunpack.c.l.b16 %v394
      %v853 = vunpack.c.l.b16 %v399
      %v854 = vunpack.c.l.b16 %v404
      %v855 = vunpack.c.l.b16 %v409
      %v856 = vunpack.c.l.b16 %v414
      %v857 = vunpack.c.l.b16 %v419
      %v858 = vunpack.c.l.b16 %v424
      %v859 = vunpack.c.l.b16 %v429
      %v860 = vunpack.c.l.b16 %v434
      %v861 = vunpack.c.l.b16 %v439
      %v862 = vunpack.c.l.b16 %v444
      %v863 = vunpack.c.l.b16 %v449
      %v864 = vunpack.c.l.b16 %v454
      %v865 = vunpack.c.l.b16 %v459
      %v866 = vunpack.c.l.b16 %v464
      %v867 = vunpack.c.l.b16 %v469
      %v868 = vunpack.c.l.b16 %v474
      %v869 = vpack.c.b16 %v837, %v837
      %v870 = vpack.c.b16 %v838, %v838
      %v871 = vpack.c.b16 %v839, %v839
      %v872 = vpack.c.b16 %v840, %v840
      %v873 = vpack.c.b16 %v841, %v841
      %v874 = vpack.c.b16 %v842, %v842
      %v875 = vpack.c.b16 %v843, %v843
      %v876 = vpack.c.b16 %v844, %v844
      %v877 = vpack.c.b16 %v845, %v845
      %v878 = vpack.c.b16 %v846, %v846
      %v879 = vpack.c.b16 %v847, %v847
      %v880 = vpack.c.b16 %v848, %v848
      %v881 = vpack.c.b16 %v849, %v849
      %v882 = vpack.c.b16 %v850, %v850
      %v883 = vpack.c.b16 %v851, %v851
      %v884 = vpack.c.b16 %v852, %v852
      %v885 = vpack.c.b16 %v853, %v853
      %v886 = vpack.c.b16 %v854, %v854
      %v887 = vpack.c.b16 %v855, %v855
      %v888 = vpack.c.b16 %v856, %v856
      %v889 = vpack.c.b16 %v857, %v857
      %v890 = vpack.c.b16 %v858, %v858
      %v891 = vpack.c.b16 %v859, %v859
      %v892 = vpack.c.b16 %v860, %v860
      %v893 = vpack.c.b16 %v861, %v861
      %v894 = vpack.c.b16 %v862, %v862
      %v895 = vpack.c.b16 %v863, %v863
      %v896 = vpack.c.b16 %v864, %v864
      %v897 = vpack.c.b16 %v865, %v865
      %v898 = vpack.c.b16 %v866, %v866
      %v899 = vpack.c.b16 %v867, %v867
      %v900 = vpack.c.b16 %v868, %v868
      %vm901 = vsmask.f32 7424
      %v903 = vshrl.u32 %v741, 16
      %v905 = vshll.u32 %v741, 16
      %v907 = vrot.slane %v905, 1
      %v908 = vor.u32 %v903, %v907
      %v910 = vshll.u32 %v742, 16
      %v912 = vrot.slane %v910, 1
      %v913 = vsel %vm901, %v908, %v912
      %v914 = vshrl.u32 %v742, 16
      %v916 = vor.u32 %v914, %v912
      %v918 = vshll.u32 %v869, 16
      %v920 = vrot.slane %v918, 1
      %v921 = vsel %vm901, %v916, %v920
      %v923 = vshrl.u32 %v743, 16
      %v925 = vshll.u32 %v743, 16
      %v927 = vrot.slane %v925, 1
      %v928 = vor.u32 %v923, %v927
      %v930 = vshll.u32 %v744, 16
      %v932 = vrot.slane %v930, 1
      %v933 = vsel %vm901, %v928, %v932
      %v934 = vshrl.u32 %v744, 16
      %v936 = vor.u32 %v934, %v932
      %v938 = vshll.u32 %v870, 16
      %v940 = vrot.slane %v938, 1
      %v941 = vsel %vm901, %v936, %v940
      %v943 = vshrl.u32 %v745, 16
      %v945 = vshll.u32 %v745, 16
      %v947 = vrot.slane %v945, 1
      %v948 = vor.u32 %v943, %v947
      %v950 = vshll.u32 %v746, 16
      %v952 = vrot.slane %v950, 1
      %v953 = vsel %vm901, %v948, %v952
      %v954 = vshrl.u32 %v746, 16
      %v956 = vor.u32 %v954, %v952
      %v958 = vshll.u32 %v871, 16
      %v960 = vrot.slane %v958, 1
      %v961 = vsel %vm901, %v956, %v960
      %v963 = vshrl.u32 %v747, 16
      %v965 = vshll.u32 %v747, 16
      %v967 = vrot.slane %v965, 1
      %v968 = vor.u32 %v963, %v967
      %v970 = vshll.u32 %v748, 16
      %v972 = vrot.slane %v970, 1
      %v973 = vsel %vm901, %v968, %v972
      %v974 = vshrl.u32 %v748, 16
      %v976 = vor.u32 %v974, %v972
      %v978 = vshll.u32 %v872, 16
      %v980 = vrot.slane %v978, 1
      %v981 = vsel %vm901, %v976, %v980
      %v983 = vshrl.u32 %v749, 16
      %v985 = vshll.u32 %v749, 16
      %v987 = vrot.slane %v985, 1
      %v988 = vor.u32 %v983, %v987
      %v990 = vshll.u32 %v750, 16
      %v992 = vrot.slane %v990, 1
      %v993 = vsel %vm901, %v988, %v992
      %v994 = vshrl.u32 %v750, 16
      %v996 = vor.u32 %v994, %v992
      %v998 = vshll.u32 %v873, 16
      %v1000 = vrot.slane %v998, 1
      %v1001 = vsel %vm901, %v996, %v1000
      %v1003 = vshrl.u32 %v751, 16
      %v1005 = vshll.u32 %v751, 16
      %v1007 = vrot.slane %v1005, 1
      %v1008 = vor.u32 %v1003, %v1007
      %v1010 = vshll.u32 %v752, 16
      %v1012 = vrot.slane %v1010, 1
      %v1013 = vsel %vm901, %v1008, %v1012
      %v1014 = vshrl.u32 %v752, 16
      %v1016 = vor.u32 %v1014, %v1012
      %v1018 = vshll.u32 %v874, 16
      %v1020 = vrot.slane %v1018, 1
      %v1021 = vsel %vm901, %v1016, %v1020
      %v1023 = vshrl.u32 %v753, 16
      %v1025 = vshll.u32 %v753, 16
      %v1027 = vrot.slane %v1025, 1
      %v1028 = vor.u32 %v1023, %v1027
      %v1030 = vshll.u32 %v754, 16
      %v1032 = vrot.slane %v1030, 1
      %v1033 = vsel %vm901, %v1028, %v1032
      %v1034 = vshrl.u32 %v754, 16
      %v1036 = vor.u32 %v1034, %v1032
      %v1038 = vshll.u32 %v875, 16
      %v1040 = vrot.slane %v1038, 1
      %v1041 = vsel %vm901, %v1036, %v1040
      %v1043 = vshrl.u32 %v755, 16
      %v1045 = vshll.u32 %v755, 16
      %v1047 = vrot.slane %v1045, 1
      %v1048 = vor.u32 %v1043, %v1047
      %v1050 = vshll.u32 %v756, 16
      %v1052 = vrot.slane %v1050, 1
      %v1053 = vsel %vm901, %v1048, %v1052
      %v1054 = vshrl.u32 %v756, 16
      %v1056 = vor.u32 %v1054, %v1052
      %v1058 = vshll.u32 %v876, 16
      %v1060 = vrot.slane %v1058, 1
      %v1061 = vsel %vm901, %v1056, %v1060
      %v1063 = vshrl.u32 %v757, 16
      %v1065 = vshll.u32 %v757, 16
      %v1067 = vrot.slane %v1065, 1
      %v1068 = vor.u32 %v1063, %v1067
      %v1070 = vshll.u32 %v758, 16
      %v1072 = vrot.slane %v1070, 1
      %v1073 = vsel %vm901, %v1068, %v1072
      %v1074 = vshrl.u32 %v758, 16
      %v1076 = vor.u32 %v1074, %v1072
      %v1078 = vshll.u32 %v877, 16
      %v1080 = vrot.slane %v1078, 1
      %v1081 = vsel %vm901, %v1076, %v1080
      %v1083 = vshrl.u32 %v759, 16
      %v1085 = vshll.u32 %v759, 16
      %v1087 = vrot.slane %v1085, 1
      %v1088 = vor.u32 %v1083, %v1087
      %v1090 = vshll.u32 %v760, 16
      %v1092 = vrot.slane %v1090, 1
      %v1093 = vsel %vm901, %v1088, %v1092
      %v1094 = vshrl.u32 %v760, 16
      %v1096 = vor.u32 %v1094, %v1092
      %v1098 = vshll.u32 %v878, 16
      %v1100 = vrot.slane %v1098, 1
      %v1101 = vsel %vm901, %v1096, %v1100
      %v1103 = vshrl.u32 %v761, 16
      %v1105 = vshll.u32 %v761, 16
      %v1107 = vrot.slane %v1105, 1
      %v1108 = vor.u32 %v1103, %v1107
      %v1110 = vshll.u32 %v762, 16
      %v1112 = vrot.slane %v1110, 1
      %v1113 = vsel %vm901, %v1108, %v1112
      %v1114 = vshrl.u32 %v762, 16
      %v1116 = vor.u32 %v1114, %v1112
      %v1118 = vshll.u32 %v879, 16
      %v1120 = vrot.slane %v1118, 1
      %v1121 = vsel %vm901, %v1116, %v1120
      %v1123 = vshrl.u32 %v763, 16
      %v1125 = vshll.u32 %v763, 16
      %v1127 = vrot.slane %v1125, 1
      %v1128 = vor.u32 %v1123, %v1127
      %v1130 = vshll.u32 %v764, 16
      %v1132 = vrot.slane %v1130, 1
      %v1133 = vsel %vm901, %v1128, %v1132
      %v1134 = vshrl.u32 %v764, 16
      %v1136 = vor.u32 %v1134, %v1132
      %v1138 = vshll.u32 %v880, 16
      %v1140 = vrot.slane %v1138, 1
      %v1141 = vsel %vm901, %v1136, %v1140
      %v1143 = vshrl.u32 %v765, 16
      %v1145 = vshll.u32 %v765, 16
      %v1147 = vrot.slane %v1145, 1
      %v1148 = vor.u32 %v1143, %v1147
      %v1150 = vshll.u32 %v766, 16
      %v1152 = vrot.slane %v1150, 1
      %v1153 = vsel %vm901, %v1148, %v1152
      %v1154 = vshrl.u32 %v766, 16
      %v1156 = vor.u32 %v1154, %v1152
      %v1158 = vshll.u32 %v881, 16
      %v1160 = vrot.slane %v1158, 1
      %v1161 = vsel %vm901, %v1156, %v1160
      %v1163 = vshrl.u32 %v767, 16
      %v1165 = vshll.u32 %v767, 16
      %v1167 = vrot.slane %v1165, 1
      %v1168 = vor.u32 %v1163, %v1167
      %v1170 = vshll.u32 %v768, 16
      %v1172 = vrot.slane %v1170, 1
      %v1173 = vsel %vm901, %v1168, %v1172
      %v1174 = vshrl.u32 %v768, 16
      %v1176 = vor.u32 %v1174, %v1172
      %v1178 = vshll.u32 %v882, 16
      %v1180 = vrot.slane %v1178, 1
      %v1181 = vsel %vm901, %v1176, %v1180
      %v1183 = vshrl.u32 %v769, 16
      %v1185 = vshll.u32 %v769, 16
      %v1187 = vrot.slane %v1185, 1
      %v1188 = vor.u32 %v1183, %v1187
      %v1190 = vshll.u32 %v770, 16
      %v1192 = vrot.slane %v1190, 1
      %v1193 = vsel %vm901, %v1188, %v1192
      %v1194 = vshrl.u32 %v770, 16
      %v1196 = vor.u32 %v1194, %v1192
      %v1198 = vshll.u32 %v883, 16
      %v1200 = vrot.slane %v1198, 1
      %v1201 = vsel %vm901, %v1196, %v1200
      %v1203 = vshrl.u32 %v771, 16
      %v1205 = vshll.u32 %v771, 16
      %v1207 = vrot.slane %v1205, 1
      %v1208 = vor.u32 %v1203, %v1207
      %v1210 = vshll.u32 %v772, 16
      %v1212 = vrot.slane %v1210, 1
      %v1213 = vsel %vm901, %v1208, %v1212
      %v1214 = vshrl.u32 %v772, 16
      %v1216 = vor.u32 %v1214, %v1212
      %v1218 = vshll.u32 %v884, 16
      %v1220 = vrot.slane %v1218, 1
      %v1221 = vsel %vm901, %v1216, %v1220
      %v1223 = vshrl.u32 %v773, 16
      %v1225 = vshll.u32 %v773, 16
      %v1227 = vrot.slane %v1225, 1
      %v1228 = vor.u32 %v1223, %v1227
      %v1230 = vshll.u32 %v774, 16
      %v1232 = vrot.slane %v1230, 1
      %v1233 = vsel %vm901, %v1228, %v1232
      %v1234 = vshrl.u32 %v774, 16
      %v1236 = vor.u32 %v1234, %v1232
      %v1238 = vshll.u32 %v885, 16
      %v1240 = vrot.slane %v1238, 1
      %v1241 = vsel %vm901, %v1236, %v1240
      %v1243 = vshrl.u32 %v775, 16
      %v1245 = vshll.u32 %v775, 16
      %v1247 = vrot.slane %v1245, 1
      %v1248 = vor.u32 %v1243, %v1247
      %v1250 = vshll.u32 %v776, 16
      %v1252 = vrot.slane %v1250, 1
      %v1253 = vsel %vm901, %v1248, %v1252
      %v1254 = vshrl.u32 %v776, 16
      %v1256 = vor.u32 %v1254, %v1252
      %v1258 = vshll.u32 %v886, 16
      %v1260 = vrot.slane %v1258, 1
      %v1261 = vsel %vm901, %v1256, %v1260
      %v1263 = vshrl.u32 %v777, 16
      %v1265 = vshll.u32 %v777, 16
      %v1267 = vrot.slane %v1265, 1
      %v1268 = vor.u32 %v1263, %v1267
      %v1270 = vshll.u32 %v778, 16
      %v1272 = vrot.slane %v1270, 1
      %v1273 = vsel %vm901, %v1268, %v1272
      %v1274 = vshrl.u32 %v778, 16
      %v1276 = vor.u32 %v1274, %v1272
      %v1278 = vshll.u32 %v887, 16
      %v1280 = vrot.slane %v1278, 1
      %v1281 = vsel %vm901, %v1276, %v1280
      %v1283 = vshrl.u32 %v779, 16
      %v1285 = vshll.u32 %v779, 16
      %v1287 = vrot.slane %v1285, 1
      %v1288 = vor.u32 %v1283, %v1287
      %v1290 = vshll.u32 %v780, 16
      %v1292 = vrot.slane %v1290, 1
      %v1293 = vsel %vm901, %v1288, %v1292
      %v1294 = vshrl.u32 %v780, 16
      %v1296 = vor.u32 %v1294, %v1292
      %v1298 = vshll.u32 %v888, 16
      %v1300 = vrot.slane %v1298, 1
      %v1301 = vsel %vm901, %v1296, %v1300
      %v1303 = vshrl.u32 %v781, 16
      %v1305 = vshll.u32 %v781, 16
      %v1307 = vrot.slane %v1305, 1
      %v1308 = vor.u32 %v1303, %v1307
      %v1310 = vshll.u32 %v782, 16
      %v1312 = vrot.slane %v1310, 1
      %v1313 = vsel %vm901, %v1308, %v1312
      %v1314 = vshrl.u32 %v782, 16
      %v1316 = vor.u32 %v1314, %v1312
      %v1318 = vshll.u32 %v889, 16
      %v1320 = vrot.slane %v1318, 1
      %v1321 = vsel %vm901, %v1316, %v1320
      %v1323 = vshrl.u32 %v783, 16
      %v1325 = vshll.u32 %v783, 16
      %v1327 = vrot.slane %v1325, 1
      %v1328 = vor.u32 %v1323, %v1327
      %v1330 = vshll.u32 %v784, 16
      %v1332 = vrot.slane %v1330, 1
      %v1333 = vsel %vm901, %v1328, %v1332
      %v1334 = vshrl.u32 %v784, 16
      %v1336 = vor.u32 %v1334, %v1332
      %v1338 = vshll.u32 %v890, 16
      %v1340 = vrot.slane %v1338, 1
      %v1341 = vsel %vm901, %v1336, %v1340
      %v1343 = vshrl.u32 %v785, 16
      %v1345 = vshll.u32 %v785, 16
      %v1347 = vrot.slane %v1345, 1
      %v1348 = vor.u32 %v1343, %v1347
      %v1350 = vshll.u32 %v786, 16
      %v1352 = vrot.slane %v1350, 1
      %v1353 = vsel %vm901, %v1348, %v1352
      %v1354 = vshrl.u32 %v786, 16
      %v1356 = vor.u32 %v1354, %v1352
      %v1358 = vshll.u32 %v891, 16
      %v1360 = vrot.slane %v1358, 1
      %v1361 = vsel %vm901, %v1356, %v1360
      %v1363 = vshrl.u32 %v787, 16
      %v1365 = vshll.u32 %v787, 16
      %v1367 = vrot.slane %v1365, 1
      %v1368 = vor.u32 %v1363, %v1367
      %v1370 = vshll.u32 %v788, 16
      %v1372 = vrot.slane %v1370, 1
      %v1373 = vsel %vm901, %v1368, %v1372
      %v1374 = vshrl.u32 %v788, 16
      %v1376 = vor.u32 %v1374, %v1372
      %v1378 = vshll.u32 %v892, 16
      %v1380 = vrot.slane %v1378, 1
      %v1381 = vsel %vm901, %v1376, %v1380
      %v1383 = vshrl.u32 %v789, 16
      %v1385 = vshll.u32 %v789, 16
      %v1387 = vrot.slane %v1385, 1
      %v1388 = vor.u32 %v1383, %v1387
      %v1390 = vshll.u32 %v790, 16
      %v1392 = vrot.slane %v1390, 1
      %v1393 = vsel %vm901, %v1388, %v1392
      %v1394 = vshrl.u32 %v790, 16
      %v1396 = vor.u32 %v1394, %v1392
      %v1398 = vshll.u32 %v893, 16
      %v1400 = vrot.slane %v1398, 1
      %v1401 = vsel %vm901, %v1396, %v1400
      %v1403 = vshrl.u32 %v791, 16
      %v1405 = vshll.u32 %v791, 16
      %v1407 = vrot.slane %v1405, 1
      %v1408 = vor.u32 %v1403, %v1407
      %v1410 = vshll.u32 %v792, 16
      %v1412 = vrot.slane %v1410, 1
      %v1413 = vsel %vm901, %v1408, %v1412
      %v1414 = vshrl.u32 %v792, 16
      %v1416 = vor.u32 %v1414, %v1412
      %v1418 = vshll.u32 %v894, 16
      %v1420 = vrot.slane %v1418, 1
      %v1421 = vsel %vm901, %v1416, %v1420
      %v1423 = vshrl.u32 %v793, 16
      %v1425 = vshll.u32 %v793, 16
      %v1427 = vrot.slane %v1425, 1
      %v1428 = vor.u32 %v1423, %v1427
      %v1430 = vshll.u32 %v794, 16
      %v1432 = vrot.slane %v1430, 1
      %v1433 = vsel %vm901, %v1428, %v1432
      %v1434 = vshrl.u32 %v794, 16
      %v1436 = vor.u32 %v1434, %v1432
      %v1438 = vshll.u32 %v895, 16
      %v1440 = vrot.slane %v1438, 1
      %v1441 = vsel %vm901, %v1436, %v1440
      %v1443 = vshrl.u32 %v795, 16
      %v1445 = vshll.u32 %v795, 16
      %v1447 = vrot.slane %v1445, 1
      %v1448 = vor.u32 %v1443, %v1447
      %v1450 = vshll.u32 %v796, 16
      %v1452 = vrot.slane %v1450, 1
      %v1453 = vsel %vm901, %v1448, %v1452
      %v1454 = vshrl.u32 %v796, 16
      %v1456 = vor.u32 %v1454, %v1452
      %v1458 = vshll.u32 %v896, 16
      %v1460 = vrot.slane %v1458, 1
      %v1461 = vsel %vm901, %v1456, %v1460
      %v1463 = vshrl.u32 %v797, 16
      %v1465 = vshll.u32 %v797, 16
      %v1467 = vrot.slane %v1465, 1
      %v1468 = vor.u32 %v1463, %v1467
      %v1470 = vshll.u32 %v798, 16
      %v1472 = vrot.slane %v1470, 1
      %v1473 = vsel %vm901, %v1468, %v1472
      %v1474 = vshrl.u32 %v798, 16
      %v1476 = vor.u32 %v1474, %v1472
      %v1478 = vshll.u32 %v897, 16
      %v1480 = vrot.slane %v1478, 1
      %v1481 = vsel %vm901, %v1476, %v1480
      %v1483 = vshrl.u32 %v799, 16
      %v1485 = vshll.u32 %v799, 16
      %v1487 = vrot.slane %v1485, 1
      %v1488 = vor.u32 %v1483, %v1487
      %v1490 = vshll.u32 %v800, 16
      %v1492 = vrot.slane %v1490, 1
      %v1493 = vsel %vm901, %v1488, %v1492
      %v1494 = vshrl.u32 %v800, 16
      %v1496 = vor.u32 %v1494, %v1492
      %v1498 = vshll.u32 %v898, 16
      %v1500 = vrot.slane %v1498, 1
      %v1501 = vsel %vm901, %v1496, %v1500
      %v1503 = vshrl.u32 %v801, 16
      %v1505 = vshll.u32 %v801, 16
      %v1507 = vrot.slane %v1505, 1
      %v1508 = vor.u32 %v1503, %v1507
      %v1510 = vshll.u32 %v802, 16
      %v1512 = vrot.slane %v1510, 1
      %v1513 = vsel %vm901, %v1508, %v1512
      %v1514 = vshrl.u32 %v802, 16
      %v1516 = vor.u32 %v1514, %v1512
      %v1518 = vshll.u32 %v899, 16
      %v1520 = vrot.slane %v1518, 1
      %v1521 = vsel %vm901, %v1516, %v1520
      %v1523 = vshrl.u32 %v803, 16
      %v1525 = vshll.u32 %v803, 16
      %v1527 = vrot.slane %v1525, 1
      %v1528 = vor.u32 %v1523, %v1527
      %v1530 = vshll.u32 %v804, 16
      %v1532 = vrot.slane %v1530, 1
      %v1533 = vsel %vm901, %v1528, %v1532
      %v1534 = vshrl.u32 %v804, 16
      %v1536 = vor.u32 %v1534, %v1532
      %v1538 = vshll.u32 %v900, 16
      %v1540 = vrot.slane %v1538, 1
      %v1541 = vsel %vm901, %v1536, %v1540
      %1542 = vrot.lane.b32.xlu0 %v913, 8
      %v1543 = vpop.permute.xlu0 %1542
      %1544 = vrot.lane.b32.xlu0 %v921, 8
      %v1545 = vpop.permute.xlu0 %1544
      %1546 = vrot.lane.b32.xlu0 %v933, 8
      %v1547 = vpop.permute.xlu0 %1546
      %1548 = vrot.lane.b32.xlu0 %v941, 8
      %v1549 = vpop.permute.xlu0 %1548
      %1550 = vrot.lane.b32.xlu0 %v953, 8
      %v1551 = vpop.permute.xlu0 %1550
      %1552 = vrot.lane.b32.xlu0 %v961, 8
      %v1553 = vpop.permute.xlu0 %1552
      %1554 = vrot.lane.b32.xlu0 %v973, 8
      %v1555 = vpop.permute.xlu0 %1554
      %1556 = vrot.lane.b32.xlu0 %v981, 8
      %v1557 = vpop.permute.xlu0 %1556
      %1558 = vrot.lane.b32.xlu0 %v993, 8
      %v1559 = vpop.permute.xlu0 %1558
      %1560 = vrot.lane.b32.xlu0 %v1001, 8
      %v1561 = vpop.permute.xlu0 %1560
      %1562 = vrot.lane.b32.xlu0 %v1013, 8
      %v1563 = vpop.permute.xlu0 %1562
      %1564 = vrot.lane.b32.xlu0 %v1021, 8
      %v1565 = vpop.permute.xlu0 %1564
      %1566 = vrot.lane.b32.xlu0 %v1033, 8
      %v1567 = vpop.permute.xlu0 %1566
      %1568 = vrot.lane.b32.xlu0 %v1041, 8
      %v1569 = vpop.permute.xlu0 %1568
      %1570 = vrot.lane.b32.xlu0 %v1053, 8
      %v1571 = vpop.permute.xlu0 %1570
      %1572 = vrot.lane.b32.xlu0 %v1061, 8
      %v1573 = vpop.permute.xlu0 %1572
      %1574 = vrot.lane.b32.xlu0 %v1073, 8
      %v1575 = vpop.permute.xlu0 %1574
      %1576 = vrot.lane.b32.xlu0 %v1081, 8
      %v1577 = vpop.permute.xlu0 %1576
      %1578 = vrot.lane.b32.xlu0 %v1093, 8
      %v1579 = vpop.permute.xlu0 %1578
      %1580 = vrot.lane.b32.xlu0 %v1101, 8
      %v1581 = vpop.permute.xlu0 %1580
      %1582 = vrot.lane.b32.xlu0 %v1113, 8
      %v1583 = vpop.permute.xlu0 %1582
      %1584 = vrot.lane.b32.xlu0 %v1121, 8
      %v1585 = vpop.permute.xlu0 %1584
      %1586 = vrot.lane.b32.xlu0 %v1133, 8
      %v1587 = vpop.permute.xlu0 %1586
      %1588 = vrot.lane.b32.xlu0 %v1141, 8
      %v1589 = vpop.permute.xlu0 %1588
      %1590 = vrot.lane.b32.xlu0 %v1153, 8
      %v1591 = vpop.permute.xlu0 %1590
      %1592 = vrot.lane.b32.xlu0 %v1161, 8
      %v1593 = vpop.permute.xlu0 %1592
      %1594 = vrot.lane.b32.xlu0 %v1173, 8
      %v1595 = vpop.permute.xlu0 %1594
      %1596 = vrot.lane.b32.xlu0 %v1181, 8
      %v1597 = vpop.permute.xlu0 %1596
      %1598 = vrot.lane.b32.xlu0 %v1193, 8
      %v1599 = vpop.permute.xlu0 %1598
      %1600 = vrot.lane.b32.xlu0 %v1201, 8
      %v1601 = vpop.permute.xlu0 %1600
      %1602 = vrot.lane.b32.xlu0 %v1213, 8
      %v1603 = vpop.permute.xlu0 %1602
      %1604 = vrot.lane.b32.xlu0 %v1221, 8
      %v1605 = vpop.permute.xlu0 %1604
      %1606 = vrot.lane.b32.xlu0 %v1233, 8
      %v1607 = vpop.permute.xlu0 %1606
      %1608 = vrot.lane.b32.xlu0 %v1241, 8
      %v1609 = vpop.permute.xlu0 %1608
      %1610 = vrot.lane.b32.xlu0 %v1253, 8
      %v1611 = vpop.permute.xlu0 %1610
      %1612 = vrot.lane.b32.xlu0 %v1261, 8
      %v1613 = vpop.permute.xlu0 %1612
      %1614 = vrot.lane.b32.xlu0 %v1273, 8
      %v1615 = vpop.permute.xlu0 %1614
      %1616 = vrot.lane.b32.xlu0 %v1281, 8
      %v1617 = vpop.permute.xlu0 %1616
      %1618 = vrot.lane.b32.xlu0 %v1293, 8
      %v1619 = vpop.permute.xlu0 %1618
      %1620 = vrot.lane.b32.xlu0 %v1301, 8
      %v1621 = vpop.permute.xlu0 %1620
      %1622 = vrot.lane.b32.xlu0 %v1313, 8
      %v1623 = vpop.permute.xlu0 %1622
      %1624 = vrot.lane.b32.xlu0 %v1321, 8
      %v1625 = vpop.permute.xlu0 %1624
      %1626 = vrot.lane.b32.xlu0 %v1333, 8
      %v1627 = vpop.permute.xlu0 %1626
      %1628 = vrot.lane.b32.xlu0 %v1341, 8
      %v1629 = vpop.permute.xlu0 %1628
      %1630 = vrot.lane.b32.xlu0 %v1353, 8
      %v1631 = vpop.permute.xlu0 %1630
      %1632 = vrot.lane.b32.xlu0 %v1361, 8
      %v1633 = vpop.permute.xlu0 %1632
      %1634 = vrot.lane.b32.xlu0 %v1373, 8
      %v1635 = vpop.permute.xlu0 %1634
      %1636 = vrot.lane.b32.xlu0 %v1381, 8
      %v1637 = vpop.permute.xlu0 %1636
      %1638 = vrot.lane.b32.xlu0 %v1393, 8
      %v1639 = vpop.permute.xlu0 %1638
      %1640 = vrot.lane.b32.xlu0 %v1401, 8
      %v1641 = vpop.permute.xlu0 %1640
      %1642 = vrot.lane.b32.xlu0 %v1413, 8
      %v1643 = vpop.permute.xlu0 %1642
      %1644 = vrot.lane.b32.xlu0 %v1421, 8
      %v1645 = vpop.permute.xlu0 %1644
      %1646 = vrot.lane.b32.xlu0 %v1433, 8
      %v1647 = vpop.permute.xlu0 %1646
      %1648 = vrot.lane.b32.xlu0 %v1441, 8
      %v1649 = vpop.permute.xlu0 %1648
      %1650 = vrot.lane.b32.xlu0 %v1453, 8
      %v1651 = vpop.permute.xlu0 %1650
      %1652 = vrot.lane.b32.xlu0 %v1461, 8
      %v1653 = vpop.permute.xlu0 %1652
      %1654 = vrot.lane.b32.xlu0 %v1473, 8
      %v1655 = vpop.permute.xlu0 %1654
      %1656 = vrot.lane.b32.xlu0 %v1481, 8
      %v1657 = vpop.permute.xlu0 %1656
      %1658 = vrot.lane.b32.xlu0 %v1493, 8
      %v1659 = vpop.permute.xlu0 %1658
      %1660 = vrot.lane.b32.xlu0 %v1501, 8
      %v1661 = vpop.permute.xlu0 %1660
      %1662 = vrot.lane.b32.xlu0 %v1513, 8
      %v1663 = vpop.permute.xlu0 %1662
      %1664 = vrot.lane.b32.xlu0 %v1521, 8
      %v1665 = vpop.permute.xlu0 %1664
      %1666 = vrot.lane.b32.xlu0 %v1533, 8
      %v1667 = vpop.permute.xlu0 %1666
      %1668 = vrot.lane.b32.xlu0 %v1541, 8
      %v1669 = vpop.permute.xlu0 %1668
      %v1674 = vunpack.c.l.b16 %v475
      %v1675 = vunpack.c.l.b16 %v476
      %v1676 = vunpack.c.l.b16 %v477
      %v1677 = vunpack.c.l.b16 %v478
      %v1678 = vpack.c.b16 %v1675, %v1674
      %v1679 = vpack.c.b16 %v1677, %v1676
      %1680 = vrot.lane.b32.xlu0 %v743, 16
      %v1681 = vpop.permute.xlu0 %1680
      %1682 = vrot.lane.b32.xlu0 %v744, 16
      %v1683 = vpop.permute.xlu0 %1682
      %1684 = vrot.lane.b32.xlu0 %v745, 16
      %v1685 = vpop.permute.xlu0 %1684
      %1686 = vrot.lane.b32.xlu0 %v746, 16
      %v1687 = vpop.permute.xlu0 %1686
      %1688 = vrot.lane.b32.xlu0 %v747, 16
      %v1689 = vpop.permute.xlu0 %1688
      %1690 = vrot.lane.b32.xlu0 %v748, 16
      %v1691 = vpop.permute.xlu0 %1690
      %1692 = vrot.lane.b32.xlu0 %v749, 16
      %v1693 = vpop.permute.xlu0 %1692
      %1694 = vrot.lane.b32.xlu0 %v750, 16
      %v1695 = vpop.permute.xlu0 %1694
      %1696 = vrot.lane.b32.xlu0 %v751, 16
      %v1697 = vpop.permute.xlu0 %1696
      %1698 = vrot.lane.b32.xlu0 %v752, 16
      %v1699 = vpop.permute.xlu0 %1698
      %1700 = vrot.lane.b32.xlu0 %v753, 16
      %v1701 = vpop.permute.xlu0 %1700
      %1702 = vrot.lane.b32.xlu0 %v754, 16
      %v1703 = vpop.permute.xlu0 %1702
      %1704 = vrot.lane.b32.xlu0 %v755, 16
      %v1705 = vpop.permute.xlu0 %1704
      %1706 = vrot.lane.b32.xlu0 %v756, 16
      %v1707 = vpop.permute.xlu0 %1706
      %1708 = vrot.lane.b32.xlu0 %v757, 16
      %v1709 = vpop.permute.xlu0 %1708
      %1710 = vrot.lane.b32.xlu0 %v758, 16
      %v1711 = vpop.permute.xlu0 %1710
      %1712 = vrot.lane.b32.xlu0 %v759, 16
      %v1713 = vpop.permute.xlu0 %1712
      %1714 = vrot.lane.b32.xlu0 %v760, 16
      %v1715 = vpop.permute.xlu0 %1714
      %1716 = vrot.lane.b32.xlu0 %v761, 16
      %v1717 = vpop.permute.xlu0 %1716
      %1718 = vrot.lane.b32.xlu0 %v762, 16
      %v1719 = vpop.permute.xlu0 %1718
      %1720 = vrot.lane.b32.xlu0 %v763, 16
      %v1721 = vpop.permute.xlu0 %1720
      %1722 = vrot.lane.b32.xlu0 %v764, 16
      %v1723 = vpop.permute.xlu0 %1722
      %1724 = vrot.lane.b32.xlu0 %v765, 16
      %v1725 = vpop.permute.xlu0 %1724
      %1726 = vrot.lane.b32.xlu0 %v766, 16
      %v1727 = vpop.permute.xlu0 %1726
      %1728 = vrot.lane.b32.xlu0 %v767, 16
      %v1729 = vpop.permute.xlu0 %1728
      %1730 = vrot.lane.b32.xlu0 %v768, 16
      %v1731 = vpop.permute.xlu0 %1730
      %1732 = vrot.lane.b32.xlu0 %v769, 16
      %v1733 = vpop.permute.xlu0 %1732
      %1734 = vrot.lane.b32.xlu0 %v770, 16
      %v1735 = vpop.permute.xlu0 %1734
      %1736 = vrot.lane.b32.xlu0 %v771, 16
      %v1737 = vpop.permute.xlu0 %1736
      %1738 = vrot.lane.b32.xlu0 %v772, 16
      %v1739 = vpop.permute.xlu0 %1738
      %1740 = vrot.lane.b32.xlu0 %v773, 16
      %v1741 = vpop.permute.xlu0 %1740
      %1742 = vrot.lane.b32.xlu0 %v774, 16
      %v1743 = vpop.permute.xlu0 %1742
      %1744 = vrot.lane.b32.xlu0 %v775, 16
      %v1745 = vpop.permute.xlu0 %1744
      %1746 = vrot.lane.b32.xlu0 %v776, 16
      %v1747 = vpop.permute.xlu0 %1746
      %1748 = vrot.lane.b32.xlu0 %v777, 16
      %v1749 = vpop.permute.xlu0 %1748
      %1750 = vrot.lane.b32.xlu0 %v778, 16
      %v1751 = vpop.permute.xlu0 %1750
      %1752 = vrot.lane.b32.xlu0 %v779, 16
      %v1753 = vpop.permute.xlu0 %1752
      %1754 = vrot.lane.b32.xlu0 %v780, 16
      %v1755 = vpop.permute.xlu0 %1754
      %1756 = vrot.lane.b32.xlu0 %v781, 16
      %v1757 = vpop.permute.xlu0 %1756
      %1758 = vrot.lane.b32.xlu0 %v782, 16
      %v1759 = vpop.permute.xlu0 %1758
      %1760 = vrot.lane.b32.xlu0 %v783, 16
      %v1761 = vpop.permute.xlu0 %1760
      %1762 = vrot.lane.b32.xlu0 %v784, 16
      %v1763 = vpop.permute.xlu0 %1762
      %1764 = vrot.lane.b32.xlu0 %v785, 16
      %v1765 = vpop.permute.xlu0 %1764
      %1766 = vrot.lane.b32.xlu0 %v786, 16
      %v1767 = vpop.permute.xlu0 %1766
      %1768 = vrot.lane.b32.xlu0 %v787, 16
      %v1769 = vpop.permute.xlu0 %1768
      %1770 = vrot.lane.b32.xlu0 %v788, 16
      %v1771 = vpop.permute.xlu0 %1770
      %1772 = vrot.lane.b32.xlu0 %v789, 16
      %v1773 = vpop.permute.xlu0 %1772
      %1774 = vrot.lane.b32.xlu0 %v790, 16
      %v1775 = vpop.permute.xlu0 %1774
      %1776 = vrot.lane.b32.xlu0 %v791, 16
      %v1777 = vpop.permute.xlu0 %1776
      %1778 = vrot.lane.b32.xlu0 %v792, 16
      %v1779 = vpop.permute.xlu0 %1778
      %1780 = vrot.lane.b32.xlu0 %v793, 16
      %v1781 = vpop.permute.xlu0 %1780
      %1782 = vrot.lane.b32.xlu0 %v794, 16
      %v1783 = vpop.permute.xlu0 %1782
      %1784 = vrot.lane.b32.xlu0 %v795, 16
      %v1785 = vpop.permute.xlu0 %1784
      %1786 = vrot.lane.b32.xlu0 %v796, 16
      %v1787 = vpop.permute.xlu0 %1786
      %1788 = vrot.lane.b32.xlu0 %v797, 16
      %v1789 = vpop.permute.xlu0 %1788
      %1790 = vrot.lane.b32.xlu0 %v798, 16
      %v1791 = vpop.permute.xlu0 %1790
      %1792 = vrot.lane.b32.xlu0 %v799, 16
      %v1793 = vpop.permute.xlu0 %1792
      %1794 = vrot.lane.b32.xlu0 %v800, 16
      %v1795 = vpop.permute.xlu0 %1794
      %1796 = vrot.lane.b32.xlu0 %v801, 16
      %v1797 = vpop.permute.xlu0 %1796
      %1798 = vrot.lane.b32.xlu0 %v802, 16
      %v1799 = vpop.permute.xlu0 %1798
      %1800 = vrot.lane.b32.xlu0 %v803, 16
      %v1801 = vpop.permute.xlu0 %1800
      %1802 = vrot.lane.b32.xlu0 %v804, 16
      %v1803 = vpop.permute.xlu0 %1802
      %1804 = vrot.lane.b32.xlu0 %v1678, 16
      %v1805 = vpop.permute.xlu0 %1804
      %1806 = vrot.lane.b32.xlu0 %v1679, 16
      %v1807 = vpop.permute.xlu0 %1806
      %v1809 = vunpack.c.l.b16 %v479
      %v1810 = vpack.c.b16 %v1809, %v1809
      %v1812 = vshrl.u32 %v1678, 16
      %v1814 = vshll.u32 %v1678, 16
      %v1816 = vrot.slane %v1814, 1
      %v1817 = vor.u32 %v1812, %v1816
      %v1819 = vshll.u32 %v1679, 16
      %v1821 = vrot.slane %v1819, 1
      %v1822 = vsel %vm901, %v1817, %v1821
      %v1823 = vshrl.u32 %v1679, 16
      %v1825 = vor.u32 %v1823, %v1821
      %v1827 = vshll.u32 %v1810, 16
      %v1829 = vrot.slane %v1827, 1
      %v1830 = vsel %vm901, %v1825, %v1829
      %1831 = vrot.lane.b32.xlu0 %v933, 24
      %v1832 = vpop.permute.xlu0 %1831
      %1833 = vrot.lane.b32.xlu0 %v941, 24
      %v1834 = vpop.permute.xlu0 %1833
      %1835 = vrot.lane.b32.xlu0 %v953, 24
      %v1836 = vpop.permute.xlu0 %1835
      %1837 = vrot.lane.b32.xlu0 %v961, 24
      %v1838 = vpop.permute.xlu0 %1837
      %1839 = vrot.lane.b32.xlu0 %v973, 24
      %v1840 = vpop.permute.xlu0 %1839
      %1841 = vrot.lane.b32.xlu0 %v981, 24
      %v1842 = vpop.permute.xlu0 %1841
      %1843 = vrot.lane.b32.xlu0 %v993, 24
      %v1844 = vpop.permute.xlu0 %1843
      %1845 = vrot.lane.b32.xlu0 %v1001, 24
      %v1846 = vpop.permute.xlu0 %1845
      %1847 = vrot.lane.b32.xlu0 %v1013, 24
      %v1848 = vpop.permute.xlu0 %1847
      %1849 = vrot.lane.b32.xlu0 %v1021, 24
      %v1850 = vpop.permute.xlu0 %1849
      %1851 = vrot.lane.b32.xlu0 %v1033, 24
      %v1852 = vpop.permute.xlu0 %1851
      %1853 = vrot.lane.b32.xlu0 %v1041, 24
      %v1854 = vpop.permute.xlu0 %1853
      %1855 = vrot.lane.b32.xlu0 %v1053, 24
      %v1856 = vpop.permute.xlu0 %1855
      %1857 = vrot.lane.b32.xlu0 %v1061, 24
      %v1858 = vpop.permute.xlu0 %1857
      %1859 = vrot.lane.b32.xlu0 %v1073, 24
      %v1860 = vpop.permute.xlu0 %1859
      %1861 = vrot.lane.b32.xlu0 %v1081, 24
      %v1862 = vpop.permute.xlu0 %1861
      %1863 = vrot.lane.b32.xlu0 %v1093, 24
      %v1864 = vpop.permute.xlu0 %1863
      %1865 = vrot.lane.b32.xlu0 %v1101, 24
      %v1866 = vpop.permute.xlu0 %1865
      %1867 = vrot.lane.b32.xlu0 %v1113, 24
      %v1868 = vpop.permute.xlu0 %1867
      %1869 = vrot.lane.b32.xlu0 %v1121, 24
      %v1870 = vpop.permute.xlu0 %1869
      %1871 = vrot.lane.b32.xlu0 %v1133, 24
      %v1872 = vpop.permute.xlu0 %1871
      %1873 = vrot.lane.b32.xlu0 %v1141, 24
      %v1874 = vpop.permute.xlu0 %1873
      %1875 = vrot.lane.b32.xlu0 %v1153, 24
      %v1876 = vpop.permute.xlu0 %1875
      %1877 = vrot.lane.b32.xlu0 %v1161, 24
      %v1878 = vpop.permute.xlu0 %1877
      %1879 = vrot.lane.b32.xlu0 %v1173, 24
      %v1880 = vpop.permute.xlu0 %1879
      %1881 = vrot.lane.b32.xlu0 %v1181, 24
      %v1882 = vpop.permute.xlu0 %1881
      %1883 = vrot.lane.b32.xlu0 %v1193, 24
      %v1884 = vpop.permute.xlu0 %1883
      %1885 = vrot.lane.b32.xlu0 %v1201, 24
      %v1886 = vpop.permute.xlu0 %1885
      %1887 = vrot.lane.b32.xlu0 %v1213, 24
      %v1888 = vpop.permute.xlu0 %1887
      %1889 = vrot.lane.b32.xlu0 %v1221, 24
      %v1890 = vpop.permute.xlu0 %1889
      %1891 = vrot.lane.b32.xlu0 %v1233, 24
      %v1892 = vpop.permute.xlu0 %1891
      %1893 = vrot.lane.b32.xlu0 %v1241, 24
      %v1894 = vpop.permute.xlu0 %1893
      %1895 = vrot.lane.b32.xlu0 %v1253, 24
      %v1896 = vpop.permute.xlu0 %1895
      %1897 = vrot.lane.b32.xlu0 %v1261, 24
      %v1898 = vpop.permute.xlu0 %1897
      %1899 = vrot.lane.b32.xlu0 %v1273, 24
      %v1900 = vpop.permute.xlu0 %1899
      %1901 = vrot.lane.b32.xlu0 %v1281, 24
      %v1902 = vpop.permute.xlu0 %1901
      %1903 = vrot.lane.b32.xlu0 %v1293, 24
      %v1904 = vpop.permute.xlu0 %1903
      %1905 = vrot.lane.b32.xlu0 %v1301, 24
      %v1906 = vpop.permute.xlu0 %1905
      %1907 = vrot.lane.b32.xlu0 %v1313, 24
      %v1908 = vpop.permute.xlu0 %1907
      %1909 = vrot.lane.b32.xlu0 %v1321, 24
      %v1910 = vpop.permute.xlu0 %1909
      %1911 = vrot.lane.b32.xlu0 %v1333, 24
      %v1912 = vpop.permute.xlu0 %1911
      %1913 = vrot.lane.b32.xlu0 %v1341, 24
      %v1914 = vpop.permute.xlu0 %1913
      %1915 = vrot.lane.b32.xlu0 %v1353, 24
      %v1916 = vpop.permute.xlu0 %1915
      %1917 = vrot.lane.b32.xlu0 %v1361, 24
      %v1918 = vpop.permute.xlu0 %1917
      %1919 = vrot.lane.b32.xlu0 %v1373, 24
      %v1920 = vpop.permute.xlu0 %1919
      %1921 = vrot.lane.b32.xlu0 %v1381, 24
      %v1922 = vpop.permute.xlu0 %1921
      %1923 = vrot.lane.b32.xlu0 %v1393, 24
      %v1924 = vpop.permute.xlu0 %1923
      %1925 = vrot.lane.b32.xlu0 %v1401, 24
      %v1926 = vpop.permute.xlu0 %1925
      %1927 = vrot.lane.b32.xlu0 %v1413, 24
      %v1928 = vpop.permute.xlu0 %1927
      %1929 = vrot.lane.b32.xlu0 %v1421, 24
      %v1930 = vpop.permute.xlu0 %1929
      %1931 = vrot.lane.b32.xlu0 %v1433, 24
      %v1932 = vpop.permute.xlu0 %1931
      %1933 = vrot.lane.b32.xlu0 %v1441, 24
      %v1934 = vpop.permute.xlu0 %1933
      %1935 = vrot.lane.b32.xlu0 %v1453, 24
      %v1936 = vpop.permute.xlu0 %1935
      %1937 = vrot.lane.b32.xlu0 %v1461, 24
      %v1938 = vpop.permute.xlu0 %1937
      %1939 = vrot.lane.b32.xlu0 %v1473, 24
      %v1940 = vpop.permute.xlu0 %1939
      %1941 = vrot.lane.b32.xlu0 %v1481, 24
      %v1942 = vpop.permute.xlu0 %1941
      %1943 = vrot.lane.b32.xlu0 %v1493, 24
      %v1944 = vpop.permute.xlu0 %1943
      %1945 = vrot.lane.b32.xlu0 %v1501, 24
      %v1946 = vpop.permute.xlu0 %1945
      %1947 = vrot.lane.b32.xlu0 %v1513, 24
      %v1948 = vpop.permute.xlu0 %1947
      %1949 = vrot.lane.b32.xlu0 %v1521, 24
      %v1950 = vpop.permute.xlu0 %1949
      %1951 = vrot.lane.b32.xlu0 %v1533, 24
      %v1952 = vpop.permute.xlu0 %1951
      %1953 = vrot.lane.b32.xlu0 %v1541, 24
      %v1954 = vpop.permute.xlu0 %1953
      %1955 = vrot.lane.b32.xlu0 %v1822, 24
      %v1956 = vpop.permute.xlu0 %1955
      %1957 = vrot.lane.b32.xlu0 %v1830, 24
      %v1958 = vpop.permute.xlu0 %1957
      %vm1959 = vcmask 64512
      %v1961 = vsel %vm1959, %v741, %v1543
      %v1963 = vsel %vm1959, %v742, %v1545
      %v1965 = vsel %vm1959, %v743, %v1547
      %v1967 = vsel %vm1959, %v744, %v1549
      %v1969 = vsel %vm1959, %v745, %v1551
      %v1971 = vsel %vm1959, %v746, %v1553
      %v1973 = vsel %vm1959, %v747, %v1555
      %v1975 = vsel %vm1959, %v748, %v1557
      %v1977 = vsel %vm1959, %v749, %v1559
      %v1979 = vsel %vm1959, %v750, %v1561
      %v1981 = vsel %vm1959, %v751, %v1563
      %v1983 = vsel %vm1959, %v752, %v1565
      %v1985 = vsel %vm1959, %v753, %v1567
      %v1987 = vsel %vm1959, %v754, %v1569
      %v1989 = vsel %vm1959, %v755, %v1571
      %v1991 = vsel %vm1959, %v756, %v1573
      %v1993 = vsel %vm1959, %v757, %v1575
      %v1995 = vsel %vm1959, %v758, %v1577
      %v1997 = vsel %vm1959, %v759, %v1579
      %v1999 = vsel %vm1959, %v760, %v1581
      %v2001 = vsel %vm1959, %v761, %v1583
      %v2003 = vsel %vm1959, %v762, %v1585
      %v2005 = vsel %vm1959, %v763, %v1587
      %v2007 = vsel %vm1959, %v764, %v1589
      %v2009 = vsel %vm1959, %v765, %v1591
      %v2011 = vsel %vm1959, %v766, %v1593
      %v2013 = vsel %vm1959, %v767, %v1595
      %v2015 = vsel %vm1959, %v768, %v1597
      %v2017 = vsel %vm1959, %v769, %v1599
      %v2019 = vsel %vm1959, %v770, %v1601
      %v2021 = vsel %vm1959, %v771, %v1603
      %v2023 = vsel %vm1959, %v772, %v1605
      %v2025 = vsel %vm1959, %v773, %v1607
      %v2027 = vsel %vm1959, %v774, %v1609
      %v2029 = vsel %vm1959, %v775, %v1611
      %v2031 = vsel %vm1959, %v776, %v1613
      %v2033 = vsel %vm1959, %v777, %v1615
      %v2035 = vsel %vm1959, %v778, %v1617
      %v2037 = vsel %vm1959, %v779, %v1619
      %v2039 = vsel %vm1959, %v780, %v1621
      %v2041 = vsel %vm1959, %v781, %v1623
      %v2043 = vsel %vm1959, %v782, %v1625
      %v2045 = vsel %vm1959, %v783, %v1627
      %v2047 = vsel %vm1959, %v784, %v1629
      %v2049 = vsel %vm1959, %v785, %v1631
      %v2051 = vsel %vm1959, %v786, %v1633
      %v2053 = vsel %vm1959, %v787, %v1635
      %v2055 = vsel %vm1959, %v788, %v1637
      %v2057 = vsel %vm1959, %v789, %v1639
      %v2059 = vsel %vm1959, %v790, %v1641
      %v2061 = vsel %vm1959, %v791, %v1643
      %v2063 = vsel %vm1959, %v792, %v1645
      %v2065 = vsel %vm1959, %v793, %v1647
      %v2067 = vsel %vm1959, %v794, %v1649
      %v2069 = vsel %vm1959, %v795, %v1651
      %v2071 = vsel %vm1959, %v796, %v1653
      %v2073 = vsel %vm1959, %v797, %v1655
      %v2075 = vsel %vm1959, %v798, %v1657
      %v2077 = vsel %vm1959, %v799, %v1659
      %v2079 = vsel %vm1959, %v800, %v1661
      %v2081 = vsel %vm1959, %v801, %v1663
      %v2083 = vsel %vm1959, %v802, %v1665
      %v2085 = vsel %vm1959, %v803, %v1667
      %v2087 = vsel %vm1959, %v804, %v1669
      %vm2088 = vcmask 130048
      %v2090 = vsel %vm2088, %v1961, %v1681
      %v2092 = vsel %vm2088, %v1963, %v1683
      %v2094 = vsel %vm2088, %v1965, %v1685
      %v2096 = vsel %vm2088, %v1967, %v1687
      %v2098 = vsel %vm2088, %v1969, %v1689
      %v2100 = vsel %vm2088, %v1971, %v1691
      %v2102 = vsel %vm2088, %v1973, %v1693
      %v2104 = vsel %vm2088, %v1975, %v1695
      %v2106 = vsel %vm2088, %v1977, %v1697
      %v2108 = vsel %vm2088, %v1979, %v1699
      %v2110 = vsel %vm2088, %v1981, %v1701
      %v2112 = vsel %vm2088, %v1983, %v1703
      %v2114 = vsel %vm2088, %v1985, %v1705
      %v2116 = vsel %vm2088, %v1987, %v1707
      %v2118 = vsel %vm2088, %v1989, %v1709
      %v2120 = vsel %vm2088, %v1991, %v1711
      %v2122 = vsel %vm2088, %v1993, %v1713
      %v2124 = vsel %vm2088, %v1995, %v1715
      %v2126 = vsel %vm2088, %v1997, %v1717
      %v2128 = vsel %vm2088, %v1999, %v1719
      %v2130 = vsel %vm2088, %v2001, %v1721
      %v2132 = vsel %vm2088, %v2003, %v1723
      %v2134 = vsel %vm2088, %v2005, %v1725
      %v2136 = vsel %vm2088, %v2007, %v1727
      %v2138 = vsel %vm2088, %v2009, %v1729
      %v2140 = vsel %vm2088, %v2011, %v1731
      %v2142 = vsel %vm2088, %v2013, %v1733
      %v2144 = vsel %vm2088, %v2015, %v1735
      %v2146 = vsel %vm2088, %v2017, %v1737
      %v2148 = vsel %vm2088, %v2019, %v1739
      %v2150 = vsel %vm2088, %v2021, %v1741
      %v2152 = vsel %vm2088, %v2023, %v1743
      %v2154 = vsel %vm2088, %v2025, %v1745
      %v2156 = vsel %vm2088, %v2027, %v1747
      %v2158 = vsel %vm2088, %v2029, %v1749
      %v2160 = vsel %vm2088, %v2031, %v1751
      %v2162 = vsel %vm2088, %v2033, %v1753
      %v2164 = vsel %vm2088, %v2035, %v1755
      %v2166 = vsel %vm2088, %v2037, %v1757
      %v2168 = vsel %vm2088, %v2039, %v1759
      %v2170 = vsel %vm2088, %v2041, %v1761
      %v2172 = vsel %vm2088, %v2043, %v1763
      %v2174 = vsel %vm2088, %v2045, %v1765
      %v2176 = vsel %vm2088, %v2047, %v1767
      %v2178 = vsel %vm2088, %v2049, %v1769
      %v2180 = vsel %vm2088, %v2051, %v1771
      %v2182 = vsel %vm2088, %v2053, %v1773
      %v2184 = vsel %vm2088, %v2055, %v1775
      %v2186 = vsel %vm2088, %v2057, %v1777
      %v2188 = vsel %vm2088, %v2059, %v1779
      %v2190 = vsel %vm2088, %v2061, %v1781
      %v2192 = vsel %vm2088, %v2063, %v1783
      %v2194 = vsel %vm2088, %v2065, %v1785
      %v2196 = vsel %vm2088, %v2067, %v1787
      %v2198 = vsel %vm2088, %v2069, %v1789
      %v2200 = vsel %vm2088, %v2071, %v1791
      %v2202 = vsel %vm2088, %v2073, %v1793
      %v2204 = vsel %vm2088, %v2075, %v1795
      %v2206 = vsel %vm2088, %v2077, %v1797
      %v2208 = vsel %vm2088, %v2079, %v1799
      %v2210 = vsel %vm2088, %v2081, %v1801
      %v2212 = vsel %vm2088, %v2083, %v1803
      %v2214 = vsel %vm2088, %v2085, %v1805
      %v2216 = vsel %vm2088, %v2087, %v1807
      %vm2217 = vcmask 195584
      %v2219 = vsel %vm2217, %v2090, %v1832
      %v2221 = vsel %vm2217, %v2092, %v1834
      %v2223 = vsel %vm2217, %v2094, %v1836
      %v2225 = vsel %vm2217, %v2096, %v1838
      %v2227 = vsel %vm2217, %v2098, %v1840
      %v2229 = vsel %vm2217, %v2100, %v1842
      %v2231 = vsel %vm2217, %v2102, %v1844
      %v2233 = vsel %vm2217, %v2104, %v1846
      %v2235 = vsel %vm2217, %v2106, %v1848
      %v2237 = vsel %vm2217, %v2108, %v1850
      %v2239 = vsel %vm2217, %v2110, %v1852
      %v2241 = vsel %vm2217, %v2112, %v1854
      %v2243 = vsel %vm2217, %v2114, %v1856
      %v2245 = vsel %vm2217, %v2116, %v1858
      %v2247 = vsel %vm2217, %v2118, %v1860
      %v2249 = vsel %vm2217, %v2120, %v1862
      %v2251 = vsel %vm2217, %v2122, %v1864
      %v2253 = vsel %vm2217, %v2124, %v1866
      %v2255 = vsel %vm2217, %v2126, %v1868
      %v2257 = vsel %vm2217, %v2128, %v1870
      %v2259 = vsel %vm2217, %v2130, %v1872
      %v2261 = vsel %vm2217, %v2132, %v1874
      %v2263 = vsel %vm2217, %v2134, %v1876
      %v2265 = vsel %vm2217, %v2136, %v1878
      %v2267 = vsel %vm2217, %v2138, %v1880
      %v2269 = vsel %vm2217, %v2140, %v1882
      %v2271 = vsel %vm2217, %v2142, %v1884
      %v2273 = vsel %vm2217, %v2144, %v1886
      %v2275 = vsel %vm2217, %v2146, %v1888
      %v2277 = vsel %vm2217, %v2148, %v1890
      %v2279 = vsel %vm2217, %v2150, %v1892
      %v2281 = vsel %vm2217, %v2152, %v1894
      %v2283 = vsel %vm2217, %v2154, %v1896
      %v2285 = vsel %vm2217, %v2156, %v1898
      %v2287 = vsel %vm2217, %v2158, %v1900
      %v2289 = vsel %vm2217, %v2160, %v1902
      %v2291 = vsel %vm2217, %v2162, %v1904
      %v2293 = vsel %vm2217, %v2164, %v1906
      %v2295 = vsel %vm2217, %v2166, %v1908
      %v2297 = vsel %vm2217, %v2168, %v1910
      %v2299 = vsel %vm2217, %v2170, %v1912
      %v2301 = vsel %vm2217, %v2172, %v1914
      %v2303 = vsel %vm2217, %v2174, %v1916
      %v2305 = vsel %vm2217, %v2176, %v1918
      %v2307 = vsel %vm2217, %v2178, %v1920
      %v2309 = vsel %vm2217, %v2180, %v1922
      %v2311 = vsel %vm2217, %v2182, %v1924
      %v2313 = vsel %vm2217, %v2184, %v1926
      %v2315 = vsel %vm2217, %v2186, %v1928
      %v2317 = vsel %vm2217, %v2188, %v1930
      %v2319 = vsel %vm2217, %v2190, %v1932
      %v2321 = vsel %vm2217, %v2192, %v1934
      %v2323 = vsel %vm2217, %v2194, %v1936
      %v2325 = vsel %vm2217, %v2196, %v1938
      %v2327 = vsel %vm2217, %v2198, %v1940
      %v2329 = vsel %vm2217, %v2200, %v1942
      %v2331 = vsel %vm2217, %v2202, %v1944
      %v2333 = vsel %vm2217, %v2204, %v1946
      %v2335 = vsel %vm2217, %v2206, %v1948
      %v2337 = vsel %vm2217, %v2208, %v1950
      %v2339 = vsel %vm2217, %v2210, %v1952
      %v2341 = vsel %vm2217, %v2212, %v1954
      %v2343 = vsel %vm2217, %v2214, %v1956
      %v2345 = vsel %vm2217, %v2216, %v1958
      %v2346 = vld [vmem:[%s1] sm:$0xf]
      %v2347 = vld [vmem:[%s1 + $0x4] sm:$0xf]
      %v2348 = vld [vmem:[%s1 + $0x8] sm:$0xf]
      %v2349 = vld [vmem:[%s1 + $0xc] sm:$0xf]
      %v2354 = vunpack.c.l.b16 %v2346
      %v2355 = vunpack.c.l.b16 %v2347
      %v2356 = vunpack.c.l.b16 %v2348
      %v2357 = vunpack.c.l.b16 %v2349
      %v2358 = vpack.c.b16 %v2355, %v2354
      %v2359 = vpack.c.b16 %v2357, %v2356
      %vm2362 = vcmask 261120
      %v2363 = vsel %vm2362, %v2219, 0
      %v2365 = vsel %vm2362, %v2221, 0
      %v2367 = vsel %vm2362, %v2223, 0
      %v2369 = vsel %vm2362, %v2225, 0
      %v2371 = vsel %vm2362, %v2227, 0
      %v2373 = vsel %vm2362, %v2229, 0
      %v2375 = vsel %vm2362, %v2231, 0
      %v2377 = vsel %vm2362, %v2233, 0
      %v2379 = vsel %vm2362, %v2235, 0
      %v2381 = vsel %vm2362, %v2237, 0
      %v2383 = vsel %vm2362, %v2239, 0
      %v2385 = vsel %vm2362, %v2241, 0
      %v2387 = vsel %vm2362, %v2243, 0
      %v2389 = vsel %vm2362, %v2245, 0
      %v2391 = vsel %vm2362, %v2247, 0
      %v2393 = vsel %vm2362, %v2249, 0
      %v2395 = vsel %vm2362, %v2251, 0
      %v2397 = vsel %vm2362, %v2253, 0
      %v2399 = vsel %vm2362, %v2255, 0
      %v2401 = vsel %vm2362, %v2257, 0
      %v2403 = vsel %vm2362, %v2259, 0
      %v2405 = vsel %vm2362, %v2261, 0
      %v2407 = vsel %vm2362, %v2263, 0
      %v2409 = vsel %vm2362, %v2265, 0
      %v2411 = vsel %vm2362, %v2267, 0
      %v2413 = vsel %vm2362, %v2269, 0
      %v2415 = vsel %vm2362, %v2271, 0
      %v2417 = vsel %vm2362, %v2273, 0
      %v2419 = vsel %vm2362, %v2275, 0
      %v2421 = vsel %vm2362, %v2277, 0
      %v2423 = vsel %vm2362, %v2279, 0
      %v2425 = vsel %vm2362, %v2281, 0
      %v2427 = vsel %vm2362, %v2283, 0
      %v2429 = vsel %vm2362, %v2285, 0
      %v2431 = vsel %vm2362, %v2287, 0
      %v2433 = vsel %vm2362, %v2289, 0
      %v2435 = vsel %vm2362, %v2291, 0
      %v2437 = vsel %vm2362, %v2293, 0
      %v2439 = vsel %vm2362, %v2295, 0
      %v2441 = vsel %vm2362, %v2297, 0
      %v2443 = vsel %vm2362, %v2299, 0
      %v2445 = vsel %vm2362, %v2301, 0
      %v2447 = vsel %vm2362, %v2303, 0
      %v2449 = vsel %vm2362, %v2305, 0
      %v2451 = vsel %vm2362, %v2307, 0
      %v2453 = vsel %vm2362, %v2309, 0
      %v2455 = vsel %vm2362, %v2311, 0
      %v2457 = vsel %vm2362, %v2313, 0
      %v2459 = vsel %vm2362, %v2315, 0
      %v2461 = vsel %vm2362, %v2317, 0
      %v2463 = vsel %vm2362, %v2319, 0
      %v2465 = vsel %vm2362, %v2321, 0
      %v2467 = vsel %vm2362, %v2323, 0
      %v2469 = vsel %vm2362, %v2325, 0
      %v2471 = vsel %vm2362, %v2327, 0
      %v2473 = vsel %vm2362, %v2329, 0
      %v2475 = vsel %vm2362, %v2331, 0
      %v2477 = vsel %vm2362, %v2333, 0
      %v2479 = vsel %vm2362, %v2335, 0
      %v2481 = vsel %vm2362, %v2337, 0
      %v2483 = vsel %vm2362, %v2339, 0
      %v2485 = vsel %vm2362, %v2341, 0
      %v2487 = vsel %vm2362, %v2343, 0
      %v2489 = vsel %vm2362, %v2345, 0
      %2491 = vmatprep.subr.bf16.mxu0 0
      %2492 = vmatpush1.bf16.msra.mxu0 %v2358
      %2493 = vmatprep.subr.bf16.mxu0 0
      %2494 = vmatpush1.bf16.msra.mxu0 %v2359
      %2495 = vmatprep.subr.bf16.mxu0 0
      %2496 = vmatpush1.bf16.msra.mxu0 0
      %2497 = vmatprep.subr.bf16.mxu0 0
      %2498 = vmatpush1.bf16.msra.mxu0 0
      %2499 = vmatprep.subr.bf16.mxu0 0
      %2500 = vmatpush1.bf16.msra.mxu0 0
      %2501 = vmatprep.subr.bf16.mxu0 0
      %2502 = vmatpush1.bf16.msra.mxu0 0
      %2503 = vmatprep.subr.bf16.mxu0 0
      %2504 = vmatpush1.bf16.msra.mxu0 0
      %2505 = vmatprep.subr.bf16.mxu0 0
      %2506 = vmatpush1.bf16.msra.mxu0 0
      %2507 = vmatprep.subr.bf16.mxu0 0
      %2508 = vmatpush1.bf16.msra.mxu0 0
      %2509 = vmatprep.subr.bf16.mxu0 0
      %2510 = vmatpush1.bf16.msra.mxu0 0
      %2511 = vmatprep.subr.bf16.mxu0 0
      %2512 = vmatpush1.bf16.msra.mxu0 0
      %2513 = vmatprep.subr.bf16.mxu0 0
      %2514 = vmatpush1.bf16.msra.mxu0 0
      %2515 = vmatprep.subr.bf16.mxu0 0
      %2516 = vmatpush1.bf16.msra.mxu0 0
      %2517 = vmatprep.subr.bf16.mxu0 0
      %2518 = vmatpush1.bf16.msra.mxu0 0
      %2519 = vmatprep.subr.bf16.mxu0 0
      %2520 = vmatpush1.bf16.msra.mxu0 0
      %2521 = vmatprep.subr.bf16.mxu0 0
      %2522 = vmatpush1.bf16.msra.mxu0 0
      %2523 = vmatprep.mubr.bf16.mxu0 0
      %2524 = vmatmul.mubr.bf16.gmra.mrb[0].mxu0 %v2363
      %v2525 = vpop.f32.mrb[0].mxu0
      %v2526 = vadd.f32 0.0, %v2525
      %v2527 = vpop.f32.mrb[0].mxu0
      %v2528 = vpop.f32.mrb[0].mxu0
      %v2529 = vadd.f32 0.0, %v2528
      %v2530 = vpop.f32.mrb[0].mxu0
      %2531 = vmatprep.mubr.bf16.mxu0 0
      %2532 = vmatmul.mubr.bf16.gmra.mrb[0].mxu0 %v2365
      %v2533 = vpop.f32.mrb[0].mxu0
      %v2534 = vadd.f32 0.0, %v2533
      %v2535 = vpop.f32.mrb[0].mxu0
      %v2536 = vpop.f32.mrb[0].mxu0
      %v2537 = vadd.f32 0.0, %v2536
      %v2538 = vpop.f32.mrb[0].mxu0
      %2539 = vmatprep.mubr.bf16.mxu0 0
      %2540 = vmatmul.mubr.bf16.gmra.mrb[0].mxu0 %v2367
      %v2541 = vpop.f32.mrb[0].mxu0
      %v2542 = vadd.f32 0.0, %v2541
      %v2543 = vpop.f32.mrb[0].mxu0
      %v2544 = vpop.f32.mrb[0].mxu0
      %v2545 = vadd.f32 0.0, %v2544
      %v2546 = vpop.f32.mrb[0].mxu0
      %2547 = vmatprep.mubr.bf16.mxu0 0
      %2548 = vmatmul.mubr.bf16.gmra.mrb[0].mxu0 %v2369
      %v2549 = vpop.f32.mrb[0].mxu0
      %v2550 = vadd.f32 0.0, %v2549
      %v2551 = vpop.f32.mrb[0].mxu0
      %v2552 = vpop.f32.mrb[0].mxu0
      %v2553 = vadd.f32 0.0, %v2552
      %v2554 = vpop.f32.mrb[0].mxu0
      %2555 = vmatprep.mubr.bf16.mxu0 0
      %2556 = vmatmul.mubr.bf16.gmra.mrb[0].mxu0 %v2371
      %v2557 = vpop.f32.mrb[0].mxu0
      %v2558 = vadd.f32 0.0, %v2557
      %v2559 = vpop.f32.mrb[0].mxu0
      %v2560 = vpop.f32.mrb[0].mxu0
      %v2561 = vadd.f32 0.0, %v2560
      %v2562 = vpop.f32.mrb[0].mxu0
      %2563 = vmatprep.mubr.bf16.mxu0 0
      %2564 = vmatmul.mubr.bf16.gmra.mrb[0].mxu0 %v2373
      %v2565 = vpop.f32.mrb[0].mxu0
      %v2566 = vadd.f32 0.0, %v2565
      %v2567 = vpop.f32.mrb[0].mxu0
      %v2568 = vpop.f32.mrb[0].mxu0
      %v2569 = vadd.f32 0.0, %v2568
      %v2570 = vpop.f32.mrb[0].mxu0
      %2571 = vmatprep.mubr.bf16.mxu0 0
      %2572 = vmatmul.mubr.bf16.gmra.mrb[0].mxu0 %v2375
      %v2573 = vpop.f32.mrb[0].mxu0
      %v2574 = vadd.f32 0.0, %v2573
      %v2575 = vpop.f32.mrb[0].mxu0
      %v2576 = vpop.f32.mrb[0].mxu0
      %v2577 = vadd.f32 0.0, %v2576
      %v2578 = vpop.f32.mrb[0].mxu0
      %2579 = vmatprep.mubr.bf16.mxu0 0
      %2580 = vmatmul.mubr.bf16.gmra.mrb[0].mxu0 %v2377
      %v2581 = vpop.f32.mrb[0].mxu0
      %v2582 = vadd.f32 0.0, %v2581
      %v2583 = vpop.f32.mrb[0].mxu0
      %v2584 = vpop.f32.mrb[0].mxu0
      %v2585 = vadd.f32 0.0, %v2584
      %v2586 = vpop.f32.mrb[0].mxu0
      %2587 = vmatprep.mubr.bf16.mxu0 0
      %2588 = vmatmul.mubr.bf16.gmra.mrb[0].mxu0 %v2379
      %v2589 = vpop.f32.mrb[0].mxu0
      %v2590 = vadd.f32 0.0, %v2589
      %v2591 = vpop.f32.mrb[0].mxu0
      %v2592 = vpop.f32.mrb[0].mxu0
      %v2593 = vadd.f32 0.0, %v2592
      %v2594 = vpop.f32.mrb[0].mxu0
      %2595 = vmatprep.mubr.bf16.mxu0 0
      %2596 = vmatmul.mubr.bf16.gmra.mrb[0].mxu0 %v2381
      %v2597 = vpop.f32.mrb[0].mxu0
      %v2598 = vadd.f32 0.0, %v2597
      %v2599 = vpop.f32.mrb[0].mxu0
      %v2600 = vpop.f32.mrb[0].mxu0
      %v2601 = vadd.f32 0.0, %v2600
      %v2602 = vpop.f32.mrb[0].mxu0
      %2603 = vmatprep.mubr.bf16.mxu0 0
      %2604 = vmatmul.mubr.bf16.gmra.mrb[0].mxu0 %v2383
      %v2605 = vpop.f32.mrb[0].mxu0
      %v2606 = vadd.f32 0.0, %v2605
      %v2607 = vpop.f32.mrb[0].mxu0
      %v2608 = vpop.f32.mrb[0].mxu0
      %v2609 = vadd.f32 0.0, %v2608
      %v2610 = vpop.f32.mrb[0].mxu0
      %2611 = vmatprep.mubr.bf16.mxu0 0
      %2612 = vmatmul.mubr.bf16.gmra.mrb[0].mxu0 %v2385
      %v2613 = vpop.f32.mrb[0].mxu0
      %v2614 = vadd.f32 0.0, %v2613
      %v2615 = vpop.f32.mrb[0].mxu0
      %v2616 = vpop.f32.mrb[0].mxu0
      %v2617 = vadd.f32 0.0, %v2616
      %v2618 = vpop.f32.mrb[0].mxu0
      %2619 = vmatprep.mubr.bf16.mxu0 0
      %2620 = vmatmul.mubr.bf16.gmra.mrb[0].mxu0 %v2387
      %v2621 = vpop.f32.mrb[0].mxu0
      %v2622 = vadd.f32 0.0, %v2621
      %v2623 = vpop.f32.mrb[0].mxu0
      %v2624 = vpop.f32.mrb[0].mxu0
      %v2625 = vadd.f32 0.0, %v2624
      %v2626 = vpop.f32.mrb[0].mxu0
      %2627 = vmatprep.mubr.bf16.mxu0 0
      %2628 = vmatmul.mubr.bf16.gmra.mrb[0].mxu0 %v2389
      %v2629 = vpop.f32.mrb[0].mxu0
      %v2630 = vadd.f32 0.0, %v2629
      %v2631 = vpop.f32.mrb[0].mxu0
      %v2632 = vpop.f32.mrb[0].mxu0
      %v2633 = vadd.f32 0.0, %v2632
      %v2634 = vpop.f32.mrb[0].mxu0
      %2635 = vmatprep.mubr.bf16.mxu0 0
      %2636 = vmatmul.mubr.bf16.gmra.mrb[0].mxu0 %v2391
      %v2637 = vpop.f32.mrb[0].mxu0
      %v2638 = vadd.f32 0.0, %v2637
      %v2639 = vpop.f32.mrb[0].mxu0
      %v2640 = vpop.f32.mrb[0].mxu0
      %v2641 = vadd.f32 0.0, %v2640
      %v2642 = vpop.f32.mrb[0].mxu0
      %2643 = vmatprep.mubr.bf16.mxu0 0
      %2644 = vmatmul.mubr.bf16.gmra.mrb[0].mxu0 %v2393
      %v2645 = vpop.f32.mrb[0].mxu0
      %v2646 = vadd.f32 0.0, %v2645
      %v2647 = vpop.f32.mrb[0].mxu0
      %v2648 = vpop.f32.mrb[0].mxu0
      %v2649 = vadd.f32 0.0, %v2648
      %v2650 = vpop.f32.mrb[0].mxu0
      %2651 = vmatprep.mubr.bf16.mxu0 0
      %2652 = vmatmul.mubr.bf16.gmra.mrb[0].mxu0 %v2395
      %v2653 = vpop.f32.mrb[0].mxu0
      %v2654 = vadd.f32 0.0, %v2653
      %v2655 = vpop.f32.mrb[0].mxu0
      %v2656 = vpop.f32.mrb[0].mxu0
      %v2657 = vadd.f32 0.0, %v2656
      %v2658 = vpop.f32.mrb[0].mxu0
      %2659 = vmatprep.mubr.bf16.mxu0 0
      %2660 = vmatmul.mubr.bf16.gmra.mrb[0].mxu0 %v2397
      %v2661 = vpop.f32.mrb[0].mxu0
      %v2662 = vadd.f32 0.0, %v2661
      %v2663 = vpop.f32.mrb[0].mxu0
      %v2664 = vpop.f32.mrb[0].mxu0
      %v2665 = vadd.f32 0.0, %v2664
      %v2666 = vpop.f32.mrb[0].mxu0
      %2667 = vmatprep.mubr.bf16.mxu0 0
      %2668 = vmatmul.mubr.bf16.gmra.mrb[0].mxu0 %v2399
      %v2669 = vpop.f32.mrb[0].mxu0
      %v2670 = vadd.f32 0.0, %v2669
      %v2671 = vpop.f32.mrb[0].mxu0
      %v2672 = vpop.f32.mrb[0].mxu0
      %v2673 = vadd.f32 0.0, %v2672
      %v2674 = vpop.f32.mrb[0].mxu0
      %2675 = vmatprep.mubr.bf16.mxu0 0
      %2676 = vmatmul.mubr.bf16.gmra.mrb[0].mxu0 %v2401
      %v2677 = vpop.f32.mrb[0].mxu0
      %v2678 = vadd.f32 0.0, %v2677
      %v2679 = vpop.f32.mrb[0].mxu0
      %v2680 = vpop.f32.mrb[0].mxu0
      %v2681 = vadd.f32 0.0, %v2680
      %v2682 = vpop.f32.mrb[0].mxu0
      %2683 = vmatprep.mubr.bf16.mxu0 0
      %2684 = vmatmul.mubr.bf16.gmra.mrb[0].mxu0 %v2403
      %v2685 = vpop.f32.mrb[0].mxu0
      %v2686 = vadd.f32 0.0, %v2685
      %v2687 = vpop.f32.mrb[0].mxu0
      %v2688 = vpop.f32.mrb[0].mxu0
      %v2689 = vadd.f32 0.0, %v2688
      %v2690 = vpop.f32.mrb[0].mxu0
      %2691 = vmatprep.mubr.bf16.mxu0 0
      %2692 = vmatmul.mubr.bf16.gmra.mrb[0].mxu0 %v2405
      %v2693 = vpop.f32.mrb[0].mxu0
      %v2694 = vadd.f32 0.0, %v2693
      %v2695 = vpop.f32.mrb[0].mxu0
      %v2696 = vpop.f32.mrb[0].mxu0
      %v2697 = vadd.f32 0.0, %v2696
      %v2698 = vpop.f32.mrb[0].mxu0
      %2699 = vmatprep.mubr.bf16.mxu0 0
      %2700 = vmatmul.mubr.bf16.gmra.mrb[0].mxu0 %v2407
      %v2701 = vpop.f32.mrb[0].mxu0
      %v2702 = vadd.f32 0.0, %v2701
      %v2703 = vpop.f32.mrb[0].mxu0
      %v2704 = vpop.f32.mrb[0].mxu0
      %v2705 = vadd.f32 0.0, %v2704
      %v2706 = vpop.f32.mrb[0].mxu0
      %2707 = vmatprep.mubr.bf16.mxu0 0
      %2708 = vmatmul.mubr.bf16.gmra.mrb[0].mxu0 %v2409
      %v2709 = vpop.f32.mrb[0].mxu0
      %v2710 = vadd.f32 0.0, %v2709
      %v2711 = vpop.f32.mrb[0].mxu0
      %v2712 = vpop.f32.mrb[0].mxu0
      %v2713 = vadd.f32 0.0, %v2712
      %v2714 = vpop.f32.mrb[0].mxu0
      %2715 = vmatprep.mubr.bf16.mxu0 0
      %2716 = vmatmul.mubr.bf16.gmra.mrb[0].mxu0 %v2411
      %v2717 = vpop.f32.mrb[0].mxu0
      %v2718 = vadd.f32 0.0, %v2717
      %v2719 = vpop.f32.mrb[0].mxu0
      %v2720 = vpop.f32.mrb[0].mxu0
      %v2721 = vadd.f32 0.0, %v2720
      %v2722 = vpop.f32.mrb[0].mxu0
      %2723 = vmatprep.mubr.bf16.mxu0 0
      %2724 = vmatmul.mubr.bf16.gmra.mrb[0].mxu0 %v2413
      %v2725 = vpop.f32.mrb[0].mxu0
      %v2726 = vadd.f32 0.0, %v2725
      %v2727 = vpop.f32.mrb[0].mxu0
      %v2728 = vpop.f32.mrb[0].mxu0
      %v2729 = vadd.f32 0.0, %v2728
      %v2730 = vpop.f32.mrb[0].mxu0
      %2731 = vmatprep.mubr.bf16.mxu0 0
      %2732 = vmatmul.mubr.bf16.gmra.mrb[0].mxu0 %v2415
      %v2733 = vpop.f32.mrb[0].mxu0
      %v2734 = vadd.f32 0.0, %v2733
      %v2735 = vpop.f32.mrb[0].mxu0
      %v2736 = vpop.f32.mrb[0].mxu0
      %v2737 = vadd.f32 0.0, %v2736
      %v2738 = vpop.f32.mrb[0].mxu0
      %2739 = vmatprep.mubr.bf16.mxu0 0
      %2740 = vmatmul.mubr.bf16.gmra.mrb[0].mxu0 %v2417
      %v2741 = vpop.f32.mrb[0].mxu0
      %v2742 = vadd.f32 0.0, %v2741
      %v2743 = vpop.f32.mrb[0].mxu0
      %v2744 = vpop.f32.mrb[0].mxu0
      %v2745 = vadd.f32 0.0, %v2744
      %v2746 = vpop.f32.mrb[0].mxu0
      %2747 = vmatprep.mubr.bf16.mxu0 0
      %2748 = vmatmul.mubr.bf16.gmra.mrb[0].mxu0 %v2419
      %v2749 = vpop.f32.mrb[0].mxu0
      %v2750 = vadd.f32 0.0, %v2749
      %v2751 = vpop.f32.mrb[0].mxu0
      %v2752 = vpop.f32.mrb[0].mxu0
      %v2753 = vadd.f32 0.0, %v2752
      %v2754 = vpop.f32.mrb[0].mxu0
      %2755 = vmatprep.mubr.bf16.mxu0 0
      %2756 = vmatmul.mubr.bf16.gmra.mrb[0].mxu0 %v2421
      %v2757 = vpop.f32.mrb[0].mxu0
      %v2758 = vadd.f32 0.0, %v2757
      %v2759 = vpop.f32.mrb[0].mxu0
      %v2760 = vpop.f32.mrb[0].mxu0
      %v2761 = vadd.f32 0.0, %v2760
      %v2762 = vpop.f32.mrb[0].mxu0
      %2763 = vmatprep.mubr.bf16.mxu0 0
      %2764 = vmatmul.mubr.bf16.gmra.mrb[0].mxu0 %v2423
      %v2765 = vpop.f32.mrb[0].mxu0
      %v2766 = vadd.f32 0.0, %v2765
      %v2767 = vpop.f32.mrb[0].mxu0
      %v2768 = vpop.f32.mrb[0].mxu0
      %v2769 = vadd.f32 0.0, %v2768
      %v2770 = vpop.f32.mrb[0].mxu0
      %2771 = vmatprep.mubr.bf16.mxu0 0
      %2772 = vmatmul.mubr.bf16.gmra.mrb[0].mxu0 %v2425
      %v2773 = vpop.f32.mrb[0].mxu0
      %v2774 = vadd.f32 0.0, %v2773
      %v2775 = vpop.f32.mrb[0].mxu0
      %v2776 = vpop.f32.mrb[0].mxu0
      %v2777 = vadd.f32 0.0, %v2776
      %v2778 = vpop.f32.mrb[0].mxu0
      %2779 = vmatprep.mubr.bf16.mxu0 0
      %2780 = vmatmul.mubr.bf16.gmra.mrb[0].mxu0 %v2427
      %v2781 = vpop.f32.mrb[0].mxu0
      %v2782 = vadd.f32 0.0, %v2781
      %v2783 = vpop.f32.mrb[0].mxu0
      %v2784 = vpop.f32.mrb[0].mxu0
      %v2785 = vadd.f32 0.0, %v2784
      %v2786 = vpop.f32.mrb[0].mxu0
      %2787 = vmatprep.mubr.bf16.mxu0 0
      %2788 = vmatmul.mubr.bf16.gmra.mrb[0].mxu0 %v2429
      %v2789 = vpop.f32.mrb[0].mxu0
      %v2790 = vadd.f32 0.0, %v2789
      %v2791 = vpop.f32.mrb[0].mxu0
      %v2792 = vpop.f32.mrb[0].mxu0
      %v2793 = vadd.f32 0.0, %v2792
      %v2794 = vpop.f32.mrb[0].mxu0
      %2795 = vmatprep.mubr.bf16.mxu0 0
      %2796 = vmatmul.mubr.bf16.gmra.mrb[0].mxu0 %v2431
      %v2797 = vpop.f32.mrb[0].mxu0
      %v2798 = vadd.f32 0.0, %v2797
      %v2799 = vpop.f32.mrb[0].mxu0
      %v2800 = vpop.f32.mrb[0].mxu0
      %v2801 = vadd.f32 0.0, %v2800
      %v2802 = vpop.f32.mrb[0].mxu0
      %2803 = vmatprep.mubr.bf16.mxu0 0
      %2804 = vmatmul.mubr.bf16.gmra.mrb[0].mxu0 %v2433
      %v2805 = vpop.f32.mrb[0].mxu0
      %v2806 = vadd.f32 0.0, %v2805
      %v2807 = vpop.f32.mrb[0].mxu0
      %v2808 = vpop.f32.mrb[0].mxu0
      %v2809 = vadd.f32 0.0, %v2808
      %v2810 = vpop.f32.mrb[0].mxu0
      %2811 = vmatprep.mubr.bf16.mxu0 0
      %2812 = vmatmul.mubr.bf16.gmra.mrb[0].mxu0 %v2435
      %v2813 = vpop.f32.mrb[0].mxu0
      %v2814 = vadd.f32 0.0, %v2813
      %v2815 = vpop.f32.mrb[0].mxu0
      %v2816 = vpop.f32.mrb[0].mxu0
      %v2817 = vadd.f32 0.0, %v2816
      %v2818 = vpop.f32.mrb[0].mxu0
      %2819 = vmatprep.mubr.bf16.mxu0 0
      %2820 = vmatmul.mubr.bf16.gmra.mrb[0].mxu0 %v2437
      %v2821 = vpop.f32.mrb[0].mxu0
      %v2822 = vadd.f32 0.0, %v2821
      %v2823 = vpop.f32.mrb[0].mxu0
      %v2824 = vpop.f32.mrb[0].mxu0
      %v2825 = vadd.f32 0.0, %v2824
      %v2826 = vpop.f32.mrb[0].mxu0
      %2827 = vmatprep.mubr.bf16.mxu0 0
      %2828 = vmatmul.mubr.bf16.gmra.mrb[0].mxu0 %v2439
      %v2829 = vpop.f32.mrb[0].mxu0
      %v2830 = vadd.f32 0.0, %v2829
      %v2831 = vpop.f32.mrb[0].mxu0
      %v2832 = vpop.f32.mrb[0].mxu0
      %v2833 = vadd.f32 0.0, %v2832
      %v2834 = vpop.f32.mrb[0].mxu0
      %2835 = vmatprep.mubr.bf16.mxu0 0
      %2836 = vmatmul.mubr.bf16.gmra.mrb[0].mxu0 %v2441
      %v2837 = vpop.f32.mrb[0].mxu0
      %v2838 = vadd.f32 0.0, %v2837
      %v2839 = vpop.f32.mrb[0].mxu0
      %v2840 = vpop.f32.mrb[0].mxu0
      %v2841 = vadd.f32 0.0, %v2840
      %v2842 = vpop.f32.mrb[0].mxu0
      %2843 = vmatprep.mubr.bf16.mxu0 0
      %2844 = vmatmul.mubr.bf16.gmra.mrb[0].mxu0 %v2443
      %v2845 = vpop.f32.mrb[0].mxu0
      %v2846 = vadd.f32 0.0, %v2845
      %v2847 = vpop.f32.mrb[0].mxu0
      %v2848 = vpop.f32.mrb[0].mxu0
      %v2849 = vadd.f32 0.0, %v2848
      %v2850 = vpop.f32.mrb[0].mxu0
      %2851 = vmatprep.mubr.bf16.mxu0 0
      %2852 = vmatmul.mubr.bf16.gmra.mrb[0].mxu0 %v2445
      %v2853 = vpop.f32.mrb[0].mxu0
      %v2854 = vadd.f32 0.0, %v2853
      %v2855 = vpop.f32.mrb[0].mxu0
      %v2856 = vpop.f32.mrb[0].mxu0
      %v2857 = vadd.f32 0.0, %v2856
      %v2858 = vpop.f32.mrb[0].mxu0
      %2859 = vmatprep.mubr.bf16.mxu0 0
      %2860 = vmatmul.mubr.bf16.gmra.mrb[0].mxu0 %v2447
      %v2861 = vpop.f32.mrb[0].mxu0
      %v2862 = vadd.f32 0.0, %v2861
      %v2863 = vpop.f32.mrb[0].mxu0
      %v2864 = vpop.f32.mrb[0].mxu0
      %v2865 = vadd.f32 0.0, %v2864
      %v2866 = vpop.f32.mrb[0].mxu0
      %2867 = vmatprep.mubr.bf16.mxu0 0
      %2868 = vmatmul.mubr.bf16.gmra.mrb[0].mxu0 %v2449
      %v2869 = vpop.f32.mrb[0].mxu0
      %v2870 = vadd.f32 0.0, %v2869
      %v2871 = vpop.f32.mrb[0].mxu0
      %v2872 = vpop.f32.mrb[0].mxu0
      %v2873 = vadd.f32 0.0, %v2872
      %v2874 = vpop.f32.mrb[0].mxu0
      %2875 = vmatprep.mubr.bf16.mxu0 0
      %2876 = vmatmul.mubr.bf16.gmra.mrb[0].mxu0 %v2451
      %v2877 = vpop.f32.mrb[0].mxu0
      %v2878 = vadd.f32 0.0, %v2877
      %v2879 = vpop.f32.mrb[0].mxu0
      %v2880 = vpop.f32.mrb[0].mxu0
      %v2881 = vadd.f32 0.0, %v2880
      %v2882 = vpop.f32.mrb[0].mxu0
      %2883 = vmatprep.mubr.bf16.mxu0 0
      %2884 = vmatmul.mubr.bf16.gmra.mrb[0].mxu0 %v2453
      %v2885 = vpop.f32.mrb[0].mxu0
      %v2886 = vadd.f32 0.0, %v2885
      %v2887 = vpop.f32.mrb[0].mxu0
      %v2888 = vpop.f32.mrb[0].mxu0
      %v2889 = vadd.f32 0.0, %v2888
      %v2890 = vpop.f32.mrb[0].mxu0
      %2891 = vmatprep.mubr.bf16.mxu0 0
      %2892 = vmatmul.mubr.bf16.gmra.mrb[0].mxu0 %v2455
      %v2893 = vpop.f32.mrb[0].mxu0
      %v2894 = vadd.f32 0.0, %v2893
      %v2895 = vpop.f32.mrb[0].mxu0
      %v2896 = vpop.f32.mrb[0].mxu0
      %v2897 = vadd.f32 0.0, %v2896
      %v2898 = vpop.f32.mrb[0].mxu0
      %2899 = vmatprep.mubr.bf16.mxu0 0
      %2900 = vmatmul.mubr.bf16.gmra.mrb[0].mxu0 %v2457
      %v2901 = vpop.f32.mrb[0].mxu0
      %v2902 = vadd.f32 0.0, %v2901
      %v2903 = vpop.f32.mrb[0].mxu0
      %v2904 = vpop.f32.mrb[0].mxu0
      %v2905 = vadd.f32 0.0, %v2904
      %v2906 = vpop.f32.mrb[0].mxu0
      %2907 = vmatprep.mubr.bf16.mxu0 0
      %2908 = vmatmul.mubr.bf16.gmra.mrb[0].mxu0 %v2459
      %v2909 = vpop.f32.mrb[0].mxu0
      %v2910 = vadd.f32 0.0, %v2909
      %v2911 = vpop.f32.mrb[0].mxu0
      %v2912 = vpop.f32.mrb[0].mxu0
      %v2913 = vadd.f32 0.0, %v2912
      %v2914 = vpop.f32.mrb[0].mxu0
      %2915 = vmatprep.mubr.bf16.mxu0 0
      %2916 = vmatmul.mubr.bf16.gmra.mrb[0].mxu0 %v2461
      %v2917 = vpop.f32.mrb[0].mxu0
      %v2918 = vadd.f32 0.0, %v2917
      %v2919 = vpop.f32.mrb[0].mxu0
      %v2920 = vpop.f32.mrb[0].mxu0
      %v2921 = vadd.f32 0.0, %v2920
      %v2922 = vpop.f32.mrb[0].mxu0
      %2923 = vmatprep.mubr.bf16.mxu0 0
      %2924 = vmatmul.mubr.bf16.gmra.mrb[0].mxu0 %v2463
      %v2925 = vpop.f32.mrb[0].mxu0
      %v2926 = vadd.f32 0.0, %v2925
      %v2927 = vpop.f32.mrb[0].mxu0
      %v2928 = vpop.f32.mrb[0].mxu0
      %v2929 = vadd.f32 0.0, %v2928
      %v2930 = vpop.f32.mrb[0].mxu0
      %2931 = vmatprep.mubr.bf16.mxu0 0
      %2932 = vmatmul.mubr.bf16.gmra.mrb[0].mxu0 %v2465
      %v2933 = vpop.f32.mrb[0].mxu0
      %v2934 = vadd.f32 0.0, %v2933
      %v2935 = vpop.f32.mrb[0].mxu0
      %v2936 = vpop.f32.mrb[0].mxu0
      %v2937 = vadd.f32 0.0, %v2936
      %v2938 = vpop.f32.mrb[0].mxu0
      %2939 = vmatprep.mubr.bf16.mxu0 0
      %2940 = vmatmul.mubr.bf16.gmra.mrb[0].mxu0 %v2467
      %v2941 = vpop.f32.mrb[0].mxu0
      %v2942 = vadd.f32 0.0, %v2941
      %v2943 = vpop.f32.mrb[0].mxu0
      %v2944 = vpop.f32.mrb[0].mxu0
      %v2945 = vadd.f32 0.0, %v2944
      %v2946 = vpop.f32.mrb[0].mxu0
      %2947 = vmatprep.mubr.bf16.mxu0 0
      %2948 = vmatmul.mubr.bf16.gmra.mrb[0].mxu0 %v2469
      %v2949 = vpop.f32.mrb[0].mxu0
      %v2950 = vadd.f32 0.0, %v2949
      %v2951 = vpop.f32.mrb[0].mxu0
      %v2952 = vpop.f32.mrb[0].mxu0
      %v2953 = vadd.f32 0.0, %v2952
      %v2954 = vpop.f32.mrb[0].mxu0
      %2955 = vmatprep.mubr.bf16.mxu0 0
      %2956 = vmatmul.mubr.bf16.gmra.mrb[0].mxu0 %v2471
      %v2957 = vpop.f32.mrb[0].mxu0
      %v2958 = vadd.f32 0.0, %v2957
      %v2959 = vpop.f32.mrb[0].mxu0
      %v2960 = vpop.f32.mrb[0].mxu0
      %v2961 = vadd.f32 0.0, %v2960
      %v2962 = vpop.f32.mrb[0].mxu0
      %2963 = vmatprep.mubr.bf16.mxu0 0
      %2964 = vmatmul.mubr.bf16.gmra.mrb[0].mxu0 %v2473
      %v2965 = vpop.f32.mrb[0].mxu0
      %v2966 = vadd.f32 0.0, %v2965
      %v2967 = vpop.f32.mrb[0].mxu0
      %v2968 = vpop.f32.mrb[0].mxu0
      %v2969 = vadd.f32 0.0, %v2968
      %v2970 = vpop.f32.mrb[0].mxu0
      %2971 = vmatprep.mubr.bf16.mxu0 0
      %2972 = vmatmul.mubr.bf16.gmra.mrb[0].mxu0 %v2475
      %v2973 = vpop.f32.mrb[0].mxu0
      %v2974 = vadd.f32 0.0, %v2973
      %v2975 = vpop.f32.mrb[0].mxu0
      %v2976 = vpop.f32.mrb[0].mxu0
      %v2977 = vadd.f32 0.0, %v2976
      %v2978 = vpop.f32.mrb[0].mxu0
      %2979 = vmatprep.mubr.bf16.mxu0 0
      %2980 = vmatmul.mubr.bf16.gmra.mrb[0].mxu0 %v2477
      %v2981 = vpop.f32.mrb[0].mxu0
      %v2982 = vadd.f32 0.0, %v2981
      %v2983 = vpop.f32.mrb[0].mxu0
      %v2984 = vpop.f32.mrb[0].mxu0
      %v2985 = vadd.f32 0.0, %v2984
      %v2986 = vpop.f32.mrb[0].mxu0
      %2987 = vmatprep.mubr.bf16.mxu0 0
      %2988 = vmatmul.mubr.bf16.gmra.mrb[0].mxu0 %v2479
      %v2989 = vpop.f32.mrb[0].mxu0
      %v2990 = vadd.f32 0.0, %v2989
      %v2991 = vpop.f32.mrb[0].mxu0
      %v2992 = vpop.f32.mrb[0].mxu0
      %v2993 = vadd.f32 0.0, %v2992
      %v2994 = vpop.f32.mrb[0].mxu0
      %2995 = vmatprep.mubr.bf16.mxu0 0
      %2996 = vmatmul.mubr.bf16.gmra.mrb[0].mxu0 %v2481
      %v2997 = vpop.f32.mrb[0].mxu0
      %v2998 = vadd.f32 0.0, %v2997
      %v2999 = vpop.f32.mrb[0].mxu0
      %v3000 = vpop.f32.mrb[0].mxu0
      %v3001 = vadd.f32 0.0, %v3000
      %v3002 = vpop.f32.mrb[0].mxu0
      %3003 = vmatprep.mubr.bf16.mxu0 0
      %3004 = vmatmul.mubr.bf16.gmra.mrb[0].mxu0 %v2483
      %v3005 = vpop.f32.mrb[0].mxu0
      %v3006 = vadd.f32 0.0, %v3005
      %v3007 = vpop.f32.mrb[0].mxu0
      %v3008 = vpop.f32.mrb[0].mxu0
      %v3009 = vadd.f32 0.0, %v3008
      %v3010 = vpop.f32.mrb[0].mxu0
      %3011 = vmatprep.mubr.bf16.mxu0 0
      %3012 = vmatmul.mubr.bf16.gmra.mrb[0].mxu0 %v2485
      %v3013 = vpop.f32.mrb[0].mxu0
      %v3014 = vadd.f32 0.0, %v3013
      %v3015 = vpop.f32.mrb[0].mxu0
      %v3016 = vpop.f32.mrb[0].mxu0
      %v3017 = vadd.f32 0.0, %v3016
      %v3018 = vpop.f32.mrb[0].mxu0
      %3019 = vmatprep.mubr.bf16.mxu0 0
      %3020 = vmatmul.mubr.bf16.gmra.mrb[0].mxu0 %v2487
      %v3021 = vpop.f32.mrb[0].mxu0
      %v3022 = vadd.f32 0.0, %v3021
      %v3023 = vpop.f32.mrb[0].mxu0
      %v3024 = vpop.f32.mrb[0].mxu0
      %v3025 = vadd.f32 0.0, %v3024
      %v3026 = vpop.f32.mrb[0].mxu0
      %3027 = vmatprep.mubr.bf16.mxu0 0
      %3028 = vmatmul.mubr.bf16.gmra.mrb[0].mxu0 %v2489
      %v3029 = vpop.f32.mrb[0].mxu0
      %v3030 = vadd.f32 0.0, %v3029
      %v3031 = vpop.f32.mrb[0].mxu0
      %v3032 = vpop.f32.mrb[0].mxu0
      %v3033 = vadd.f32 0.0, %v3032
      %v3034 = vpop.f32.mrb[0].mxu0
      %3035 = vdwg.mxu0
      %v3036 = vshrl.u32 %v869, 16
      %v3038 = vshrl.u32 %v870, 16
      %v3040 = vshrl.u32 %v871, 16
      %v3042 = vshrl.u32 %v872, 16
      %v3044 = vshrl.u32 %v873, 16
      %v3046 = vshrl.u32 %v874, 16
      %v3048 = vshrl.u32 %v875, 16
      %v3050 = vshrl.u32 %v876, 16
      %v3052 = vshrl.u32 %v877, 16
      %v3054 = vshrl.u32 %v878, 16
      %v3056 = vshrl.u32 %v879, 16
      %v3058 = vshrl.u32 %v880, 16
      %v3060 = vshrl.u32 %v881, 16
      %v3062 = vshrl.u32 %v882, 16
      %v3064 = vshrl.u32 %v883, 16
      %v3066 = vshrl.u32 %v884, 16
      %v3068 = vshrl.u32 %v885, 16
      %v3070 = vshrl.u32 %v886, 16
      %v3072 = vshrl.u32 %v887, 16
      %v3074 = vshrl.u32 %v888, 16
      %v3076 = vshrl.u32 %v889, 16
      %v3078 = vshrl.u32 %v890, 16
      %v3080 = vshrl.u32 %v891, 16
      %v3082 = vshrl.u32 %v892, 16
      %v3084 = vshrl.u32 %v893, 16
      %v3086 = vshrl.u32 %v894, 16
      %v3088 = vshrl.u32 %v895, 16
      %v3090 = vshrl.u32 %v896, 16
      %v3092 = vshrl.u32 %v897, 16
      %v3094 = vshrl.u32 %v898, 16
      %v3096 = vshrl.u32 %v899, 16
      %v3098 = vshrl.u32 %v900, 16
      %3100 = vrot.lane.b32.xlu0 %v3036, 8
      %v3101 = vpop.permute.xlu0 %3100
      %3102 = vrot.lane.b32.xlu0 %v3038, 8
      %v3103 = vpop.permute.xlu0 %3102
      %3104 = vrot.lane.b32.xlu0 %v3040, 8
      %v3105 = vpop.permute.xlu0 %3104
      %3106 = vrot.lane.b32.xlu0 %v3042, 8
      %v3107 = vpop.permute.xlu0 %3106
      %3108 = vrot.lane.b32.xlu0 %v3044, 8
      %v3109 = vpop.permute.xlu0 %3108
      %3110 = vrot.lane.b32.xlu0 %v3046, 8
      %v3111 = vpop.permute.xlu0 %3110
      %3112 = vrot.lane.b32.xlu0 %v3048, 8
      %v3113 = vpop.permute.xlu0 %3112
      %3114 = vrot.lane.b32.xlu0 %v3050, 8
      %v3115 = vpop.permute.xlu0 %3114
      %3116 = vrot.lane.b32.xlu0 %v3052, 8
      %v3117 = vpop.permute.xlu0 %3116
      %3118 = vrot.lane.b32.xlu0 %v3054, 8
      %v3119 = vpop.permute.xlu0 %3118
      %3120 = vrot.lane.b32.xlu0 %v3056, 8
      %v3121 = vpop.permute.xlu0 %3120
      %3122 = vrot.lane.b32.xlu0 %v3058, 8
      %v3123 = vpop.permute.xlu0 %3122
      %3124 = vrot.lane.b32.xlu0 %v3060, 8
      %v3125 = vpop.permute.xlu0 %3124
      %3126 = vrot.lane.b32.xlu0 %v3062, 8
      %v3127 = vpop.permute.xlu0 %3126
      %3128 = vrot.lane.b32.xlu0 %v3064, 8
      %v3129 = vpop.permute.xlu0 %3128
      %3130 = vrot.lane.b32.xlu0 %v3066, 8
      %v3131 = vpop.permute.xlu0 %3130
      %3132 = vrot.lane.b32.xlu0 %v3068, 8
      %v3133 = vpop.permute.xlu0 %3132
      %3134 = vrot.lane.b32.xlu0 %v3070, 8
      %v3135 = vpop.permute.xlu0 %3134
      %3136 = vrot.lane.b32.xlu0 %v3072, 8
      %v3137 = vpop.permute.xlu0 %3136
      %3138 = vrot.lane.b32.xlu0 %v3074, 8
      %v3139 = vpop.permute.xlu0 %3138
      %3140 = vrot.lane.b32.xlu0 %v3076, 8
      %v3141 = vpop.permute.xlu0 %3140
      %3142 = vrot.lane.b32.xlu0 %v3078, 8
      %v3143 = vpop.permute.xlu0 %3142
      %3144 = vrot.lane.b32.xlu0 %v3080, 8
      %v3145 = vpop.permute.xlu0 %3144
      %3146 = vrot.lane.b32.xlu0 %v3082, 8
      %v3147 = vpop.permute.xlu0 %3146
      %3148 = vrot.lane.b32.xlu0 %v3084, 8
      %v3149 = vpop.permute.xlu0 %3148
      %3150 = vrot.lane.b32.xlu0 %v3086, 8
      %v3151 = vpop.permute.xlu0 %3150
      %3152 = vrot.lane.b32.xlu0 %v3088, 8
      %v3153 = vpop.permute.xlu0 %3152
      %3154 = vrot.lane.b32.xlu0 %v3090, 8
      %v3155 = vpop.permute.xlu0 %3154
      %3156 = vrot.lane.b32.xlu0 %v3092, 8
      %v3157 = vpop.permute.xlu0 %3156
      %3158 = vrot.lane.b32.xlu0 %v3094, 8
      %v3159 = vpop.permute.xlu0 %3158
      %3160 = vrot.lane.b32.xlu0 %v3096, 8
      %v3161 = vpop.permute.xlu0 %3160
      %3162 = vrot.lane.b32.xlu0 %v3098, 8
      %v3163 = vpop.permute.xlu0 %3162
      %3164 = vrot.lane.b32.xlu0 %v870, 16
      %v3165 = vpop.permute.xlu0 %3164
      %3166 = vrot.lane.b32.xlu0 %v871, 16
      %v3167 = vpop.permute.xlu0 %3166
      %3168 = vrot.lane.b32.xlu0 %v872, 16
      %v3169 = vpop.permute.xlu0 %3168
      %3170 = vrot.lane.b32.xlu0 %v873, 16
      %v3171 = vpop.permute.xlu0 %3170
      %3172 = vrot.lane.b32.xlu0 %v874, 16
      %v3173 = vpop.permute.xlu0 %3172
      %3174 = vrot.lane.b32.xlu0 %v875, 16
      %v3175 = vpop.permute.xlu0 %3174
      %3176 = vrot.lane.b32.xlu0 %v876, 16
      %v3177 = vpop.permute.xlu0 %3176
      %3178 = vrot.lane.b32.xlu0 %v877, 16
      %v3179 = vpop.permute.xlu0 %3178
      %3180 = vrot.lane.b32.xlu0 %v878, 16
      %v3181 = vpop.permute.xlu0 %3180
      %3182 = vrot.lane.b32.xlu0 %v879, 16
      %v3183 = vpop.permute.xlu0 %3182
      %3184 = vrot.lane.b32.xlu0 %v880, 16
      %v3185 = vpop.permute.xlu0 %3184
      %3186 = vrot.lane.b32.xlu0 %v881, 16
      %v3187 = vpop.permute.xlu0 %3186
      %3188 = vrot.lane.b32.xlu0 %v882, 16
      %v3189 = vpop.permute.xlu0 %3188
      %3190 = vrot.lane.b32.xlu0 %v883, 16
      %v3191 = vpop.permute.xlu0 %3190
      %3192 = vrot.lane.b32.xlu0 %v884, 16
      %v3193 = vpop.permute.xlu0 %3192
      %3194 = vrot.lane.b32.xlu0 %v885, 16
      %v3195 = vpop.permute.xlu0 %3194
      %3196 = vrot.lane.b32.xlu0 %v886, 16
      %v3197 = vpop.permute.xlu0 %3196
      %3198 = vrot.lane.b32.xlu0 %v887, 16
      %v3199 = vpop.permute.xlu0 %3198
      %3200 = vrot.lane.b32.xlu0 %v888, 16
      %v3201 = vpop.permute.xlu0 %3200
      %3202 = vrot.lane.b32.xlu0 %v889, 16
      %v3203 = vpop.permute.xlu0 %3202
      %3204 = vrot.lane.b32.xlu0 %v890, 16
      %v3205 = vpop.permute.xlu0 %3204
      %3206 = vrot.lane.b32.xlu0 %v891, 16
      %v3207 = vpop.permute.xlu0 %3206
      %3208 = vrot.lane.b32.xlu0 %v892, 16
      %v3209 = vpop.permute.xlu0 %3208
      %3210 = vrot.lane.b32.xlu0 %v893, 16
      %v3211 = vpop.permute.xlu0 %3210
      %3212 = vrot.lane.b32.xlu0 %v894, 16
      %v3213 = vpop.permute.xlu0 %3212
      %3214 = vrot.lane.b32.xlu0 %v895, 16
      %v3215 = vpop.permute.xlu0 %3214
      %3216 = vrot.lane.b32.xlu0 %v896, 16
      %v3217 = vpop.permute.xlu0 %3216
      %3218 = vrot.lane.b32.xlu0 %v897, 16
      %v3219 = vpop.permute.xlu0 %3218
      %3220 = vrot.lane.b32.xlu0 %v898, 16
      %v3221 = vpop.permute.xlu0 %3220
      %3222 = vrot.lane.b32.xlu0 %v899, 16
      %v3223 = vpop.permute.xlu0 %3222
      %3224 = vrot.lane.b32.xlu0 %v900, 16
      %v3225 = vpop.permute.xlu0 %3224
      %3226 = vrot.lane.b32.xlu0 %v1810, 16
      %v3227 = vpop.permute.xlu0 %3226
      %v3228 = vshrl.u32 %v1810, 16
      %3230 = vrot.lane.b32.xlu0 %v3038, 24
      %v3231 = vpop.permute.xlu0 %3230
      %3232 = vrot.lane.b32.xlu0 %v3040, 24
      %v3233 = vpop.permute.xlu0 %3232
      %3234 = vrot.lane.b32.xlu0 %v3042, 24
      %v3235 = vpop.permute.xlu0 %3234
      %3236 = vrot.lane.b32.xlu0 %v3044, 24
      %v3237 = vpop.permute.xlu0 %3236
      %3238 = vrot.lane.b32.xlu0 %v3046, 24
      %v3239 = vpop.permute.xlu0 %3238
      %3240 = vrot.lane.b32.xlu0 %v3048, 24
      %v3241 = vpop.permute.xlu0 %3240
      %3242 = vrot.lane.b32.xlu0 %v3050, 24
      %v3243 = vpop.permute.xlu0 %3242
      %3244 = vrot.lane.b32.xlu0 %v3052, 24
      %v3245 = vpop.permute.xlu0 %3244
      %3246 = vrot.lane.b32.xlu0 %v3054, 24
      %v3247 = vpop.permute.xlu0 %3246
      %3248 = vrot.lane.b32.xlu0 %v3056, 24
      %v3249 = vpop.permute.xlu0 %3248
      %3250 = vrot.lane.b32.xlu0 %v3058, 24
      %v3251 = vpop.permute.xlu0 %3250
      %3252 = vrot.lane.b32.xlu0 %v3060, 24
      %v3253 = vpop.permute.xlu0 %3252
      %3254 = vrot.lane.b32.xlu0 %v3062, 24
      %v3255 = vpop.permute.xlu0 %3254
      %3256 = vrot.lane.b32.xlu0 %v3064, 24
      %v3257 = vpop.permute.xlu0 %3256
      %3258 = vrot.lane.b32.xlu0 %v3066, 24
      %v3259 = vpop.permute.xlu0 %3258
      %3260 = vrot.lane.b32.xlu0 %v3068, 24
      %v3261 = vpop.permute.xlu0 %3260
      %3262 = vrot.lane.b32.xlu0 %v3070, 24
      %v3263 = vpop.permute.xlu0 %3262
      %3264 = vrot.lane.b32.xlu0 %v3072, 24
      %v3265 = vpop.permute.xlu0 %3264
      %3266 = vrot.lane.b32.xlu0 %v3074, 24
      %v3267 = vpop.permute.xlu0 %3266
      %3268 = vrot.lane.b32.xlu0 %v3076, 24
      %v3269 = vpop.permute.xlu0 %3268
      %3270 = vrot.lane.b32.xlu0 %v3078, 24
      %v3271 = vpop.permute.xlu0 %3270
      %3272 = vrot.lane.b32.xlu0 %v3080, 24
      %v3273 = vpop.permute.xlu0 %3272
      %3274 = vrot.lane.b32.xlu0 %v3082, 24
      %v3275 = vpop.permute.xlu0 %3274
      %3276 = vrot.lane.b32.xlu0 %v3084, 24
      %v3277 = vpop.permute.xlu0 %3276
      %3278 = vrot.lane.b32.xlu0 %v3086, 24
      %v3279 = vpop.permute.xlu0 %3278
      %3280 = vrot.lane.b32.xlu0 %v3088, 24
      %v3281 = vpop.permute.xlu0 %3280
      %3282 = vrot.lane.b32.xlu0 %v3090, 24
      %v3283 = vpop.permute.xlu0 %3282
      %3284 = vrot.lane.b32.xlu0 %v3092, 24
      %v3285 = vpop.permute.xlu0 %3284
      %3286 = vrot.lane.b32.xlu0 %v3094, 24
      %v3287 = vpop.permute.xlu0 %3286
      %3288 = vrot.lane.b32.xlu0 %v3096, 24
      %v3289 = vpop.permute.xlu0 %3288
      %3290 = vrot.lane.b32.xlu0 %v3098, 24
      %v3291 = vpop.permute.xlu0 %3290
      %3292 = vrot.lane.b32.xlu0 %v3228, 24
      %v3293 = vpop.permute.xlu0 %3292
      %v3295 = vsel %vm1959, %v869, %v3101
      %v3297 = vsel %vm1959, %v870, %v3103
      %v3299 = vsel %vm1959, %v871, %v3105
      %v3301 = vsel %vm1959, %v872, %v3107
      %v3303 = vsel %vm1959, %v873, %v3109
      %v3305 = vsel %vm1959, %v874, %v3111
      %v3307 = vsel %vm1959, %v875, %v3113
      %v3309 = vsel %vm1959, %v876, %v3115
      %v3311 = vsel %vm1959, %v877, %v3117
      %v3313 = vsel %vm1959, %v878, %v3119
      %v3315 = vsel %vm1959, %v879, %v3121
      %v3317 = vsel %vm1959, %v880, %v3123
      %v3319 = vsel %vm1959, %v881, %v3125
      %v3321 = vsel %vm1959, %v882, %v3127
      %v3323 = vsel %vm1959, %v883, %v3129
      %v3325 = vsel %vm1959, %v884, %v3131
      %v3327 = vsel %vm1959, %v885, %v3133
      %v3329 = vsel %vm1959, %v886, %v3135
      %v3331 = vsel %vm1959, %v887, %v3137
      %v3333 = vsel %vm1959, %v888, %v3139
      %v3335 = vsel %vm1959, %v889, %v3141
      %v3337 = vsel %vm1959, %v890, %v3143
      %v3339 = vsel %vm1959, %v891, %v3145
      %v3341 = vsel %vm1959, %v892, %v3147
      %v3343 = vsel %vm1959, %v893, %v3149
      %v3345 = vsel %vm1959, %v894, %v3151
      %v3347 = vsel %vm1959, %v895, %v3153
      %v3349 = vsel %vm1959, %v896, %v3155
      %v3351 = vsel %vm1959, %v897, %v3157
      %v3353 = vsel %vm1959, %v898, %v3159
      %v3355 = vsel %vm1959, %v899, %v3161
      %v3357 = vsel %vm1959, %v900, %v3163
      %v3359 = vsel %vm2088, %v3295, %v3165
      %v3361 = vsel %vm2088, %v3297, %v3167
      %v3363 = vsel %vm2088, %v3299, %v3169
      %v3365 = vsel %vm2088, %v3301, %v3171
      %v3367 = vsel %vm2088, %v3303, %v3173
      %v3369 = vsel %vm2088, %v3305, %v3175
      %v3371 = vsel %vm2088, %v3307, %v3177
      %v3373 = vsel %vm2088, %v3309, %v3179
      %v3375 = vsel %vm2088, %v3311, %v3181
      %v3377 = vsel %vm2088, %v3313, %v3183
      %v3379 = vsel %vm2088, %v3315, %v3185
      %v3381 = vsel %vm2088, %v3317, %v3187
      %v3383 = vsel %vm2088, %v3319, %v3189
      %v3385 = vsel %vm2088, %v3321, %v3191
      %v3387 = vsel %vm2088, %v3323, %v3193
      %v3389 = vsel %vm2088, %v3325, %v3195
      %v3391 = vsel %vm2088, %v3327, %v3197
      %v3393 = vsel %vm2088, %v3329, %v3199
      %v3395 = vsel %vm2088, %v3331, %v3201
      %v3397 = vsel %vm2088, %v3333, %v3203
      %v3399 = vsel %vm2088, %v3335, %v3205
      %v3401 = vsel %vm2088, %v3337, %v3207
      %v3403 = vsel %vm2088, %v3339, %v3209
      %v3405 = vsel %vm2088, %v3341, %v3211
      %v3407 = vsel %vm2088, %v3343, %v3213
      %v3409 = vsel %vm2088, %v3345, %v3215
      %v3411 = vsel %vm2088, %v3347, %v3217
      %v3413 = vsel %vm2088, %v3349, %v3219
      %v3415 = vsel %vm2088, %v3351, %v3221
      %v3417 = vsel %vm2088, %v3353, %v3223
      %v3419 = vsel %vm2088, %v3355, %v3225
      %v3421 = vsel %vm2088, %v3357, %v3227
      %v3423 = vsel %vm2217, %v3359, %v3231
      %v3425 = vsel %vm2217, %v3361, %v3233
      %v3427 = vsel %vm2217, %v3363, %v3235
      %v3429 = vsel %vm2217, %v3365, %v3237
      %v3431 = vsel %vm2217, %v3367, %v3239
      %v3433 = vsel %vm2217, %v3369, %v3241
      %v3435 = vsel %vm2217, %v3371, %v3243
      %v3437 = vsel %vm2217, %v3373, %v3245
      %v3439 = vsel %vm2217, %v3375, %v3247
      %v3441 = vsel %vm2217, %v3377, %v3249
      %v3443 = vsel %vm2217, %v3379, %v3251
      %v3445 = vsel %vm2217, %v3381, %v3253
      %v3447 = vsel %vm2217, %v3383, %v3255
      %v3449 = vsel %vm2217, %v3385, %v3257
      %v3451 = vsel %vm2217, %v3387, %v3259
      %v3453 = vsel %vm2217, %v3389, %v3261
      %v3455 = vsel %vm2217, %v3391, %v3263
      %v3457 = vsel %vm2217, %v3393, %v3265
      %v3459 = vsel %vm2217, %v3395, %v3267
      %v3461 = vsel %vm2217, %v3397, %v3269
      %v3463 = vsel %vm2217, %v3399, %v3271
      %v3465 = vsel %vm2217, %v3401, %v3273
      %v3467 = vsel %vm2217, %v3403, %v3275
      %v3469 = vsel %vm2217, %v3405, %v3277
      %v3471 = vsel %vm2217, %v3407, %v3279
      %v3473 = vsel %vm2217, %v3409, %v3281
      %v3475 = vsel %vm2217, %v3411, %v3283
      %v3477 = vsel %vm2217, %v3413, %v3285
      %v3479 = vsel %vm2217, %v3415, %v3287
      %v3481 = vsel %vm2217, %v3417, %v3289
      %v3483 = vsel %vm2217, %v3419, %v3291
      %v3485 = vsel %vm2217, %v3421, %v3293
      %v3486 = vshrl.u32 %v2219, 16
      %v3488 = vshll.u32 %v2219, 16
      %v3490 = vrot.slane %v3488, 1
      %v3491 = vor.u32 %v3486, %v3490
      %v3492 = vshll.u32 %v2221, 16
      %v3494 = vrot.slane %v3492, 1
      %v3495 = vsel %vm901, %v3491, %v3494
      %v3496 = vshrl.u32 %v2221, 16
      %v3498 = vor.u32 %v3496, %v3494
      %v3499 = vshll.u32 %v3423, 16
      %v3501 = vrot.slane %v3499, 1
      %v3502 = vsel %vm901, %v3498, %v3501
      %v3503 = vshrl.u32 %v2223, 16
      %v3505 = vshll.u32 %v2223, 16
      %v3507 = vrot.slane %v3505, 1
      %v3508 = vor.u32 %v3503, %v3507
      %v3509 = vshll.u32 %v2225, 16
      %v3511 = vrot.slane %v3509, 1
      %v3512 = vsel %vm901, %v3508, %v3511
      %v3513 = vshrl.u32 %v2225, 16
      %v3515 = vor.u32 %v3513, %v3511
      %v3516 = vshll.u32 %v3425, 16
      %v3518 = vrot.slane %v3516, 1
      %v3519 = vsel %vm901, %v3515, %v3518
      %v3520 = vshrl.u32 %v2227, 16
      %v3522 = vshll.u32 %v2227, 16
      %v3524 = vrot.slane %v3522, 1
      %v3525 = vor.u32 %v3520, %v3524
      %v3526 = vshll.u32 %v2229, 16
      %v3528 = vrot.slane %v3526, 1
      %v3529 = vsel %vm901, %v3525, %v3528
      %v3530 = vshrl.u32 %v2229, 16
      %v3532 = vor.u32 %v3530, %v3528
      %v3533 = vshll.u32 %v3427, 16
      %v3535 = vrot.slane %v3533, 1
      %v3536 = vsel %vm901, %v3532, %v3535
      %v3537 = vshrl.u32 %v2231, 16
      %v3539 = vshll.u32 %v2231, 16
      %v3541 = vrot.slane %v3539, 1
      %v3542 = vor.u32 %v3537, %v3541
      %v3543 = vshll.u32 %v2233, 16
      %v3545 = vrot.slane %v3543, 1
      %v3546 = vsel %vm901, %v3542, %v3545
      %v3547 = vshrl.u32 %v2233, 16
      %v3549 = vor.u32 %v3547, %v3545
      %v3550 = vshll.u32 %v3429, 16
      %v3552 = vrot.slane %v3550, 1
      %v3553 = vsel %vm901, %v3549, %v3552
      %v3554 = vshrl.u32 %v2235, 16
      %v3556 = vshll.u32 %v2235, 16
      %v3558 = vrot.slane %v3556, 1
      %v3559 = vor.u32 %v3554, %v3558
      %v3560 = vshll.u32 %v2237, 16
      %v3562 = vrot.slane %v3560, 1
      %v3563 = vsel %vm901, %v3559, %v3562
      %v3564 = vshrl.u32 %v2237, 16
      %v3566 = vor.u32 %v3564, %v3562
      %v3567 = vshll.u32 %v3431, 16
      %v3569 = vrot.slane %v3567, 1
      %v3570 = vsel %vm901, %v3566, %v3569
      %v3571 = vshrl.u32 %v2239, 16
      %v3573 = vshll.u32 %v2239, 16
      %v3575 = vrot.slane %v3573, 1
      %v3576 = vor.u32 %v3571, %v3575
      %v3577 = vshll.u32 %v2241, 16
      %v3579 = vrot.slane %v3577, 1
      %v3580 = vsel %vm901, %v3576, %v3579
      %v3581 = vshrl.u32 %v2241, 16
      %v3583 = vor.u32 %v3581, %v3579
      %v3584 = vshll.u32 %v3433, 16
      %v3586 = vrot.slane %v3584, 1
      %v3587 = vsel %vm901, %v3583, %v3586
      %v3588 = vshrl.u32 %v2243, 16
      %v3590 = vshll.u32 %v2243, 16
      %v3592 = vrot.slane %v3590, 1
      %v3593 = vor.u32 %v3588, %v3592
      %v3594 = vshll.u32 %v2245, 16
      %v3596 = vrot.slane %v3594, 1
      %v3597 = vsel %vm901, %v3593, %v3596
      %v3598 = vshrl.u32 %v2245, 16
      %v3600 = vor.u32 %v3598, %v3596
      %v3601 = vshll.u32 %v3435, 16
      %v3603 = vrot.slane %v3601, 1
      %v3604 = vsel %vm901, %v3600, %v3603
      %v3605 = vshrl.u32 %v2247, 16
      %v3607 = vshll.u32 %v2247, 16
      %v3609 = vrot.slane %v3607, 1
      %v3610 = vor.u32 %v3605, %v3609
      %v3611 = vshll.u32 %v2249, 16
      %v3613 = vrot.slane %v3611, 1
      %v3614 = vsel %vm901, %v3610, %v3613
      %v3615 = vshrl.u32 %v2249, 16
      %v3617 = vor.u32 %v3615, %v3613
      %v3618 = vshll.u32 %v3437, 16
      %v3620 = vrot.slane %v3618, 1
      %v3621 = vsel %vm901, %v3617, %v3620
      %v3622 = vshrl.u32 %v2251, 16
      %v3624 = vshll.u32 %v2251, 16
      %v3626 = vrot.slane %v3624, 1
      %v3627 = vor.u32 %v3622, %v3626
      %v3628 = vshll.u32 %v2253, 16
      %v3630 = vrot.slane %v3628, 1
      %v3631 = vsel %vm901, %v3627, %v3630
      %v3632 = vshrl.u32 %v2253, 16
      %v3634 = vor.u32 %v3632, %v3630
      %v3635 = vshll.u32 %v3439, 16
      %v3637 = vrot.slane %v3635, 1
      %v3638 = vsel %vm901, %v3634, %v3637
      %v3639 = vshrl.u32 %v2255, 16
      %v3641 = vshll.u32 %v2255, 16
      %v3643 = vrot.slane %v3641, 1
      %v3644 = vor.u32 %v3639, %v3643
      %v3645 = vshll.u32 %v2257, 16
      %v3647 = vrot.slane %v3645, 1
      %v3648 = vsel %vm901, %v3644, %v3647
      %v3649 = vshrl.u32 %v2257, 16
      %v3651 = vor.u32 %v3649, %v3647
      %v3652 = vshll.u32 %v3441, 16
      %v3654 = vrot.slane %v3652, 1
      %v3655 = vsel %vm901, %v3651, %v3654
      %v3656 = vshrl.u32 %v2259, 16
      %v3658 = vshll.u32 %v2259, 16
      %v3660 = vrot.slane %v3658, 1
      %v3661 = vor.u32 %v3656, %v3660
      %v3662 = vshll.u32 %v2261, 16
      %v3664 = vrot.slane %v3662, 1
      %v3665 = vsel %vm901, %v3661, %v3664
      %v3666 = vshrl.u32 %v2261, 16
      %v3668 = vor.u32 %v3666, %v3664
      %v3669 = vshll.u32 %v3443, 16
      %v3671 = vrot.slane %v3669, 1
      %v3672 = vsel %vm901, %v3668, %v3671
      %v3673 = vshrl.u32 %v2263, 16
      %v3675 = vshll.u32 %v2263, 16
      %v3677 = vrot.slane %v3675, 1
      %v3678 = vor.u32 %v3673, %v3677
      %v3679 = vshll.u32 %v2265, 16
      %v3681 = vrot.slane %v3679, 1
      %v3682 = vsel %vm901, %v3678, %v3681
      %v3683 = vshrl.u32 %v2265, 16
      %v3685 = vor.u32 %v3683, %v3681
      %v3686 = vshll.u32 %v3445, 16
      %v3688 = vrot.slane %v3686, 1
      %v3689 = vsel %vm901, %v3685, %v3688
      %v3690 = vshrl.u32 %v2267, 16
      %v3692 = vshll.u32 %v2267, 16
      %v3694 = vrot.slane %v3692, 1
      %v3695 = vor.u32 %v3690, %v3694
      %v3696 = vshll.u32 %v2269, 16
      %v3698 = vrot.slane %v3696, 1
      %v3699 = vsel %vm901, %v3695, %v3698
      %v3700 = vshrl.u32 %v2269, 16
      %v3702 = vor.u32 %v3700, %v3698
      %v3703 = vshll.u32 %v3447, 16
      %v3705 = vrot.slane %v3703, 1
      %v3706 = vsel %vm901, %v3702, %v3705
      %v3707 = vshrl.u32 %v2271, 16
      %v3709 = vshll.u32 %v2271, 16
      %v3711 = vrot.slane %v3709, 1
      %v3712 = vor.u32 %v3707, %v3711
      %v3713 = vshll.u32 %v2273, 16
      %v3715 = vrot.slane %v3713, 1
      %v3716 = vsel %vm901, %v3712, %v3715
      %v3717 = vshrl.u32 %v2273, 16
      %v3719 = vor.u32 %v3717, %v3715
      %v3720 = vshll.u32 %v3449, 16
      %v3722 = vrot.slane %v3720, 1
      %v3723 = vsel %vm901, %v3719, %v3722
      %v3724 = vshrl.u32 %v2275, 16
      %v3726 = vshll.u32 %v2275, 16
      %v3728 = vrot.slane %v3726, 1
      %v3729 = vor.u32 %v3724, %v3728
      %v3730 = vshll.u32 %v2277, 16
      %v3732 = vrot.slane %v3730, 1
      %v3733 = vsel %vm901, %v3729, %v3732
      %v3734 = vshrl.u32 %v2277, 16
      %v3736 = vor.u32 %v3734, %v3732
      %v3737 = vshll.u32 %v3451, 16
      %v3739 = vrot.slane %v3737, 1
      %v3740 = vsel %vm901, %v3736, %v3739
      %v3741 = vshrl.u32 %v2279, 16
      %v3743 = vshll.u32 %v2279, 16
      %v3745 = vrot.slane %v3743, 1
      %v3746 = vor.u32 %v3741, %v3745
      %v3747 = vshll.u32 %v2281, 16
      %v3749 = vrot.slane %v3747, 1
      %v3750 = vsel %vm901, %v3746, %v3749
      %v3751 = vshrl.u32 %v2281, 16
      %v3753 = vor.u32 %v3751, %v3749
      %v3754 = vshll.u32 %v3453, 16
      %v3756 = vrot.slane %v3754, 1
      %v3757 = vsel %vm901, %v3753, %v3756
      %v3758 = vshrl.u32 %v2283, 16
      %v3760 = vshll.u32 %v2283, 16
      %v3762 = vrot.slane %v3760, 1
      %v3763 = vor.u32 %v3758, %v3762
      %v3764 = vshll.u32 %v2285, 16
      %v3766 = vrot.slane %v3764, 1
      %v3767 = vsel %vm901, %v3763, %v3766
      %v3768 = vshrl.u32 %v2285, 16
      %v3770 = vor.u32 %v3768, %v3766
      %v3771 = vshll.u32 %v3455, 16
      %v3773 = vrot.slane %v3771, 1
      %v3774 = vsel %vm901, %v3770, %v3773
      %v3775 = vshrl.u32 %v2287, 16
      %v3777 = vshll.u32 %v2287, 16
      %v3779 = vrot.slane %v3777, 1
      %v3780 = vor.u32 %v3775, %v3779
      %v3781 = vshll.u32 %v2289, 16
      %v3783 = vrot.slane %v3781, 1
      %v3784 = vsel %vm901, %v3780, %v3783
      %v3785 = vshrl.u32 %v2289, 16
      %v3787 = vor.u32 %v3785, %v3783
      %v3788 = vshll.u32 %v3457, 16
      %v3790 = vrot.slane %v3788, 1
      %v3791 = vsel %vm901, %v3787, %v3790
      %v3792 = vshrl.u32 %v2291, 16
      %v3794 = vshll.u32 %v2291, 16
      %v3796 = vrot.slane %v3794, 1
      %v3797 = vor.u32 %v3792, %v3796
      %v3798 = vshll.u32 %v2293, 16
      %v3800 = vrot.slane %v3798, 1
      %v3801 = vsel %vm901, %v3797, %v3800
      %v3802 = vshrl.u32 %v2293, 16
      %v3804 = vor.u32 %v3802, %v3800
      %v3805 = vshll.u32 %v3459, 16
      %v3807 = vrot.slane %v3805, 1
      %v3808 = vsel %vm901, %v3804, %v3807
      %v3809 = vshrl.u32 %v2295, 16
      %v3811 = vshll.u32 %v2295, 16
      %v3813 = vrot.slane %v3811, 1
      %v3814 = vor.u32 %v3809, %v3813
      %v3815 = vshll.u32 %v2297, 16
      %v3817 = vrot.slane %v3815, 1
      %v3818 = vsel %vm901, %v3814, %v3817
      %v3819 = vshrl.u32 %v2297, 16
      %v3821 = vor.u32 %v3819, %v3817
      %v3822 = vshll.u32 %v3461, 16
      %v3824 = vrot.slane %v3822, 1
      %v3825 = vsel %vm901, %v3821, %v3824
      %v3826 = vshrl.u32 %v2299, 16
      %v3828 = vshll.u32 %v2299, 16
      %v3830 = vrot.slane %v3828, 1
      %v3831 = vor.u32 %v3826, %v3830
      %v3832 = vshll.u32 %v2301, 16
      %v3834 = vrot.slane %v3832, 1
      %v3835 = vsel %vm901, %v3831, %v3834
      %v3836 = vshrl.u32 %v2301, 16
      %v3838 = vor.u32 %v3836, %v3834
      %v3839 = vshll.u32 %v3463, 16
      %v3841 = vrot.slane %v3839, 1
      %v3842 = vsel %vm901, %v3838, %v3841
      %v3843 = vshrl.u32 %v2303, 16
      %v3845 = vshll.u32 %v2303, 16
      %v3847 = vrot.slane %v3845, 1
      %v3848 = vor.u32 %v3843, %v3847
      %v3849 = vshll.u32 %v2305, 16
      %v3851 = vrot.slane %v3849, 1
      %v3852 = vsel %vm901, %v3848, %v3851
      %v3853 = vshrl.u32 %v2305, 16
      %v3855 = vor.u32 %v3853, %v3851
      %v3856 = vshll.u32 %v3465, 16
      %v3858 = vrot.slane %v3856, 1
      %v3859 = vsel %vm901, %v3855, %v3858
      %v3860 = vshrl.u32 %v2307, 16
      %v3862 = vshll.u32 %v2307, 16
      %v3864 = vrot.slane %v3862, 1
      %v3865 = vor.u32 %v3860, %v3864
      %v3866 = vshll.u32 %v2309, 16
      %v3868 = vrot.slane %v3866, 1
      %v3869 = vsel %vm901, %v3865, %v3868
      %v3870 = vshrl.u32 %v2309, 16
      %v3872 = vor.u32 %v3870, %v3868
      %v3873 = vshll.u32 %v3467, 16
      %v3875 = vrot.slane %v3873, 1
      %v3876 = vsel %vm901, %v3872, %v3875
      %v3877 = vshrl.u32 %v2311, 16
      %v3879 = vshll.u32 %v2311, 16
      %v3881 = vrot.slane %v3879, 1
      %v3882 = vor.u32 %v3877, %v3881
      %v3883 = vshll.u32 %v2313, 16
      %v3885 = vrot.slane %v3883, 1
      %v3886 = vsel %vm901, %v3882, %v3885
      %v3887 = vshrl.u32 %v2313, 16
      %v3889 = vor.u32 %v3887, %v3885
      %v3890 = vshll.u32 %v3469, 16
      %v3892 = vrot.slane %v3890, 1
      %v3893 = vsel %vm901, %v3889, %v3892
      %v3894 = vshrl.u32 %v2315, 16
      %v3896 = vshll.u32 %v2315, 16
      %v3898 = vrot.slane %v3896, 1
      %v3899 = vor.u32 %v3894, %v3898
      %v3900 = vshll.u32 %v2317, 16
      %v3902 = vrot.slane %v3900, 1
      %v3903 = vsel %vm901, %v3899, %v3902
      %v3904 = vshrl.u32 %v2317, 16
      %v3906 = vor.u32 %v3904, %v3902
      %v3907 = vshll.u32 %v3471, 16
      %v3909 = vrot.slane %v3907, 1
      %v3910 = vsel %vm901, %v3906, %v3909
      %v3911 = vshrl.u32 %v2319, 16
      %v3913 = vshll.u32 %v2319, 16
      %v3915 = vrot.slane %v3913, 1
      %v3916 = vor.u32 %v3911, %v3915
      %v3917 = vshll.u32 %v2321, 16
      %v3919 = vrot.slane %v3917, 1
      %v3920 = vsel %vm901, %v3916, %v3919
      %v3921 = vshrl.u32 %v2321, 16
      %v3923 = vor.u32 %v3921, %v3919
      %v3924 = vshll.u32 %v3473, 16
      %v3926 = vrot.slane %v3924, 1
      %v3927 = vsel %vm901, %v3923, %v3926
      %v3928 = vshrl.u32 %v2323, 16
      %v3930 = vshll.u32 %v2323, 16
      %v3932 = vrot.slane %v3930, 1
      %v3933 = vor.u32 %v3928, %v3932
      %v3934 = vshll.u32 %v2325, 16
      %v3936 = vrot.slane %v3934, 1
      %v3937 = vsel %vm901, %v3933, %v3936
      %v3938 = vshrl.u32 %v2325, 16
      %v3940 = vor.u32 %v3938, %v3936
      %v3941 = vshll.u32 %v3475, 16
      %v3943 = vrot.slane %v3941, 1
      %v3944 = vsel %vm901, %v3940, %v3943
      %v3945 = vshrl.u32 %v2327, 16
      %v3947 = vshll.u32 %v2327, 16
      %v3949 = vrot.slane %v3947, 1
      %v3950 = vor.u32 %v3945, %v3949
      %v3951 = vshll.u32 %v2329, 16
      %v3953 = vrot.slane %v3951, 1
      %v3954 = vsel %vm901, %v3950, %v3953
      %v3955 = vshrl.u32 %v2329, 16
      %v3957 = vor.u32 %v3955, %v3953
      %v3958 = vshll.u32 %v3477, 16
      %v3960 = vrot.slane %v3958, 1
      %v3961 = vsel %vm901, %v3957, %v3960
      %v3962 = vshrl.u32 %v2331, 16
      %v3964 = vshll.u32 %v2331, 16
      %v3966 = vrot.slane %v3964, 1
      %v3967 = vor.u32 %v3962, %v3966
      %v3968 = vshll.u32 %v2333, 16
      %v3970 = vrot.slane %v3968, 1
      %v3971 = vsel %vm901, %v3967, %v3970
      %v3972 = vshrl.u32 %v2333, 16
      %v3974 = vor.u32 %v3972, %v3970
      %v3975 = vshll.u32 %v3479, 16
      %v3977 = vrot.slane %v3975, 1
      %v3978 = vsel %vm901, %v3974, %v3977
      %v3979 = vshrl.u32 %v2335, 16
      %v3981 = vshll.u32 %v2335, 16
      %v3983 = vrot.slane %v3981, 1
      %v3984 = vor.u32 %v3979, %v3983
      %v3985 = vshll.u32 %v2337, 16
      %v3987 = vrot.slane %v3985, 1
      %v3988 = vsel %vm901, %v3984, %v3987
      %v3989 = vshrl.u32 %v2337, 16
      %v3991 = vor.u32 %v3989, %v3987
      %v3992 = vshll.u32 %v3481, 16
      %v3994 = vrot.slane %v3992, 1
      %v3995 = vsel %vm901, %v3991, %v3994
      %v3996 = vshrl.u32 %v2339, 16
      %v3998 = vshll.u32 %v2339, 16
      %v4000 = vrot.slane %v3998, 1
      %v4001 = vor.u32 %v3996, %v4000
      %v4002 = vshll.u32 %v2341, 16
      %v4004 = vrot.slane %v4002, 1
      %v4005 = vsel %vm901, %v4001, %v4004
      %v4006 = vshrl.u32 %v2341, 16
      %v4008 = vor.u32 %v4006, %v4004
      %v4009 = vshll.u32 %v3483, 16
      %v4011 = vrot.slane %v4009, 1
      %v4012 = vsel %vm901, %v4008, %v4011
      %v4013 = vshrl.u32 %v2343, 16
      %v4015 = vshll.u32 %v2343, 16
      %v4017 = vrot.slane %v4015, 1
      %v4018 = vor.u32 %v4013, %v4017
      %v4019 = vshll.u32 %v2345, 16
      %v4021 = vrot.slane %v4019, 1
      %v4022 = vsel %vm901, %v4018, %v4021
      %v4023 = vshrl.u32 %v2345, 16
      %v4025 = vor.u32 %v4023, %v4021
      %v4026 = vshll.u32 %v3485, 16
      %v4028 = vrot.slane %v4026, 1
      %v4029 = vsel %vm901, %v4025, %v4028
      %s4030 = scalar_lea.vmem %s1, 16
      %v4031 = vld [vmem:[%s4030] sm:$0xf]
      %v4032 = vld [vmem:[%s4030 + $0x4] sm:$0xf]
      %v4033 = vld [vmem:[%s4030 + $0x8] sm:$0xf]
      %v4034 = vld [vmem:[%s4030 + $0xc] sm:$0xf]
      %v4039 = vunpack.c.l.b16 %v4031
      %v4040 = vunpack.c.l.b16 %v4032
      %v4041 = vunpack.c.l.b16 %v4033
      %v4042 = vunpack.c.l.b16 %v4034
      %v4043 = vpack.c.b16 %v4040, %v4039
      %v4044 = vpack.c.b16 %v4042, %v4041
      %v4048 = vsel %vm2362, %v3495, 0
      %v4051 = vsel %vm2362, %v3502, 0
      %v4054 = vsel %vm2362, %v3512, 0
      %v4057 = vsel %vm2362, %v3519, 0
      %v4060 = vsel %vm2362, %v3529, 0
      %v4063 = vsel %vm2362, %v3536, 0
      %v4066 = vsel %vm2362, %v3546, 0
      %v4069 = vsel %vm2362, %v3553, 0
      %v4072 = vsel %vm2362, %v3563, 0
      %v4075 = vsel %vm2362, %v3570, 0
      %v4078 = vsel %vm2362, %v3580, 0
      %v4081 = vsel %vm2362, %v3587, 0
      %v4084 = vsel %vm2362, %v3597, 0
      %v4087 = vsel %vm2362, %v3604, 0
      %v4090 = vsel %vm2362, %v3614, 0
      %v4093 = vsel %vm2362, %v3621, 0
      %v4096 = vsel %vm2362, %v3631, 0
      %v4099 = vsel %vm2362, %v3638, 0
      %v4102 = vsel %vm2362, %v3648, 0
      %v4105 = vsel %vm2362, %v3655, 0
      %v4108 = vsel %vm2362, %v3665, 0
      %v4111 = vsel %vm2362, %v3672, 0
      %v4114 = vsel %vm2362, %v3682, 0
      %v4117 = vsel %vm2362, %v3689, 0
      %v4120 = vsel %vm2362, %v3699, 0
      %v4123 = vsel %vm2362, %v3706, 0
      %v4126 = vsel %vm2362, %v3716, 0
      %v4129 = vsel %vm2362, %v3723, 0
      %v4132 = vsel %vm2362, %v3733, 0
      %v4135 = vsel %vm2362, %v3740, 0
      %v4138 = vsel %vm2362, %v3750, 0
      %v4141 = vsel %vm2362, %v3757, 0
      %v4144 = vsel %vm2362, %v3767, 0
      %v4147 = vsel %vm2362, %v3774, 0
      %v4150 = vsel %vm2362, %v3784, 0
      %v4153 = vsel %vm2362, %v3791, 0
      %v4156 = vsel %vm2362, %v3801, 0
      %v4159 = vsel %vm2362, %v3808, 0
      %v4162 = vsel %vm2362, %v3818, 0
      %v4165 = vsel %vm2362, %v3825, 0
      %v4168 = vsel %vm2362, %v3835, 0
      %v4171 = vsel %vm2362, %v3842, 0
      %v4174 = vsel %vm2362, %v3852, 0
      %v4177 = vsel %vm2362, %v3859, 0
      %v4180 = vsel %vm2362, %v3869, 0
      %v4183 = vsel %vm2362, %v3876, 0
      %v4186 = vsel %vm2362, %v3886, 0
      %v4189 = vsel %vm2362, %v3893, 0
      %v4192 = vsel %vm2362, %v3903, 0
      %v4195 = vsel %vm2362, %v3910, 0
      %v4198 = vsel %vm2362, %v3920, 0
      %v4201 = vsel %vm2362, %v3927, 0
      %v4204 = vsel %vm2362, %v3937, 0
      %v4207 = vsel %vm2362, %v3944, 0
      %v4210 = vsel %vm2362, %v3954, 0
      %v4213 = vsel %vm2362, %v3961, 0
      %v4216 = vsel %vm2362, %v3971, 0
      %v4219 = vsel %vm2362, %v3978, 0
      %v4222 = vsel %vm2362, %v3988, 0
      %v4225 = vsel %vm2362, %v3995, 0
      %v4228 = vsel %vm2362, %v4005, 0
      %v4231 = vsel %vm2362, %v4012, 0
      %v4234 = vsel %vm2362, %v4022, 0
      %v4237 = vsel %vm2362, %v4029, 0
      %4239 = vmatprep.subr.bf16.mxu0 0
      %4240 = vmatpush1.bf16.msra.mxu0 %v4043
      %4241 = vmatprep.subr.bf16.mxu0 0
      %4242 = vmatpush1.bf16.msra.mxu0 %v4044
      %4243 = vmatprep.subr.bf16.mxu0 0
      %4244 = vmatpush1.bf16.msra.mxu0 0
      %4245 = vmatprep.subr.bf16.mxu0 0
      %4246 = vmatpush1.bf16.msra.mxu0 0
      %4247 = vmatprep.subr.bf16.mxu0 0
      %4248 = vmatpush1.bf16.msra.mxu0 0
      %4249 = vmatprep.subr.bf16.mxu0 0
      %4250 = vmatpush1.bf16.msra.mxu0 0
      %4251 = vmatprep.subr.bf16.mxu0 0
      %4252 = vmatpush1.bf16.msra.mxu0 0
      %4253 = vmatprep.subr.bf16.mxu0 0
      %4254 = vmatpush1.bf16.msra.mxu0 0
      %4255 = vmatprep.subr.bf16.mxu0 0
      %4256 = vmatpush1.bf16.msra.mxu0 0
      %4257 = vmatprep.subr.bf16.mxu0 0
      %4258 = vmatpush1.bf16.msra.mxu0 0
      %4259 = vmatprep.subr.bf16.mxu0 0
      %4260 = vmatpush1.bf16.msra.mxu0 0
      %4261 = vmatprep.subr.bf16.mxu0 0
      %4262 = vmatpush1.bf16.msra.mxu0 0
      %4263 = vmatprep.subr.bf16.mxu0 0
      %4264 = vmatpush1.bf16.msra.mxu0 0
      %4265 = vmatprep.subr.bf16.mxu0 0
      %4266 = vmatpush1.bf16.msra.mxu0 0
      %4267 = vmatprep.subr.bf16.mxu0 0
      %4268 = vmatpush1.bf16.msra.mxu0 0
      %4269 = vmatprep.subr.bf16.mxu0 0
      %4270 = vmatpush1.bf16.msra.mxu0 0
      %4271 = vmatprep.mubr.bf16.mxu0 0
      %4272 = vmatmul.mubr.bf16.gmra.mrb[0].mxu0 %v4048
      %v4273 = vpop.f32.mrb[0].mxu0
      %v4274 = vadd.f32 0.0, %v4273
      %v4275 = vpop.f32.mrb[0].mxu0
      %v4276 = vpop.f32.mrb[0].mxu0
      %v4277 = vadd.f32 0.0, %v4276
      %v4278 = vpop.f32.mrb[0].mxu0
      %4279 = vmatprep.mubr.bf16.mxu0 0
      %4280 = vmatmul.mubr.bf16.gmra.mrb[0].mxu0 %v4051
      %v4281 = vpop.f32.mrb[0].mxu0
      %v4282 = vadd.f32 0.0, %v4281
      %v4283 = vpop.f32.mrb[0].mxu0
      %v4284 = vpop.f32.mrb[0].mxu0
      %v4285 = vadd.f32 0.0, %v4284
      %v4286 = vpop.f32.mrb[0].mxu0
      %4287 = vmatprep.mubr.bf16.mxu0 0
      %4288 = vmatmul.mubr.bf16.gmra.mrb[0].mxu0 %v4054
      %v4289 = vpop.f32.mrb[0].mxu0
      %v4290 = vadd.f32 0.0, %v4289
      %v4291 = vpop.f32.mrb[0].mxu0
      %v4292 = vpop.f32.mrb[0].mxu0
      %v4293 = vadd.f32 0.0, %v4292
      %v4294 = vpop.f32.mrb[0].mxu0
      %4295 = vmatprep.mubr.bf16.mxu0 0
      %4296 = vmatmul.mubr.bf16.gmra.mrb[0].mxu0 %v4057
      %v4297 = vpop.f32.mrb[0].mxu0
      %v4298 = vadd.f32 0.0, %v4297
      %v4299 = vpop.f32.mrb[0].mxu0
      %v4300 = vpop.f32.mrb[0].mxu0
      %v4301 = vadd.f32 0.0, %v4300
      %v4302 = vpop.f32.mrb[0].mxu0
      %4303 = vmatprep.mubr.bf16.mxu0 0
      %4304 = vmatmul.mubr.bf16.gmra.mrb[0].mxu0 %v4060
      %v4305 = vpop.f32.mrb[0].mxu0
      %v4306 = vadd.f32 0.0, %v4305
      %v4307 = vpop.f32.mrb[0].mxu0
      %v4308 = vpop.f32.mrb[0].mxu0
      %v4309 = vadd.f32 0.0, %v4308
      %v4310 = vpop.f32.mrb[0].mxu0
      %4311 = vmatprep.mubr.bf16.mxu0 0
      %4312 = vmatmul.mubr.bf16.gmra.mrb[0].mxu0 %v4063
      %v4313 = vpop.f32.mrb[0].mxu0
      %v4314 = vadd.f32 0.0, %v4313
      %v4315 = vpop.f32.mrb[0].mxu0
      %v4316 = vpop.f32.mrb[0].mxu0
      %v4317 = vadd.f32 0.0, %v4316
      %v4318 = vpop.f32.mrb[0].mxu0
      %4319 = vmatprep.mubr.bf16.mxu0 0
      %4320 = vmatmul.mubr.bf16.gmra.mrb[0].mxu0 %v4066
      %v4321 = vpop.f32.mrb[0].mxu0
      %v4322 = vadd.f32 0.0, %v4321
      %v4323 = vpop.f32.mrb[0].mxu0
      %v4324 = vpop.f32.mrb[0].mxu0
      %v4325 = vadd.f32 0.0, %v4324
      %v4326 = vpop.f32.mrb[0].mxu0
      %4327 = vmatprep.mubr.bf16.mxu0 0
      %4328 = vmatmul.mubr.bf16.gmra.mrb[0].mxu0 %v4069
      %v4329 = vpop.f32.mrb[0].mxu0
      %v4330 = vadd.f32 0.0, %v4329
      %v4331 = vpop.f32.mrb[0].mxu0
      %v4332 = vpop.f32.mrb[0].mxu0
      %v4333 = vadd.f32 0.0, %v4332
      %v4334 = vpop.f32.mrb[0].mxu0
      %4335 = vmatprep.mubr.bf16.mxu0 0
      %4336 = vmatmul.mubr.bf16.gmra.mrb[0].mxu0 %v4072
      %v4337 = vpop.f32.mrb[0].mxu0
      %v4338 = vadd.f32 0.0, %v4337
      %v4339 = vpop.f32.mrb[0].mxu0
      %v4340 = vpop.f32.mrb[0].mxu0
      %v4341 = vadd.f32 0.0, %v4340
      %v4342 = vpop.f32.mrb[0].mxu0
      %4343 = vmatprep.mubr.bf16.mxu0 0
      %4344 = vmatmul.mubr.bf16.gmra.mrb[0].mxu0 %v4075
      %v4345 = vpop.f32.mrb[0].mxu0
      %v4346 = vadd.f32 0.0, %v4345
      %v4347 = vpop.f32.mrb[0].mxu0
      %v4348 = vpop.f32.mrb[0].mxu0
      %v4349 = vadd.f32 0.0, %v4348
      %v4350 = vpop.f32.mrb[0].mxu0
      %4351 = vmatprep.mubr.bf16.mxu0 0
      %4352 = vmatmul.mubr.bf16.gmra.mrb[0].mxu0 %v4078
      %v4353 = vpop.f32.mrb[0].mxu0
      %v4354 = vadd.f32 0.0, %v4353
      %v4355 = vpop.f32.mrb[0].mxu0
      %v4356 = vpop.f32.mrb[0].mxu0
      %v4357 = vadd.f32 0.0, %v4356
      %v4358 = vpop.f32.mrb[0].mxu0
      %4359 = vmatprep.mubr.bf16.mxu0 0
      %4360 = vmatmul.mubr.bf16.gmra.mrb[0].mxu0 %v4081
      %v4361 = vpop.f32.mrb[0].mxu0
      %v4362 = vadd.f32 0.0, %v4361
      %v4363 = vpop.f32.mrb[0].mxu0
      %v4364 = vpop.f32.mrb[0].mxu0
      %v4365 = vadd.f32 0.0, %v4364
      %v4366 = vpop.f32.mrb[0].mxu0
      %4367 = vmatprep.mubr.bf16.mxu0 0
      %4368 = vmatmul.mubr.bf16.gmra.mrb[0].mxu0 %v4084
      %v4369 = vpop.f32.mrb[0].mxu0
      %v4370 = vadd.f32 0.0, %v4369
      %v4371 = vpop.f32.mrb[0].mxu0
      %v4372 = vpop.f32.mrb[0].mxu0
      %v4373 = vadd.f32 0.0, %v4372
      %v4374 = vpop.f32.mrb[0].mxu0
      %4375 = vmatprep.mubr.bf16.mxu0 0
      %4376 = vmatmul.mubr.bf16.gmra.mrb[0].mxu0 %v4087
      %v4377 = vpop.f32.mrb[0].mxu0
      %v4378 = vadd.f32 0.0, %v4377
      %v4379 = vpop.f32.mrb[0].mxu0
      %v4380 = vpop.f32.mrb[0].mxu0
      %v4381 = vadd.f32 0.0, %v4380
      %v4382 = vpop.f32.mrb[0].mxu0
      %4383 = vmatprep.mubr.bf16.mxu0 0
      %4384 = vmatmul.mubr.bf16.gmra.mrb[0].mxu0 %v4090
      %v4385 = vpop.f32.mrb[0].mxu0
      %v4386 = vadd.f32 0.0, %v4385
      %v4387 = vpop.f32.mrb[0].mxu0
      %v4388 = vpop.f32.mrb[0].mxu0
      %v4389 = vadd.f32 0.0, %v4388
      %v4390 = vpop.f32.mrb[0].mxu0
      %4391 = vmatprep.mubr.bf16.mxu0 0
      %4392 = vmatmul.mubr.bf16.gmra.mrb[0].mxu0 %v4093
      %v4393 = vpop.f32.mrb[0].mxu0
      %v4394 = vadd.f32 0.0, %v4393
      %v4395 = vpop.f32.mrb[0].mxu0
      %v4396 = vpop.f32.mrb[0].mxu0
      %v4397 = vadd.f32 0.0, %v4396
      %v4398 = vpop.f32.mrb[0].mxu0
      %4399 = vmatprep.mubr.bf16.mxu0 0
      %4400 = vmatmul.mubr.bf16.gmra.mrb[0].mxu0 %v4096
      %v4401 = vpop.f32.mrb[0].mxu0
      %v4402 = vadd.f32 0.0, %v4401
      %v4403 = vpop.f32.mrb[0].mxu0
      %v4404 = vpop.f32.mrb[0].mxu0
      %v4405 = vadd.f32 0.0, %v4404
      %v4406 = vpop.f32.mrb[0].mxu0
      %4407 = vmatprep.mubr.bf16.mxu0 0
      %4408 = vmatmul.mubr.bf16.gmra.mrb[0].mxu0 %v4099
      %v4409 = vpop.f32.mrb[0].mxu0
      %v4410 = vadd.f32 0.0, %v4409
      %v4411 = vpop.f32.mrb[0].mxu0
      %v4412 = vpop.f32.mrb[0].mxu0
      %v4413 = vadd.f32 0.0, %v4412
      %v4414 = vpop.f32.mrb[0].mxu0
      %4415 = vmatprep.mubr.bf16.mxu0 0
      %4416 = vmatmul.mubr.bf16.gmra.mrb[0].mxu0 %v4102
      %v4417 = vpop.f32.mrb[0].mxu0
      %v4418 = vadd.f32 0.0, %v4417
      %v4419 = vpop.f32.mrb[0].mxu0
      %v4420 = vpop.f32.mrb[0].mxu0
      %v4421 = vadd.f32 0.0, %v4420
      %v4422 = vpop.f32.mrb[0].mxu0
      %4423 = vmatprep.mubr.bf16.mxu0 0
      %4424 = vmatmul.mubr.bf16.gmra.mrb[0].mxu0 %v4105
      %v4425 = vpop.f32.mrb[0].mxu0
      %v4426 = vadd.f32 0.0, %v4425
      %v4427 = vpop.f32.mrb[0].mxu0
      %v4428 = vpop.f32.mrb[0].mxu0
      %v4429 = vadd.f32 0.0, %v4428
      %v4430 = vpop.f32.mrb[0].mxu0
      %4431 = vmatprep.mubr.bf16.mxu0 0
      %4432 = vmatmul.mubr.bf16.gmra.mrb[0].mxu0 %v4108
      %v4433 = vpop.f32.mrb[0].mxu0
      %v4434 = vadd.f32 0.0, %v4433
      %v4435 = vpop.f32.mrb[0].mxu0
      %v4436 = vpop.f32.mrb[0].mxu0
      %v4437 = vadd.f32 0.0, %v4436
      %v4438 = vpop.f32.mrb[0].mxu0
      %4439 = vmatprep.mubr.bf16.mxu0 0
      %4440 = vmatmul.mubr.bf16.gmra.mrb[0].mxu0 %v4111
      %v4441 = vpop.f32.mrb[0].mxu0
      %v4442 = vadd.f32 0.0, %v4441
      %v4443 = vpop.f32.mrb[0].mxu0
      %v4444 = vpop.f32.mrb[0].mxu0
      %v4445 = vadd.f32 0.0, %v4444
      %v4446 = vpop.f32.mrb[0].mxu0
      %4447 = vmatprep.mubr.bf16.mxu0 0
      %4448 = vmatmul.mubr.bf16.gmra.mrb[0].mxu0 %v4114
      %v4449 = vpop.f32.mrb[0].mxu0
      %v4450 = vadd.f32 0.0, %v4449
      %v4451 = vpop.f32.mrb[0].mxu0
      %v4452 = vpop.f32.mrb[0].mxu0
      %v4453 = vadd.f32 0.0, %v4452
      %v4454 = vpop.f32.mrb[0].mxu0
      %4455 = vmatprep.mubr.bf16.mxu0 0
      %4456 = vmatmul.mubr.bf16.gmra.mrb[0].mxu0 %v4117
      %v4457 = vpop.f32.mrb[0].mxu0
      %v4458 = vadd.f32 0.0, %v4457
      %v4459 = vpop.f32.mrb[0].mxu0
      %v4460 = vpop.f32.mrb[0].mxu0
      %v4461 = vadd.f32 0.0, %v4460
      %v4462 = vpop.f32.mrb[0].mxu0
      %4463 = vmatprep.mubr.bf16.mxu0 0
      %4464 = vmatmul.mubr.bf16.gmra.mrb[0].mxu0 %v4120
      %v4465 = vpop.f32.mrb[0].mxu0
      %v4466 = vadd.f32 0.0, %v4465
      %v4467 = vpop.f32.mrb[0].mxu0
      %v4468 = vpop.f32.mrb[0].mxu0
      %v4469 = vadd.f32 0.0, %v4468
      %v4470 = vpop.f32.mrb[0].mxu0
      %4471 = vmatprep.mubr.bf16.mxu0 0
      %4472 = vmatmul.mubr.bf16.gmra.mrb[0].mxu0 %v4123
      %v4473 = vpop.f32.mrb[0].mxu0
      %v4474 = vadd.f32 0.0, %v4473
      %v4475 = vpop.f32.mrb[0].mxu0
      %v4476 = vpop.f32.mrb[0].mxu0
      %v4477 = vadd.f32 0.0, %v4476
      %v4478 = vpop.f32.mrb[0].mxu0
      %4479 = vmatprep.mubr.bf16.mxu0 0
      %4480 = vmatmul.mubr.bf16.gmra.mrb[0].mxu0 %v4126
      %v4481 = vpop.f32.mrb[0].mxu0
      %v4482 = vadd.f32 0.0, %v4481
      %v4483 = vpop.f32.mrb[0].mxu0
      %v4484 = vpop.f32.mrb[0].mxu0
      %v4485 = vadd.f32 0.0, %v4484
      %v4486 = vpop.f32.mrb[0].mxu0
      %4487 = vmatprep.mubr.bf16.mxu0 0
      %4488 = vmatmul.mubr.bf16.gmra.mrb[0].mxu0 %v4129
      %v4489 = vpop.f32.mrb[0].mxu0
      %v4490 = vadd.f32 0.0, %v4489
      %v4491 = vpop.f32.mrb[0].mxu0
      %v4492 = vpop.f32.mrb[0].mxu0
      %v4493 = vadd.f32 0.0, %v4492
      %v4494 = vpop.f32.mrb[0].mxu0
      %4495 = vmatprep.mubr.bf16.mxu0 0
      %4496 = vmatmul.mubr.bf16.gmra.mrb[0].mxu0 %v4132
      %v4497 = vpop.f32.mrb[0].mxu0
      %v4498 = vadd.f32 0.0, %v4497
      %v4499 = vpop.f32.mrb[0].mxu0
      %v4500 = vpop.f32.mrb[0].mxu0
      %v4501 = vadd.f32 0.0, %v4500
      %v4502 = vpop.f32.mrb[0].mxu0
      %4503 = vmatprep.mubr.bf16.mxu0 0
      %4504 = vmatmul.mubr.bf16.gmra.mrb[0].mxu0 %v4135
      %v4505 = vpop.f32.mrb[0].mxu0
      %v4506 = vadd.f32 0.0, %v4505
      %v4507 = vpop.f32.mrb[0].mxu0
      %v4508 = vpop.f32.mrb[0].mxu0
      %v4509 = vadd.f32 0.0, %v4508
      %v4510 = vpop.f32.mrb[0].mxu0
      %4511 = vmatprep.mubr.bf16.mxu0 0
      %4512 = vmatmul.mubr.bf16.gmra.mrb[0].mxu0 %v4138
      %v4513 = vpop.f32.mrb[0].mxu0
      %v4514 = vadd.f32 0.0, %v4513
      %v4515 = vpop.f32.mrb[0].mxu0
      %v4516 = vpop.f32.mrb[0].mxu0
      %v4517 = vadd.f32 0.0, %v4516
      %v4518 = vpop.f32.mrb[0].mxu0
      %4519 = vmatprep.mubr.bf16.mxu0 0
      %4520 = vmatmul.mubr.bf16.gmra.mrb[0].mxu0 %v4141
      %v4521 = vpop.f32.mrb[0].mxu0
      %v4522 = vadd.f32 0.0, %v4521
      %v4523 = vpop.f32.mrb[0].mxu0
      %v4524 = vpop.f32.mrb[0].mxu0
      %v4525 = vadd.f32 0.0, %v4524
      %v4526 = vpop.f32.mrb[0].mxu0
      %4527 = vmatprep.mubr.bf16.mxu0 0
      %4528 = vmatmul.mubr.bf16.gmra.mrb[0].mxu0 %v4144
      %v4529 = vpop.f32.mrb[0].mxu0
      %v4530 = vadd.f32 0.0, %v4529
      %v4531 = vpop.f32.mrb[0].mxu0
      %v4532 = vpop.f32.mrb[0].mxu0
      %v4533 = vadd.f32 0.0, %v4532
      %v4534 = vpop.f32.mrb[0].mxu0
      %4535 = vmatprep.mubr.bf16.mxu0 0
      %4536 = vmatmul.mubr.bf16.gmra.mrb[0].mxu0 %v4147
      %v4537 = vpop.f32.mrb[0].mxu0
      %v4538 = vadd.f32 0.0, %v4537
      %v4539 = vpop.f32.mrb[0].mxu0
      %v4540 = vpop.f32.mrb[0].mxu0
      %v4541 = vadd.f32 0.0, %v4540
      %v4542 = vpop.f32.mrb[0].mxu0
      %4543 = vmatprep.mubr.bf16.mxu0 0
      %4544 = vmatmul.mubr.bf16.gmra.mrb[0].mxu0 %v4150
      %v4545 = vpop.f32.mrb[0].mxu0
      %v4546 = vadd.f32 0.0, %v4545
      %v4547 = vpop.f32.mrb[0].mxu0
      %v4548 = vpop.f32.mrb[0].mxu0
      %v4549 = vadd.f32 0.0, %v4548
      %v4550 = vpop.f32.mrb[0].mxu0
      %4551 = vmatprep.mubr.bf16.mxu0 0
      %4552 = vmatmul.mubr.bf16.gmra.mrb[0].mxu0 %v4153
      %v4553 = vpop.f32.mrb[0].mxu0
      %v4554 = vadd.f32 0.0, %v4553
      %v4555 = vpop.f32.mrb[0].mxu0
      %v4556 = vpop.f32.mrb[0].mxu0
      %v4557 = vadd.f32 0.0, %v4556
      %v4558 = vpop.f32.mrb[0].mxu0
      %4559 = vmatprep.mubr.bf16.mxu0 0
      %4560 = vmatmul.mubr.bf16.gmra.mrb[0].mxu0 %v4156
      %v4561 = vpop.f32.mrb[0].mxu0
      %v4562 = vadd.f32 0.0, %v4561
      %v4563 = vpop.f32.mrb[0].mxu0
      %v4564 = vpop.f32.mrb[0].mxu0
      %v4565 = vadd.f32 0.0, %v4564
      %v4566 = vpop.f32.mrb[0].mxu0
      %4567 = vmatprep.mubr.bf16.mxu0 0
      %4568 = vmatmul.mubr.bf16.gmra.mrb[0].mxu0 %v4159
      %v4569 = vpop.f32.mrb[0].mxu0
      %v4570 = vadd.f32 0.0, %v4569
      %v4571 = vpop.f32.mrb[0].mxu0
      %v4572 = vpop.f32.mrb[0].mxu0
      %v4573 = vadd.f32 0.0, %v4572
      %v4574 = vpop.f32.mrb[0].mxu0
      %4575 = vmatprep.mubr.bf16.mxu0 0
      %4576 = vmatmul.mubr.bf16.gmra.mrb[0].mxu0 %v4162
      %v4577 = vpop.f32.mrb[0].mxu0
      %v4578 = vadd.f32 0.0, %v4577
      %v4579 = vpop.f32.mrb[0].mxu0
      %v4580 = vpop.f32.mrb[0].mxu0
      %v4581 = vadd.f32 0.0, %v4580
      %v4582 = vpop.f32.mrb[0].mxu0
      %4583 = vmatprep.mubr.bf16.mxu0 0
      %4584 = vmatmul.mubr.bf16.gmra.mrb[0].mxu0 %v4165
      %v4585 = vpop.f32.mrb[0].mxu0
      %v4586 = vadd.f32 0.0, %v4585
      %v4587 = vpop.f32.mrb[0].mxu0
      %v4588 = vpop.f32.mrb[0].mxu0
      %v4589 = vadd.f32 0.0, %v4588
      %v4590 = vpop.f32.mrb[0].mxu0
      %4591 = vmatprep.mubr.bf16.mxu0 0
      %4592 = vmatmul.mubr.bf16.gmra.mrb[0].mxu0 %v4168
      %v4593 = vpop.f32.mrb[0].mxu0
      %v4594 = vadd.f32 0.0, %v4593
      %v4595 = vpop.f32.mrb[0].mxu0
      %v4596 = vpop.f32.mrb[0].mxu0
      %v4597 = vadd.f32 0.0, %v4596
      %v4598 = vpop.f32.mrb[0].mxu0
      %4599 = vmatprep.mubr.bf16.mxu0 0
      %4600 = vmatmul.mubr.bf16.gmra.mrb[0].mxu0 %v4171
      %v4601 = vpop.f32.mrb[0].mxu0
      %v4602 = vadd.f32 0.0, %v4601
      %v4603 = vpop.f32.mrb[0].mxu0
      %v4604 = vpop.f32.mrb[0].mxu0
      %v4605 = vadd.f32 0.0, %v4604
      %v4606 = vpop.f32.mrb[0].mxu0
      %4607 = vmatprep.mubr.bf16.mxu0 0
      %4608 = vmatmul.mubr.bf16.gmra.mrb[0].mxu0 %v4174
      %v4609 = vpop.f32.mrb[0].mxu0
      %v4610 = vadd.f32 0.0, %v4609
      %v4611 = vpop.f32.mrb[0].mxu0
      %v4612 = vpop.f32.mrb[0].mxu0
      %v4613 = vadd.f32 0.0, %v4612
      %v4614 = vpop.f32.mrb[0].mxu0
      %4615 = vmatprep.mubr.bf16.mxu0 0
      %4616 = vmatmul.mubr.bf16.gmra.mrb[0].mxu0 %v4177
      %v4617 = vpop.f32.mrb[0].mxu0
      %v4618 = vadd.f32 0.0, %v4617
      %v4619 = vpop.f32.mrb[0].mxu0
      %v4620 = vpop.f32.mrb[0].mxu0
      %v4621 = vadd.f32 0.0, %v4620
      %v4622 = vpop.f32.mrb[0].mxu0
      %4623 = vmatprep.mubr.bf16.mxu0 0
      %4624 = vmatmul.mubr.bf16.gmra.mrb[0].mxu0 %v4180
      %v4625 = vpop.f32.mrb[0].mxu0
      %v4626 = vadd.f32 0.0, %v4625
      %v4627 = vpop.f32.mrb[0].mxu0
      %v4628 = vpop.f32.mrb[0].mxu0
      %v4629 = vadd.f32 0.0, %v4628
      %v4630 = vpop.f32.mrb[0].mxu0
      %4631 = vmatprep.mubr.bf16.mxu0 0
      %4632 = vmatmul.mubr.bf16.gmra.mrb[0].mxu0 %v4183
      %v4633 = vpop.f32.mrb[0].mxu0
      %v4634 = vadd.f32 0.0, %v4633
      %v4635 = vpop.f32.mrb[0].mxu0
      %v4636 = vpop.f32.mrb[0].mxu0
      %v4637 = vadd.f32 0.0, %v4636
      %v4638 = vpop.f32.mrb[0].mxu0
      %4639 = vmatprep.mubr.bf16.mxu0 0
      %4640 = vmatmul.mubr.bf16.gmra.mrb[0].mxu0 %v4186
      %v4641 = vpop.f32.mrb[0].mxu0
      %v4642 = vadd.f32 0.0, %v4641
      %v4643 = vpop.f32.mrb[0].mxu0
      %v4644 = vpop.f32.mrb[0].mxu0
      %v4645 = vadd.f32 0.0, %v4644
      %v4646 = vpop.f32.mrb[0].mxu0
      %4647 = vmatprep.mubr.bf16.mxu0 0
      %4648 = vmatmul.mubr.bf16.gmra.mrb[0].mxu0 %v4189
      %v4649 = vpop.f32.mrb[0].mxu0
      %v4650 = vadd.f32 0.0, %v4649
      %v4651 = vpop.f32.mrb[0].mxu0
      %v4652 = vpop.f32.mrb[0].mxu0
      %v4653 = vadd.f32 0.0, %v4652
      %v4654 = vpop.f32.mrb[0].mxu0
      %4655 = vmatprep.mubr.bf16.mxu0 0
      %4656 = vmatmul.mubr.bf16.gmra.mrb[0].mxu0 %v4192
      %v4657 = vpop.f32.mrb[0].mxu0
      %v4658 = vadd.f32 0.0, %v4657
      %v4659 = vpop.f32.mrb[0].mxu0
      %v4660 = vpop.f32.mrb[0].mxu0
      %v4661 = vadd.f32 0.0, %v4660
      %v4662 = vpop.f32.mrb[0].mxu0
      %4663 = vmatprep.mubr.bf16.mxu0 0
      %4664 = vmatmul.mubr.bf16.gmra.mrb[0].mxu0 %v4195
      %v4665 = vpop.f32.mrb[0].mxu0
      %v4666 = vadd.f32 0.0, %v4665
      %v4667 = vpop.f32.mrb[0].mxu0
      %v4668 = vpop.f32.mrb[0].mxu0
      %v4669 = vadd.f32 0.0, %v4668
      %v4670 = vpop.f32.mrb[0].mxu0
      %4671 = vmatprep.mubr.bf16.mxu0 0
      %4672 = vmatmul.mubr.bf16.gmra.mrb[0].mxu0 %v4198
      %v4673 = vpop.f32.mrb[0].mxu0
      %v4674 = vadd.f32 0.0, %v4673
      %v4675 = vpop.f32.mrb[0].mxu0
      %v4676 = vpop.f32.mrb[0].mxu0
      %v4677 = vadd.f32 0.0, %v4676
      %v4678 = vpop.f32.mrb[0].mxu0
      %4679 = vmatprep.mubr.bf16.mxu0 0
      %4680 = vmatmul.mubr.bf16.gmra.mrb[0].mxu0 %v4201
      %v4681 = vpop.f32.mrb[0].mxu0
      %v4682 = vadd.f32 0.0, %v4681
      %v4683 = vpop.f32.mrb[0].mxu0
      %v4684 = vpop.f32.mrb[0].mxu0
      %v4685 = vadd.f32 0.0, %v4684
      %v4686 = vpop.f32.mrb[0].mxu0
      %4687 = vmatprep.mubr.bf16.mxu0 0
      %4688 = vmatmul.mubr.bf16.gmra.mrb[0].mxu0 %v4204
      %v4689 = vpop.f32.mrb[0].mxu0
      %v4690 = vadd.f32 0.0, %v4689
      %v4691 = vpop.f32.mrb[0].mxu0
      %v4692 = vpop.f32.mrb[0].mxu0
      %v4693 = vadd.f32 0.0, %v4692
      %v4694 = vpop.f32.mrb[0].mxu0
      %4695 = vmatprep.mubr.bf16.mxu0 0
      %4696 = vmatmul.mubr.bf16.gmra.mrb[0].mxu0 %v4207
      %v4697 = vpop.f32.mrb[0].mxu0
      %v4698 = vadd.f32 0.0, %v4697
      %v4699 = vpop.f32.mrb[0].mxu0
      %v4700 = vpop.f32.mrb[0].mxu0
      %v4701 = vadd.f32 0.0, %v4700
      %v4702 = vpop.f32.mrb[0].mxu0
      %4703 = vmatprep.mubr.bf16.mxu0 0
      %4704 = vmatmul.mubr.bf16.gmra.mrb[0].mxu0 %v4210
      %v4705 = vpop.f32.mrb[0].mxu0
      %v4706 = vadd.f32 0.0, %v4705
      %v4707 = vpop.f32.mrb[0].mxu0
      %v4708 = vpop.f32.mrb[0].mxu0
      %v4709 = vadd.f32 0.0, %v4708
      %v4710 = vpop.f32.mrb[0].mxu0
      %4711 = vmatprep.mubr.bf16.mxu0 0
      %4712 = vmatmul.mubr.bf16.gmra.mrb[0].mxu0 %v4213
      %v4713 = vpop.f32.mrb[0].mxu0
      %v4714 = vadd.f32 0.0, %v4713
      %v4715 = vpop.f32.mrb[0].mxu0
      %v4716 = vpop.f32.mrb[0].mxu0
      %v4717 = vadd.f32 0.0, %v4716
      %v4718 = vpop.f32.mrb[0].mxu0
      %4719 = vmatprep.mubr.bf16.mxu0 0
      %4720 = vmatmul.mubr.bf16.gmra.mrb[0].mxu0 %v4216
      %v4721 = vpop.f32.mrb[0].mxu0
      %v4722 = vadd.f32 0.0, %v4721
      %v4723 = vpop.f32.mrb[0].mxu0
      %v4724 = vpop.f32.mrb[0].mxu0
      %v4725 = vadd.f32 0.0, %v4724
      %v4726 = vpop.f32.mrb[0].mxu0
      %4727 = vmatprep.mubr.bf16.mxu0 0
      %4728 = vmatmul.mubr.bf16.gmra.mrb[0].mxu0 %v4219
      %v4729 = vpop.f32.mrb[0].mxu0
      %v4730 = vadd.f32 0.0, %v4729
      %v4731 = vpop.f32.mrb[0].mxu0
      %v4732 = vpop.f32.mrb[0].mxu0
      %v4733 = vadd.f32 0.0, %v4732
      %v4734 = vpop.f32.mrb[0].mxu0
      %4735 = vmatprep.mubr.bf16.mxu0 0
      %4736 = vmatmul.mubr.bf16.gmra.mrb[0].mxu0 %v4222
      %v4737 = vpop.f32.mrb[0].mxu0
      %v4738 = vadd.f32 0.0, %v4737
      %v4739 = vpop.f32.mrb[0].mxu0
      %v4740 = vpop.f32.mrb[0].mxu0
      %v4741 = vadd.f32 0.0, %v4740
      %v4742 = vpop.f32.mrb[0].mxu0
      %4743 = vmatprep.mubr.bf16.mxu0 0
      %4744 = vmatmul.mubr.bf16.gmra.mrb[0].mxu0 %v4225
      %v4745 = vpop.f32.mrb[0].mxu0
      %v4746 = vadd.f32 0.0, %v4745
      %v4747 = vpop.f32.mrb[0].mxu0
      %v4748 = vpop.f32.mrb[0].mxu0
      %v4749 = vadd.f32 0.0, %v4748
      %v4750 = vpop.f32.mrb[0].mxu0
      %4751 = vmatprep.mubr.bf16.mxu0 0
      %4752 = vmatmul.mubr.bf16.gmra.mrb[0].mxu0 %v4228
      %v4753 = vpop.f32.mrb[0].mxu0
      %v4754 = vadd.f32 0.0, %v4753
      %v4755 = vpop.f32.mrb[0].mxu0
      %v4756 = vpop.f32.mrb[0].mxu0
      %v4757 = vadd.f32 0.0, %v4756
      %v4758 = vpop.f32.mrb[0].mxu0
      %4759 = vmatprep.mubr.bf16.mxu0 0
      %4760 = vmatmul.mubr.bf16.gmra.mrb[0].mxu0 %v4231
      %v4761 = vpop.f32.mrb[0].mxu0
      %v4762 = vadd.f32 0.0, %v4761
      %v4763 = vpop.f32.mrb[0].mxu0
      %v4764 = vpop.f32.mrb[0].mxu0
      %v4765 = vadd.f32 0.0, %v4764
      %v4766 = vpop.f32.mrb[0].mxu0
      %4767 = vmatprep.mubr.bf16.mxu0 0
      %4768 = vmatmul.mubr.bf16.gmra.mrb[0].mxu0 %v4234
      %v4769 = vpop.f32.mrb[0].mxu0
      %v4770 = vadd.f32 0.0, %v4769
      %v4771 = vpop.f32.mrb[0].mxu0
      %v4772 = vpop.f32.mrb[0].mxu0
      %v4773 = vadd.f32 0.0, %v4772
      %v4774 = vpop.f32.mrb[0].mxu0
      %4775 = vmatprep.mubr.bf16.mxu0 0
      %4776 = vmatmul.mubr.bf16.gmra.mrb[0].mxu0 %v4237
      %v4777 = vpop.f32.mrb[0].mxu0
      %v4778 = vadd.f32 0.0, %v4777
      %v4779 = vpop.f32.mrb[0].mxu0
      %v4780 = vpop.f32.mrb[0].mxu0
      %v4781 = vadd.f32 0.0, %v4780
      %v4782 = vpop.f32.mrb[0].mxu0
      %4783 = vdwg.mxu0
      %4912 = vrot.lane.b32.xlu0 %v4274, 3
      %v4913 = vpop.permute.xlu0 %4912
      %4914 = vrot.lane.b32.xlu0 %v4277, 3
      %v4915 = vpop.permute.xlu0 %4914
      %4916 = vrot.lane.b32.xlu0 %v4282, 3
      %v4917 = vpop.permute.xlu0 %4916
      %4918 = vrot.lane.b32.xlu0 %v4285, 3
      %v4919 = vpop.permute.xlu0 %4918
      %4920 = vrot.lane.b32.xlu0 %v4290, 3
      %v4921 = vpop.permute.xlu0 %4920
      %4922 = vrot.lane.b32.xlu0 %v4293, 3
      %v4923 = vpop.permute.xlu0 %4922
      %4924 = vrot.lane.b32.xlu0 %v4298, 3
      %v4925 = vpop.permute.xlu0 %4924
      %4926 = vrot.lane.b32.xlu0 %v4301, 3
      %v4927 = vpop.permute.xlu0 %4926
      %4928 = vrot.lane.b32.xlu0 %v4306, 3
      %v4929 = vpop.permute.xlu0 %4928
      %4930 = vrot.lane.b32.xlu0 %v4309, 3
      %v4931 = vpop.permute.xlu0 %4930
      %4932 = vrot.lane.b32.xlu0 %v4314, 3
      %v4933 = vpop.permute.xlu0 %4932
      %4934 = vrot.lane.b32.xlu0 %v4317, 3
      %v4935 = vpop.permute.xlu0 %4934
      %4936 = vrot.lane.b32.xlu0 %v4322, 3
      %v4937 = vpop.permute.xlu0 %4936
      %4938 = vrot.lane.b32.xlu0 %v4325, 3
      %v4939 = vpop.permute.xlu0 %4938
      %4940 = vrot.lane.b32.xlu0 %v4330, 3
      %v4941 = vpop.permute.xlu0 %4940
      %4942 = vrot.lane.b32.xlu0 %v4333, 3
      %v4943 = vpop.permute.xlu0 %4942
      %4944 = vrot.lane.b32.xlu0 %v4338, 3
      %v4945 = vpop.permute.xlu0 %4944
      %4946 = vrot.lane.b32.xlu0 %v4341, 3
      %v4947 = vpop.permute.xlu0 %4946
      %4948 = vrot.lane.b32.xlu0 %v4346, 3
      %v4949 = vpop.permute.xlu0 %4948
      %4950 = vrot.lane.b32.xlu0 %v4349, 3
      %v4951 = vpop.permute.xlu0 %4950
      %4952 = vrot.lane.b32.xlu0 %v4354, 3
      %v4953 = vpop.permute.xlu0 %4952
      %4954 = vrot.lane.b32.xlu0 %v4357, 3
      %v4955 = vpop.permute.xlu0 %4954
      %4956 = vrot.lane.b32.xlu0 %v4362, 3
      %v4957 = vpop.permute.xlu0 %4956
      %4958 = vrot.lane.b32.xlu0 %v4365, 3
      %v4959 = vpop.permute.xlu0 %4958
      %4960 = vrot.lane.b32.xlu0 %v4370, 3
      %v4961 = vpop.permute.xlu0 %4960
      %4962 = vrot.lane.b32.xlu0 %v4373, 3
      %v4963 = vpop.permute.xlu0 %4962
      %4964 = vrot.lane.b32.xlu0 %v4378, 3
      %v4965 = vpop.permute.xlu0 %4964
      %4966 = vrot.lane.b32.xlu0 %v4381, 3
      %v4967 = vpop.permute.xlu0 %4966
      %4968 = vrot.lane.b32.xlu0 %v4386, 3
      %v4969 = vpop.permute.xlu0 %4968
      %4970 = vrot.lane.b32.xlu0 %v4389, 3
      %v4971 = vpop.permute.xlu0 %4970
      %4972 = vrot.lane.b32.xlu0 %v4394, 3
      %v4973 = vpop.permute.xlu0 %4972
      %4974 = vrot.lane.b32.xlu0 %v4397, 3
      %v4975 = vpop.permute.xlu0 %4974
      %4976 = vrot.lane.b32.xlu0 %v4402, 3
      %v4977 = vpop.permute.xlu0 %4976
      %4978 = vrot.lane.b32.xlu0 %v4405, 3
      %v4979 = vpop.permute.xlu0 %4978
      %4980 = vrot.lane.b32.xlu0 %v4410, 3
      %v4981 = vpop.permute.xlu0 %4980
      %4982 = vrot.lane.b32.xlu0 %v4413, 3
      %v4983 = vpop.permute.xlu0 %4982
      %4984 = vrot.lane.b32.xlu0 %v4418, 3
      %v4985 = vpop.permute.xlu0 %4984
      %4986 = vrot.lane.b32.xlu0 %v4421, 3
      %v4987 = vpop.permute.xlu0 %4986
      %4988 = vrot.lane.b32.xlu0 %v4426, 3
      %v4989 = vpop.permute.xlu0 %4988
      %4990 = vrot.lane.b32.xlu0 %v4429, 3
      %v4991 = vpop.permute.xlu0 %4990
      %4992 = vrot.lane.b32.xlu0 %v4434, 3
      %v4993 = vpop.permute.xlu0 %4992
      %4994 = vrot.lane.b32.xlu0 %v4437, 3
      %v4995 = vpop.permute.xlu0 %4994
      %4996 = vrot.lane.b32.xlu0 %v4442, 3
      %v4997 = vpop.permute.xlu0 %4996
      %4998 = vrot.lane.b32.xlu0 %v4445, 3
      %v4999 = vpop.permute.xlu0 %4998
      %5000 = vrot.lane.b32.xlu0 %v4450, 3
      %v5001 = vpop.permute.xlu0 %5000
      %5002 = vrot.lane.b32.xlu0 %v4453, 3
      %v5003 = vpop.permute.xlu0 %5002
      %5004 = vrot.lane.b32.xlu0 %v4458, 3
      %v5005 = vpop.permute.xlu0 %5004
      %5006 = vrot.lane.b32.xlu0 %v4461, 3
      %v5007 = vpop.permute.xlu0 %5006
      %5008 = vrot.lane.b32.xlu0 %v4466, 3
      %v5009 = vpop.permute.xlu0 %5008
      %5010 = vrot.lane.b32.xlu0 %v4469, 3
      %v5011 = vpop.permute.xlu0 %5010
      %5012 = vrot.lane.b32.xlu0 %v4474, 3
      %v5013 = vpop.permute.xlu0 %5012
      %5014 = vrot.lane.b32.xlu0 %v4477, 3
      %v5015 = vpop.permute.xlu0 %5014
      %5016 = vrot.lane.b32.xlu0 %v4482, 3
      %v5017 = vpop.permute.xlu0 %5016
      %5018 = vrot.lane.b32.xlu0 %v4485, 3
      %v5019 = vpop.permute.xlu0 %5018
      %5020 = vrot.lane.b32.xlu0 %v4490, 3
      %v5021 = vpop.permute.xlu0 %5020
      %5022 = vrot.lane.b32.xlu0 %v4493, 3
      %v5023 = vpop.permute.xlu0 %5022
      %5024 = vrot.lane.b32.xlu0 %v4498, 3
      %v5025 = vpop.permute.xlu0 %5024
      %5026 = vrot.lane.b32.xlu0 %v4501, 3
      %v5027 = vpop.permute.xlu0 %5026
      %5028 = vrot.lane.b32.xlu0 %v4506, 3
      %v5029 = vpop.permute.xlu0 %5028
      %5030 = vrot.lane.b32.xlu0 %v4509, 3
      %v5031 = vpop.permute.xlu0 %5030
      %5032 = vrot.lane.b32.xlu0 %v4514, 3
      %v5033 = vpop.permute.xlu0 %5032
      %5034 = vrot.lane.b32.xlu0 %v4517, 3
      %v5035 = vpop.permute.xlu0 %5034
      %5036 = vrot.lane.b32.xlu0 %v4522, 3
      %v5037 = vpop.permute.xlu0 %5036
      %5038 = vrot.lane.b32.xlu0 %v4525, 3
      %v5039 = vpop.permute.xlu0 %5038
      %5040 = vrot.lane.b32.xlu0 %v4530, 3
      %v5041 = vpop.permute.xlu0 %5040
      %5042 = vrot.lane.b32.xlu0 %v4533, 3
      %v5043 = vpop.permute.xlu0 %5042
      %5044 = vrot.lane.b32.xlu0 %v4538, 3
      %v5045 = vpop.permute.xlu0 %5044
      %5046 = vrot.lane.b32.xlu0 %v4541, 3
      %v5047 = vpop.permute.xlu0 %5046
      %5048 = vrot.lane.b32.xlu0 %v4546, 3
      %v5049 = vpop.permute.xlu0 %5048
      %5050 = vrot.lane.b32.xlu0 %v4549, 3
      %v5051 = vpop.permute.xlu0 %5050
      %5052 = vrot.lane.b32.xlu0 %v4554, 3
      %v5053 = vpop.permute.xlu0 %5052
      %5054 = vrot.lane.b32.xlu0 %v4557, 3
      %v5055 = vpop.permute.xlu0 %5054
      %5056 = vrot.lane.b32.xlu0 %v4562, 3
      %v5057 = vpop.permute.xlu0 %5056
      %5058 = vrot.lane.b32.xlu0 %v4565, 3
      %v5059 = vpop.permute.xlu0 %5058
      %5060 = vrot.lane.b32.xlu0 %v4570, 3
      %v5061 = vpop.permute.xlu0 %5060
      %5062 = vrot.lane.b32.xlu0 %v4573, 3
      %v5063 = vpop.permute.xlu0 %5062
      %5064 = vrot.lane.b32.xlu0 %v4578, 3
      %v5065 = vpop.permute.xlu0 %5064
      %5066 = vrot.lane.b32.xlu0 %v4581, 3
      %v5067 = vpop.permute.xlu0 %5066
      %5068 = vrot.lane.b32.xlu0 %v4586, 3
      %v5069 = vpop.permute.xlu0 %5068
      %5070 = vrot.lane.b32.xlu0 %v4589, 3
      %v5071 = vpop.permute.xlu0 %5070
      %5072 = vrot.lane.b32.xlu0 %v4594, 3
      %v5073 = vpop.permute.xlu0 %5072
      %5074 = vrot.lane.b32.xlu0 %v4597, 3
      %v5075 = vpop.permute.xlu0 %5074
      %5076 = vrot.lane.b32.xlu0 %v4602, 3
      %v5077 = vpop.permute.xlu0 %5076
      %5078 = vrot.lane.b32.xlu0 %v4605, 3
      %v5079 = vpop.permute.xlu0 %5078
      %5080 = vrot.lane.b32.xlu0 %v4610, 3
      %v5081 = vpop.permute.xlu0 %5080
      %5082 = vrot.lane.b32.xlu0 %v4613, 3
      %v5083 = vpop.permute.xlu0 %5082
      %5084 = vrot.lane.b32.xlu0 %v4618, 3
      %v5085 = vpop.permute.xlu0 %5084
      %5086 = vrot.lane.b32.xlu0 %v4621, 3
      %v5087 = vpop.permute.xlu0 %5086
      %5088 = vrot.lane.b32.xlu0 %v4626, 3
      %v5089 = vpop.permute.xlu0 %5088
      %5090 = vrot.lane.b32.xlu0 %v4629, 3
      %v5091 = vpop.permute.xlu0 %5090
      %5092 = vrot.lane.b32.xlu0 %v4634, 3
      %v5093 = vpop.permute.xlu0 %5092
      %5094 = vrot.lane.b32.xlu0 %v4637, 3
      %v5095 = vpop.permute.xlu0 %5094
      %5096 = vrot.lane.b32.xlu0 %v4642, 3
      %v5097 = vpop.permute.xlu0 %5096
      %5098 = vrot.lane.b32.xlu0 %v4645, 3
      %v5099 = vpop.permute.xlu0 %5098
      %5100 = vrot.lane.b32.xlu0 %v4650, 3
      %v5101 = vpop.permute.xlu0 %5100
      %5102 = vrot.lane.b32.xlu0 %v4653, 3
      %v5103 = vpop.permute.xlu0 %5102
      %5104 = vrot.lane.b32.xlu0 %v4658, 3
      %v5105 = vpop.permute.xlu0 %5104
      %5106 = vrot.lane.b32.xlu0 %v4661, 3
      %v5107 = vpop.permute.xlu0 %5106
      %5108 = vrot.lane.b32.xlu0 %v4666, 3
      %v5109 = vpop.permute.xlu0 %5108
      %5110 = vrot.lane.b32.xlu0 %v4669, 3
      %v5111 = vpop.permute.xlu0 %5110
      %5112 = vrot.lane.b32.xlu0 %v4674, 3
      %v5113 = vpop.permute.xlu0 %5112
      %5114 = vrot.lane.b32.xlu0 %v4677, 3
      %v5115 = vpop.permute.xlu0 %5114
      %5116 = vrot.lane.b32.xlu0 %v4682, 3
      %v5117 = vpop.permute.xlu0 %5116
      %5118 = vrot.lane.b32.xlu0 %v4685, 3
      %v5119 = vpop.permute.xlu0 %5118
      %5120 = vrot.lane.b32.xlu0 %v4690, 3
      %v5121 = vpop.permute.xlu0 %5120
      %5122 = vrot.lane.b32.xlu0 %v4693, 3
      %v5123 = vpop.permute.xlu0 %5122
      %5124 = vrot.lane.b32.xlu0 %v4698, 3
      %v5125 = vpop.permute.xlu0 %5124
      %5126 = vrot.lane.b32.xlu0 %v4701, 3
      %v5127 = vpop.permute.xlu0 %5126
      %5128 = vrot.lane.b32.xlu0 %v4706, 3
      %v5129 = vpop.permute.xlu0 %5128
      %5130 = vrot.lane.b32.xlu0 %v4709, 3
      %v5131 = vpop.permute.xlu0 %5130
      %5132 = vrot.lane.b32.xlu0 %v4714, 3
      %v5133 = vpop.permute.xlu0 %5132
      %5134 = vrot.lane.b32.xlu0 %v4717, 3
      %v5135 = vpop.permute.xlu0 %5134
      %5136 = vrot.lane.b32.xlu0 %v4722, 3
      %v5137 = vpop.permute.xlu0 %5136
      %5138 = vrot.lane.b32.xlu0 %v4725, 3
      %v5139 = vpop.permute.xlu0 %5138
      %5140 = vrot.lane.b32.xlu0 %v4730, 3
      %v5141 = vpop.permute.xlu0 %5140
      %5142 = vrot.lane.b32.xlu0 %v4733, 3
      %v5143 = vpop.permute.xlu0 %5142
      %5144 = vrot.lane.b32.xlu0 %v4738, 3
      %v5145 = vpop.permute.xlu0 %5144
      %5146 = vrot.lane.b32.xlu0 %v4741, 3
      %v5147 = vpop.permute.xlu0 %5146
      %5148 = vrot.lane.b32.xlu0 %v4746, 3
      %v5149 = vpop.permute.xlu0 %5148
      %5150 = vrot.lane.b32.xlu0 %v4749, 3
      %v5151 = vpop.permute.xlu0 %5150
      %5152 = vrot.lane.b32.xlu0 %v4754, 3
      %v5153 = vpop.permute.xlu0 %5152
      %5154 = vrot.lane.b32.xlu0 %v4757, 3
      %v5155 = vpop.permute.xlu0 %5154
      %5156 = vrot.lane.b32.xlu0 %v4762, 3
      %v5157 = vpop.permute.xlu0 %5156
      %5158 = vrot.lane.b32.xlu0 %v4765, 3
      %v5159 = vpop.permute.xlu0 %5158
      %5160 = vrot.lane.b32.xlu0 %v4770, 3
      %v5161 = vpop.permute.xlu0 %5160
      %5162 = vrot.lane.b32.xlu0 %v4773, 3
      %v5163 = vpop.permute.xlu0 %5162
      %5164 = vrot.lane.b32.xlu0 %v4778, 3
      %v5165 = vpop.permute.xlu0 %5164
      %5166 = vrot.lane.b32.xlu0 %v4781, 3
      %v5167 = vpop.permute.xlu0 %5166
      %vm5296 = vcmask 23552
      %v5297 = vsel %vm5296, %v2526, %v4913
      %v5298 = vsel %vm5296, %v2529, %v4915
      %v5299 = vsel %vm5296, %v2534, %v4917
      %v5300 = vsel %vm5296, %v2537, %v4919
      %v5301 = vsel %vm5296, %v2542, %v4921
      %v5302 = vsel %vm5296, %v2545, %v4923
      %v5303 = vsel %vm5296, %v2550, %v4925
      %v5304 = vsel %vm5296, %v2553, %v4927
      %v5305 = vsel %vm5296, %v2558, %v4929
      %v5306 = vsel %vm5296, %v2561, %v4931
      %v5307 = vsel %vm5296, %v2566, %v4933
      %v5308 = vsel %vm5296, %v2569, %v4935
      %v5309 = vsel %vm5296, %v2574, %v4937
      %v5310 = vsel %vm5296, %v2577, %v4939
      %v5311 = vsel %vm5296, %v2582, %v4941
      %v5312 = vsel %vm5296, %v2585, %v4943
      %v5313 = vsel %vm5296, %v2590, %v4945
      %v5314 = vsel %vm5296, %v2593, %v4947
      %v5315 = vsel %vm5296, %v2598, %v4949
      %v5316 = vsel %vm5296, %v2601, %v4951
      %v5317 = vsel %vm5296, %v2606, %v4953
      %v5318 = vsel %vm5296, %v2609, %v4955
      %v5319 = vsel %vm5296, %v2614, %v4957
      %v5320 = vsel %vm5296, %v2617, %v4959
      %v5321 = vsel %vm5296, %v2622, %v4961
      %v5322 = vsel %vm5296, %v2625, %v4963
      %v5323 = vsel %vm5296, %v2630, %v4965
      %v5324 = vsel %vm5296, %v2633, %v4967
      %v5325 = vsel %vm5296, %v2638, %v4969
      %v5326 = vsel %vm5296, %v2641, %v4971
      %v5327 = vsel %vm5296, %v2646, %v4973
      %v5328 = vsel %vm5296, %v2649, %v4975
      %v5329 = vsel %vm5296, %v2654, %v4977
      %v5330 = vsel %vm5296, %v2657, %v4979
      %v5331 = vsel %vm5296, %v2662, %v4981
      %v5332 = vsel %vm5296, %v2665, %v4983
      %v5333 = vsel %vm5296, %v2670, %v4985
      %v5334 = vsel %vm5296, %v2673, %v4987
      %v5335 = vsel %vm5296, %v2678, %v4989
      %v5336 = vsel %vm5296, %v2681, %v4991
      %v5337 = vsel %vm5296, %v2686, %v4993
      %v5338 = vsel %vm5296, %v2689, %v4995
      %v5339 = vsel %vm5296, %v2694, %v4997
      %v5340 = vsel %vm5296, %v2697, %v4999
      %v5341 = vsel %vm5296, %v2702, %v5001
      %v5342 = vsel %vm5296, %v2705, %v5003
      %v5343 = vsel %vm5296, %v2710, %v5005
      %v5344 = vsel %vm5296, %v2713, %v5007
      %v5345 = vsel %vm5296, %v2718, %v5009
      %v5346 = vsel %vm5296, %v2721, %v5011
      %v5347 = vsel %vm5296, %v2726, %v5013
      %v5348 = vsel %vm5296, %v2729, %v5015
      %v5349 = vsel %vm5296, %v2734, %v5017
      %v5350 = vsel %vm5296, %v2737, %v5019
      %v5351 = vsel %vm5296, %v2742, %v5021
      %v5352 = vsel %vm5296, %v2745, %v5023
      %v5353 = vsel %vm5296, %v2750, %v5025
      %v5354 = vsel %vm5296, %v2753, %v5027
      %v5355 = vsel %vm5296, %v2758, %v5029
      %v5356 = vsel %vm5296, %v2761, %v5031
      %v5357 = vsel %vm5296, %v2766, %v5033
      %v5358 = vsel %vm5296, %v2769, %v5035
      %v5359 = vsel %vm5296, %v2774, %v5037
      %v5360 = vsel %vm5296, %v2777, %v5039
      %v5361 = vsel %vm5296, %v2782, %v5041
      %v5362 = vsel %vm5296, %v2785, %v5043
      %v5363 = vsel %vm5296, %v2790, %v5045
      %v5364 = vsel %vm5296, %v2793, %v5047
      %v5365 = vsel %vm5296, %v2798, %v5049
      %v5366 = vsel %vm5296, %v2801, %v5051
      %v5367 = vsel %vm5296, %v2806, %v5053
      %v5368 = vsel %vm5296, %v2809, %v5055
      %v5369 = vsel %vm5296, %v2814, %v5057
      %v5370 = vsel %vm5296, %v2817, %v5059
      %v5371 = vsel %vm5296, %v2822, %v5061
      %v5372 = vsel %vm5296, %v2825, %v5063
      %v5373 = vsel %vm5296, %v2830, %v5065
      %v5374 = vsel %vm5296, %v2833, %v5067
      %v5375 = vsel %vm5296, %v2838, %v5069
      %v5376 = vsel %vm5296, %v2841, %v5071
      %v5377 = vsel %vm5296, %v2846, %v5073
      %v5378 = vsel %vm5296, %v2849, %v5075
      %v5379 = vsel %vm5296, %v2854, %v5077
      %v5380 = vsel %vm5296, %v2857, %v5079
      %v5381 = vsel %vm5296, %v2862, %v5081
      %v5382 = vsel %vm5296, %v2865, %v5083
      %v5383 = vsel %vm5296, %v2870, %v5085
      %v5384 = vsel %vm5296, %v2873, %v5087
      %v5385 = vsel %vm5296, %v2878, %v5089
      %v5386 = vsel %vm5296, %v2881, %v5091
      %v5387 = vsel %vm5296, %v2886, %v5093
      %v5388 = vsel %vm5296, %v2889, %v5095
      %v5389 = vsel %vm5296, %v2894, %v5097
      %v5390 = vsel %vm5296, %v2897, %v5099
      %v5391 = vsel %vm5296, %v2902, %v5101
      %v5392 = vsel %vm5296, %v2905, %v5103
      %v5393 = vsel %vm5296, %v2910, %v5105
      %v5394 = vsel %vm5296, %v2913, %v5107
      %v5395 = vsel %vm5296, %v2918, %v5109
      %v5396 = vsel %vm5296, %v2921, %v5111
      %v5397 = vsel %vm5296, %v2926, %v5113
      %v5398 = vsel %vm5296, %v2929, %v5115
      %v5399 = vsel %vm5296, %v2934, %v5117
      %v5400 = vsel %vm5296, %v2937, %v5119
      %v5401 = vsel %vm5296, %v2942, %v5121
      %v5402 = vsel %vm5296, %v2945, %v5123
      %v5403 = vsel %vm5296, %v2950, %v5125
      %v5404 = vsel %vm5296, %v2953, %v5127
      %v5405 = vsel %vm5296, %v2958, %v5129
      %v5406 = vsel %vm5296, %v2961, %v5131
      %v5407 = vsel %vm5296, %v2966, %v5133
      %v5408 = vsel %vm5296, %v2969, %v5135
      %v5409 = vsel %vm5296, %v2974, %v5137
      %v5410 = vsel %vm5296, %v2977, %v5139
      %v5411 = vsel %vm5296, %v2982, %v5141
      %v5412 = vsel %vm5296, %v2985, %v5143
      %v5413 = vsel %vm5296, %v2990, %v5145
      %v5414 = vsel %vm5296, %v2993, %v5147
      %v5415 = vsel %vm5296, %v2998, %v5149
      %v5416 = vsel %vm5296, %v3001, %v5151
      %v5417 = vsel %vm5296, %v3006, %v5153
      %v5418 = vsel %vm5296, %v3009, %v5155
      %v5419 = vsel %vm5296, %v3014, %v5157
      %v5420 = vsel %vm5296, %v3017, %v5159
      %v5421 = vsel %vm5296, %v3022, %v5161
      %v5422 = vsel %vm5296, %v3025, %v5163
      %v5423 = vsel %vm5296, %v3030, %v5165
      %v5424 = vsel %vm5296, %v3033, %v5167
      %5425 = vrot.lane.b32.xlu0 %v1822, 8
      %v5426 = vpop.permute.xlu0 %5425
      %5427 = vrot.lane.b32.xlu0 %v1830, 8
      %v5428 = vpop.permute.xlu0 %5427
      %v5433 = vunpack.c.l.b16 %v480
      %v5434 = vunpack.c.l.b16 %v481
      %v5435 = vunpack.c.l.b16 %v482
      %v5436 = vunpack.c.l.b16 %v483
      %v5437 = vpack.c.b16 %v5434, %v5433
      %v5438 = vpack.c.b16 %v5436, %v5435
      %5439 = vrot.lane.b32.xlu0 %v5437, 16
      %v5440 = vpop.permute.xlu0 %5439
      %5441 = vrot.lane.b32.xlu0 %v5438, 16
      %v5442 = vpop.permute.xlu0 %5441
      %v5444 = vunpack.c.l.b16 %v484
      %v5445 = vpack.c.b16 %v5444, %v5444
      %v5447 = vshrl.u32 %v5437, 16
      %v5449 = vshll.u32 %v5437, 16
      %v5451 = vrot.slane %v5449, 1
      %v5452 = vor.u32 %v5447, %v5451
      %v5454 = vshll.u32 %v5438, 16
      %v5456 = vrot.slane %v5454, 1
      %v5457 = vsel %vm901, %v5452, %v5456
      %v5458 = vshrl.u32 %v5438, 16
      %v5460 = vor.u32 %v5458, %v5456
      %v5462 = vshll.u32 %v5445, 16
      %v5464 = vrot.slane %v5462, 1
      %v5465 = vsel %vm901, %v5460, %v5464
      %5466 = vrot.lane.b32.xlu0 %v5457, 24
      %v5467 = vpop.permute.xlu0 %5466
      %5468 = vrot.lane.b32.xlu0 %v5465, 24
      %v5469 = vpop.permute.xlu0 %5468
      %v5471 = vsel %vm1959, %v1678, %v5426
      %v5473 = vsel %vm1959, %v1679, %v5428
      %v5475 = vsel %vm2088, %v5471, %v5440
      %v5477 = vsel %vm2088, %v5473, %v5442
      %v5479 = vsel %vm2217, %v5475, %v5467
      %v5481 = vsel %vm2217, %v5477, %v5469
      %s5482 = scalar_lea.vmem %s1, 32
      %v5483 = vld [vmem:[%s5482] sm:$0xf]
      %v5484 = vld [vmem:[%s5482 + $0x4] sm:$0xf]
      %v5485 = vld [vmem:[%s5482 + $0x8] sm:$0xf]
      %v5486 = vld [vmem:[%s5482 + $0xc] sm:$0xf]
      %v5491 = vunpack.c.l.b16 %v5483
      %v5492 = vunpack.c.l.b16 %v5484
      %v5493 = vunpack.c.l.b16 %v5485
      %v5494 = vunpack.c.l.b16 %v5486
      %v5495 = vpack.c.b16 %v5492, %v5491
      %v5496 = vpack.c.b16 %v5494, %v5493
      %v5499 = vsel %vm2362, %v5479, 0
      %v5501 = vsel %vm2362, %v5481, 0
      %5503 = vmatprep.subr.bf16.mxu0 0
      %5504 = vmatpush1.bf16.msra.mxu0 %v5495
      %5505 = vmatprep.subr.bf16.mxu0 0
      %5506 = vmatpush1.bf16.msra.mxu0 %v5496
      %5507 = vmatprep.subr.bf16.mxu0 0
      %5508 = vmatpush1.bf16.msra.mxu0 0
      %5509 = vmatprep.subr.bf16.mxu0 0
      %5510 = vmatpush1.bf16.msra.mxu0 0
      %5511 = vmatprep.subr.bf16.mxu0 0
      %5512 = vmatpush1.bf16.msra.mxu0 0
      %5513 = vmatprep.subr.bf16.mxu0 0
      %5514 = vmatpush1.bf16.msra.mxu0 0
      %5515 = vmatprep.subr.bf16.mxu0 0
      %5516 = vmatpush1.bf16.msra.mxu0 0
      %5517 = vmatprep.subr.bf16.mxu0 0
      %5518 = vmatpush1.bf16.msra.mxu0 0
      %5519 = vmatprep.subr.bf16.mxu0 0
      %5520 = vmatpush1.bf16.msra.mxu0 0
      %5521 = vmatprep.subr.bf16.mxu0 0
      %5522 = vmatpush1.bf16.msra.mxu0 0
      %5523 = vmatprep.subr.bf16.mxu0 0
      %5524 = vmatpush1.bf16.msra.mxu0 0
      %5525 = vmatprep.subr.bf16.mxu0 0
      %5526 = vmatpush1.bf16.msra.mxu0 0
      %5527 = vmatprep.subr.bf16.mxu0 0
      %5528 = vmatpush1.bf16.msra.mxu0 0
      %5529 = vmatprep.subr.bf16.mxu0 0
      %5530 = vmatpush1.bf16.msra.mxu0 0
      %5531 = vmatprep.subr.bf16.mxu0 0
      %5532 = vmatpush1.bf16.msra.mxu0 0
      %5533 = vmatprep.subr.bf16.mxu0 0
      %5534 = vmatpush1.bf16.msra.mxu0 0
      %5535 = vmatprep.mubr.bf16.mxu0 0
      %5536 = vmatmul.mubr.bf16.gmra.mrb[0].mxu0 %v2367
      %v5537 = vpop.f32.mrb[0].mxu0
      %v5538 = vadd.f32 0.0, %v5537
      %v5539 = vpop.f32.mrb[0].mxu0
      %v5540 = vpop.f32.mrb[0].mxu0
      %v5541 = vadd.f32 0.0, %v5540
      %v5542 = vpop.f32.mrb[0].mxu0
      %5543 = vmatprep.mubr.bf16.mxu0 0
      %5544 = vmatmul.mubr.bf16.gmra.mrb[0].mxu0 %v2369
      %v5545 = vpop.f32.mrb[0].mxu0
      %v5546 = vadd.f32 0.0, %v5545
      %v5547 = vpop.f32.mrb[0].mxu0
      %v5548 = vpop.f32.mrb[0].mxu0
      %v5549 = vadd.f32 0.0, %v5548
      %v5550 = vpop.f32.mrb[0].mxu0
      %5551 = vmatprep.mubr.bf16.mxu0 0
      %5552 = vmatmul.mubr.bf16.gmra.mrb[0].mxu0 %v2371
      %v5553 = vpop.f32.mrb[0].mxu0
      %v5554 = vadd.f32 0.0, %v5553
      %v5555 = vpop.f32.mrb[0].mxu0
      %v5556 = vpop.f32.mrb[0].mxu0
      %v5557 = vadd.f32 0.0, %v5556
      %v5558 = vpop.f32.mrb[0].mxu0
      %5559 = vmatprep.mubr.bf16.mxu0 0
      %5560 = vmatmul.mubr.bf16.gmra.mrb[0].mxu0 %v2373
      %v5561 = vpop.f32.mrb[0].mxu0
      %v5562 = vadd.f32 0.0, %v5561
      %v5563 = vpop.f32.mrb[0].mxu0
      %v5564 = vpop.f32.mrb[0].mxu0
      %v5565 = vadd.f32 0.0, %v5564
      %v5566 = vpop.f32.mrb[0].mxu0
      %5567 = vmatprep.mubr.bf16.mxu0 0
      %5568 = vmatmul.mubr.bf16.gmra.mrb[0].mxu0 %v2375
      %v5569 = vpop.f32.mrb[0].mxu0
      %v5570 = vadd.f32 0.0, %v5569
      %v5571 = vpop.f32.mrb[0].mxu0
      %v5572 = vpop.f32.mrb[0].mxu0
      %v5573 = vadd.f32 0.0, %v5572
      %v5574 = vpop.f32.mrb[0].mxu0
      %5575 = vmatprep.mubr.bf16.mxu0 0
      %5576 = vmatmul.mubr.bf16.gmra.mrb[0].mxu0 %v2377
      %v5577 = vpop.f32.mrb[0].mxu0
      %v5578 = vadd.f32 0.0, %v5577
      %v5579 = vpop.f32.mrb[0].mxu0
      %v5580 = vpop.f32.mrb[0].mxu0
      %v5581 = vadd.f32 0.0, %v5580
      %v5582 = vpop.f32.mrb[0].mxu0
      %5583 = vmatprep.mubr.bf16.mxu0 0
      %5584 = vmatmul.mubr.bf16.gmra.mrb[0].mxu0 %v2379
      %v5585 = vpop.f32.mrb[0].mxu0
      %v5586 = vadd.f32 0.0, %v5585
      %v5587 = vpop.f32.mrb[0].mxu0
      %v5588 = vpop.f32.mrb[0].mxu0
      %v5589 = vadd.f32 0.0, %v5588
      %v5590 = vpop.f32.mrb[0].mxu0
      %5591 = vmatprep.mubr.bf16.mxu0 0
      %5592 = vmatmul.mubr.bf16.gmra.mrb[0].mxu0 %v2381
      %v5593 = vpop.f32.mrb[0].mxu0
      %v5594 = vadd.f32 0.0, %v5593
      %v5595 = vpop.f32.mrb[0].mxu0
      %v5596 = vpop.f32.mrb[0].mxu0
      %v5597 = vadd.f32 0.0, %v5596
      %v5598 = vpop.f32.mrb[0].mxu0
      %5599 = vmatprep.mubr.bf16.mxu0 0
      %5600 = vmatmul.mubr.bf16.gmra.mrb[0].mxu0 %v2383
      %v5601 = vpop.f32.mrb[0].mxu0
      %v5602 = vadd.f32 0.0, %v5601
      %v5603 = vpop.f32.mrb[0].mxu0
      %v5604 = vpop.f32.mrb[0].mxu0
      %v5605 = vadd.f32 0.0, %v5604
      %v5606 = vpop.f32.mrb[0].mxu0
      %5607 = vmatprep.mubr.bf16.mxu0 0
      %5608 = vmatmul.mubr.bf16.gmra.mrb[0].mxu0 %v2385
      %v5609 = vpop.f32.mrb[0].mxu0
      %v5610 = vadd.f32 0.0, %v5609
      %v5611 = vpop.f32.mrb[0].mxu0
      %v5612 = vpop.f32.mrb[0].mxu0
      %v5613 = vadd.f32 0.0, %v5612
      %v5614 = vpop.f32.mrb[0].mxu0
      %5615 = vmatprep.mubr.bf16.mxu0 0
      %5616 = vmatmul.mubr.bf16.gmra.mrb[0].mxu0 %v2387
      %v5617 = vpop.f32.mrb[0].mxu0
      %v5618 = vadd.f32 0.0, %v5617
      %v5619 = vpop.f32.mrb[0].mxu0
      %v5620 = vpop.f32.mrb[0].mxu0
      %v5621 = vadd.f32 0.0, %v5620
      %v5622 = vpop.f32.mrb[0].mxu0
      %5623 = vmatprep.mubr.bf16.mxu0 0
      %5624 = vmatmul.mubr.bf16.gmra.mrb[0].mxu0 %v2389
      %v5625 = vpop.f32.mrb[0].mxu0
      %v5626 = vadd.f32 0.0, %v5625
      %v5627 = vpop.f32.mrb[0].mxu0
      %v5628 = vpop.f32.mrb[0].mxu0
      %v5629 = vadd.f32 0.0, %v5628
      %v5630 = vpop.f32.mrb[0].mxu0
      %5631 = vmatprep.mubr.bf16.mxu0 0
      %5632 = vmatmul.mubr.bf16.gmra.mrb[0].mxu0 %v2391
      %v5633 = vpop.f32.mrb[0].mxu0
      %v5634 = vadd.f32 0.0, %v5633
      %v5635 = vpop.f32.mrb[0].mxu0
      %v5636 = vpop.f32.mrb[0].mxu0
      %v5637 = vadd.f32 0.0, %v5636
      %v5638 = vpop.f32.mrb[0].mxu0
      %5639 = vmatprep.mubr.bf16.mxu0 0
      %5640 = vmatmul.mubr.bf16.gmra.mrb[0].mxu0 %v2393
      %v5641 = vpop.f32.mrb[0].mxu0
      %v5642 = vadd.f32 0.0, %v5641
      %v5643 = vpop.f32.mrb[0].mxu0
      %v5644 = vpop.f32.mrb[0].mxu0
      %v5645 = vadd.f32 0.0, %v5644
      %v5646 = vpop.f32.mrb[0].mxu0
      %5647 = vmatprep.mubr.bf16.mxu0 0
      %5648 = vmatmul.mubr.bf16.gmra.mrb[0].mxu0 %v2395
      %v5649 = vpop.f32.mrb[0].mxu0
      %v5650 = vadd.f32 0.0, %v5649
      %v5651 = vpop.f32.mrb[0].mxu0
      %v5652 = vpop.f32.mrb[0].mxu0
      %v5653 = vadd.f32 0.0, %v5652
      %v5654 = vpop.f32.mrb[0].mxu0
      %5655 = vmatprep.mubr.bf16.mxu0 0
      %5656 = vmatmul.mubr.bf16.gmra.mrb[0].mxu0 %v2397
      %v5657 = vpop.f32.mrb[0].mxu0
      %v5658 = vadd.f32 0.0, %v5657
      %v5659 = vpop.f32.mrb[0].mxu0
      %v5660 = vpop.f32.mrb[0].mxu0
      %v5661 = vadd.f32 0.0, %v5660
      %v5662 = vpop.f32.mrb[0].mxu0
      %5663 = vmatprep.mubr.bf16.mxu0 0
      %5664 = vmatmul.mubr.bf16.gmra.mrb[0].mxu0 %v2399
      %v5665 = vpop.f32.mrb[0].mxu0
      %v5666 = vadd.f32 0.0, %v5665
      %v5667 = vpop.f32.mrb[0].mxu0
      %v5668 = vpop.f32.mrb[0].mxu0
      %v5669 = vadd.f32 0.0, %v5668
      %v5670 = vpop.f32.mrb[0].mxu0
      %5671 = vmatprep.mubr.bf16.mxu0 0
      %5672 = vmatmul.mubr.bf16.gmra.mrb[0].mxu0 %v2401
      %v5673 = vpop.f32.mrb[0].mxu0
      %v5674 = vadd.f32 0.0, %v5673
      %v5675 = vpop.f32.mrb[0].mxu0
      %v5676 = vpop.f32.mrb[0].mxu0
      %v5677 = vadd.f32 0.0, %v5676
      %v5678 = vpop.f32.mrb[0].mxu0
      %5679 = vmatprep.mubr.bf16.mxu0 0
      %5680 = vmatmul.mubr.bf16.gmra.mrb[0].mxu0 %v2403
      %v5681 = vpop.f32.mrb[0].mxu0
      %v5682 = vadd.f32 0.0, %v5681
      %v5683 = vpop.f32.mrb[0].mxu0
      %v5684 = vpop.f32.mrb[0].mxu0
      %v5685 = vadd.f32 0.0, %v5684
      %v5686 = vpop.f32.mrb[0].mxu0
      %5687 = vmatprep.mubr.bf16.mxu0 0
      %5688 = vmatmul.mubr.bf16.gmra.mrb[0].mxu0 %v2405
      %v5689 = vpop.f32.mrb[0].mxu0
      %v5690 = vadd.f32 0.0, %v5689
      %v5691 = vpop.f32.mrb[0].mxu0
      %v5692 = vpop.f32.mrb[0].mxu0
      %v5693 = vadd.f32 0.0, %v5692
      %v5694 = vpop.f32.mrb[0].mxu0
      %5695 = vmatprep.mubr.bf16.mxu0 0
      %5696 = vmatmul.mubr.bf16.gmra.mrb[0].mxu0 %v2407
      %v5697 = vpop.f32.mrb[0].mxu0
      %v5698 = vadd.f32 0.0, %v5697
      %v5699 = vpop.f32.mrb[0].mxu0
      %v5700 = vpop.f32.mrb[0].mxu0
      %v5701 = vadd.f32 0.0, %v5700
      %v5702 = vpop.f32.mrb[0].mxu0
      %5703 = vmatprep.mubr.bf16.mxu0 0
      %5704 = vmatmul.mubr.bf16.gmra.mrb[0].mxu0 %v2409
      %v5705 = vpop.f32.mrb[0].mxu0
      %v5706 = vadd.f32 0.0, %v5705
      %v5707 = vpop.f32.mrb[0].mxu0
      %v5708 = vpop.f32.mrb[0].mxu0
      %v5709 = vadd.f32 0.0, %v5708
      %v5710 = vpop.f32.mrb[0].mxu0
      %5711 = vmatprep.mubr.bf16.mxu0 0
      %5712 = vmatmul.mubr.bf16.gmra.mrb[0].mxu0 %v2411
      %v5713 = vpop.f32.mrb[0].mxu0
      %v5714 = vadd.f32 0.0, %v5713
      %v5715 = vpop.f32.mrb[0].mxu0
      %v5716 = vpop.f32.mrb[0].mxu0
      %v5717 = vadd.f32 0.0, %v5716
      %v5718 = vpop.f32.mrb[0].mxu0
      %5719 = vmatprep.mubr.bf16.mxu0 0
      %5720 = vmatmul.mubr.bf16.gmra.mrb[0].mxu0 %v2413
      %v5721 = vpop.f32.mrb[0].mxu0
      %v5722 = vadd.f32 0.0, %v5721
      %v5723 = vpop.f32.mrb[0].mxu0
      %v5724 = vpop.f32.mrb[0].mxu0
      %v5725 = vadd.f32 0.0, %v5724
      %v5726 = vpop.f32.mrb[0].mxu0
      %5727 = vmatprep.mubr.bf16.mxu0 0
      %5728 = vmatmul.mubr.bf16.gmra.mrb[0].mxu0 %v2415
      %v5729 = vpop.f32.mrb[0].mxu0
      %v5730 = vadd.f32 0.0, %v5729
      %v5731 = vpop.f32.mrb[0].mxu0
      %v5732 = vpop.f32.mrb[0].mxu0
      %v5733 = vadd.f32 0.0, %v5732
      %v5734 = vpop.f32.mrb[0].mxu0
      %5735 = vmatprep.mubr.bf16.mxu0 0
      %5736 = vmatmul.mubr.bf16.gmra.mrb[0].mxu0 %v2417
      %v5737 = vpop.f32.mrb[0].mxu0
      %v5738 = vadd.f32 0.0, %v5737
      %v5739 = vpop.f32.mrb[0].mxu0
      %v5740 = vpop.f32.mrb[0].mxu0
      %v5741 = vadd.f32 0.0, %v5740
      %v5742 = vpop.f32.mrb[0].mxu0
      %5743 = vmatprep.mubr.bf16.mxu0 0
      %5744 = vmatmul.mubr.bf16.gmra.mrb[0].mxu0 %v2419
      %v5745 = vpop.f32.mrb[0].mxu0
      %v5746 = vadd.f32 0.0, %v5745
      %v5747 = vpop.f32.mrb[0].mxu0
      %v5748 = vpop.f32.mrb[0].mxu0
      %v5749 = vadd.f32 0.0, %v5748
      %v5750 = vpop.f32.mrb[0].mxu0
      %5751 = vmatprep.mubr.bf16.mxu0 0
      %5752 = vmatmul.mubr.bf16.gmra.mrb[0].mxu0 %v2421
      %v5753 = vpop.f32.mrb[0].mxu0
      %v5754 = vadd.f32 0.0, %v5753
      %v5755 = vpop.f32.mrb[0].mxu0
      %v5756 = vpop.f32.mrb[0].mxu0
      %v5757 = vadd.f32 0.0, %v5756
      %v5758 = vpop.f32.mrb[0].mxu0
      %5759 = vmatprep.mubr.bf16.mxu0 0
      %5760 = vmatmul.mubr.bf16.gmra.mrb[0].mxu0 %v2423
      %v5761 = vpop.f32.mrb[0].mxu0
      %v5762 = vadd.f32 0.0, %v5761
      %v5763 = vpop.f32.mrb[0].mxu0
      %v5764 = vpop.f32.mrb[0].mxu0
      %v5765 = vadd.f32 0.0, %v5764
      %v5766 = vpop.f32.mrb[0].mxu0
      %5767 = vmatprep.mubr.bf16.mxu0 0
      %5768 = vmatmul.mubr.bf16.gmra.mrb[0].mxu0 %v2425
      %v5769 = vpop.f32.mrb[0].mxu0
      %v5770 = vadd.f32 0.0, %v5769
      %v5771 = vpop.f32.mrb[0].mxu0
      %v5772 = vpop.f32.mrb[0].mxu0
      %v5773 = vadd.f32 0.0, %v5772
      %v5774 = vpop.f32.mrb[0].mxu0
      %5775 = vmatprep.mubr.bf16.mxu0 0
      %5776 = vmatmul.mubr.bf16.gmra.mrb[0].mxu0 %v2427
      %v5777 = vpop.f32.mrb[0].mxu0
      %v5778 = vadd.f32 0.0, %v5777
      %v5779 = vpop.f32.mrb[0].mxu0
      %v5780 = vpop.f32.mrb[0].mxu0
      %v5781 = vadd.f32 0.0, %v5780
      %v5782 = vpop.f32.mrb[0].mxu0
      %5783 = vmatprep.mubr.bf16.mxu0 0
      %5784 = vmatmul.mubr.bf16.gmra.mrb[0].mxu0 %v2429
      %v5785 = vpop.f32.mrb[0].mxu0
      %v5786 = vadd.f32 0.0, %v5785
      %v5787 = vpop.f32.mrb[0].mxu0
      %v5788 = vpop.f32.mrb[0].mxu0
      %v5789 = vadd.f32 0.0, %v5788
      %v5790 = vpop.f32.mrb[0].mxu0
      %5791 = vmatprep.mubr.bf16.mxu0 0
      %5792 = vmatmul.mubr.bf16.gmra.mrb[0].mxu0 %v2431
      %v5793 = vpop.f32.mrb[0].mxu0
      %v5794 = vadd.f32 0.0, %v5793
      %v5795 = vpop.f32.mrb[0].mxu0
      %v5796 = vpop.f32.mrb[0].mxu0
      %v5797 = vadd.f32 0.0, %v5796
      %v5798 = vpop.f32.mrb[0].mxu0
      %5799 = vmatprep.mubr.bf16.mxu0 0
      %5800 = vmatmul.mubr.bf16.gmra.mrb[0].mxu0 %v2433
      %v5801 = vpop.f32.mrb[0].mxu0
      %v5802 = vadd.f32 0.0, %v5801
      %v5803 = vpop.f32.mrb[0].mxu0
      %v5804 = vpop.f32.mrb[0].mxu0
      %v5805 = vadd.f32 0.0, %v5804
      %v5806 = vpop.f32.mrb[0].mxu0
      %5807 = vmatprep.mubr.bf16.mxu0 0
      %5808 = vmatmul.mubr.bf16.gmra.mrb[0].mxu0 %v2435
      %v5809 = vpop.f32.mrb[0].mxu0
      %v5810 = vadd.f32 0.0, %v5809
      %v5811 = vpop.f32.mrb[0].mxu0
      %v5812 = vpop.f32.mrb[0].mxu0
      %v5813 = vadd.f32 0.0, %v5812
      %v5814 = vpop.f32.mrb[0].mxu0
      %5815 = vmatprep.mubr.bf16.mxu0 0
      %5816 = vmatmul.mubr.bf16.gmra.mrb[0].mxu0 %v2437
      %v5817 = vpop.f32.mrb[0].mxu0
      %v5818 = vadd.f32 0.0, %v5817
      %v5819 = vpop.f32.mrb[0].mxu0
      %v5820 = vpop.f32.mrb[0].mxu0
      %v5821 = vadd.f32 0.0, %v5820
      %v5822 = vpop.f32.mrb[0].mxu0
      %5823 = vmatprep.mubr.bf16.mxu0 0
      %5824 = vmatmul.mubr.bf16.gmra.mrb[0].mxu0 %v2439
      %v5825 = vpop.f32.mrb[0].mxu0
      %v5826 = vadd.f32 0.0, %v5825
      %v5827 = vpop.f32.mrb[0].mxu0
      %v5828 = vpop.f32.mrb[0].mxu0
      %v5829 = vadd.f32 0.0, %v5828
      %v5830 = vpop.f32.mrb[0].mxu0
      %5831 = vmatprep.mubr.bf16.mxu0 0
      %5832 = vmatmul.mubr.bf16.gmra.mrb[0].mxu0 %v2441
      %v5833 = vpop.f32.mrb[0].mxu0
      %v5834 = vadd.f32 0.0, %v5833
      %v5835 = vpop.f32.mrb[0].mxu0
      %v5836 = vpop.f32.mrb[0].mxu0
      %v5837 = vadd.f32 0.0, %v5836
      %v5838 = vpop.f32.mrb[0].mxu0
      %5839 = vmatprep.mubr.bf16.mxu0 0
      %5840 = vmatmul.mubr.bf16.gmra.mrb[0].mxu0 %v2443
      %v5841 = vpop.f32.mrb[0].mxu0
      %v5842 = vadd.f32 0.0, %v5841
      %v5843 = vpop.f32.mrb[0].mxu0
      %v5844 = vpop.f32.mrb[0].mxu0
      %v5845 = vadd.f32 0.0, %v5844
      %v5846 = vpop.f32.mrb[0].mxu0
      %5847 = vmatprep.mubr.bf16.mxu0 0
      %5848 = vmatmul.mubr.bf16.gmra.mrb[0].mxu0 %v2445
      %v5849 = vpop.f32.mrb[0].mxu0
      %v5850 = vadd.f32 0.0, %v5849
      %v5851 = vpop.f32.mrb[0].mxu0
      %v5852 = vpop.f32.mrb[0].mxu0
      %v5853 = vadd.f32 0.0, %v5852
      %v5854 = vpop.f32.mrb[0].mxu0
      %5855 = vmatprep.mubr.bf16.mxu0 0
      %5856 = vmatmul.mubr.bf16.gmra.mrb[0].mxu0 %v2447
      %v5857 = vpop.f32.mrb[0].mxu0
      %v5858 = vadd.f32 0.0, %v5857
      %v5859 = vpop.f32.mrb[0].mxu0
      %v5860 = vpop.f32.mrb[0].mxu0
      %v5861 = vadd.f32 0.0, %v5860
      %v5862 = vpop.f32.mrb[0].mxu0
      %5863 = vmatprep.mubr.bf16.mxu0 0
      %5864 = vmatmul.mubr.bf16.gmra.mrb[0].mxu0 %v2449
      %v5865 = vpop.f32.mrb[0].mxu0
      %v5866 = vadd.f32 0.0, %v5865
      %v5867 = vpop.f32.mrb[0].mxu0
      %v5868 = vpop.f32.mrb[0].mxu0
      %v5869 = vadd.f32 0.0, %v5868
      %v5870 = vpop.f32.mrb[0].mxu0
      %5871 = vmatprep.mubr.bf16.mxu0 0
      %5872 = vmatmul.mubr.bf16.gmra.mrb[0].mxu0 %v2451
      %v5873 = vpop.f32.mrb[0].mxu0
      %v5874 = vadd.f32 0.0, %v5873
      %v5875 = vpop.f32.mrb[0].mxu0
      %v5876 = vpop.f32.mrb[0].mxu0
      %v5877 = vadd.f32 0.0, %v5876
      %v5878 = vpop.f32.mrb[0].mxu0
      %5879 = vmatprep.mubr.bf16.mxu0 0
      %5880 = vmatmul.mubr.bf16.gmra.mrb[0].mxu0 %v2453
      %v5881 = vpop.f32.mrb[0].mxu0
      %v5882 = vadd.f32 0.0, %v5881
      %v5883 = vpop.f32.mrb[0].mxu0
      %v5884 = vpop.f32.mrb[0].mxu0
      %v5885 = vadd.f32 0.0, %v5884
      %v5886 = vpop.f32.mrb[0].mxu0
      %5887 = vmatprep.mubr.bf16.mxu0 0
      %5888 = vmatmul.mubr.bf16.gmra.mrb[0].mxu0 %v2455
      %v5889 = vpop.f32.mrb[0].mxu0
      %v5890 = vadd.f32 0.0, %v5889
      %v5891 = vpop.f32.mrb[0].mxu0
      %v5892 = vpop.f32.mrb[0].mxu0
      %v5893 = vadd.f32 0.0, %v5892
      %v5894 = vpop.f32.mrb[0].mxu0
      %5895 = vmatprep.mubr.bf16.mxu0 0
      %5896 = vmatmul.mubr.bf16.gmra.mrb[0].mxu0 %v2457
      %v5897 = vpop.f32.mrb[0].mxu0
      %v5898 = vadd.f32 0.0, %v5897
      %v5899 = vpop.f32.mrb[0].mxu0
      %v5900 = vpop.f32.mrb[0].mxu0
      %v5901 = vadd.f32 0.0, %v5900
      %v5902 = vpop.f32.mrb[0].mxu0
      %5903 = vmatprep.mubr.bf16.mxu0 0
      %5904 = vmatmul.mubr.bf16.gmra.mrb[0].mxu0 %v2459
      %v5905 = vpop.f32.mrb[0].mxu0
      %v5906 = vadd.f32 0.0, %v5905
      %v5907 = vpop.f32.mrb[0].mxu0
      %v5908 = vpop.f32.mrb[0].mxu0
      %v5909 = vadd.f32 0.0, %v5908
      %v5910 = vpop.f32.mrb[0].mxu0
      %5911 = vmatprep.mubr.bf16.mxu0 0
      %5912 = vmatmul.mubr.bf16.gmra.mrb[0].mxu0 %v2461
      %v5913 = vpop.f32.mrb[0].mxu0
      %v5914 = vadd.f32 0.0, %v5913
      %v5915 = vpop.f32.mrb[0].mxu0
      %v5916 = vpop.f32.mrb[0].mxu0
      %v5917 = vadd.f32 0.0, %v5916
      %v5918 = vpop.f32.mrb[0].mxu0
      %5919 = vmatprep.mubr.bf16.mxu0 0
      %5920 = vmatmul.mubr.bf16.gmra.mrb[0].mxu0 %v2463
      %v5921 = vpop.f32.mrb[0].mxu0
      %v5922 = vadd.f32 0.0, %v5921
      %v5923 = vpop.f32.mrb[0].mxu0
      %v5924 = vpop.f32.mrb[0].mxu0
      %v5925 = vadd.f32 0.0, %v5924
      %v5926 = vpop.f32.mrb[0].mxu0
      %5927 = vmatprep.mubr.bf16.mxu0 0
      %5928 = vmatmul.mubr.bf16.gmra.mrb[0].mxu0 %v2465
      %v5929 = vpop.f32.mrb[0].mxu0
      %v5930 = vadd.f32 0.0, %v5929
      %v5931 = vpop.f32.mrb[0].mxu0
      %v5932 = vpop.f32.mrb[0].mxu0
      %v5933 = vadd.f32 0.0, %v5932
      %v5934 = vpop.f32.mrb[0].mxu0
      %5935 = vmatprep.mubr.bf16.mxu0 0
      %5936 = vmatmul.mubr.bf16.gmra.mrb[0].mxu0 %v2467
      %v5937 = vpop.f32.mrb[0].mxu0
      %v5938 = vadd.f32 0.0, %v5937
      %v5939 = vpop.f32.mrb[0].mxu0
      %v5940 = vpop.f32.mrb[0].mxu0
      %v5941 = vadd.f32 0.0, %v5940
      %v5942 = vpop.f32.mrb[0].mxu0
      %5943 = vmatprep.mubr.bf16.mxu0 0
      %5944 = vmatmul.mubr.bf16.gmra.mrb[0].mxu0 %v2469
      %v5945 = vpop.f32.mrb[0].mxu0
      %v5946 = vadd.f32 0.0, %v5945
      %v5947 = vpop.f32.mrb[0].mxu0
      %v5948 = vpop.f32.mrb[0].mxu0
      %v5949 = vadd.f32 0.0, %v5948
      %v5950 = vpop.f32.mrb[0].mxu0
      %5951 = vmatprep.mubr.bf16.mxu0 0
      %5952 = vmatmul.mubr.bf16.gmra.mrb[0].mxu0 %v2471
      %v5953 = vpop.f32.mrb[0].mxu0
      %v5954 = vadd.f32 0.0, %v5953
      %v5955 = vpop.f32.mrb[0].mxu0
      %v5956 = vpop.f32.mrb[0].mxu0
      %v5957 = vadd.f32 0.0, %v5956
      %v5958 = vpop.f32.mrb[0].mxu0
      %5959 = vmatprep.mubr.bf16.mxu0 0
      %5960 = vmatmul.mubr.bf16.gmra.mrb[0].mxu0 %v2473
      %v5961 = vpop.f32.mrb[0].mxu0
      %v5962 = vadd.f32 0.0, %v5961
      %v5963 = vpop.f32.mrb[0].mxu0
      %v5964 = vpop.f32.mrb[0].mxu0
      %v5965 = vadd.f32 0.0, %v5964
      %v5966 = vpop.f32.mrb[0].mxu0
      %5967 = vmatprep.mubr.bf16.mxu0 0
      %5968 = vmatmul.mubr.bf16.gmra.mrb[0].mxu0 %v2475
      %v5969 = vpop.f32.mrb[0].mxu0
      %v5970 = vadd.f32 0.0, %v5969
      %v5971 = vpop.f32.mrb[0].mxu0
      %v5972 = vpop.f32.mrb[0].mxu0
      %v5973 = vadd.f32 0.0, %v5972
      %v5974 = vpop.f32.mrb[0].mxu0
      %5975 = vmatprep.mubr.bf16.mxu0 0
      %5976 = vmatmul.mubr.bf16.gmra.mrb[0].mxu0 %v2477
      %v5977 = vpop.f32.mrb[0].mxu0
      %v5978 = vadd.f32 0.0, %v5977
      %v5979 = vpop.f32.mrb[0].mxu0
      %v5980 = vpop.f32.mrb[0].mxu0
      %v5981 = vadd.f32 0.0, %v5980
      %v5982 = vpop.f32.mrb[0].mxu0
      %5983 = vmatprep.mubr.bf16.mxu0 0
      %5984 = vmatmul.mubr.bf16.gmra.mrb[0].mxu0 %v2479
      %v5985 = vpop.f32.mrb[0].mxu0
      %v5986 = vadd.f32 0.0, %v5985
      %v5987 = vpop.f32.mrb[0].mxu0
      %v5988 = vpop.f32.mrb[0].mxu0
      %v5989 = vadd.f32 0.0, %v5988
      %v5990 = vpop.f32.mrb[0].mxu0
      %5991 = vmatprep.mubr.bf16.mxu0 0
      %5992 = vmatmul.mubr.bf16.gmra.mrb[0].mxu0 %v2481
      %v5993 = vpop.f32.mrb[0].mxu0
      %v5994 = vadd.f32 0.0, %v5993
      %v5995 = vpop.f32.mrb[0].mxu0
      %v5996 = vpop.f32.mrb[0].mxu0
      %v5997 = vadd.f32 0.0, %v5996
      %v5998 = vpop.f32.mrb[0].mxu0
      %5999 = vmatprep.mubr.bf16.mxu0 0
      %6000 = vmatmul.mubr.bf16.gmra.mrb[0].mxu0 %v2483
      %v6001 = vpop.f32.mrb[0].mxu0
      %v6002 = vadd.f32 0.0, %v6001
      %v6003 = vpop.f32.mrb[0].mxu0
      %v6004 = vpop.f32.mrb[0].mxu0
      %v6005 = vadd.f32 0.0, %v6004
      %v6006 = vpop.f32.mrb[0].mxu0
      %6007 = vmatprep.mubr.bf16.mxu0 0
      %6008 = vmatmul.mubr.bf16.gmra.mrb[0].mxu0 %v2485
      %v6009 = vpop.f32.mrb[0].mxu0
      %v6010 = vadd.f32 0.0, %v6009
      %v6011 = vpop.f32.mrb[0].mxu0
      %v6012 = vpop.f32.mrb[0].mxu0
      %v6013 = vadd.f32 0.0, %v6012
      %v6014 = vpop.f32.mrb[0].mxu0
      %6015 = vmatprep.mubr.bf16.mxu0 0
      %6016 = vmatmul.mubr.bf16.gmra.mrb[0].mxu0 %v2487
      %v6017 = vpop.f32.mrb[0].mxu0
      %v6018 = vadd.f32 0.0, %v6017
      %v6019 = vpop.f32.mrb[0].mxu0
      %v6020 = vpop.f32.mrb[0].mxu0
      %v6021 = vadd.f32 0.0, %v6020
      %v6022 = vpop.f32.mrb[0].mxu0
      %6023 = vmatprep.mubr.bf16.mxu0 0
      %6024 = vmatmul.mubr.bf16.gmra.mrb[0].mxu0 %v2489
      %v6025 = vpop.f32.mrb[0].mxu0
      %v6026 = vadd.f32 0.0, %v6025
      %v6027 = vpop.f32.mrb[0].mxu0
      %v6028 = vpop.f32.mrb[0].mxu0
      %v6029 = vadd.f32 0.0, %v6028
      %v6030 = vpop.f32.mrb[0].mxu0
      %6031 = vmatprep.mubr.bf16.mxu0 0
      %6032 = vmatmul.mubr.bf16.gmra.mrb[0].mxu0 %v5499
      %v6033 = vpop.f32.mrb[0].mxu0
      %v6034 = vadd.f32 0.0, %v6033
      %v6035 = vpop.f32.mrb[0].mxu0
      %v6036 = vpop.f32.mrb[0].mxu0
      %v6037 = vadd.f32 0.0, %v6036
      %v6038 = vpop.f32.mrb[0].mxu0
      %6039 = vmatprep.mubr.bf16.mxu0 0
      %6040 = vmatmul.mubr.bf16.gmra.mrb[0].mxu0 %v5501
      %v6041 = vpop.f32.mrb[0].mxu0
      %v6042 = vadd.f32 0.0, %v6041
      %v6043 = vpop.f32.mrb[0].mxu0
      %v6044 = vpop.f32.mrb[0].mxu0
      %v6045 = vadd.f32 0.0, %v6044
      %v6046 = vpop.f32.mrb[0].mxu0
      %6047 = vdwg.mxu0
      %6048 = vrot.lane.b32.xlu0 %v3228, 8
      %v6049 = vpop.permute.xlu0 %6048
      %6050 = vrot.lane.b32.xlu0 %v5445, 16
      %v6051 = vpop.permute.xlu0 %6050
      %v6052 = vshrl.u32 %v5445, 16
      %6054 = vrot.lane.b32.xlu0 %v6052, 24
      %v6055 = vpop.permute.xlu0 %6054
      %v6057 = vsel %vm1959, %v1810, %v6049
      %v6059 = vsel %vm2088, %v6057, %v6051
      %v6061 = vsel %vm2217, %v6059, %v6055
      %v6062 = vshrl.u32 %v5479, 16
      %v6064 = vshll.u32 %v5479, 16
      %v6066 = vrot.slane %v6064, 1
      %v6067 = vor.u32 %v6062, %v6066
      %v6068 = vshll.u32 %v5481, 16
      %v6070 = vrot.slane %v6068, 1
      %v6071 = vsel %vm901, %v6067, %v6070
      %v6072 = vshrl.u32 %v5481, 16
      %v6074 = vor.u32 %v6072, %v6070
      %v6075 = vshll.u32 %v6061, 16
      %v6077 = vrot.slane %v6075, 1
      %v6078 = vsel %vm901, %v6074, %v6077
      %s6079 = scalar_lea.vmem %s1, 48
      %v6080 = vld [vmem:[%s6079] sm:$0xf]
      %v6081 = vld [vmem:[%s6079 + $0x4] sm:$0xf]
      %v6082 = vld [vmem:[%s6079 + $0x8] sm:$0xf]
      %v6083 = vld [vmem:[%s6079 + $0xc] sm:$0xf]
      %v6088 = vunpack.c.l.b16 %v6080
      %v6089 = vunpack.c.l.b16 %v6081
      %v6090 = vunpack.c.l.b16 %v6082
      %v6091 = vunpack.c.l.b16 %v6083
      %v6092 = vpack.c.b16 %v6089, %v6088
      %v6093 = vpack.c.b16 %v6091, %v6090
      %v6097 = vsel %vm2362, %v6071, 0
      %v6100 = vsel %vm2362, %v6078, 0
      %6102 = vmatprep.subr.bf16.mxu0 0
      %6103 = vmatpush1.bf16.msra.mxu0 %v6092
      %6104 = vmatprep.subr.bf16.mxu0 0
      %6105 = vmatpush1.bf16.msra.mxu0 %v6093
      %6106 = vmatprep.subr.bf16.mxu0 0
      %6107 = vmatpush1.bf16.msra.mxu0 0
      %6108 = vmatprep.subr.bf16.mxu0 0
      %6109 = vmatpush1.bf16.msra.mxu0 0
      %6110 = vmatprep.subr.bf16.mxu0 0
      %6111 = vmatpush1.bf16.msra.mxu0 0
      %6112 = vmatprep.subr.bf16.mxu0 0
      %6113 = vmatpush1.bf16.msra.mxu0 0
      %6114 = vmatprep.subr.bf16.mxu0 0
      %6115 = vmatpush1.bf16.msra.mxu0 0
      %6116 = vmatprep.subr.bf16.mxu0 0
      %6117 = vmatpush1.bf16.msra.mxu0 0
      %6118 = vmatprep.subr.bf16.mxu0 0
      %6119 = vmatpush1.bf16.msra.mxu0 0
      %6120 = vmatprep.subr.bf16.mxu0 0
      %6121 = vmatpush1.bf16.msra.mxu0 0
      %6122 = vmatprep.subr.bf16.mxu0 0
      %6123 = vmatpush1.bf16.msra.mxu0 0
      %6124 = vmatprep.subr.bf16.mxu0 0
      %6125 = vmatpush1.bf16.msra.mxu0 0
      %6126 = vmatprep.subr.bf16.mxu0 0
      %6127 = vmatpush1.bf16.msra.mxu0 0
      %6128 = vmatprep.subr.bf16.mxu0 0
      %6129 = vmatpush1.bf16.msra.mxu0 0
      %6130 = vmatprep.subr.bf16.mxu0 0
      %6131 = vmatpush1.bf16.msra.mxu0 0
      %6132 = vmatprep.subr.bf16.mxu0 0
      %6133 = vmatpush1.bf16.msra.mxu0 0
      %6134 = vmatprep.mubr.bf16.mxu0 0
      %6135 = vmatmul.mubr.bf16.gmra.mrb[0].mxu0 %v4054
      %v6136 = vpop.f32.mrb[0].mxu0
      %v6137 = vadd.f32 0.0, %v6136
      %v6138 = vpop.f32.mrb[0].mxu0
      %v6139 = vpop.f32.mrb[0].mxu0
      %v6140 = vadd.f32 0.0, %v6139
      %v6141 = vpop.f32.mrb[0].mxu0
      %6142 = vmatprep.mubr.bf16.mxu0 0
      %6143 = vmatmul.mubr.bf16.gmra.mrb[0].mxu0 %v4057
      %v6144 = vpop.f32.mrb[0].mxu0
      %v6145 = vadd.f32 0.0, %v6144
      %v6146 = vpop.f32.mrb[0].mxu0
      %v6147 = vpop.f32.mrb[0].mxu0
      %v6148 = vadd.f32 0.0, %v6147
      %v6149 = vpop.f32.mrb[0].mxu0
      %6150 = vmatprep.mubr.bf16.mxu0 0
      %6151 = vmatmul.mubr.bf16.gmra.mrb[0].mxu0 %v4060
      %v6152 = vpop.f32.mrb[0].mxu0
      %v6153 = vadd.f32 0.0, %v6152
      %v6154 = vpop.f32.mrb[0].mxu0
      %v6155 = vpop.f32.mrb[0].mxu0
      %v6156 = vadd.f32 0.0, %v6155
      %v6157 = vpop.f32.mrb[0].mxu0
      %6158 = vmatprep.mubr.bf16.mxu0 0
      %6159 = vmatmul.mubr.bf16.gmra.mrb[0].mxu0 %v4063
      %v6160 = vpop.f32.mrb[0].mxu0
      %v6161 = vadd.f32 0.0, %v6160
      %v6162 = vpop.f32.mrb[0].mxu0
      %v6163 = vpop.f32.mrb[0].mxu0
      %v6164 = vadd.f32 0.0, %v6163
      %v6165 = vpop.f32.mrb[0].mxu0
      %6166 = vmatprep.mubr.bf16.mxu0 0
      %6167 = vmatmul.mubr.bf16.gmra.mrb[0].mxu0 %v4066
      %v6168 = vpop.f32.mrb[0].mxu0
      %v6169 = vadd.f32 0.0, %v6168
      %v6170 = vpop.f32.mrb[0].mxu0
      %v6171 = vpop.f32.mrb[0].mxu0
      %v6172 = vadd.f32 0.0, %v6171
      %v6173 = vpop.f32.mrb[0].mxu0
      %6174 = vmatprep.mubr.bf16.mxu0 0
      %6175 = vmatmul.mubr.bf16.gmra.mrb[0].mxu0 %v4069
      %v6176 = vpop.f32.mrb[0].mxu0
      %v6177 = vadd.f32 0.0, %v6176
      %v6178 = vpop.f32.mrb[0].mxu0
      %v6179 = vpop.f32.mrb[0].mxu0
      %v6180 = vadd.f32 0.0, %v6179
      %v6181 = vpop.f32.mrb[0].mxu0
      %6182 = vmatprep.mubr.bf16.mxu0 0
      %6183 = vmatmul.mubr.bf16.gmra.mrb[0].mxu0 %v4072
      %v6184 = vpop.f32.mrb[0].mxu0
      %v6185 = vadd.f32 0.0, %v6184
      %v6186 = vpop.f32.mrb[0].mxu0
      %v6187 = vpop.f32.mrb[0].mxu0
      %v6188 = vadd.f32 0.0, %v6187
      %v6189 = vpop.f32.mrb[0].mxu0
      %6190 = vmatprep.mubr.bf16.mxu0 0
      %6191 = vmatmul.mubr.bf16.gmra.mrb[0].mxu0 %v4075
      %v6192 = vpop.f32.mrb[0].mxu0
      %v6193 = vadd.f32 0.0, %v6192
      %v6194 = vpop.f32.mrb[0].mxu0
      %v6195 = vpop.f32.mrb[0].mxu0
      %v6196 = vadd.f32 0.0, %v6195
      %v6197 = vpop.f32.mrb[0].mxu0
      %6198 = vmatprep.mubr.bf16.mxu0 0
      %6199 = vmatmul.mubr.bf16.gmra.mrb[0].mxu0 %v4078
      %v6200 = vpop.f32.mrb[0].mxu0
      %v6201 = vadd.f32 0.0, %v6200
      %v6202 = vpop.f32.mrb[0].mxu0
      %v6203 = vpop.f32.mrb[0].mxu0
      %v6204 = vadd.f32 0.0, %v6203
      %v6205 = vpop.f32.mrb[0].mxu0
      %6206 = vmatprep.mubr.bf16.mxu0 0
      %6207 = vmatmul.mubr.bf16.gmra.mrb[0].mxu0 %v4081
      %v6208 = vpop.f32.mrb[0].mxu0
      %v6209 = vadd.f32 0.0, %v6208
      %v6210 = vpop.f32.mrb[0].mxu0
      %v6211 = vpop.f32.mrb[0].mxu0
      %v6212 = vadd.f32 0.0, %v6211
      %v6213 = vpop.f32.mrb[0].mxu0
      %6214 = vmatprep.mubr.bf16.mxu0 0
      %6215 = vmatmul.mubr.bf16.gmra.mrb[0].mxu0 %v4084
      %v6216 = vpop.f32.mrb[0].mxu0
      %v6217 = vadd.f32 0.0, %v6216
      %v6218 = vpop.f32.mrb[0].mxu0
      %v6219 = vpop.f32.mrb[0].mxu0
      %v6220 = vadd.f32 0.0, %v6219
      %v6221 = vpop.f32.mrb[0].mxu0
      %6222 = vmatprep.mubr.bf16.mxu0 0
      %6223 = vmatmul.mubr.bf16.gmra.mrb[0].mxu0 %v4087
      %v6224 = vpop.f32.mrb[0].mxu0
      %v6225 = vadd.f32 0.0, %v6224
      %v6226 = vpop.f32.mrb[0].mxu0
      %v6227 = vpop.f32.mrb[0].mxu0
      %v6228 = vadd.f32 0.0, %v6227
      %v6229 = vpop.f32.mrb[0].mxu0
      %6230 = vmatprep.mubr.bf16.mxu0 0
      %6231 = vmatmul.mubr.bf16.gmra.mrb[0].mxu0 %v4090
      %v6232 = vpop.f32.mrb[0].mxu0
      %v6233 = vadd.f32 0.0, %v6232
      %v6234 = vpop.f32.mrb[0].mxu0
      %v6235 = vpop.f32.mrb[0].mxu0
      %v6236 = vadd.f32 0.0, %v6235
      %v6237 = vpop.f32.mrb[0].mxu0
      %6238 = vmatprep.mubr.bf16.mxu0 0
      %6239 = vmatmul.mubr.bf16.gmra.mrb[0].mxu0 %v4093
      %v6240 = vpop.f32.mrb[0].mxu0
      %v6241 = vadd.f32 0.0, %v6240
      %v6242 = vpop.f32.mrb[0].mxu0
      %v6243 = vpop.f32.mrb[0].mxu0
      %v6244 = vadd.f32 0.0, %v6243
      %v6245 = vpop.f32.mrb[0].mxu0
      %6246 = vmatprep.mubr.bf16.mxu0 0
      %6247 = vmatmul.mubr.bf16.gmra.mrb[0].mxu0 %v4096
      %v6248 = vpop.f32.mrb[0].mxu0
      %v6249 = vadd.f32 0.0, %v6248
      %v6250 = vpop.f32.mrb[0].mxu0
      %v6251 = vpop.f32.mrb[0].mxu0
      %v6252 = vadd.f32 0.0, %v6251
      %v6253 = vpop.f32.mrb[0].mxu0
      %6254 = vmatprep.mubr.bf16.mxu0 0
      %6255 = vmatmul.mubr.bf16.gmra.mrb[0].mxu0 %v4099
      %v6256 = vpop.f32.mrb[0].mxu0
      %v6257 = vadd.f32 0.0, %v6256
      %v6258 = vpop.f32.mrb[0].mxu0
      %v6259 = vpop.f32.mrb[0].mxu0
      %v6260 = vadd.f32 0.0, %v6259
      %v6261 = vpop.f32.mrb[0].mxu0
      %6262 = vmatprep.mubr.bf16.mxu0 0
      %6263 = vmatmul.mubr.bf16.gmra.mrb[0].mxu0 %v4102
      %v6264 = vpop.f32.mrb[0].mxu0
      %v6265 = vadd.f32 0.0, %v6264
      %v6266 = vpop.f32.mrb[0].mxu0
      %v6267 = vpop.f32.mrb[0].mxu0
      %v6268 = vadd.f32 0.0, %v6267
      %v6269 = vpop.f32.mrb[0].mxu0
      %6270 = vmatprep.mubr.bf16.mxu0 0
      %6271 = vmatmul.mubr.bf16.gmra.mrb[0].mxu0 %v4105
      %v6272 = vpop.f32.mrb[0].mxu0
      %v6273 = vadd.f32 0.0, %v6272
      %v6274 = vpop.f32.mrb[0].mxu0
      %v6275 = vpop.f32.mrb[0].mxu0
      %v6276 = vadd.f32 0.0, %v6275
      %v6277 = vpop.f32.mrb[0].mxu0
      %6278 = vmatprep.mubr.bf16.mxu0 0
      %6279 = vmatmul.mubr.bf16.gmra.mrb[0].mxu0 %v4108
      %v6280 = vpop.f32.mrb[0].mxu0
      %v6281 = vadd.f32 0.0, %v6280
      %v6282 = vpop.f32.mrb[0].mxu0
      %v6283 = vpop.f32.mrb[0].mxu0
      %v6284 = vadd.f32 0.0, %v6283
      %v6285 = vpop.f32.mrb[0].mxu0
      %6286 = vmatprep.mubr.bf16.mxu0 0
      %6287 = vmatmul.mubr.bf16.gmra.mrb[0].mxu0 %v4111
      %v6288 = vpop.f32.mrb[0].mxu0
      %v6289 = vadd.f32 0.0, %v6288
      %v6290 = vpop.f32.mrb[0].mxu0
      %v6291 = vpop.f32.mrb[0].mxu0
      %v6292 = vadd.f32 0.0, %v6291
      %v6293 = vpop.f32.mrb[0].mxu0
      %6294 = vmatprep.mubr.bf16.mxu0 0
      %6295 = vmatmul.mubr.bf16.gmra.mrb[0].mxu0 %v4114
      %v6296 = vpop.f32.mrb[0].mxu0
      %v6297 = vadd.f32 0.0, %v6296
      %v6298 = vpop.f32.mrb[0].mxu0
      %v6299 = vpop.f32.mrb[0].mxu0
      %v6300 = vadd.f32 0.0, %v6299
      %v6301 = vpop.f32.mrb[0].mxu0
      %6302 = vmatprep.mubr.bf16.mxu0 0
      %6303 = vmatmul.mubr.bf16.gmra.mrb[0].mxu0 %v4117
      %v6304 = vpop.f32.mrb[0].mxu0
      %v6305 = vadd.f32 0.0, %v6304
      %v6306 = vpop.f32.mrb[0].mxu0
      %v6307 = vpop.f32.mrb[0].mxu0
      %v6308 = vadd.f32 0.0, %v6307
      %v6309 = vpop.f32.mrb[0].mxu0
      %6310 = vmatprep.mubr.bf16.mxu0 0
      %6311 = vmatmul.mubr.bf16.gmra.mrb[0].mxu0 %v4120
      %v6312 = vpop.f32.mrb[0].mxu0
      %v6313 = vadd.f32 0.0, %v6312
      %v6314 = vpop.f32.mrb[0].mxu0
      %v6315 = vpop.f32.mrb[0].mxu0
      %v6316 = vadd.f32 0.0, %v6315
      %v6317 = vpop.f32.mrb[0].mxu0
      %6318 = vmatprep.mubr.bf16.mxu0 0
      %6319 = vmatmul.mubr.bf16.gmra.mrb[0].mxu0 %v4123
      %v6320 = vpop.f32.mrb[0].mxu0
      %v6321 = vadd.f32 0.0, %v6320
      %v6322 = vpop.f32.mrb[0].mxu0
      %v6323 = vpop.f32.mrb[0].mxu0
      %v6324 = vadd.f32 0.0, %v6323
      %v6325 = vpop.f32.mrb[0].mxu0
      %6326 = vmatprep.mubr.bf16.mxu0 0
      %6327 = vmatmul.mubr.bf16.gmra.mrb[0].mxu0 %v4126
      %v6328 = vpop.f32.mrb[0].mxu0
      %v6329 = vadd.f32 0.0, %v6328
      %v6330 = vpop.f32.mrb[0].mxu0
      %v6331 = vpop.f32.mrb[0].mxu0
      %v6332 = vadd.f32 0.0, %v6331
      %v6333 = vpop.f32.mrb[0].mxu0
      %6334 = vmatprep.mubr.bf16.mxu0 0
      %6335 = vmatmul.mubr.bf16.gmra.mrb[0].mxu0 %v4129
      %v6336 = vpop.f32.mrb[0].mxu0
      %v6337 = vadd.f32 0.0, %v6336
      %v6338 = vpop.f32.mrb[0].mxu0
      %v6339 = vpop.f32.mrb[0].mxu0
      %v6340 = vadd.f32 0.0, %v6339
      %v6341 = vpop.f32.mrb[0].mxu0
      %6342 = vmatprep.mubr.bf16.mxu0 0
      %6343 = vmatmul.mubr.bf16.gmra.mrb[0].mxu0 %v4132
      %v6344 = vpop.f32.mrb[0].mxu0
      %v6345 = vadd.f32 0.0, %v6344
      %v6346 = vpop.f32.mrb[0].mxu0
      %v6347 = vpop.f32.mrb[0].mxu0
      %v6348 = vadd.f32 0.0, %v6347
      %v6349 = vpop.f32.mrb[0].mxu0
      %6350 = vmatprep.mubr.bf16.mxu0 0
      %6351 = vmatmul.mubr.bf16.gmra.mrb[0].mxu0 %v4135
      %v6352 = vpop.f32.mrb[0].mxu0
      %v6353 = vadd.f32 0.0, %v6352
      %v6354 = vpop.f32.mrb[0].mxu0
      %v6355 = vpop.f32.mrb[0].mxu0
      %v6356 = vadd.f32 0.0, %v6355
      %v6357 = vpop.f32.mrb[0].mxu0
      %6358 = vmatprep.mubr.bf16.mxu0 0
      %6359 = vmatmul.mubr.bf16.gmra.mrb[0].mxu0 %v4138
      %v6360 = vpop.f32.mrb[0].mxu0
      %v6361 = vadd.f32 0.0, %v6360
      %v6362 = vpop.f32.mrb[0].mxu0
      %v6363 = vpop.f32.mrb[0].mxu0
      %v6364 = vadd.f32 0.0, %v6363
      %v6365 = vpop.f32.mrb[0].mxu0
      %6366 = vmatprep.mubr.bf16.mxu0 0
      %6367 = vmatmul.mubr.bf16.gmra.mrb[0].mxu0 %v4141
      %v6368 = vpop.f32.mrb[0].mxu0
      %v6369 = vadd.f32 0.0, %v6368
      %v6370 = vpop.f32.mrb[0].mxu0
      %v6371 = vpop.f32.mrb[0].mxu0
      %v6372 = vadd.f32 0.0, %v6371
      %v6373 = vpop.f32.mrb[0].mxu0
      %6374 = vmatprep.mubr.bf16.mxu0 0
      %6375 = vmatmul.mubr.bf16.gmra.mrb[0].mxu0 %v4144
      %v6376 = vpop.f32.mrb[0].mxu0
      %v6377 = vadd.f32 0.0, %v6376
      %v6378 = vpop.f32.mrb[0].mxu0
      %v6379 = vpop.f32.mrb[0].mxu0
      %v6380 = vadd.f32 0.0, %v6379
      %v6381 = vpop.f32.mrb[0].mxu0
      %6382 = vmatprep.mubr.bf16.mxu0 0
      %6383 = vmatmul.mubr.bf16.gmra.mrb[0].mxu0 %v4147
      %v6384 = vpop.f32.mrb[0].mxu0
      %v6385 = vadd.f32 0.0, %v6384
      %v6386 = vpop.f32.mrb[0].mxu0
      %v6387 = vpop.f32.mrb[0].mxu0
      %v6388 = vadd.f32 0.0, %v6387
      %v6389 = vpop.f32.mrb[0].mxu0
      %6390 = vmatprep.mubr.bf16.mxu0 0
      %6391 = vmatmul.mubr.bf16.gmra.mrb[0].mxu0 %v4150
      %v6392 = vpop.f32.mrb[0].mxu0
      %v6393 = vadd.f32 0.0, %v6392
      %v6394 = vpop.f32.mrb[0].mxu0
      %v6395 = vpop.f32.mrb[0].mxu0
      %v6396 = vadd.f32 0.0, %v6395
      %v6397 = vpop.f32.mrb[0].mxu0
      %6398 = vmatprep.mubr.bf16.mxu0 0
      %6399 = vmatmul.mubr.bf16.gmra.mrb[0].mxu0 %v4153
      %v6400 = vpop.f32.mrb[0].mxu0
      %v6401 = vadd.f32 0.0, %v6400
      %v6402 = vpop.f32.mrb[0].mxu0
      %v6403 = vpop.f32.mrb[0].mxu0
      %v6404 = vadd.f32 0.0, %v6403
      %v6405 = vpop.f32.mrb[0].mxu0
      %6406 = vmatprep.mubr.bf16.mxu0 0
      %6407 = vmatmul.mubr.bf16.gmra.mrb[0].mxu0 %v4156
      %v6408 = vpop.f32.mrb[0].mxu0
      %v6409 = vadd.f32 0.0, %v6408
      %v6410 = vpop.f32.mrb[0].mxu0
      %v6411 = vpop.f32.mrb[0].mxu0
      %v6412 = vadd.f32 0.0, %v6411
      %v6413 = vpop.f32.mrb[0].mxu0
      %6414 = vmatprep.mubr.bf16.mxu0 0
      %6415 = vmatmul.mubr.bf16.gmra.mrb[0].mxu0 %v4159
      %v6416 = vpop.f32.mrb[0].mxu0
      %v6417 = vadd.f32 0.0, %v6416
      %v6418 = vpop.f32.mrb[0].mxu0
      %v6419 = vpop.f32.mrb[0].mxu0
      %v6420 = vadd.f32 0.0, %v6419
      %v6421 = vpop.f32.mrb[0].mxu0
      %6422 = vmatprep.mubr.bf16.mxu0 0
      %6423 = vmatmul.mubr.bf16.gmra.mrb[0].mxu0 %v4162
      %v6424 = vpop.f32.mrb[0].mxu0
      %v6425 = vadd.f32 0.0, %v6424
      %v6426 = vpop.f32.mrb[0].mxu0
      %v6427 = vpop.f32.mrb[0].mxu0
      %v6428 = vadd.f32 0.0, %v6427
      %v6429 = vpop.f32.mrb[0].mxu0
      %6430 = vmatprep.mubr.bf16.mxu0 0
      %6431 = vmatmul.mubr.bf16.gmra.mrb[0].mxu0 %v4165
      %v6432 = vpop.f32.mrb[0].mxu0
      %v6433 = vadd.f32 0.0, %v6432
      %v6434 = vpop.f32.mrb[0].mxu0
      %v6435 = vpop.f32.mrb[0].mxu0
      %v6436 = vadd.f32 0.0, %v6435
      %v6437 = vpop.f32.mrb[0].mxu0
      %6438 = vmatprep.mubr.bf16.mxu0 0
      %6439 = vmatmul.mubr.bf16.gmra.mrb[0].mxu0 %v4168
      %v6440 = vpop.f32.mrb[0].mxu0
      %v6441 = vadd.f32 0.0, %v6440
      %v6442 = vpop.f32.mrb[0].mxu0
      %v6443 = vpop.f32.mrb[0].mxu0
      %v6444 = vadd.f32 0.0, %v6443
      %v6445 = vpop.f32.mrb[0].mxu0
      %6446 = vmatprep.mubr.bf16.mxu0 0
      %6447 = vmatmul.mubr.bf16.gmra.mrb[0].mxu0 %v4171
      %v6448 = vpop.f32.mrb[0].mxu0
      %v6449 = vadd.f32 0.0, %v6448
      %v6450 = vpop.f32.mrb[0].mxu0
      %v6451 = vpop.f32.mrb[0].mxu0
      %v6452 = vadd.f32 0.0, %v6451
      %v6453 = vpop.f32.mrb[0].mxu0
      %6454 = vmatprep.mubr.bf16.mxu0 0
      %6455 = vmatmul.mubr.bf16.gmra.mrb[0].mxu0 %v4174
      %v6456 = vpop.f32.mrb[0].mxu0
      %v6457 = vadd.f32 0.0, %v6456
      %v6458 = vpop.f32.mrb[0].mxu0
      %v6459 = vpop.f32.mrb[0].mxu0
      %v6460 = vadd.f32 0.0, %v6459
      %v6461 = vpop.f32.mrb[0].mxu0
      %6462 = vmatprep.mubr.bf16.mxu0 0
      %6463 = vmatmul.mubr.bf16.gmra.mrb[0].mxu0 %v4177
      %v6464 = vpop.f32.mrb[0].mxu0
      %v6465 = vadd.f32 0.0, %v6464
      %v6466 = vpop.f32.mrb[0].mxu0
      %v6467 = vpop.f32.mrb[0].mxu0
      %v6468 = vadd.f32 0.0, %v6467
      %v6469 = vpop.f32.mrb[0].mxu0
      %6470 = vmatprep.mubr.bf16.mxu0 0
      %6471 = vmatmul.mubr.bf16.gmra.mrb[0].mxu0 %v4180
      %v6472 = vpop.f32.mrb[0].mxu0
      %v6473 = vadd.f32 0.0, %v6472
      %v6474 = vpop.f32.mrb[0].mxu0
      %v6475 = vpop.f32.mrb[0].mxu0
      %v6476 = vadd.f32 0.0, %v6475
      %v6477 = vpop.f32.mrb[0].mxu0
      %6478 = vmatprep.mubr.bf16.mxu0 0
      %6479 = vmatmul.mubr.bf16.gmra.mrb[0].mxu0 %v4183
      %v6480 = vpop.f32.mrb[0].mxu0
      %v6481 = vadd.f32 0.0, %v6480
      %v6482 = vpop.f32.mrb[0].mxu0
      %v6483 = vpop.f32.mrb[0].mxu0
      %v6484 = vadd.f32 0.0, %v6483
      %v6485 = vpop.f32.mrb[0].mxu0
      %6486 = vmatprep.mubr.bf16.mxu0 0
      %6487 = vmatmul.mubr.bf16.gmra.mrb[0].mxu0 %v4186
      %v6488 = vpop.f32.mrb[0].mxu0
      %v6489 = vadd.f32 0.0, %v6488
      %v6490 = vpop.f32.mrb[0].mxu0
      %v6491 = vpop.f32.mrb[0].mxu0
      %v6492 = vadd.f32 0.0, %v6491
      %v6493 = vpop.f32.mrb[0].mxu0
      %6494 = vmatprep.mubr.bf16.mxu0 0
      %6495 = vmatmul.mubr.bf16.gmra.mrb[0].mxu0 %v4189
      %v6496 = vpop.f32.mrb[0].mxu0
      %v6497 = vadd.f32 0.0, %v6496
      %v6498 = vpop.f32.mrb[0].mxu0
      %v6499 = vpop.f32.mrb[0].mxu0
      %v6500 = vadd.f32 0.0, %v6499
      %v6501 = vpop.f32.mrb[0].mxu0
      %6502 = vmatprep.mubr.bf16.mxu0 0
      %6503 = vmatmul.mubr.bf16.gmra.mrb[0].mxu0 %v4192
      %v6504 = vpop.f32.mrb[0].mxu0
      %v6505 = vadd.f32 0.0, %v6504
      %v6506 = vpop.f32.mrb[0].mxu0
      %v6507 = vpop.f32.mrb[0].mxu0
      %v6508 = vadd.f32 0.0, %v6507
      %v6509 = vpop.f32.mrb[0].mxu0
      %6510 = vmatprep.mubr.bf16.mxu0 0
      %6511 = vmatmul.mubr.bf16.gmra.mrb[0].mxu0 %v4195
      %v6512 = vpop.f32.mrb[0].mxu0
      %v6513 = vadd.f32 0.0, %v6512
      %v6514 = vpop.f32.mrb[0].mxu0
      %v6515 = vpop.f32.mrb[0].mxu0
      %v6516 = vadd.f32 0.0, %v6515
      %v6517 = vpop.f32.mrb[0].mxu0
      %6518 = vmatprep.mubr.bf16.mxu0 0
      %6519 = vmatmul.mubr.bf16.gmra.mrb[0].mxu0 %v4198
      %v6520 = vpop.f32.mrb[0].mxu0
      %v6521 = vadd.f32 0.0, %v6520
      %v6522 = vpop.f32.mrb[0].mxu0
      %v6523 = vpop.f32.mrb[0].mxu0
      %v6524 = vadd.f32 0.0, %v6523
      %v6525 = vpop.f32.mrb[0].mxu0
      %6526 = vmatprep.mubr.bf16.mxu0 0
      %6527 = vmatmul.mubr.bf16.gmra.mrb[0].mxu0 %v4201
      %v6528 = vpop.f32.mrb[0].mxu0
      %v6529 = vadd.f32 0.0, %v6528
      %v6530 = vpop.f32.mrb[0].mxu0
      %v6531 = vpop.f32.mrb[0].mxu0
      %v6532 = vadd.f32 0.0, %v6531
      %v6533 = vpop.f32.mrb[0].mxu0
      %6534 = vmatprep.mubr.bf16.mxu0 0
      %6535 = vmatmul.mubr.bf16.gmra.mrb[0].mxu0 %v4204
      %v6536 = vpop.f32.mrb[0].mxu0
      %v6537 = vadd.f32 0.0, %v6536
      %v6538 = vpop.f32.mrb[0].mxu0
      %v6539 = vpop.f32.mrb[0].mxu0
      %v6540 = vadd.f32 0.0, %v6539
      %v6541 = vpop.f32.mrb[0].mxu0
      %6542 = vmatprep.mubr.bf16.mxu0 0
      %6543 = vmatmul.mubr.bf16.gmra.mrb[0].mxu0 %v4207
      %v6544 = vpop.f32.mrb[0].mxu0
      %v6545 = vadd.f32 0.0, %v6544
      %v6546 = vpop.f32.mrb[0].mxu0
      %v6547 = vpop.f32.mrb[0].mxu0
      %v6548 = vadd.f32 0.0, %v6547
      %v6549 = vpop.f32.mrb[0].mxu0
      %6550 = vmatprep.mubr.bf16.mxu0 0
      %6551 = vmatmul.mubr.bf16.gmra.mrb[0].mxu0 %v4210
      %v6552 = vpop.f32.mrb[0].mxu0
      %v6553 = vadd.f32 0.0, %v6552
      %v6554 = vpop.f32.mrb[0].mxu0
      %v6555 = vpop.f32.mrb[0].mxu0
      %v6556 = vadd.f32 0.0, %v6555
      %v6557 = vpop.f32.mrb[0].mxu0
      %6558 = vmatprep.mubr.bf16.mxu0 0
      %6559 = vmatmul.mubr.bf16.gmra.mrb[0].mxu0 %v4213
      %v6560 = vpop.f32.mrb[0].mxu0
      %v6561 = vadd.f32 0.0, %v6560
      %v6562 = vpop.f32.mrb[0].mxu0
      %v6563 = vpop.f32.mrb[0].mxu0
      %v6564 = vadd.f32 0.0, %v6563
      %v6565 = vpop.f32.mrb[0].mxu0
      %6566 = vmatprep.mubr.bf16.mxu0 0
      %6567 = vmatmul.mubr.bf16.gmra.mrb[0].mxu0 %v4216
      %v6568 = vpop.f32.mrb[0].mxu0
      %v6569 = vadd.f32 0.0, %v6568
      %v6570 = vpop.f32.mrb[0].mxu0
      %v6571 = vpop.f32.mrb[0].mxu0
      %v6572 = vadd.f32 0.0, %v6571
      %v6573 = vpop.f32.mrb[0].mxu0
      %6574 = vmatprep.mubr.bf16.mxu0 0
      %6575 = vmatmul.mubr.bf16.gmra.mrb[0].mxu0 %v4219
      %v6576 = vpop.f32.mrb[0].mxu0
      %v6577 = vadd.f32 0.0, %v6576
      %v6578 = vpop.f32.mrb[0].mxu0
      %v6579 = vpop.f32.mrb[0].mxu0
      %v6580 = vadd.f32 0.0, %v6579
      %v6581 = vpop.f32.mrb[0].mxu0
      %6582 = vmatprep.mubr.bf16.mxu0 0
      %6583 = vmatmul.mubr.bf16.gmra.mrb[0].mxu0 %v4222
      %v6584 = vpop.f32.mrb[0].mxu0
      %v6585 = vadd.f32 0.0, %v6584
      %v6586 = vpop.f32.mrb[0].mxu0
      %v6587 = vpop.f32.mrb[0].mxu0
      %v6588 = vadd.f32 0.0, %v6587
      %v6589 = vpop.f32.mrb[0].mxu0
      %6590 = vmatprep.mubr.bf16.mxu0 0
      %6591 = vmatmul.mubr.bf16.gmra.mrb[0].mxu0 %v4225
      %v6592 = vpop.f32.mrb[0].mxu0
      %v6593 = vadd.f32 0.0, %v6592
      %v6594 = vpop.f32.mrb[0].mxu0
      %v6595 = vpop.f32.mrb[0].mxu0
      %v6596 = vadd.f32 0.0, %v6595
      %v6597 = vpop.f32.mrb[0].mxu0
      %6598 = vmatprep.mubr.bf16.mxu0 0
      %6599 = vmatmul.mubr.bf16.gmra.mrb[0].mxu0 %v4228
      %v6600 = vpop.f32.mrb[0].mxu0
      %v6601 = vadd.f32 0.0, %v6600
      %v6602 = vpop.f32.mrb[0].mxu0
      %v6603 = vpop.f32.mrb[0].mxu0
      %v6604 = vadd.f32 0.0, %v6603
      %v6605 = vpop.f32.mrb[0].mxu0
      %6606 = vmatprep.mubr.bf16.mxu0 0
      %6607 = vmatmul.mubr.bf16.gmra.mrb[0].mxu0 %v4231
      %v6608 = vpop.f32.mrb[0].mxu0
      %v6609 = vadd.f32 0.0, %v6608
      %v6610 = vpop.f32.mrb[0].mxu0
      %v6611 = vpop.f32.mrb[0].mxu0
      %v6612 = vadd.f32 0.0, %v6611
      %v6613 = vpop.f32.mrb[0].mxu0
      %6614 = vmatprep.mubr.bf16.mxu0 0
      %6615 = vmatmul.mubr.bf16.gmra.mrb[0].mxu0 %v4234
      %v6616 = vpop.f32.mrb[0].mxu0
      %v6617 = vadd.f32 0.0, %v6616
      %v6618 = vpop.f32.mrb[0].mxu0
      %v6619 = vpop.f32.mrb[0].mxu0
      %v6620 = vadd.f32 0.0, %v6619
      %v6621 = vpop.f32.mrb[0].mxu0
      %6622 = vmatprep.mubr.bf16.mxu0 0
      %6623 = vmatmul.mubr.bf16.gmra.mrb[0].mxu0 %v4237
      %v6624 = vpop.f32.mrb[0].mxu0
      %v6625 = vadd.f32 0.0, %v6624
      %v6626 = vpop.f32.mrb[0].mxu0
      %v6627 = vpop.f32.mrb[0].mxu0
      %v6628 = vadd.f32 0.0, %v6627
      %v6629 = vpop.f32.mrb[0].mxu0
      %6630 = vmatprep.mubr.bf16.mxu0 0
      %6631 = vmatmul.mubr.bf16.gmra.mrb[0].mxu0 %v6097
      %v6632 = vpop.f32.mrb[0].mxu0
      %v6633 = vadd.f32 0.0, %v6632
      %v6634 = vpop.f32.mrb[0].mxu0
      %v6635 = vpop.f32.mrb[0].mxu0
      %v6636 = vadd.f32 0.0, %v6635
      %v6637 = vpop.f32.mrb[0].mxu0
      %6638 = vmatprep.mubr.bf16.mxu0 0
      %6639 = vmatmul.mubr.bf16.gmra.mrb[0].mxu0 %v6100
      %v6640 = vpop.f32.mrb[0].mxu0
      %v6641 = vadd.f32 0.0, %v6640
      %v6642 = vpop.f32.mrb[0].mxu0
      %v6643 = vpop.f32.mrb[0].mxu0
      %v6644 = vadd.f32 0.0, %v6643
      %v6645 = vpop.f32.mrb[0].mxu0
      %6646 = vdwg.mxu0
      %6775 = vrot.lane.b32.xlu0 %v6137, 3
      %v6776 = vpop.permute.xlu0 %6775
      %6777 = vrot.lane.b32.xlu0 %v6140, 3
      %v6778 = vpop.permute.xlu0 %6777
      %6779 = vrot.lane.b32.xlu0 %v6145, 3
      %v6780 = vpop.permute.xlu0 %6779
      %6781 = vrot.lane.b32.xlu0 %v6148, 3
      %v6782 = vpop.permute.xlu0 %6781
      %6783 = vrot.lane.b32.xlu0 %v6153, 3
      %v6784 = vpop.permute.xlu0 %6783
      %6785 = vrot.lane.b32.xlu0 %v6156, 3
      %v6786 = vpop.permute.xlu0 %6785
      %6787 = vrot.lane.b32.xlu0 %v6161, 3
      %v6788 = vpop.permute.xlu0 %6787
      %6789 = vrot.lane.b32.xlu0 %v6164, 3
      %v6790 = vpop.permute.xlu0 %6789
      %6791 = vrot.lane.b32.xlu0 %v6169, 3
      %v6792 = vpop.permute.xlu0 %6791
      %6793 = vrot.lane.b32.xlu0 %v6172, 3
      %v6794 = vpop.permute.xlu0 %6793
      %6795 = vrot.lane.b32.xlu0 %v6177, 3
      %v6796 = vpop.permute.xlu0 %6795
      %6797 = vrot.lane.b32.xlu0 %v6180, 3
      %v6798 = vpop.permute.xlu0 %6797
      %6799 = vrot.lane.b32.xlu0 %v6185, 3
      %v6800 = vpop.permute.xlu0 %6799
      %6801 = vrot.lane.b32.xlu0 %v6188, 3
      %v6802 = vpop.permute.xlu0 %6801
      %6803 = vrot.lane.b32.xlu0 %v6193, 3
      %v6804 = vpop.permute.xlu0 %6803
      %6805 = vrot.lane.b32.xlu0 %v6196, 3
      %v6806 = vpop.permute.xlu0 %6805
      %6807 = vrot.lane.b32.xlu0 %v6201, 3
      %v6808 = vpop.permute.xlu0 %6807
      %6809 = vrot.lane.b32.xlu0 %v6204, 3
      %v6810 = vpop.permute.xlu0 %6809
      %6811 = vrot.lane.b32.xlu0 %v6209, 3
      %v6812 = vpop.permute.xlu0 %6811
      %6813 = vrot.lane.b32.xlu0 %v6212, 3
      %v6814 = vpop.permute.xlu0 %6813
      %6815 = vrot.lane.b32.xlu0 %v6217, 3
      %v6816 = vpop.permute.xlu0 %6815
      %6817 = vrot.lane.b32.xlu0 %v6220, 3
      %v6818 = vpop.permute.xlu0 %6817
      %6819 = vrot.lane.b32.xlu0 %v6225, 3
      %v6820 = vpop.permute.xlu0 %6819
      %6821 = vrot.lane.b32.xlu0 %v6228, 3
      %v6822 = vpop.permute.xlu0 %6821
      %6823 = vrot.lane.b32.xlu0 %v6233, 3
      %v6824 = vpop.permute.xlu0 %6823
      %6825 = vrot.lane.b32.xlu0 %v6236, 3
      %v6826 = vpop.permute.xlu0 %6825
      %6827 = vrot.lane.b32.xlu0 %v6241, 3
      %v6828 = vpop.permute.xlu0 %6827
      %6829 = vrot.lane.b32.xlu0 %v6244, 3
      %v6830 = vpop.permute.xlu0 %6829
      %6831 = vrot.lane.b32.xlu0 %v6249, 3
      %v6832 = vpop.permute.xlu0 %6831
      %6833 = vrot.lane.b32.xlu0 %v6252, 3
      %v6834 = vpop.permute.xlu0 %6833
      %6835 = vrot.lane.b32.xlu0 %v6257, 3
      %v6836 = vpop.permute.xlu0 %6835
      %6837 = vrot.lane.b32.xlu0 %v6260, 3
      %v6838 = vpop.permute.xlu0 %6837
      %6839 = vrot.lane.b32.xlu0 %v6265, 3
      %v6840 = vpop.permute.xlu0 %6839
      %6841 = vrot.lane.b32.xlu0 %v6268, 3
      %v6842 = vpop.permute.xlu0 %6841
      %6843 = vrot.lane.b32.xlu0 %v6273, 3
      %v6844 = vpop.permute.xlu0 %6843
      %6845 = vrot.lane.b32.xlu0 %v6276, 3
      %v6846 = vpop.permute.xlu0 %6845
      %6847 = vrot.lane.b32.xlu0 %v6281, 3
      %v6848 = vpop.permute.xlu0 %6847
      %6849 = vrot.lane.b32.xlu0 %v6284, 3
      %v6850 = vpop.permute.xlu0 %6849
      %6851 = vrot.lane.b32.xlu0 %v6289, 3
      %v6852 = vpop.permute.xlu0 %6851
      %6853 = vrot.lane.b32.xlu0 %v6292, 3
      %v6854 = vpop.permute.xlu0 %6853
      %6855 = vrot.lane.b32.xlu0 %v6297, 3
      %v6856 = vpop.permute.xlu0 %6855
      %6857 = vrot.lane.b32.xlu0 %v6300, 3
      %v6858 = vpop.permute.xlu0 %6857
      %6859 = vrot.lane.b32.xlu0 %v6305, 3
      %v6860 = vpop.permute.xlu0 %6859
      %6861 = vrot.lane.b32.xlu0 %v6308, 3
      %v6862 = vpop.permute.xlu0 %6861
      %6863 = vrot.lane.b32.xlu0 %v6313, 3
      %v6864 = vpop.permute.xlu0 %6863
      %6865 = vrot.lane.b32.xlu0 %v6316, 3
      %v6866 = vpop.permute.xlu0 %6865
      %6867 = vrot.lane.b32.xlu0 %v6321, 3
      %v6868 = vpop.permute.xlu0 %6867
      %6869 = vrot.lane.b32.xlu0 %v6324, 3
      %v6870 = vpop.permute.xlu0 %6869
      %6871 = vrot.lane.b32.xlu0 %v6329, 3
      %v6872 = vpop.permute.xlu0 %6871
      %6873 = vrot.lane.b32.xlu0 %v6332, 3
      %v6874 = vpop.permute.xlu0 %6873
      %6875 = vrot.lane.b32.xlu0 %v6337, 3
      %v6876 = vpop.permute.xlu0 %6875
      %6877 = vrot.lane.b32.xlu0 %v6340, 3
      %v6878 = vpop.permute.xlu0 %6877
      %6879 = vrot.lane.b32.xlu0 %v6345, 3
      %v6880 = vpop.permute.xlu0 %6879
      %6881 = vrot.lane.b32.xlu0 %v6348, 3
      %v6882 = vpop.permute.xlu0 %6881
      %6883 = vrot.lane.b32.xlu0 %v6353, 3
      %v6884 = vpop.permute.xlu0 %6883
      %6885 = vrot.lane.b32.xlu0 %v6356, 3
      %v6886 = vpop.permute.xlu0 %6885
      %6887 = vrot.lane.b32.xlu0 %v6361, 3
      %v6888 = vpop.permute.xlu0 %6887
      %6889 = vrot.lane.b32.xlu0 %v6364, 3
      %v6890 = vpop.permute.xlu0 %6889
      %6891 = vrot.lane.b32.xlu0 %v6369, 3
      %v6892 = vpop.permute.xlu0 %6891
      %6893 = vrot.lane.b32.xlu0 %v6372, 3
      %v6894 = vpop.permute.xlu0 %6893
      %6895 = vrot.lane.b32.xlu0 %v6377, 3
      %v6896 = vpop.permute.xlu0 %6895
      %6897 = vrot.lane.b32.xlu0 %v6380, 3
      %v6898 = vpop.permute.xlu0 %6897
      %6899 = vrot.lane.b32.xlu0 %v6385, 3
      %v6900 = vpop.permute.xlu0 %6899
      %6901 = vrot.lane.b32.xlu0 %v6388, 3
      %v6902 = vpop.permute.xlu0 %6901
      %6903 = vrot.lane.b32.xlu0 %v6393, 3
      %v6904 = vpop.permute.xlu0 %6903
      %6905 = vrot.lane.b32.xlu0 %v6396, 3
      %v6906 = vpop.permute.xlu0 %6905
      %6907 = vrot.lane.b32.xlu0 %v6401, 3
      %v6908 = vpop.permute.xlu0 %6907
      %6909 = vrot.lane.b32.xlu0 %v6404, 3
      %v6910 = vpop.permute.xlu0 %6909
      %6911 = vrot.lane.b32.xlu0 %v6409, 3
      %v6912 = vpop.permute.xlu0 %6911
      %6913 = vrot.lane.b32.xlu0 %v6412, 3
      %v6914 = vpop.permute.xlu0 %6913
      %6915 = vrot.lane.b32.xlu0 %v6417, 3
      %v6916 = vpop.permute.xlu0 %6915
      %6917 = vrot.lane.b32.xlu0 %v6420, 3
      %v6918 = vpop.permute.xlu0 %6917
      %6919 = vrot.lane.b32.xlu0 %v6425, 3
      %v6920 = vpop.permute.xlu0 %6919
      %6921 = vrot.lane.b32.xlu0 %v6428, 3
      %v6922 = vpop.permute.xlu0 %6921
      %6923 = vrot.lane.b32.xlu0 %v6433, 3
      %v6924 = vpop.permute.xlu0 %6923
      %6925 = vrot.lane.b32.xlu0 %v6436, 3
      %v6926 = vpop.permute.xlu0 %6925
      %6927 = vrot.lane.b32.xlu0 %v6441, 3
      %v6928 = vpop.permute.xlu0 %6927
      %6929 = vrot.lane.b32.xlu0 %v6444, 3
      %v6930 = vpop.permute.xlu0 %6929
      %6931 = vrot.lane.b32.xlu0 %v6449, 3
      %v6932 = vpop.permute.xlu0 %6931
      %6933 = vrot.lane.b32.xlu0 %v6452, 3
      %v6934 = vpop.permute.xlu0 %6933
      %6935 = vrot.lane.b32.xlu0 %v6457, 3
      %v6936 = vpop.permute.xlu0 %6935
      %6937 = vrot.lane.b32.xlu0 %v6460, 3
      %v6938 = vpop.permute.xlu0 %6937
      %6939 = vrot.lane.b32.xlu0 %v6465, 3
      %v6940 = vpop.permute.xlu0 %6939
      %6941 = vrot.lane.b32.xlu0 %v6468, 3
      %v6942 = vpop.permute.xlu0 %6941
      %6943 = vrot.lane.b32.xlu0 %v6473, 3
      %v6944 = vpop.permute.xlu0 %6943
      %6945 = vrot.lane.b32.xlu0 %v6476, 3
      %v6946 = vpop.permute.xlu0 %6945
      %6947 = vrot.lane.b32.xlu0 %v6481, 3
      %v6948 = vpop.permute.xlu0 %6947
      %6949 = vrot.lane.b32.xlu0 %v6484, 3
      %v6950 = vpop.permute.xlu0 %6949
      %6951 = vrot.lane.b32.xlu0 %v6489, 3
      %v6952 = vpop.permute.xlu0 %6951
      %6953 = vrot.lane.b32.xlu0 %v6492, 3
      %v6954 = vpop.permute.xlu0 %6953
      %6955 = vrot.lane.b32.xlu0 %v6497, 3
      %v6956 = vpop.permute.xlu0 %6955
      %6957 = vrot.lane.b32.xlu0 %v6500, 3
      %v6958 = vpop.permute.xlu0 %6957
      %6959 = vrot.lane.b32.xlu0 %v6505, 3
      %v6960 = vpop.permute.xlu0 %6959
      %6961 = vrot.lane.b32.xlu0 %v6508, 3
      %v6962 = vpop.permute.xlu0 %6961
      %6963 = vrot.lane.b32.xlu0 %v6513, 3
      %v6964 = vpop.permute.xlu0 %6963
      %6965 = vrot.lane.b32.xlu0 %v6516, 3
      %v6966 = vpop.permute.xlu0 %6965
      %6967 = vrot.lane.b32.xlu0 %v6521, 3
      %v6968 = vpop.permute.xlu0 %6967
      %6969 = vrot.lane.b32.xlu0 %v6524, 3
      %v6970 = vpop.permute.xlu0 %6969
      %6971 = vrot.lane.b32.xlu0 %v6529, 3
      %v6972 = vpop.permute.xlu0 %6971
      %6973 = vrot.lane.b32.xlu0 %v6532, 3
      %v6974 = vpop.permute.xlu0 %6973
      %6975 = vrot.lane.b32.xlu0 %v6537, 3
      %v6976 = vpop.permute.xlu0 %6975
      %6977 = vrot.lane.b32.xlu0 %v6540, 3
      %v6978 = vpop.permute.xlu0 %6977
      %6979 = vrot.lane.b32.xlu0 %v6545, 3
      %v6980 = vpop.permute.xlu0 %6979
      %6981 = vrot.lane.b32.xlu0 %v6548, 3
      %v6982 = vpop.permute.xlu0 %6981
      %6983 = vrot.lane.b32.xlu0 %v6553, 3
      %v6984 = vpop.permute.xlu0 %6983
      %6985 = vrot.lane.b32.xlu0 %v6556, 3
      %v6986 = vpop.permute.xlu0 %6985
      %6987 = vrot.lane.b32.xlu0 %v6561, 3
      %v6988 = vpop.permute.xlu0 %6987
      %6989 = vrot.lane.b32.xlu0 %v6564, 3
      %v6990 = vpop.permute.xlu0 %6989
      %6991 = vrot.lane.b32.xlu0 %v6569, 3
      %v6992 = vpop.permute.xlu0 %6991
      %6993 = vrot.lane.b32.xlu0 %v6572, 3
      %v6994 = vpop.permute.xlu0 %6993
      %6995 = vrot.lane.b32.xlu0 %v6577, 3
      %v6996 = vpop.permute.xlu0 %6995
      %6997 = vrot.lane.b32.xlu0 %v6580, 3
      %v6998 = vpop.permute.xlu0 %6997
      %6999 = vrot.lane.b32.xlu0 %v6585, 3
      %v7000 = vpop.permute.xlu0 %6999
      %7001 = vrot.lane.b32.xlu0 %v6588, 3
      %v7002 = vpop.permute.xlu0 %7001
      %7003 = vrot.lane.b32.xlu0 %v6593, 3
      %v7004 = vpop.permute.xlu0 %7003
      %7005 = vrot.lane.b32.xlu0 %v6596, 3
      %v7006 = vpop.permute.xlu0 %7005
      %7007 = vrot.lane.b32.xlu0 %v6601, 3
      %v7008 = vpop.permute.xlu0 %7007
      %7009 = vrot.lane.b32.xlu0 %v6604, 3
      %v7010 = vpop.permute.xlu0 %7009
      %7011 = vrot.lane.b32.xlu0 %v6609, 3
      %v7012 = vpop.permute.xlu0 %7011
      %7013 = vrot.lane.b32.xlu0 %v6612, 3
      %v7014 = vpop.permute.xlu0 %7013
      %7015 = vrot.lane.b32.xlu0 %v6617, 3
      %v7016 = vpop.permute.xlu0 %7015
      %7017 = vrot.lane.b32.xlu0 %v6620, 3
      %v7018 = vpop.permute.xlu0 %7017
      %7019 = vrot.lane.b32.xlu0 %v6625, 3
      %v7020 = vpop.permute.xlu0 %7019
      %7021 = vrot.lane.b32.xlu0 %v6628, 3
      %v7022 = vpop.permute.xlu0 %7021
      %7023 = vrot.lane.b32.xlu0 %v6633, 3
      %v7024 = vpop.permute.xlu0 %7023
      %7025 = vrot.lane.b32.xlu0 %v6636, 3
      %v7026 = vpop.permute.xlu0 %7025
      %7027 = vrot.lane.b32.xlu0 %v6641, 3
      %v7028 = vpop.permute.xlu0 %7027
      %7029 = vrot.lane.b32.xlu0 %v6644, 3
      %v7030 = vpop.permute.xlu0 %7029
      %v7159 = vsel %vm5296, %v5538, %v6776
      %v7160 = vsel %vm5296, %v5541, %v6778
      %v7161 = vsel %vm5296, %v5546, %v6780
      %v7162 = vsel %vm5296, %v5549, %v6782
      %v7163 = vsel %vm5296, %v5554, %v6784
      %v7164 = vsel %vm5296, %v5557, %v6786
      %v7165 = vsel %vm5296, %v5562, %v6788
      %v7166 = vsel %vm5296, %v5565, %v6790
      %v7167 = vsel %vm5296, %v5570, %v6792
      %v7168 = vsel %vm5296, %v5573, %v6794
      %v7169 = vsel %vm5296, %v5578, %v6796
      %v7170 = vsel %vm5296, %v5581, %v6798
      %v7171 = vsel %vm5296, %v5586, %v6800
      %v7172 = vsel %vm5296, %v5589, %v6802
      %v7173 = vsel %vm5296, %v5594, %v6804
      %v7174 = vsel %vm5296, %v5597, %v6806
      %v7175 = vsel %vm5296, %v5602, %v6808
      %v7176 = vsel %vm5296, %v5605, %v6810
      %v7177 = vsel %vm5296, %v5610, %v6812
      %v7178 = vsel %vm5296, %v5613, %v6814
      %v7179 = vsel %vm5296, %v5618, %v6816
      %v7180 = vsel %vm5296, %v5621, %v6818
      %v7181 = vsel %vm5296, %v5626, %v6820
      %v7182 = vsel %vm5296, %v5629, %v6822
      %v7183 = vsel %vm5296, %v5634, %v6824
      %v7184 = vsel %vm5296, %v5637, %v6826
      %v7185 = vsel %vm5296, %v5642, %v6828
      %v7186 = vsel %vm5296, %v5645, %v6830
      %v7187 = vsel %vm5296, %v5650, %v6832
      %v7188 = vsel %vm5296, %v5653, %v6834
      %v7189 = vsel %vm5296, %v5658, %v6836
      %v7190 = vsel %vm5296, %v5661, %v6838
      %v7191 = vsel %vm5296, %v5666, %v6840
      %v7192 = vsel %vm5296, %v5669, %v6842
      %v7193 = vsel %vm5296, %v5674, %v6844
      %v7194 = vsel %vm5296, %v5677, %v6846
      %v7195 = vsel %vm5296, %v5682, %v6848
      %v7196 = vsel %vm5296, %v5685, %v6850
      %v7197 = vsel %vm5296, %v5690, %v6852
      %v7198 = vsel %vm5296, %v5693, %v6854
      %v7199 = vsel %vm5296, %v5698, %v6856
      %v7200 = vsel %vm5296, %v5701, %v6858
      %v7201 = vsel %vm5296, %v5706, %v6860
      %v7202 = vsel %vm5296, %v5709, %v6862
      %v7203 = vsel %vm5296, %v5714, %v6864
      %v7204 = vsel %vm5296, %v5717, %v6866
      %v7205 = vsel %vm5296, %v5722, %v6868
      %v7206 = vsel %vm5296, %v5725, %v6870
      %v7207 = vsel %vm5296, %v5730, %v6872
      %v7208 = vsel %vm5296, %v5733, %v6874
      %v7209 = vsel %vm5296, %v5738, %v6876
      %v7210 = vsel %vm5296, %v5741, %v6878
      %v7211 = vsel %vm5296, %v5746, %v6880
      %v7212 = vsel %vm5296, %v5749, %v6882
      %v7213 = vsel %vm5296, %v5754, %v6884
      %v7214 = vsel %vm5296, %v5757, %v6886
      %v7215 = vsel %vm5296, %v5762, %v6888
      %v7216 = vsel %vm5296, %v5765, %v6890
      %v7217 = vsel %vm5296, %v5770, %v6892
      %v7218 = vsel %vm5296, %v5773, %v6894
      %v7219 = vsel %vm5296, %v5778, %v6896
      %v7220 = vsel %vm5296, %v5781, %v6898
      %v7221 = vsel %vm5296, %v5786, %v6900
      %v7222 = vsel %vm5296, %v5789, %v6902
      %v7223 = vsel %vm5296, %v5794, %v6904
      %v7224 = vsel %vm5296, %v5797, %v6906
      %v7225 = vsel %vm5296, %v5802, %v6908
      %v7226 = vsel %vm5296, %v5805, %v6910
      %v7227 = vsel %vm5296, %v5810, %v6912
      %v7228 = vsel %vm5296, %v5813, %v6914
      %v7229 = vsel %vm5296, %v5818, %v6916
      %v7230 = vsel %vm5296, %v5821, %v6918
      %v7231 = vsel %vm5296, %v5826, %v6920
      %v7232 = vsel %vm5296, %v5829, %v6922
      %v7233 = vsel %vm5296, %v5834, %v6924
      %v7234 = vsel %vm5296, %v5837, %v6926
      %v7235 = vsel %vm5296, %v5842, %v6928
      %v7236 = vsel %vm5296, %v5845, %v6930
      %v7237 = vsel %vm5296, %v5850, %v6932
      %v7238 = vsel %vm5296, %v5853, %v6934
      %v7239 = vsel %vm5296, %v5858, %v6936
      %v7240 = vsel %vm5296, %v5861, %v6938
      %v7241 = vsel %vm5296, %v5866, %v6940
      %v7242 = vsel %vm5296, %v5869, %v6942
      %v7243 = vsel %vm5296, %v5874, %v6944
      %v7244 = vsel %vm5296, %v5877, %v6946
      %v7245 = vsel %vm5296, %v5882, %v6948
      %v7246 = vsel %vm5296, %v5885, %v6950
      %v7247 = vsel %vm5296, %v5890, %v6952
      %v7248 = vsel %vm5296, %v5893, %v6954
      %v7249 = vsel %vm5296, %v5898, %v6956
      %v7250 = vsel %vm5296, %v5901, %v6958
      %v7251 = vsel %vm5296, %v5906, %v6960
      %v7252 = vsel %vm5296, %v5909, %v6962
      %v7253 = vsel %vm5296, %v5914, %v6964
      %v7254 = vsel %vm5296, %v5917, %v6966
      %v7255 = vsel %vm5296, %v5922, %v6968
      %v7256 = vsel %vm5296, %v5925, %v6970
      %v7257 = vsel %vm5296, %v5930, %v6972
      %v7258 = vsel %vm5296, %v5933, %v6974
      %v7259 = vsel %vm5296, %v5938, %v6976
      %v7260 = vsel %vm5296, %v5941, %v6978
      %v7261 = vsel %vm5296, %v5946, %v6980
      %v7262 = vsel %vm5296, %v5949, %v6982
      %v7263 = vsel %vm5296, %v5954, %v6984
      %v7264 = vsel %vm5296, %v5957, %v6986
      %v7265 = vsel %vm5296, %v5962, %v6988
      %v7266 = vsel %vm5296, %v5965, %v6990
      %v7267 = vsel %vm5296, %v5970, %v6992
      %v7268 = vsel %vm5296, %v5973, %v6994
      %v7269 = vsel %vm5296, %v5978, %v6996
      %v7270 = vsel %vm5296, %v5981, %v6998
      %v7271 = vsel %vm5296, %v5986, %v7000
      %v7272 = vsel %vm5296, %v5989, %v7002
      %v7273 = vsel %vm5296, %v5994, %v7004
      %v7274 = vsel %vm5296, %v5997, %v7006
      %v7275 = vsel %vm5296, %v6002, %v7008
      %v7276 = vsel %vm5296, %v6005, %v7010
      %v7277 = vsel %vm5296, %v6010, %v7012
      %v7278 = vsel %vm5296, %v6013, %v7014
      %v7279 = vsel %vm5296, %v6018, %v7016
      %v7280 = vsel %vm5296, %v6021, %v7018
      %v7281 = vsel %vm5296, %v6026, %v7020
      %v7282 = vsel %vm5296, %v6029, %v7022
      %v7283 = vsel %vm5296, %v6034, %v7024
      %v7284 = vsel %vm5296, %v6037, %v7026
      %v7285 = vsel %vm5296, %v6042, %v7028
      %v7286 = vsel %vm5296, %v6045, %v7030
      %v7287 = vtanh.pop %v5297
      %v7288 = vtanh.pop %v5298
      %v7289 = vtanh.pop %v5299
      %v7290 = vtanh.pop %v5300
      %v7291 = vtanh.pop %v7159
      %v7292 = vtanh.pop %v7160
      %v7293 = vtanh.pop %v7161
      %v7294 = vtanh.pop %v7162
      %v7295 = vtanh.pop %v5301
      %v7296 = vtanh.pop %v5302
      %v7297 = vtanh.pop %v5303
      %v7298 = vtanh.pop %v5304
      %v7299 = vtanh.pop %v7163
      %v7300 = vtanh.pop %v7164
      %v7301 = vtanh.pop %v7165
      %v7302 = vtanh.pop %v7166
      %v7303 = vtanh.pop %v5305
      %v7304 = vtanh.pop %v5306
      %v7305 = vtanh.pop %v5307
      %v7306 = vtanh.pop %v5308
      %v7307 = vtanh.pop %v7167
      %v7308 = vtanh.pop %v7168
      %v7309 = vtanh.pop %v7169
      %v7310 = vtanh.pop %v7170
      %v7311 = vtanh.pop %v5309
      %v7312 = vtanh.pop %v5310
      %v7313 = vtanh.pop %v5311
      %v7314 = vtanh.pop %v5312
      %v7315 = vtanh.pop %v7171
      %v7316 = vtanh.pop %v7172
      %v7317 = vtanh.pop %v7173
      %v7318 = vtanh.pop %v7174
      %v7319 = vtanh.pop %v5313
      %v7320 = vtanh.pop %v5314
      %v7321 = vtanh.pop %v5315
      %v7322 = vtanh.pop %v5316
      %v7323 = vtanh.pop %v7175
      %v7324 = vtanh.pop %v7176
      %v7325 = vtanh.pop %v7177
      %v7326 = vtanh.pop %v7178
      %v7327 = vtanh.pop %v5317
      %v7328 = vtanh.pop %v5318
      %v7329 = vtanh.pop %v5319
      %v7330 = vtanh.pop %v5320
      %v7331 = vtanh.pop %v7179
      %v7332 = vtanh.pop %v7180
      %v7333 = vtanh.pop %v7181
      %v7334 = vtanh.pop %v7182
      %v7335 = vtanh.pop %v5321
      %v7336 = vtanh.pop %v5322
      %v7337 = vtanh.pop %v5323
      %v7338 = vtanh.pop %v5324
      %v7339 = vtanh.pop %v7183
      %v7340 = vtanh.pop %v7184
      %v7341 = vtanh.pop %v7185
      %v7342 = vtanh.pop %v7186
      %v7343 = vtanh.pop %v5325
      %v7344 = vtanh.pop %v5326
      %v7345 = vtanh.pop %v5327
      %v7346 = vtanh.pop %v5328
      %v7347 = vtanh.pop %v7187
      %v7348 = vtanh.pop %v7188
      %v7349 = vtanh.pop %v7189
      %v7350 = vtanh.pop %v7190
      %v7351 = vtanh.pop %v5329
      %v7352 = vtanh.pop %v5330
      %v7353 = vtanh.pop %v5331
      %v7354 = vtanh.pop %v5332
      %v7355 = vtanh.pop %v7191
      %v7356 = vtanh.pop %v7192
      %v7357 = vtanh.pop %v7193
      %v7358 = vtanh.pop %v7194
      %v7359 = vtanh.pop %v5333
      %v7360 = vtanh.pop %v5334
      %v7361 = vtanh.pop %v5335
      %v7362 = vtanh.pop %v5336
      %v7363 = vtanh.pop %v7195
      %v7364 = vtanh.pop %v7196
      %v7365 = vtanh.pop %v7197
      %v7366 = vtanh.pop %v7198
      %v7367 = vtanh.pop %v5337
      %v7368 = vtanh.pop %v5338
      %v7369 = vtanh.pop %v5339
      %v7370 = vtanh.pop %v5340
      %v7371 = vtanh.pop %v7199
      %v7372 = vtanh.pop %v7200
      %v7373 = vtanh.pop %v7201
      %v7374 = vtanh.pop %v7202
      %v7375 = vtanh.pop %v5341
      %v7376 = vtanh.pop %v5342
      %v7377 = vtanh.pop %v5343
      %v7378 = vtanh.pop %v5344
      %v7379 = vtanh.pop %v7203
      %v7380 = vtanh.pop %v7204
      %v7381 = vtanh.pop %v7205
      %v7382 = vtanh.pop %v7206
      %v7383 = vtanh.pop %v5345
      %v7384 = vtanh.pop %v5346
      %v7385 = vtanh.pop %v5347
      %v7386 = vtanh.pop %v5348
      %v7387 = vtanh.pop %v7207
      %v7388 = vtanh.pop %v7208
      %v7389 = vtanh.pop %v7209
      %v7390 = vtanh.pop %v7210
      %v7391 = vtanh.pop %v5349
      %v7392 = vtanh.pop %v5350
      %v7393 = vtanh.pop %v5351
      %v7394 = vtanh.pop %v5352
      %v7395 = vtanh.pop %v7211
      %v7396 = vtanh.pop %v7212
      %v7397 = vtanh.pop %v7213
      %v7398 = vtanh.pop %v7214
      %v7399 = vtanh.pop %v5353
      %v7400 = vtanh.pop %v5354
      %v7401 = vtanh.pop %v5355
      %v7402 = vtanh.pop %v5356
      %v7403 = vtanh.pop %v7215
      %v7404 = vtanh.pop %v7216
      %v7405 = vtanh.pop %v7217
      %v7406 = vtanh.pop %v7218
      %v7407 = vtanh.pop %v5357
      %v7408 = vtanh.pop %v5358
      %v7409 = vtanh.pop %v5359
      %v7410 = vtanh.pop %v5360
      %v7411 = vtanh.pop %v7219
      %v7412 = vtanh.pop %v7220
      %v7413 = vtanh.pop %v7221
      %v7414 = vtanh.pop %v7222
      %v7415 = vtanh.pop %v5361
      %v7416 = vtanh.pop %v5362
      %v7417 = vtanh.pop %v5363
      %v7418 = vtanh.pop %v5364
      %v7419 = vtanh.pop %v7223
      %v7420 = vtanh.pop %v7224
      %v7421 = vtanh.pop %v7225
      %v7422 = vtanh.pop %v7226
      %v7423 = vtanh.pop %v5365
      %v7424 = vtanh.pop %v5366
      %v7425 = vtanh.pop %v5367
      %v7426 = vtanh.pop %v5368
      %v7427 = vtanh.pop %v7227
      %v7428 = vtanh.pop %v7228
      %v7429 = vtanh.pop %v7229
      %v7430 = vtanh.pop %v7230
      %v7431 = vtanh.pop %v5369
      %v7432 = vtanh.pop %v5370
      %v7433 = vtanh.pop %v5371
      %v7434 = vtanh.pop %v5372
      %v7435 = vtanh.pop %v7231
      %v7436 = vtanh.pop %v7232
      %v7437 = vtanh.pop %v7233
      %v7438 = vtanh.pop %v7234
      %v7439 = vtanh.pop %v5373
      %v7440 = vtanh.pop %v5374
      %v7441 = vtanh.pop %v5375
      %v7442 = vtanh.pop %v5376
      %v7443 = vtanh.pop %v7235
      %v7444 = vtanh.pop %v7236
      %v7445 = vtanh.pop %v7237
      %v7446 = vtanh.pop %v7238
      %v7447 = vtanh.pop %v5377
      %v7448 = vtanh.pop %v5378
      %v7449 = vtanh.pop %v5379
      %v7450 = vtanh.pop %v5380
      %v7451 = vtanh.pop %v7239
      %v7452 = vtanh.pop %v7240
      %v7453 = vtanh.pop %v7241
      %v7454 = vtanh.pop %v7242
      %v7455 = vtanh.pop %v5381
      %v7456 = vtanh.pop %v5382
      %v7457 = vtanh.pop %v5383
      %v7458 = vtanh.pop %v5384
      %v7459 = vtanh.pop %v7243
      %v7460 = vtanh.pop %v7244
      %v7461 = vtanh.pop %v7245
      %v7462 = vtanh.pop %v7246
      %v7463 = vtanh.pop %v5385
      %v7464 = vtanh.pop %v5386
      %v7465 = vtanh.pop %v5387
      %v7466 = vtanh.pop %v5388
      %v7467 = vtanh.pop %v7247
      %v7468 = vtanh.pop %v7248
      %v7469 = vtanh.pop %v7249
      %v7470 = vtanh.pop %v7250
      %v7471 = vtanh.pop %v5389
      %v7472 = vtanh.pop %v5390
      %v7473 = vtanh.pop %v5391
      %v7474 = vtanh.pop %v5392
      %v7475 = vtanh.pop %v7251
      %v7476 = vtanh.pop %v7252
      %v7477 = vtanh.pop %v7253
      %v7478 = vtanh.pop %v7254
      %v7479 = vtanh.pop %v5393
      %v7480 = vtanh.pop %v5394
      %v7481 = vtanh.pop %v5395
      %v7482 = vtanh.pop %v5396
      %v7483 = vtanh.pop %v7255
      %v7484 = vtanh.pop %v7256
      %v7485 = vtanh.pop %v7257
      %v7486 = vtanh.pop %v7258
      %v7487 = vtanh.pop %v5397
      %v7488 = vtanh.pop %v5398
      %v7489 = vtanh.pop %v5399
      %v7490 = vtanh.pop %v5400
      %v7491 = vtanh.pop %v7259
      %v7492 = vtanh.pop %v7260
      %v7493 = vtanh.pop %v7261
      %v7494 = vtanh.pop %v7262
      %v7495 = vtanh.pop %v5401
      %v7496 = vtanh.pop %v5402
      %v7497 = vtanh.pop %v5403
      %v7498 = vtanh.pop %v5404
      %v7499 = vtanh.pop %v7263
      %v7500 = vtanh.pop %v7264
      %v7501 = vtanh.pop %v7265
      %v7502 = vtanh.pop %v7266
      %v7503 = vtanh.pop %v5405
      %v7504 = vtanh.pop %v5406
      %v7505 = vtanh.pop %v5407
      %v7506 = vtanh.pop %v5408
      %v7507 = vtanh.pop %v7267
      %v7508 = vtanh.pop %v7268
      %v7509 = vtanh.pop %v7269
      %v7510 = vtanh.pop %v7270
      %v7511 = vtanh.pop %v5409
      %v7512 = vtanh.pop %v5410
      %v7513 = vtanh.pop %v5411
      %v7514 = vtanh.pop %v5412
      %v7515 = vtanh.pop %v7271
      %v7516 = vtanh.pop %v7272
      %v7517 = vtanh.pop %v7273
      %v7518 = vtanh.pop %v7274
      %v7519 = vtanh.pop %v5413
      %v7520 = vtanh.pop %v5414
      %v7521 = vtanh.pop %v5415
      %v7522 = vtanh.pop %v5416
      %v7523 = vtanh.pop %v7275
      %v7524 = vtanh.pop %v7276
      %v7525 = vtanh.pop %v7277
      %v7526 = vtanh.pop %v7278
      %v7527 = vtanh.pop %v5417
      %v7528 = vtanh.pop %v5418
      %v7529 = vtanh.pop %v5419
      %v7530 = vtanh.pop %v5420
      %v7531 = vtanh.pop %v7279
      %v7532 = vtanh.pop %v7280
      %v7533 = vtanh.pop %v7281
      %v7534 = vtanh.pop %v7282
      %v7535 = vtanh.pop %v5421
      %v7536 = vtanh.pop %v5422
      %v7537 = vtanh.pop %v5423
      %v7538 = vtanh.pop %v5424
      %v7539 = vtanh.pop %v7283
      %v7540 = vtanh.pop %v7284
      %v7541 = vtanh.pop %v7285
      %v7542 = vtanh.pop %v7286
      %vm7543 = vcmask 48128
      %7544 = vst.msk [vmem:[%s143] sm:$0xff] %vm7543, %v7287
      %7545 = vst.msk [vmem:[%s143 + $0x8] sm:$0xff] %vm7543, %v7288
      %7546 = vst.msk [vmem:[%s143 + $0x10] sm:$0xff] %vm7543, %v7289
      %7547 = vst.msk [vmem:[%s143 + $0x18] sm:$0xff] %vm7543, %v7290
      %7548 = vst.msk [vmem:[%s143 + $0x20] sm:$0xff] %vm7543, %v7291
      %7549 = vst.msk [vmem:[%s143 + $0x28] sm:$0xff] %vm7543, %v7292
      %7550 = vst.msk [vmem:[%s143 + $0x30] sm:$0xff] %vm7543, %v7293
      %7551 = vst.msk [vmem:[%s143 + $0x38] sm:$0xff] %vm7543, %v7294
      %7552 = vst.msk [vmem:[%s143 + $0x40] sm:$0xff] %vm7543, %v7295
      %7553 = vst.msk [vmem:[%s143 + $0x48] sm:$0xff] %vm7543, %v7296
      %7554 = vst.msk [vmem:[%s143 + $0x50] sm:$0xff] %vm7543, %v7297
      %7555 = vst.msk [vmem:[%s143 + $0x58] sm:$0xff] %vm7543, %v7298
      %7556 = vst.msk [vmem:[%s143 + $0x60] sm:$0xff] %vm7543, %v7299
      %7557 = vst.msk [vmem:[%s143 + $0x68] sm:$0xff] %vm7543, %v7300
      %7558 = vst.msk [vmem:[%s143 + $0x70] sm:$0xff] %vm7543, %v7301
      %7559 = vst.msk [vmem:[%s143 + $0x78] sm:$0xff] %vm7543, %v7302
      %7560 = vst.msk [vmem:[%s143 + $0x80] sm:$0xff] %vm7543, %v7303
      %7561 = vst.msk [vmem:[%s143 + $0x88] sm:$0xff] %vm7543, %v7304
      %7562 = vst.msk [vmem:[%s143 + $0x90] sm:$0xff] %vm7543, %v7305
      %7563 = vst.msk [vmem:[%s143 + $0x98] sm:$0xff] %vm7543, %v7306
      %7564 = vst.msk [vmem:[%s143 + $0xa0] sm:$0xff] %vm7543, %v7307
      %7565 = vst.msk [vmem:[%s143 + $0xa8] sm:$0xff] %vm7543, %v7308
      %7566 = vst.msk [vmem:[%s143 + $0xb0] sm:$0xff] %vm7543, %v7309
      %7567 = vst.msk [vmem:[%s143 + $0xb8] sm:$0xff] %vm7543, %v7310
      %7568 = vst.msk [vmem:[%s143 + $0xc0] sm:$0xff] %vm7543, %v7311
      %7569 = vst.msk [vmem:[%s143 + $0xc8] sm:$0xff] %vm7543, %v7312
      %7570 = vst.msk [vmem:[%s143 + $0xd0] sm:$0xff] %vm7543, %v7313
      %7571 = vst.msk [vmem:[%s143 + $0xd8] sm:$0xff] %vm7543, %v7314
      %7572 = vst.msk [vmem:[%s143 + $0xe0] sm:$0xff] %vm7543, %v7315
      %7573 = vst.msk [vmem:[%s143 + $0xe8] sm:$0xff] %vm7543, %v7316
      %7574 = vst.msk [vmem:[%s143 + $0xf0] sm:$0xff] %vm7543, %v7317
      %7575 = vst.msk [vmem:[%s143 + $0xf8] sm:$0xff] %vm7543, %v7318
      %7576 = vst.msk [vmem:[%s143 + $0x100] sm:$0xff] %vm7543, %v7319
      %7577 = vst.msk [vmem:[%s143 + $0x108] sm:$0xff] %vm7543, %v7320
      %7578 = vst.msk [vmem:[%s143 + $0x110] sm:$0xff] %vm7543, %v7321
      %7579 = vst.msk [vmem:[%s143 + $0x118] sm:$0xff] %vm7543, %v7322
      %7580 = vst.msk [vmem:[%s143 + $0x120] sm:$0xff] %vm7543, %v7323
      %7581 = vst.msk [vmem:[%s143 + $0x128] sm:$0xff] %vm7543, %v7324
      %7582 = vst.msk [vmem:[%s143 + $0x130] sm:$0xff] %vm7543, %v7325
      %7583 = vst.msk [vmem:[%s143 + $0x138] sm:$0xff] %vm7543, %v7326
      %7584 = vst.msk [vmem:[%s143 + $0x140] sm:$0xff] %vm7543, %v7327
      %7585 = vst.msk [vmem:[%s143 + $0x148] sm:$0xff] %vm7543, %v7328
      %7586 = vst.msk [vmem:[%s143 + $0x150] sm:$0xff] %vm7543, %v7329
      %7587 = vst.msk [vmem:[%s143 + $0x158] sm:$0xff] %vm7543, %v7330
      %7588 = vst.msk [vmem:[%s143 + $0x160] sm:$0xff] %vm7543, %v7331
      %7589 = vst.msk [vmem:[%s143 + $0x168] sm:$0xff] %vm7543, %v7332
      %7590 = vst.msk [vmem:[%s143 + $0x170] sm:$0xff] %vm7543, %v7333
      %7591 = vst.msk [vmem:[%s143 + $0x178] sm:$0xff] %vm7543, %v7334
      %7592 = vst.msk [vmem:[%s143 + $0x180] sm:$0xff] %vm7543, %v7335
      %7593 = vst.msk [vmem:[%s143 + $0x188] sm:$0xff] %vm7543, %v7336
      %7594 = vst.msk [vmem:[%s143 + $0x190] sm:$0xff] %vm7543, %v7337
      %7595 = vst.msk [vmem:[%s143 + $0x198] sm:$0xff] %vm7543, %v7338
      %7596 = vst.msk [vmem:[%s143 + $0x1a0] sm:$0xff] %vm7543, %v7339
      %7597 = vst.msk [vmem:[%s143 + $0x1a8] sm:$0xff] %vm7543, %v7340
      %7598 = vst.msk [vmem:[%s143 + $0x1b0] sm:$0xff] %vm7543, %v7341
      %7599 = vst.msk [vmem:[%s143 + $0x1b8] sm:$0xff] %vm7543, %v7342
      %7600 = vst.msk [vmem:[%s143 + $0x1c0] sm:$0xff] %vm7543, %v7343
      %7601 = vst.msk [vmem:[%s143 + $0x1c8] sm:$0xff] %vm7543, %v7344
      %7602 = vst.msk [vmem:[%s143 + $0x1d0] sm:$0xff] %vm7543, %v7345
      %7603 = vst.msk [vmem:[%s143 + $0x1d8] sm:$0xff] %vm7543, %v7346
      %7604 = vst.msk [vmem:[%s143 + $0x1e0] sm:$0xff] %vm7543, %v7347
      %7605 = vst.msk [vmem:[%s143 + $0x1e8] sm:$0xff] %vm7543, %v7348
      %7606 = vst.msk [vmem:[%s143 + $0x1f0] sm:$0xff] %vm7543, %v7349
      %7607 = vst.msk [vmem:[%s143 + $0x1f8] sm:$0xff] %vm7543, %v7350
      %7608 = vst.msk [vmem:[%s143 + $0x200] sm:$0xff] %vm7543, %v7351
      %7609 = vst.msk [vmem:[%s143 + $0x208] sm:$0xff] %vm7543, %v7352
      %7610 = vst.msk [vmem:[%s143 + $0x210] sm:$0xff] %vm7543, %v7353
      %7611 = vst.msk [vmem:[%s143 + $0x218] sm:$0xff] %vm7543, %v7354
      %7612 = vst.msk [vmem:[%s143 + $0x220] sm:$0xff] %vm7543, %v7355
      %7613 = vst.msk [vmem:[%s143 + $0x228] sm:$0xff] %vm7543, %v7356
      %7614 = vst.msk [vmem:[%s143 + $0x230] sm:$0xff] %vm7543, %v7357
      %7615 = vst.msk [vmem:[%s143 + $0x238] sm:$0xff] %vm7543, %v7358
      %7616 = vst.msk [vmem:[%s143 + $0x240] sm:$0xff] %vm7543, %v7359
      %7617 = vst.msk [vmem:[%s143 + $0x248] sm:$0xff] %vm7543, %v7360
      %7618 = vst.msk [vmem:[%s143 + $0x250] sm:$0xff] %vm7543, %v7361
      %7619 = vst.msk [vmem:[%s143 + $0x258] sm:$0xff] %vm7543, %v7362
      %7620 = vst.msk [vmem:[%s143 + $0x260] sm:$0xff] %vm7543, %v7363
      %7621 = vst.msk [vmem:[%s143 + $0x268] sm:$0xff] %vm7543, %v7364
      %7622 = vst.msk [vmem:[%s143 + $0x270] sm:$0xff] %vm7543, %v7365
      %7623 = vst.msk [vmem:[%s143 + $0x278] sm:$0xff] %vm7543, %v7366
      %7624 = vst.msk [vmem:[%s143 + $0x280] sm:$0xff] %vm7543, %v7367
      %7625 = vst.msk [vmem:[%s143 + $0x288] sm:$0xff] %vm7543, %v7368
      %7626 = vst.msk [vmem:[%s143 + $0x290] sm:$0xff] %vm7543, %v7369
      %7627 = vst.msk [vmem:[%s143 + $0x298] sm:$0xff] %vm7543, %v7370
      %7628 = vst.msk [vmem:[%s143 + $0x2a0] sm:$0xff] %vm7543, %v7371
      %7629 = vst.msk [vmem:[%s143 + $0x2a8] sm:$0xff] %vm7543, %v7372
      %7630 = vst.msk [vmem:[%s143 + $0x2b0] sm:$0xff] %vm7543, %v7373
      %7631 = vst.msk [vmem:[%s143 + $0x2b8] sm:$0xff] %vm7543, %v7374
      %7632 = vst.msk [vmem:[%s143 + $0x2c0] sm:$0xff] %vm7543, %v7375
      %7633 = vst.msk [vmem:[%s143 + $0x2c8] sm:$0xff] %vm7543, %v7376
      %7634 = vst.msk [vmem:[%s143 + $0x2d0] sm:$0xff] %vm7543, %v7377
      %7635 = vst.msk [vmem:[%s143 + $0x2d8] sm:$0xff] %vm7543, %v7378
      %7636 = vst.msk [vmem:[%s143 + $0x2e0] sm:$0xff] %vm7543, %v7379
      %7637 = vst.msk [vmem:[%s143 + $0x2e8] sm:$0xff] %vm7543, %v7380
      %7638 = vst.msk [vmem:[%s143 + $0x2f0] sm:$0xff] %vm7543, %v7381
      %7639 = vst.msk [vmem:[%s143 + $0x2f8] sm:$0xff] %vm7543, %v7382
      %7640 = vst.msk [vmem:[%s143 + $0x300] sm:$0xff] %vm7543, %v7383
      %7641 = vst.msk [vmem:[%s143 + $0x308] sm:$0xff] %vm7543, %v7384
      %7642 = vst.msk [vmem:[%s143 + $0x310] sm:$0xff] %vm7543, %v7385
      %7643 = vst.msk [vmem:[%s143 + $0x318] sm:$0xff] %vm7543, %v7386
      %7644 = vst.msk [vmem:[%s143 + $0x320] sm:$0xff] %vm7543, %v7387
      %7645 = vst.msk [vmem:[%s143 + $0x328] sm:$0xff] %vm7543, %v7388
      %7646 = vst.msk [vmem:[%s143 + $0x330] sm:$0xff] %vm7543, %v7389
      %7647 = vst.msk [vmem:[%s143 + $0x338] sm:$0xff] %vm7543, %v7390
      %7648 = vst.msk [vmem:[%s143 + $0x340] sm:$0xff] %vm7543, %v7391
      %7649 = vst.msk [vmem:[%s143 + $0x348] sm:$0xff] %vm7543, %v7392
      %7650 = vst.msk [vmem:[%s143 + $0x350] sm:$0xff] %vm7543, %v7393
      %7651 = vst.msk [vmem:[%s143 + $0x358] sm:$0xff] %vm7543, %v7394
      %7652 = vst.msk [vmem:[%s143 + $0x360] sm:$0xff] %vm7543, %v7395
      %7653 = vst.msk [vmem:[%s143 + $0x368] sm:$0xff] %vm7543, %v7396
      %7654 = vst.msk [vmem:[%s143 + $0x370] sm:$0xff] %vm7543, %v7397
      %7655 = vst.msk [vmem:[%s143 + $0x378] sm:$0xff] %vm7543, %v7398
      %7656 = vst.msk [vmem:[%s143 + $0x380] sm:$0xff] %vm7543, %v7399
      %7657 = vst.msk [vmem:[%s143 + $0x388] sm:$0xff] %vm7543, %v7400
      %7658 = vst.msk [vmem:[%s143 + $0x390] sm:$0xff] %vm7543, %v7401
      %7659 = vst.msk [vmem:[%s143 + $0x398] sm:$0xff] %vm7543, %v7402
      %7660 = vst.msk [vmem:[%s143 + $0x3a0] sm:$0xff] %vm7543, %v7403
      %7661 = vst.msk [vmem:[%s143 + $0x3a8] sm:$0xff] %vm7543, %v7404
      %7662 = vst.msk [vmem:[%s143 + $0x3b0] sm:$0xff] %vm7543, %v7405
      %7663 = vst.msk [vmem:[%s143 + $0x3b8] sm:$0xff] %vm7543, %v7406
      %7664 = vst.msk [vmem:[%s143 + $0x3c0] sm:$0xff] %vm7543, %v7407
      %7665 = vst.msk [vmem:[%s143 + $0x3c8] sm:$0xff] %vm7543, %v7408
      %7666 = vst.msk [vmem:[%s143 + $0x3d0] sm:$0xff] %vm7543, %v7409
      %7667 = vst.msk [vmem:[%s143 + $0x3d8] sm:$0xff] %vm7543, %v7410
      %7668 = vst.msk [vmem:[%s143 + $0x3e0] sm:$0xff] %vm7543, %v7411
      %7669 = vst.msk [vmem:[%s143 + $0x3e8] sm:$0xff] %vm7543, %v7412
      %7670 = vst.msk [vmem:[%s143 + $0x3f0] sm:$0xff] %vm7543, %v7413
      %7671 = vst.msk [vmem:[%s143 + $0x3f8] sm:$0xff] %vm7543, %v7414
      %7672 = vst.msk [vmem:[%s143 + $0x400] sm:$0xff] %vm7543, %v7415
      %7673 = vst.msk [vmem:[%s143 + $0x408] sm:$0xff] %vm7543, %v7416
      %7674 = vst.msk [vmem:[%s143 + $0x410] sm:$0xff] %vm7543, %v7417
      %7675 = vst.msk [vmem:[%s143 + $0x418] sm:$0xff] %vm7543, %v7418
      %7676 = vst.msk [vmem:[%s143 + $0x420] sm:$0xff] %vm7543, %v7419
      %7677 = vst.msk [vmem:[%s143 + $0x428] sm:$0xff] %vm7543, %v7420
      %7678 = vst.msk [vmem:[%s143 + $0x430] sm:$0xff] %vm7543, %v7421
      %7679 = vst.msk [vmem:[%s143 + $0x438] sm:$0xff] %vm7543, %v7422
      %7680 = vst.msk [vmem:[%s143 + $0x440] sm:$0xff] %vm7543, %v7423
      %7681 = vst.msk [vmem:[%s143 + $0x448] sm:$0xff] %vm7543, %v7424
      %7682 = vst.msk [vmem:[%s143 + $0x450] sm:$0xff] %vm7543, %v7425
      %7683 = vst.msk [vmem:[%s143 + $0x458] sm:$0xff] %vm7543, %v7426
      %7684 = vst.msk [vmem:[%s143 + $0x460] sm:$0xff] %vm7543, %v7427
      %7685 = vst.msk [vmem:[%s143 + $0x468] sm:$0xff] %vm7543, %v7428
      %7686 = vst.msk [vmem:[%s143 + $0x470] sm:$0xff] %vm7543, %v7429
      %7687 = vst.msk [vmem:[%s143 + $0x478] sm:$0xff] %vm7543, %v7430
      %7688 = vst.msk [vmem:[%s143 + $0x480] sm:$0xff] %vm7543, %v7431
      %7689 = vst.msk [vmem:[%s143 + $0x488] sm:$0xff] %vm7543, %v7432
      %7690 = vst.msk [vmem:[%s143 + $0x490] sm:$0xff] %vm7543, %v7433
      %7691 = vst.msk [vmem:[%s143 + $0x498] sm:$0xff] %vm7543, %v7434
      %7692 = vst.msk [vmem:[%s143 + $0x4a0] sm:$0xff] %vm7543, %v7435
      %7693 = vst.msk [vmem:[%s143 + $0x4a8] sm:$0xff] %vm7543, %v7436
      %7694 = vst.msk [vmem:[%s143 + $0x4b0] sm:$0xff] %vm7543, %v7437
      %7695 = vst.msk [vmem:[%s143 + $0x4b8] sm:$0xff] %vm7543, %v7438
      %7696 = vst.msk [vmem:[%s143 + $0x4c0] sm:$0xff] %vm7543, %v7439
      %7697 = vst.msk [vmem:[%s143 + $0x4c8] sm:$0xff] %vm7543, %v7440
      %7698 = vst.msk [vmem:[%s143 + $0x4d0] sm:$0xff] %vm7543, %v7441
      %7699 = vst.msk [vmem:[%s143 + $0x4d8] sm:$0xff] %vm7543, %v7442
      %7700 = vst.msk [vmem:[%s143 + $0x4e0] sm:$0xff] %vm7543, %v7443
      %7701 = vst.msk [vmem:[%s143 + $0x4e8] sm:$0xff] %vm7543, %v7444
      %7702 = vst.msk [vmem:[%s143 + $0x4f0] sm:$0xff] %vm7543, %v7445
      %7703 = vst.msk [vmem:[%s143 + $0x4f8] sm:$0xff] %vm7543, %v7446
      %7704 = vst.msk [vmem:[%s143 + $0x500] sm:$0xff] %vm7543, %v7447
      %7705 = vst.msk [vmem:[%s143 + $0x508] sm:$0xff] %vm7543, %v7448
      %7706 = vst.msk [vmem:[%s143 + $0x510] sm:$0xff] %vm7543, %v7449
      %7707 = vst.msk [vmem:[%s143 + $0x518] sm:$0xff] %vm7543, %v7450
      %7708 = vst.msk [vmem:[%s143 + $0x520] sm:$0xff] %vm7543, %v7451
      %7709 = vst.msk [vmem:[%s143 + $0x528] sm:$0xff] %vm7543, %v7452
      %7710 = vst.msk [vmem:[%s143 + $0x530] sm:$0xff] %vm7543, %v7453
      %7711 = vst.msk [vmem:[%s143 + $0x538] sm:$0xff] %vm7543, %v7454
      %7712 = vst.msk [vmem:[%s143 + $0x540] sm:$0xff] %vm7543, %v7455
      %7713 = vst.msk [vmem:[%s143 + $0x548] sm:$0xff] %vm7543, %v7456
      %7714 = vst.msk [vmem:[%s143 + $0x550] sm:$0xff] %vm7543, %v7457
      %7715 = vst.msk [vmem:[%s143 + $0x558] sm:$0xff] %vm7543, %v7458
      %7716 = vst.msk [vmem:[%s143 + $0x560] sm:$0xff] %vm7543, %v7459
      %7717 = vst.msk [vmem:[%s143 + $0x568] sm:$0xff] %vm7543, %v7460
      %7718 = vst.msk [vmem:[%s143 + $0x570] sm:$0xff] %vm7543, %v7461
      %7719 = vst.msk [vmem:[%s143 + $0x578] sm:$0xff] %vm7543, %v7462
      %7720 = vst.msk [vmem:[%s143 + $0x580] sm:$0xff] %vm7543, %v7463
      %7721 = vst.msk [vmem:[%s143 + $0x588] sm:$0xff] %vm7543, %v7464
      %7722 = vst.msk [vmem:[%s143 + $0x590] sm:$0xff] %vm7543, %v7465
      %7723 = vst.msk [vmem:[%s143 + $0x598] sm:$0xff] %vm7543, %v7466
      %7724 = vst.msk [vmem:[%s143 + $0x5a0] sm:$0xff] %vm7543, %v7467
      %7725 = vst.msk [vmem:[%s143 + $0x5a8] sm:$0xff] %vm7543, %v7468
      %7726 = vst.msk [vmem:[%s143 + $0x5b0] sm:$0xff] %vm7543, %v7469
      %7727 = vst.msk [vmem:[%s143 + $0x5b8] sm:$0xff] %vm7543, %v7470
      %7728 = vst.msk [vmem:[%s143 + $0x5c0] sm:$0xff] %vm7543, %v7471
      %7729 = vst.msk [vmem:[%s143 + $0x5c8] sm:$0xff] %vm7543, %v7472
      %7730 = vst.msk [vmem:[%s143 + $0x5d0] sm:$0xff] %vm7543, %v7473
      %7731 = vst.msk [vmem:[%s143 + $0x5d8] sm:$0xff] %vm7543, %v7474
      %7732 = vst.msk [vmem:[%s143 + $0x5e0] sm:$0xff] %vm7543, %v7475
      %7733 = vst.msk [vmem:[%s143 + $0x5e8] sm:$0xff] %vm7543, %v7476
      %7734 = vst.msk [vmem:[%s143 + $0x5f0] sm:$0xff] %vm7543, %v7477
      %7735 = vst.msk [vmem:[%s143 + $0x5f8] sm:$0xff] %vm7543, %v7478
      %7736 = vst.msk [vmem:[%s143 + $0x600] sm:$0xff] %vm7543, %v7479
      %7737 = vst.msk [vmem:[%s143 + $0x608] sm:$0xff] %vm7543, %v7480
      %7738 = vst.msk [vmem:[%s143 + $0x610] sm:$0xff] %vm7543, %v7481
      %7739 = vst.msk [vmem:[%s143 + $0x618] sm:$0xff] %vm7543, %v7482
      %7740 = vst.msk [vmem:[%s143 + $0x620] sm:$0xff] %vm7543, %v7483
      %7741 = vst.msk [vmem:[%s143 + $0x628] sm:$0xff] %vm7543, %v7484
      %7742 = vst.msk [vmem:[%s143 + $0x630] sm:$0xff] %vm7543, %v7485
      %7743 = vst.msk [vmem:[%s143 + $0x638] sm:$0xff] %vm7543, %v7486
      %7744 = vst.msk [vmem:[%s143 + $0x640] sm:$0xff] %vm7543, %v7487
      %7745 = vst.msk [vmem:[%s143 + $0x648] sm:$0xff] %vm7543, %v7488
      %7746 = vst.msk [vmem:[%s143 + $0x650] sm:$0xff] %vm7543, %v7489
      %7747 = vst.msk [vmem:[%s143 + $0x658] sm:$0xff] %vm7543, %v7490
      %7748 = vst.msk [vmem:[%s143 + $0x660] sm:$0xff] %vm7543, %v7491
      %7749 = vst.msk [vmem:[%s143 + $0x668] sm:$0xff] %vm7543, %v7492
      %7750 = vst.msk [vmem:[%s143 + $0x670] sm:$0xff] %vm7543, %v7493
      %7751 = vst.msk [vmem:[%s143 + $0x678] sm:$0xff] %vm7543, %v7494
      %7752 = vst.msk [vmem:[%s143 + $0x680] sm:$0xff] %vm7543, %v7495
      %7753 = vst.msk [vmem:[%s143 + $0x688] sm:$0xff] %vm7543, %v7496
      %7754 = vst.msk [vmem:[%s143 + $0x690] sm:$0xff] %vm7543, %v7497
      %7755 = vst.msk [vmem:[%s143 + $0x698] sm:$0xff] %vm7543, %v7498
      %7756 = vst.msk [vmem:[%s143 + $0x6a0] sm:$0xff] %vm7543, %v7499
      %7757 = vst.msk [vmem:[%s143 + $0x6a8] sm:$0xff] %vm7543, %v7500
      %7758 = vst.msk [vmem:[%s143 + $0x6b0] sm:$0xff] %vm7543, %v7501
      %7759 = vst.msk [vmem:[%s143 + $0x6b8] sm:$0xff] %vm7543, %v7502
      %7760 = vst.msk [vmem:[%s143 + $0x6c0] sm:$0xff] %vm7543, %v7503
      %7761 = vst.msk [vmem:[%s143 + $0x6c8] sm:$0xff] %vm7543, %v7504
      %7762 = vst.msk [vmem:[%s143 + $0x6d0] sm:$0xff] %vm7543, %v7505
      %7763 = vst.msk [vmem:[%s143 + $0x6d8] sm:$0xff] %vm7543, %v7506
      %7764 = vst.msk [vmem:[%s143 + $0x6e0] sm:$0xff] %vm7543, %v7507
      %7765 = vst.msk [vmem:[%s143 + $0x6e8] sm:$0xff] %vm7543, %v7508
      %7766 = vst.msk [vmem:[%s143 + $0x6f0] sm:$0xff] %vm7543, %v7509
      %7767 = vst.msk [vmem:[%s143 + $0x6f8] sm:$0xff] %vm7543, %v7510
      %7768 = vst.msk [vmem:[%s143 + $0x700] sm:$0xff] %vm7543, %v7511
      %7769 = vst.msk [vmem:[%s143 + $0x708] sm:$0xff] %vm7543, %v7512
      %7770 = vst.msk [vmem:[%s143 + $0x710] sm:$0xff] %vm7543, %v7513
      %7771 = vst.msk [vmem:[%s143 + $0x718] sm:$0xff] %vm7543, %v7514
      %7772 = vst.msk [vmem:[%s143 + $0x720] sm:$0xff] %vm7543, %v7515
      %7773 = vst.msk [vmem:[%s143 + $0x728] sm:$0xff] %vm7543, %v7516
      %7774 = vst.msk [vmem:[%s143 + $0x730] sm:$0xff] %vm7543, %v7517
      %7775 = vst.msk [vmem:[%s143 + $0x738] sm:$0xff] %vm7543, %v7518
      %7776 = vst.msk [vmem:[%s143 + $0x740] sm:$0xff] %vm7543, %v7519
      %7777 = vst.msk [vmem:[%s143 + $0x748] sm:$0xff] %vm7543, %v7520
      %7778 = vst.msk [vmem:[%s143 + $0x750] sm:$0xff] %vm7543, %v7521
      %7779 = vst.msk [vmem:[%s143 + $0x758] sm:$0xff] %vm7543, %v7522
      %7780 = vst.msk [vmem:[%s143 + $0x760] sm:$0xff] %vm7543, %v7523
      %7781 = vst.msk [vmem:[%s143 + $0x768] sm:$0xff] %vm7543, %v7524
      %7782 = vst.msk [vmem:[%s143 + $0x770] sm:$0xff] %vm7543, %v7525
      %7783 = vst.msk [vmem:[%s143 + $0x778] sm:$0xff] %vm7543, %v7526
      %7784 = vst.msk [vmem:[%s143 + $0x780] sm:$0xff] %vm7543, %v7527
      %7785 = vst.msk [vmem:[%s143 + $0x788] sm:$0xff] %vm7543, %v7528
      %7786 = vst.msk [vmem:[%s143 + $0x790] sm:$0xff] %vm7543, %v7529
      %7787 = vst.msk [vmem:[%s143 + $0x798] sm:$0xff] %vm7543, %v7530
      %7788 = vst.msk [vmem:[%s143 + $0x7a0] sm:$0xff] %vm7543, %v7531
      %7789 = vst.msk [vmem:[%s143 + $0x7a8] sm:$0xff] %vm7543, %v7532
      %7790 = vst.msk [vmem:[%s143 + $0x7b0] sm:$0xff] %vm7543, %v7533
      %7791 = vst.msk [vmem:[%s143 + $0x7b8] sm:$0xff] %vm7543, %v7534
      %7792 = vst.msk [vmem:[%s143 + $0x7c0] sm:$0xff] %vm7543, %v7535
      %7793 = vst.msk [vmem:[%s143 + $0x7c8] sm:$0xff] %vm7543, %v7536
      %7794 = vst.msk [vmem:[%s143 + $0x7d0] sm:$0xff] %vm7543, %v7537
      %7795 = vst.msk [vmem:[%s143 + $0x7d8] sm:$0xff] %vm7543, %v7538
      %7796 = vst.msk [vmem:[%s143 + $0x7e0] sm:$0xff] %vm7543, %v7539
      %7797 = vst.msk [vmem:[%s143 + $0x7e8] sm:$0xff] %vm7543, %v7540
      %7798 = vst.msk [vmem:[%s143 + $0x7f0] sm:$0xff] %vm7543, %v7541
      %7799 = vst.msk [vmem:[%s143 + $0x7f8] sm:$0xff] %vm7543, %v7542
      %p7800 = scmp.lt.s32.totalorder %s13, 1
      %s7801 = scalar_select %p7800, %s13, 1
      %s7802 = smul.addr %s7801, 256
      %s7803 = smul.addr %s7802, 8
      %s7804 = scalar_lea.vmem %s2, %s7803
      // Predicated region
      $region29: #{generator_forward.9} parent=27 // pred_check
        %p7805 = pneg %p78
      $region30: #{generator_forward.9} parent=27 // pred_check_branch
        %7807 = sbr.rel (%p7805) target = $region32
      $region31: #{generator_forward.9} parent=27 // pred_region
        _
      $region32: #{generator_forward.9} parent=27 // pred_fallthru
        _
    $region28: #{generator_forward.9} parent=5 // pred_fallthru
      _
    %p7808 = scmp.le.s32.totalorder 2, %s8
    // Predicated region
    $region33: #{generator_forward.9} parent=5 // pred_check
      %p7809 = pneg %p7808
    $region34: #{generator_forward.9} parent=5 // pred_check_branch
      %7811 = sbr.rel (%p7809) target = $region36
    $region35: #{generator_forward.9} parent=5 // pred_region
      %s7812 = ssub.s32 %s8, 2
      // Predicated region
      $region37: #{generator_forward.9} parent=35 // pred_check
        %p7813 = pneg %p84
      $region38: #{generator_forward.9} parent=35 // pred_check_branch
        %7815 = sbr.rel (%p7813) target = $region40
      $region39: #{generator_forward.9} parent=35 // pred_region
        %p7816 = scmp.lt.s32.totalorder %s14, 1
        %s7817 = scalar_select %p7816, %s14, 1
        %s7818 = smul.addr %s7817, 256
        %s7819 = smul.addr %s7818, 8
        %s7820 = scalar_lea.vmem %s2, %s7819
      $region40: #{generator_forward.9} parent=35 // pred_fallthru
        _
    $region36: #{generator_forward.9} parent=5 // pred_fallthru
      _
  $region6: #{generator_forward.9} parent=0 // loop_footer
    %s12 = sadd.s32 1, %s8
  $region7: #{generator_forward.9} parent=0 // loop_footer_branch
    %7 = sbr.rel target = $region3
  $region8: #{generator_forward.9} parent=0 // loop_exit
    _

</llo_original>
